<compile_context>
chip_gen: v7x
topology: tpu7x:2x2x1
jax: 0.10.0
libtpu: 0.0.40
codegen_flags: <defaults>
</compile_context>

<pallas_src>
import functools

import numpy as np
import jax
import jax.numpy as jnp
from jax.experimental import pallas as pl
from jax.experimental.pallas import tpu as pltpu

LANE = 128


def _gelu(x):
    # TODO(synk): torch nn.GELU defaults to the exact erf form; the tanh
    # approximation used here is EUP-friendly and differs by ~1e-3.
    c0 = 0.7978845608028654  # sqrt(2/pi)
    return 0.5 * x * (1.0 + jnp.tanh(c0 * (x + 0.044715 * x * x * x)))


# ----------------------------------------------------------------------------
# Single fused Pallas kernel: patch embed -> depth ConvMixer blocks -> pool ->
# MLP head.  One grid step processes `nblk` samples.
# ----------------------------------------------------------------------------
def _convmixer_fwd_kernel(x_ref, wpe_ref, ape_ref, wdw_ref, adw_ref, wpw_ref,
                          apw_ref, wmlp_ref, bmlp_ref, wout_ref, bout_ref,
                          o_ref, *, nblk, gh, gw, ksize, depth, depth_mlp):
    # x_ref   : (nblk, gh*gw, Dpad)      bf16  patch im2col (lane-dense, zero padded)
    # wpe_ref : (Dpad, 128)              bf16  patch-embed weights
    # ape_ref : (3, 128)                 f32   [conv bias, BN scale, BN shift]
    # wdw_ref : (depth, K*K, 128)        f32   depthwise weights, rows = (kh, kw)
    # adw_ref : (depth, 3, 128)          f32
    # wpw_ref : (depth, 128, 128)        bf16  pointwise (1x1) weights (in, out)
    # apw_ref : (depth, 3, 128)          f32
    # wmlp_ref: (max(depth_mlp,1),128,128) bf16 ; bmlp_ref: (.,1,128) f32
    # wout_ref: (128, 128) bf16 ; bout_ref: (1, 128) f32
    # o_ref   : (nblk, 1, 128)           f32   logits (first num_classes lanes valid)
    C = wpe_ref.shape[-1]
    hw = gh * gw
    pad = (ksize - 1) // 2
    wpad = ((pad + 7) // 8) * 8  # sublane-aligned zero-slab width for W padding

    # ---- patch embedding: one MXU matmul over all nblk*hw patches ----
    x = x_ref[...].reshape(nblk * hw, x_ref.shape[-1])           # bf16
    z = jnp.dot(x, wpe_ref[...], preferred_element_type=jnp.float32)
    z = _gelu(z + ape_ref[0])
    h = ape_ref[1] * z + ape_ref[2]                               # (nblk*hw, C) f32

    # zero slabs for the "same" padding, hoisted out of the depth loop
    zrow = jnp.zeros((nblk, pad, gw, C), jnp.float32)             # pad H (outer dim)
    zcol = jnp.zeros((nblk, gh + 2 * pad, wpad, C), jnp.float32)  # pad W (sublanes)

    for d in range(depth):
        # ---- depthwise KxK conv ("same"), GELU, BN, residual ----
        xm = h.reshape(nblk, gh, gw, C)
        xm = jnp.concatenate([zrow, xm, zrow], axis=1)
        xm = jnp.concatenate([zcol, xm, zcol], axis=2)            # 8-aligned pieces
        acc = jnp.zeros((nblk, gh, gw, C), jnp.float32)
        for j in range(ksize):                                    # one sublane slice / j
            xj = xm[:, :, wpad - pad + j: wpad - pad + j + gw, :]
            for i in range(ksize):                                # outer-dim slice: free
                acc = acc + xj[:, i:i + gh, :, :] * wdw_ref[d, i * ksize + j, :]
        z = _gelu(acc.reshape(nblk * hw, C) + adw_ref[d, 0])
        h = h + (adw_ref[d, 1] * z + adw_ref[d, 2])               # residual add

        # ---- pointwise 1x1 conv (MXU, M = nblk*hw), GELU, BN ----
        z = jnp.dot(h.astype(jnp.bfloat16), wpw_ref[d],
                    preferred_element_type=jnp.float32)
        z = _gelu(z + apw_ref[d, 0])
        h = apw_ref[d, 1] * z + apw_ref[d, 2]

    # ---- global average pool + MLP head ----
    f = jnp.mean(h.reshape(nblk, hw, C), axis=1)                  # (nblk, C)
    for m in range(depth_mlp):
        f = jnp.dot(f.astype(jnp.bfloat16), wmlp_ref[m],
                    preferred_element_type=jnp.float32) + bmlp_ref[m, 0]
        f = _gelu(f)
    out = jnp.dot(f.astype(jnp.bfloat16), wout_ref[...],
                  preferred_element_type=jnp.float32) + bout_ref[0]
    o_ref[...] = out.reshape(nblk, 1, C)


# ----------------------------------------------------------------------------
# Wrapper: patchify in XLA (cheap, non-overlapping -> no data blow-up), then
# one pallas_call over batch blocks.
# ----------------------------------------------------------------------------
def _pick_samples_per_step(batch, cap=8):
    # batch as many samples per grid step as possible while keeping the grid
    # >= 2 steps (v7x has 2 TensorCores sharing "parallel" grid axes)
    best = 1
    for n in range(1, cap + 1):
        if batch % n == 0 and batch // n >= 2:
            best = n
    return best


def convmixer_patch_forward(packed, x, cfg):
    B = x.shape[0]
    P = cfg.patch_size
    gh = gw = cfg.input_size // P
    hw = gh * gw
    din = P * P * cfg.in_chans
    dpad = ((din + LANE - 1) // LANE) * LANE

    # non-overlapping patch im2col, zero padded to a lane-dense depth, bf16
    xn = jnp.transpose(x, (0, 2, 3, 1))                            # NHWC
    xn = xn.reshape(B, gh, P, gw, P, cfg.in_chans)
    xn = xn.transpose(0, 1, 3, 2, 4, 5).reshape(B, hw, din)        # (ph, pw, c)
    xn = jnp.pad(xn, ((0, 0), (0, 0), (0, dpad - din))).astype(jnp.bfloat16)

    nblk = _pick_samples_per_step(B)
    kernel = functools.partial(
        _convmixer_fwd_kernel, nblk=nblk, gh=gh, gw=gw,
        ksize=cfg.kernel_size, depth=cfg.depth, depth_mlp=cfg.depth_mlp)

    out = pl.pallas_call(
        kernel,
        out_shape=jax.ShapeDtypeStruct((B, 1, LANE), jnp.float32),
        grid=(B // nblk,),
        in_specs=[
            pl.BlockSpec((nblk, hw, dpad), lambda n: (n, 0, 0)),
            pl.BlockSpec(packed["w_pe"].shape, lambda n: (0, 0)),
            pl.BlockSpec(packed["aff_pe"].shape, lambda n: (0, 0)),
            pl.BlockSpec(packed["w_dw"].shape, lambda n: (0, 0, 0)),
            pl.BlockSpec(packed["aff_dw"].shape, lambda n: (0, 0, 0)),
            pl.BlockSpec(packed["w_pw"].shape, lambda n: (0, 0, 0)),
            pl.BlockSpec(packed["aff_pw"].shape, lambda n: (0, 0, 0)),
            pl.BlockSpec(packed["w_mlp"].shape, lambda n: (0, 0, 0)),
            pl.BlockSpec(packed["b_mlp"].shape, lambda n: (0, 0, 0)),
            pl.BlockSpec(packed["w_out"].shape, lambda n: (0, 0)),
            pl.BlockSpec(packed["b_out"].shape, lambda n: (0, 0)),
        ],
        out_specs=pl.BlockSpec((nblk, 1, LANE), lambda n: (n, 0, 0)),
        compiler_params=pltpu.CompilerParams(
            dimension_semantics=("parallel",),
            vmem_limit_bytes=32 * 1024 * 1024),
    )(xn, packed["w_pe"], packed["aff_pe"], packed["w_dw"], packed["aff_dw"],
      packed["w_pw"], packed["aff_pw"], packed["w_mlp"], packed["b_mlp"],
      packed["w_out"], packed["b_out"])
    return out[:, 0, :cfg.num_classes]


# ----------------------------------------------------------------------------
# Parameters: torch-default-like uniform init, BN in inference mode
# (running mean 0, var 1), packed into lane-dense / MXU-friendly layouts.
# ----------------------------------------------------------------------------
def init_params(key, cfg):
    dim, K, P = cfg.dim, cfg.kernel_size, cfg.patch_size
    n_keys = 4 + 8 * cfg.depth + 2 * cfg.depth_mlp + 2
    it = iter(jax.random.split(key, max(n_keys, 2)))

    def unif(shape, bound):
        return jax.random.uniform(next(it), shape, jnp.float32, -bound, bound)

    def conv_init(shape, fan_in):
        return unif(shape, 1.0 / float(np.sqrt(fan_in)))

    p = {"pe_w": conv_init((P, P, cfg.in_chans, dim), cfg.in_chans * P * P),
         "pe_b": conv_init((dim,), cfg.in_chans * P * P),
         "pe_g": 1.0 + 0.1 * unif((dim,), 1.0),
         "pe_beta": 0.1 * unif((dim,), 1.0),
         "blocks": [], "mlp": []}
    for _ in range(cfg.depth):
        p["blocks"].append({
            "dw_w": conv_init((K, K, dim), K * K),
            "dw_b": conv_init((dim,), K * K),
            "dw_g": 1.0 + 0.1 * unif((dim,), 1.0),
            "dw_beta": 0.1 * unif((dim,), 1.0),
            "pw_w": conv_init((dim, dim), dim),
            "pw_b": conv_init((dim,), dim),
            "pw_g": 1.0 + 0.1 * unif((dim,), 1.0),
            "pw_beta": 0.1 * unif((dim,), 1.0),
        })
    for _ in range(cfg.depth_mlp):
        p["mlp"].append({"w": conv_init((dim, dim), dim),
                         "b": conv_init((dim,), dim)})
    p["out_w"] = conv_init((dim, cfg.num_classes), dim)
    p["out_b"] = conv_init((cfg.num_classes,), dim)
    return p


def pack_params(p, cfg):
    dim, K, P = cfg.dim, cfg.kernel_size, cfg.patch_size
    eps = 1e-5
    din = P * P * cfg.in_chans
    dpad = ((din + LANE - 1) // LANE) * LANE

    def pad_to(a, shape):
        return jnp.pad(a, [(0, s - d) for d, s in zip(a.shape, shape)])

    def bn_affine(bias, gamma, beta):
        # inference BN with running mean 0, var 1: y = scale*x + shift
        scale = gamma / jnp.sqrt(1.0 + eps)
        # padded channels get bias/scale/shift = 0 -> they stay exactly zero
        return jnp.stack([pad_to(bias, (LANE,)), pad_to(scale, (LANE,)),
                          pad_to(beta, (LANE,))])

    packed = {
        "w_pe": pad_to(p["pe_w"].reshape(din, dim), (dpad, LANE)).astype(jnp.bfloat16),
        "aff_pe": bn_affine(p["pe_b"], p["pe_g"], p["pe_beta"]),
    }
    wdw, adw, wpw, apw = [], [], [], []
    for blk in p["blocks"]:
        wdw.append(pad_to(blk["dw_w"].reshape(K * K, dim), (K * K, LANE)))
        adw.append(bn_affine(blk["dw_b"], blk["dw_g"], blk["dw_beta"]))
        wpw.append(pad_to(blk["pw_w"], (LANE, LANE)))
        apw.append(bn_affine(blk["pw_b"], blk["pw_g"], blk["pw_beta"]))
    packed["w_dw"] = jnp.stack(wdw)                               # f32 (VPU taps)
    packed["aff_dw"] = jnp.stack(adw)
    packed["w_pw"] = jnp.stack(wpw).astype(jnp.bfloat16)
    packed["aff_pw"] = jnp.stack(apw)
    if cfg.depth_mlp > 0:
        packed["w_mlp"] = jnp.stack([pad_to(m["w"], (LANE, LANE))
                                     for m in p["mlp"]]).astype(jnp.bfloat16)
        packed["b_mlp"] = jnp.stack([pad_to(m["b"], (LANE,))[None, :]
                                     for m in p["mlp"]])
    else:  # keep non-empty shapes; the kernel's static loop just skips them
        packed["w_mlp"] = jnp.zeros((1, LANE, LANE), jnp.bfloat16)
        packed["b_mlp"] = jnp.zeros((1, 1, LANE), jnp.float32)
    packed["w_out"] = pad_to(p["out_w"], (LANE, LANE)).astype(jnp.bfloat16)
    packed["b_out"] = pad_to(p["out_b"], (LANE,))[None, :]
    return packed


if __name__ == "__main__":
    class Cfg:
        # TODO(synk): 'bagnet_patch' (BagNetPatch) branch and mlp_only=True are
        # not implemented here — their reference code is not in the spec; this
        # is the 'convmixer_patch' path with a depth_mlp x [Linear,GELU] head.
        architecture = "convmixer_patch"
        in_chans = 3
        input_size = 32
        patch_size = 4
        dim = 128
        depth = 2
        depth_mlp = 1
        kernel_size = 9        # ConvMixer default depthwise kernel
        num_classes = 10
        mlp_only = False

    cfg = Cfg()
    key = jax.random.PRNGKey(0)
    pkey, xkey = jax.random.split(key)
    params = init_params(pkey, cfg)
    packed = pack_params(params, cfg)

    B = 2
    x = jax.random.normal(
        xkey, (B, cfg.in_chans, cfg.input_size, cfg.input_size), jnp.float32)

    fwd = jax.jit(lambda pk, xx: convmixer_patch_forward(pk, xx, cfg))
    out = fwd(packed, x)
    jax.block_until_ready(out)
    assert out.shape == (B, cfg.num_classes), out.shape
    assert bool(jnp.all(jnp.isfinite(out)))
    print("KERNEL_OK")
</pallas_src>

<mosaic_0001>
module attributes {stable_mosaic.version = 11 : i64} {
  func.func @_convmixer_fwd_kernel(%arg0: i32, %arg1: memref<1x64x128xbf16, #tpu.memory_space<vmem>>, %arg2: memref<128x128xbf16, #tpu.memory_space<vmem>>, %arg3: memref<3x128xf32, #tpu.memory_space<vmem>>, %arg4: memref<2x81x128xf32, #tpu.memory_space<vmem>>, %arg5: memref<2x3x128xf32, #tpu.memory_space<vmem>>, %arg6: memref<2x128x128xbf16, #tpu.memory_space<vmem>>, %arg7: memref<2x3x128xf32, #tpu.memory_space<vmem>>, %arg8: memref<1x128x128xbf16, #tpu.memory_space<vmem>>, %arg9: memref<1x1x128xf32, #tpu.memory_space<vmem>>, %arg10: memref<128x128xbf16, #tpu.memory_space<vmem>>, %arg11: memref<1x128xf32, #tpu.memory_space<vmem>>, %arg12: memref<1x1x128xf32, #tpu.memory_space<vmem>>) attributes {dimension_semantics = [#tpu.dimension_semantics<parallel>], iteration_bounds = array<i64: 2>, scalar_prefetch = 0 : i64, scratch_operands = 0 : i64, tpu.core_type = #tpu.core_type<tc>, window_params = [{transform_indices = @transform_0, window_bounds = array<i64: 1, 64, 128>}, {pipeline_mode = #tpu.pipeline_mode<synchronous>, transform_indices = @transform_1, window_bounds = array<i64: 128, 128>}, {pipeline_mode = #tpu.pipeline_mode<synchronous>, transform_indices = @transform_2, window_bounds = array<i64: 3, 128>}, {pipeline_mode = #tpu.pipeline_mode<synchronous>, transform_indices = @transform_3, window_bounds = array<i64: 2, 81, 128>}, {pipeline_mode = #tpu.pipeline_mode<synchronous>, transform_indices = @transform_4, window_bounds = array<i64: 2, 3, 128>}, {pipeline_mode = #tpu.pipeline_mode<synchronous>, transform_indices = @transform_5, window_bounds = array<i64: 2, 128, 128>}, {pipeline_mode = #tpu.pipeline_mode<synchronous>, transform_indices = @transform_6, window_bounds = array<i64: 2, 3, 128>}, {pipeline_mode = #tpu.pipeline_mode<synchronous>, transform_indices = @transform_7, window_bounds = array<i64: 1, 128, 128>}, {pipeline_mode = #tpu.pipeline_mode<synchronous>, transform_indices = @transform_8, window_bounds = array<i64: 1, 1, 128>}, {pipeline_mode = #tpu.pipeline_mode<synchronous>, transform_indices = @transform_9, window_bounds = array<i64: 128, 128>}, {pipeline_mode = #tpu.pipeline_mode<synchronous>, transform_indices = @transform_10, window_bounds = array<i64: 1, 128>}, {transform_indices = @transform_11, window_bounds = array<i64: 1, 1, 128>}]} {
    %c0 = arith.constant 0 : index
    %c0_0 = arith.constant 0 : index
    %c0_1 = arith.constant 0 : index
    %0 = vector.load %arg1[%c0, %c0_0, %c0_1] : memref<1x64x128xbf16, #tpu.memory_space<vmem>>, vector<1x64x128xbf16>
    %1 = vector.shape_cast %0 : vector<1x64x128xbf16> to vector<64x128xbf16>
    %c0_2 = arith.constant 0 : index
    %c0_3 = arith.constant 0 : index
    %2 = vector.load %arg2[%c0_2, %c0_3] : memref<128x128xbf16, #tpu.memory_space<vmem>>, vector<128x128xbf16>
    %cst = arith.constant dense<0.000000e+00> : vector<64x128xf32>
    %3 = tpu.matmul %1, %2, %cst {dimension_numbers = #tpu.dot_dimension_numbers<[1], [0], [0], [1], [0, 0, 1, 1], [], []>} : vector<64x128xbf16>, vector<128x128xbf16>, vector<64x128xf32> -> vector<64x128xf32>
    %c0_4 = arith.constant 0 : index
    %c0_5 = arith.constant 0 : index
    %4 = vector.load %arg3[%c0_4, %c0_5] : memref<3x128xf32, #tpu.memory_space<vmem>>, vector<1x128xf32>
    %5 = vector.shape_cast %4 : vector<1x128xf32> to vector<128xf32>
    %6 = vector.shape_cast %5 : vector<128xf32> to vector<1x128xf32>
    %7 = vector.broadcast %6 : vector<1x128xf32> to vector<64x128xf32>
    %8 = arith.addf %3, %7 : vector<64x128xf32>
    %cst_6 = arith.constant 5.000000e-01 : f32
    %9 = vector.broadcast %cst_6 : f32 to vector<64x128xf32>
    %10 = arith.mulf %9, %8 : vector<64x128xf32>
    %cst_7 = arith.constant 4.471500e-02 : f32
    %11 = vector.broadcast %cst_7 : f32 to vector<64x128xf32>
    %12 = arith.mulf %11, %8 : vector<64x128xf32>
    %13 = arith.mulf %12, %8 : vector<64x128xf32>
    %14 = arith.mulf %13, %8 : vector<64x128xf32>
    %15 = arith.addf %8, %14 : vector<64x128xf32>
    %cst_8 = arith.constant 0.797884583 : f32
    %16 = vector.broadcast %cst_8 : f32 to vector<64x128xf32>
    %17 = arith.mulf %16, %15 : vector<64x128xf32>
    %18 = math.tanh %17 : vector<64x128xf32>
    %cst_9 = arith.constant 1.000000e+00 : f32
    %19 = vector.broadcast %cst_9 : f32 to vector<64x128xf32>
    %20 = arith.addf %19, %18 : vector<64x128xf32>
    %21 = arith.mulf %10, %20 : vector<64x128xf32>
    %c1 = arith.constant 1 : index
    %c0_10 = arith.constant 0 : index
    %22 = vector.load %arg3[%c1, %c0_10] : memref<3x128xf32, #tpu.memory_space<vmem>>, vector<1x128xf32>
    %23 = vector.shape_cast %22 : vector<1x128xf32> to vector<128xf32>
    %24 = vector.shape_cast %23 : vector<128xf32> to vector<1x128xf32>
    %25 = vector.broadcast %24 : vector<1x128xf32> to vector<64x128xf32>
    %26 = arith.mulf %25, %21 : vector<64x128xf32>
    %c2 = arith.constant 2 : index
    %c0_11 = arith.constant 0 : index
    %27 = vector.load %arg3[%c2, %c0_11] : memref<3x128xf32, #tpu.memory_space<vmem>>, vector<1x128xf32>
    %28 = vector.shape_cast %27 : vector<1x128xf32> to vector<128xf32>
    %29 = vector.shape_cast %28 : vector<128xf32> to vector<1x128xf32>
    %30 = vector.broadcast %29 : vector<1x128xf32> to vector<64x128xf32>
    %31 = arith.addf %26, %30 : vector<64x128xf32>
    %cst_12 = arith.constant 0.000000e+00 : f32
    %32 = vector.broadcast %cst_12 : f32 to vector<1x4x8x128xf32>
    %cst_13 = arith.constant 0.000000e+00 : f32
    %33 = vector.broadcast %cst_13 : f32 to vector<1x16x8x128xf32>
    %34 = vector.shape_cast %31 : vector<64x128xf32> to vector<1x8x8x128xf32>
    %35 = tpu.concatenate %32, %34, %32 in 1 : vector<1x4x8x128xf32>, vector<1x8x8x128xf32>, vector<1x4x8x128xf32> -> vector<1x16x8x128xf32>
    %36 = tpu.concatenate %33, %35, %33 in 2 : vector<1x16x8x128xf32>, vector<1x16x8x128xf32>, vector<1x16x8x128xf32> -> vector<1x16x24x128xf32>
    %cst_14 = arith.constant 0.000000e+00 : f32
    %37 = vector.broadcast %cst_14 : f32 to vector<1x8x8x128xf32>
    %38 = vector.extract_strided_slice %36 {offsets = [0, 0, 4, 0], sizes = [1, 16, 8, 128], strides = [1, 1, 1, 1]} : vector<1x16x24x128xf32> to vector<1x16x8x128xf32>
    %39 = vector.extract_strided_slice %38 {offsets = [0, 0, 0, 0], sizes = [1, 8, 8, 128], strides = [1, 1, 1, 1]} : vector<1x16x8x128xf32> to vector<1x8x8x128xf32>
    %c0_15 = arith.constant 0 : index
    %c0_16 = arith.constant 0 : index
    %c0_17 = arith.constant 0 : index
    %40 = vector.load %arg4[%c0_15, %c0_16, %c0_17] : memref<2x81x128xf32, #tpu.memory_space<vmem>>, vector<1x1x128xf32>
    %41 = vector.shape_cast %40 : vector<1x1x128xf32> to vector<128xf32>
    %42 = vector.shape_cast %41 : vector<128xf32> to vector<1x1x1x128xf32>
    %43 = vector.broadcast %42 : vector<1x1x1x128xf32> to vector<1x8x8x128xf32>
    %44 = arith.mulf %39, %43 : vector<1x8x8x128xf32>
    %45 = arith.addf %37, %44 : vector<1x8x8x128xf32>
    %46 = vector.extract_strided_slice %38 {offsets = [0, 1, 0, 0], sizes = [1, 8, 8, 128], strides = [1, 1, 1, 1]} : vector<1x16x8x128xf32> to vector<1x8x8x128xf32>
    %c0_18 = arith.constant 0 : index
    %c9 = arith.constant 9 : index
    %c0_19 = arith.constant 0 : index
    %47 = vector.load %arg4[%c0_18, %c9, %c0_19] : memref<2x81x128xf32, #tpu.memory_space<vmem>>, vector<1x1x128xf32>
    %48 = vector.shape_cast %47 : vector<1x1x128xf32> to vector<128xf32>
    %49 = vector.shape_cast %48 : vector<128xf32> to vector<1x1x1x128xf32>
    %50 = vector.broadcast %49 : vector<1x1x1x128xf32> to vector<1x8x8x128xf32>
    %51 = arith.mulf %46, %50 : vector<1x8x8x128xf32>
    %52 = arith.addf %45, %51 : vector<1x8x8x128xf32>
    %53 = vector.extract_strided_slice %38 {offsets = [0, 2, 0, 0], sizes = [1, 8, 8, 128], strides = [1, 1, 1, 1]} : vector<1x16x8x128xf32> to vector<1x8x8x128xf32>
    %c0_20 = arith.constant 0 : index
    %c18 = arith.constant 18 : index
    %c0_21 = arith.constant 0 : index
    %54 = vector.load %arg4[%c0_20, %c18, %c0_21] : memref<2x81x128xf32, #tpu.memory_space<vmem>>, vector<1x1x128xf32>
    %55 = vector.shape_cast %54 : vector<1x1x128xf32> to vector<128xf32>
    %56 = vector.shape_cast %55 : vector<128xf32> to vector<1x1x1x128xf32>
    %57 = vector.broadcast %56 : vector<1x1x1x128xf32> to vector<1x8x8x128xf32>
    %58 = arith.mulf %53, %57 : vector<1x8x8x128xf32>
    %59 = arith.addf %52, %58 : vector<1x8x8x128xf32>
    %60 = vector.extract_strided_slice %38 {offsets = [0, 3, 0, 0], sizes = [1, 8, 8, 128], strides = [1, 1, 1, 1]} : vector<1x16x8x128xf32> to vector<1x8x8x128xf32>
    %c0_22 = arith.constant 0 : index
    %c27 = arith.constant 27 : index
    %c0_23 = arith.constant 0 : index
    %61 = vector.load %arg4[%c0_22, %c27, %c0_23] : memref<2x81x128xf32, #tpu.memory_space<vmem>>, vector<1x1x128xf32>
    %62 = vector.shape_cast %61 : vector<1x1x128xf32> to vector<128xf32>
    %63 = vector.shape_cast %62 : vector<128xf32> to vector<1x1x1x128xf32>
    %64 = vector.broadcast %63 : vector<1x1x1x128xf32> to vector<1x8x8x128xf32>
    %65 = arith.mulf %60, %64 : vector<1x8x8x128xf32>
    %66 = arith.addf %59, %65 : vector<1x8x8x128xf32>
    %67 = vector.extract_strided_slice %38 {offsets = [0, 4, 0, 0], sizes = [1, 8, 8, 128], strides = [1, 1, 1, 1]} : vector<1x16x8x128xf32> to vector<1x8x8x128xf32>
    %c0_24 = arith.constant 0 : index
    %c36 = arith.constant 36 : index
    %c0_25 = arith.constant 0 : index
    %68 = vector.load %arg4[%c0_24, %c36, %c0_25] : memref<2x81x128xf32, #tpu.memory_space<vmem>>, vector<1x1x128xf32>
    %69 = vector.shape_cast %68 : vector<1x1x128xf32> to vector<128xf32>
    %70 = vector.shape_cast %69 : vector<128xf32> to vector<1x1x1x128xf32>
    %71 = vector.broadcast %70 : vector<1x1x1x128xf32> to vector<1x8x8x128xf32>
    %72 = arith.mulf %67, %71 : vector<1x8x8x128xf32>
    %73 = arith.addf %66, %72 : vector<1x8x8x128xf32>
    %74 = vector.extract_strided_slice %38 {offsets = [0, 5, 0, 0], sizes = [1, 8, 8, 128], strides = [1, 1, 1, 1]} : vector<1x16x8x128xf32> to vector<1x8x8x128xf32>
    %c0_26 = arith.constant 0 : index
    %c45 = arith.constant 45 : index
    %c0_27 = arith.constant 0 : index
    %75 = vector.load %arg4[%c0_26, %c45, %c0_27] : memref<2x81x128xf32, #tpu.memory_space<vmem>>, vector<1x1x128xf32>
    %76 = vector.shape_cast %75 : vector<1x1x128xf32> to vector<128xf32>
    %77 = vector.shape_cast %76 : vector<128xf32> to vector<1x1x1x128xf32>
    %78 = vector.broadcast %77 : vector<1x1x1x128xf32> to vector<1x8x8x128xf32>
    %79 = arith.mulf %74, %78 : vector<1x8x8x128xf32>
    %80 = arith.addf %73, %79 : vector<1x8x8x128xf32>
    %81 = vector.extract_strided_slice %38 {offsets = [0, 6, 0, 0], sizes = [1, 8, 8, 128], strides = [1, 1, 1, 1]} : vector<1x16x8x128xf32> to vector<1x8x8x128xf32>
    %c0_28 = arith.constant 0 : index
    %c54 = arith.constant 54 : index
    %c0_29 = arith.constant 0 : index
    %82 = vector.load %arg4[%c0_28, %c54, %c0_29] : memref<2x81x128xf32, #tpu.memory_space<vmem>>, vector<1x1x128xf32>
    %83 = vector.shape_cast %82 : vector<1x1x128xf32> to vector<128xf32>
    %84 = vector.shape_cast %83 : vector<128xf32> to vector<1x1x1x128xf32>
    %85 = vector.broadcast %84 : vector<1x1x1x128xf32> to vector<1x8x8x128xf32>
    %86 = arith.mulf %81, %85 : vector<1x8x8x128xf32>
    %87 = arith.addf %80, %86 : vector<1x8x8x128xf32>
    %88 = vector.extract_strided_slice %38 {offsets = [0, 7, 0, 0], sizes = [1, 8, 8, 128], strides = [1, 1, 1, 1]} : vector<1x16x8x128xf32> to vector<1x8x8x128xf32>
    %c0_30 = arith.constant 0 : index
    %c63 = arith.constant 63 : index
    %c0_31 = arith.constant 0 : index
    %89 = vector.load %arg4[%c0_30, %c63, %c0_31] : memref<2x81x128xf32, #tpu.memory_space<vmem>>, vector<1x1x128xf32>
    %90 = vector.shape_cast %89 : vector<1x1x128xf32> to vector<128xf32>
    %91 = vector.shape_cast %90 : vector<128xf32> to vector<1x1x1x128xf32>
    %92 = vector.broadcast %91 : vector<1x1x1x128xf32> to vector<1x8x8x128xf32>
    %93 = arith.mulf %88, %92 : vector<1x8x8x128xf32>
    %94 = arith.addf %87, %93 : vector<1x8x8x128xf32>
    %95 = vector.extract_strided_slice %38 {offsets = [0, 8, 0, 0], sizes = [1, 8, 8, 128], strides = [1, 1, 1, 1]} : vector<1x16x8x128xf32> to vector<1x8x8x128xf32>
    %c0_32 = arith.constant 0 : index
    %c72 = arith.constant 72 : index
    %c0_33 = arith.constant 0 : index
    %96 = vector.load %arg4[%c0_32, %c72, %c0_33] : memref<2x81x128xf32, #tpu.memory_space<vmem>>, vector<1x1x128xf32>
    %97 = vector.shape_cast %96 : vector<1x1x128xf32> to vector<128xf32>
    %98 = vector.shape_cast %97 : vector<128xf32> to vector<1x1x1x128xf32>
    %99 = vector.broadcast %98 : vector<1x1x1x128xf32> to vector<1x8x8x128xf32>
    %100 = arith.mulf %95, %99 : vector<1x8x8x128xf32>
    %101 = arith.addf %94, %100 : vector<1x8x8x128xf32>
    %102 = vector.extract_strided_slice %36 {offsets = [0, 0, 5, 0], sizes = [1, 16, 8, 128], strides = [1, 1, 1, 1]} : vector<1x16x24x128xf32> to vector<1x16x8x128xf32>
    %103 = vector.extract_strided_slice %102 {offsets = [0, 0, 0, 0], sizes = [1, 8, 8, 128], strides = [1, 1, 1, 1]} : vector<1x16x8x128xf32> to vector<1x8x8x128xf32>
    %c0_34 = arith.constant 0 : index
    %c1_35 = arith.constant 1 : index
    %c0_36 = arith.constant 0 : index
    %104 = vector.load %arg4[%c0_34, %c1_35, %c0_36] : memref<2x81x128xf32, #tpu.memory_space<vmem>>, vector<1x1x128xf32>
    %105 = vector.shape_cast %104 : vector<1x1x128xf32> to vector<128xf32>
    %106 = vector.shape_cast %105 : vector<128xf32> to vector<1x1x1x128xf32>
    %107 = vector.broadcast %106 : vector<1x1x1x128xf32> to vector<1x8x8x128xf32>
    %108 = arith.mulf %103, %107 : vector<1x8x8x128xf32>
    %109 = arith.addf %101, %108 : vector<1x8x8x128xf32>
    %110 = vector.extract_strided_slice %102 {offsets = [0, 1, 0, 0], sizes = [1, 8, 8, 128], strides = [1, 1, 1, 1]} : vector<1x16x8x128xf32> to vector<1x8x8x128xf32>
    %c0_37 = arith.constant 0 : index
    %c10 = arith.constant 10 : index
    %c0_38 = arith.constant 0 : index
    %111 = vector.load %arg4[%c0_37, %c10, %c0_38] : memref<2x81x128xf32, #tpu.memory_space<vmem>>, vector<1x1x128xf32>
    %112 = vector.shape_cast %111 : vector<1x1x128xf32> to vector<128xf32>
    %113 = vector.shape_cast %112 : vector<128xf32> to vector<1x1x1x128xf32>
    %114 = vector.broadcast %113 : vector<1x1x1x128xf32> to vector<1x8x8x128xf32>
    %115 = arith.mulf %110, %114 : vector<1x8x8x128xf32>
    %116 = arith.addf %109, %115 : vector<1x8x8x128xf32>
    %117 = vector.extract_strided_slice %102 {offsets = [0, 2, 0, 0], sizes = [1, 8, 8, 128], strides = [1, 1, 1, 1]} : vector<1x16x8x128xf32> to vector<1x8x8x128xf32>
    %c0_39 = arith.constant 0 : index
    %c19 = arith.constant 19 : index
    %c0_40 = arith.constant 0 : index
    %118 = vector.load %arg4[%c0_39, %c19, %c0_40] : memref<2x81x128xf32, #tpu.memory_space<vmem>>, vector<1x1x128xf32>
    %119 = vector.shape_cast %118 : vector<1x1x128xf32> to vector<128xf32>
    %120 = vector.shape_cast %119 : vector<128xf32> to vector<1x1x1x128xf32>
    %121 = vector.broadcast %120 : vector<1x1x1x128xf32> to vector<1x8x8x128xf32>
    %122 = arith.mulf %117, %121 : vector<1x8x8x128xf32>
    %123 = arith.addf %116, %122 : vector<1x8x8x128xf32>
    %124 = vector.extract_strided_slice %102 {offsets = [0, 3, 0, 0], sizes = [1, 8, 8, 128], strides = [1, 1, 1, 1]} : vector<1x16x8x128xf32> to vector<1x8x8x128xf32>
    %c0_41 = arith.constant 0 : index
    %c28 = arith.constant 28 : index
    %c0_42 = arith.constant 0 : index
    %125 = vector.load %arg4[%c0_41, %c28, %c0_42] : memref<2x81x128xf32, #tpu.memory_space<vmem>>, vector<1x1x128xf32>
    %126 = vector.shape_cast %125 : vector<1x1x128xf32> to vector<128xf32>
    %127 = vector.shape_cast %126 : vector<128xf32> to vector<1x1x1x128xf32>
    %128 = vector.broadcast %127 : vector<1x1x1x128xf32> to vector<1x8x8x128xf32>
    %129 = arith.mulf %124, %128 : vector<1x8x8x128xf32>
    %130 = arith.addf %123, %129 : vector<1x8x8x128xf32>
    %131 = vector.extract_strided_slice %102 {offsets = [0, 4, 0, 0], sizes = [1, 8, 8, 128], strides = [1, 1, 1, 1]} : vector<1x16x8x128xf32> to vector<1x8x8x128xf32>
    %c0_43 = arith.constant 0 : index
    %c37 = arith.constant 37 : index
    %c0_44 = arith.constant 0 : index
    %132 = vector.load %arg4[%c0_43, %c37, %c0_44] : memref<2x81x128xf32, #tpu.memory_space<vmem>>, vector<1x1x128xf32>
    %133 = vector.shape_cast %132 : vector<1x1x128xf32> to vector<128xf32>
    %134 = vector.shape_cast %133 : vector<128xf32> to vector<1x1x1x128xf32>
    %135 = vector.broadcast %134 : vector<1x1x1x128xf32> to vector<1x8x8x128xf32>
    %136 = arith.mulf %131, %135 : vector<1x8x8x128xf32>
    %137 = arith.addf %130, %136 : vector<1x8x8x128xf32>
    %138 = vector.extract_strided_slice %102 {offsets = [0, 5, 0, 0], sizes = [1, 8, 8, 128], strides = [1, 1, 1, 1]} : vector<1x16x8x128xf32> to vector<1x8x8x128xf32>
    %c0_45 = arith.constant 0 : index
    %c46 = arith.constant 46 : index
    %c0_46 = arith.constant 0 : index
    %139 = vector.load %arg4[%c0_45, %c46, %c0_46] : memref<2x81x128xf32, #tpu.memory_space<vmem>>, vector<1x1x128xf32>
    %140 = vector.shape_cast %139 : vector<1x1x128xf32> to vector<128xf32>
    %141 = vector.shape_cast %140 : vector<128xf32> to vector<1x1x1x128xf32>
    %142 = vector.broadcast %141 : vector<1x1x1x128xf32> to vector<1x8x8x128xf32>
    %143 = arith.mulf %138, %142 : vector<1x8x8x128xf32>
    %144 = arith.addf %137, %143 : vector<1x8x8x128xf32>
    %145 = vector.extract_strided_slice %102 {offsets = [0, 6, 0, 0], sizes = [1, 8, 8, 128], strides = [1, 1, 1, 1]} : vector<1x16x8x128xf32> to vector<1x8x8x128xf32>
    %c0_47 = arith.constant 0 : index
    %c55 = arith.constant 55 : index
    %c0_48 = arith.constant 0 : index
    %146 = vector.load %arg4[%c0_47, %c55, %c0_48] : memref<2x81x128xf32, #tpu.memory_space<vmem>>, vector<1x1x128xf32>
    %147 = vector.shape_cast %146 : vector<1x1x128xf32> to vector<128xf32>
    %148 = vector.shape_cast %147 : vector<128xf32> to vector<1x1x1x128xf32>
    %149 = vector.broadcast %148 : vector<1x1x1x128xf32> to vector<1x8x8x128xf32>
    %150 = arith.mulf %145, %149 : vector<1x8x8x128xf32>
    %151 = arith.addf %144, %150 : vector<1x8x8x128xf32>
    %152 = vector.extract_strided_slice %102 {offsets = [0, 7, 0, 0], sizes = [1, 8, 8, 128], strides = [1, 1, 1, 1]} : vector<1x16x8x128xf32> to vector<1x8x8x128xf32>
    %c0_49 = arith.constant 0 : index
    %c64 = arith.constant 64 : index
    %c0_50 = arith.constant 0 : index
    %153 = vector.load %arg4[%c0_49, %c64, %c0_50] : memref<2x81x128xf32, #tpu.memory_space<vmem>>, vector<1x1x128xf32>
    %154 = vector.shape_cast %153 : vector<1x1x128xf32> to vector<128xf32>
    %155 = vector.shape_cast %154 : vector<128xf32> to vector<1x1x1x128xf32>
    %156 = vector.broadcast %155 : vector<1x1x1x128xf32> to vector<1x8x8x128xf32>
    %157 = arith.mulf %152, %156 : vector<1x8x8x128xf32>
    %158 = arith.addf %151, %157 : vector<1x8x8x128xf32>
    %159 = vector.extract_strided_slice %102 {offsets = [0, 8, 0, 0], sizes = [1, 8, 8, 128], strides = [1, 1, 1, 1]} : vector<1x16x8x128xf32> to vector<1x8x8x128xf32>
    %c0_51 = arith.constant 0 : index
    %c73 = arith.constant 73 : index
    %c0_52 = arith.constant 0 : index
    %160 = vector.load %arg4[%c0_51, %c73, %c0_52] : memref<2x81x128xf32, #tpu.memory_space<vmem>>, vector<1x1x128xf32>
    %161 = vector.shape_cast %160 : vector<1x1x128xf32> to vector<128xf32>
    %162 = vector.shape_cast %161 : vector<128xf32> to vector<1x1x1x128xf32>
    %163 = vector.broadcast %162 : vector<1x1x1x128xf32> to vector<1x8x8x128xf32>
    %164 = arith.mulf %159, %163 : vector<1x8x8x128xf32>
    %165 = arith.addf %158, %164 : vector<1x8x8x128xf32>
    %166 = vector.extract_strided_slice %36 {offsets = [0, 0, 6, 0], sizes = [1, 16, 8, 128], strides = [1, 1, 1, 1]} : vector<1x16x24x128xf32> to vector<1x16x8x128xf32>
    %167 = vector.extract_strided_slice %166 {offsets = [0, 0, 0, 0], sizes = [1, 8, 8, 128], strides = [1, 1, 1, 1]} : vector<1x16x8x128xf32> to vector<1x8x8x128xf32>
    %c0_53 = arith.constant 0 : index
    %c2_54 = arith.constant 2 : index
    %c0_55 = arith.constant 0 : index
    %168 = vector.load %arg4[%c0_53, %c2_54, %c0_55] : memref<2x81x128xf32, #tpu.memory_space<vmem>>, vector<1x1x128xf32>
    %169 = vector.shape_cast %168 : vector<1x1x128xf32> to vector<128xf32>
    %170 = vector.shape_cast %169 : vector<128xf32> to vector<1x1x1x128xf32>
    %171 = vector.broadcast %170 : vector<1x1x1x128xf32> to vector<1x8x8x128xf32>
    %172 = arith.mulf %167, %171 : vector<1x8x8x128xf32>
    %173 = arith.addf %165, %172 : vector<1x8x8x128xf32>
    %174 = vector.extract_strided_slice %166 {offsets = [0, 1, 0, 0], sizes = [1, 8, 8, 128], strides = [1, 1, 1, 1]} : vector<1x16x8x128xf32> to vector<1x8x8x128xf32>
    %c0_56 = arith.constant 0 : index
    %c11 = arith.constant 11 : index
    %c0_57 = arith.constant 0 : index
    %175 = vector.load %arg4[%c0_56, %c11, %c0_57] : memref<2x81x128xf32, #tpu.memory_space<vmem>>, vector<1x1x128xf32>
    %176 = vector.shape_cast %175 : vector<1x1x128xf32> to vector<128xf32>
    %177 = vector.shape_cast %176 : vector<128xf32> to vector<1x1x1x128xf32>
    %178 = vector.broadcast %177 : vector<1x1x1x128xf32> to vector<1x8x8x128xf32>
    %179 = arith.mulf %174, %178 : vector<1x8x8x128xf32>
    %180 = arith.addf %173, %179 : vector<1x8x8x128xf32>
    %181 = vector.extract_strided_slice %166 {offsets = [0, 2, 0, 0], sizes = [1, 8, 8, 128], strides = [1, 1, 1, 1]} : vector<1x16x8x128xf32> to vector<1x8x8x128xf32>
    %c0_58 = arith.constant 0 : index
    %c20 = arith.constant 20 : index
    %c0_59 = arith.constant 0 : index
    %182 = vector.load %arg4[%c0_58, %c20, %c0_59] : memref<2x81x128xf32, #tpu.memory_space<vmem>>, vector<1x1x128xf32>
    %183 = vector.shape_cast %182 : vector<1x1x128xf32> to vector<128xf32>
    %184 = vector.shape_cast %183 : vector<128xf32> to vector<1x1x1x128xf32>
    %185 = vector.broadcast %184 : vector<1x1x1x128xf32> to vector<1x8x8x128xf32>
    %186 = arith.mulf %181, %185 : vector<1x8x8x128xf32>
    %187 = arith.addf %180, %186 : vector<1x8x8x128xf32>
    %188 = vector.extract_strided_slice %166 {offsets = [0, 3, 0, 0], sizes = [1, 8, 8, 128], strides = [1, 1, 1, 1]} : vector<1x16x8x128xf32> to vector<1x8x8x128xf32>
    %c0_60 = arith.constant 0 : index
    %c29 = arith.constant 29 : index
    %c0_61 = arith.constant 0 : index
    %189 = vector.load %arg4[%c0_60, %c29, %c0_61] : memref<2x81x128xf32, #tpu.memory_space<vmem>>, vector<1x1x128xf32>
    %190 = vector.shape_cast %189 : vector<1x1x128xf32> to vector<128xf32>
    %191 = vector.shape_cast %190 : vector<128xf32> to vector<1x1x1x128xf32>
    %192 = vector.broadcast %191 : vector<1x1x1x128xf32> to vector<1x8x8x128xf32>
    %193 = arith.mulf %188, %192 : vector<1x8x8x128xf32>
    %194 = arith.addf %187, %193 : vector<1x8x8x128xf32>
    %195 = vector.extract_strided_slice %166 {offsets = [0, 4, 0, 0], sizes = [1, 8, 8, 128], strides = [1, 1, 1, 1]} : vector<1x16x8x128xf32> to vector<1x8x8x128xf32>
    %c0_62 = arith.constant 0 : index
    %c38 = arith.constant 38 : index
    %c0_63 = arith.constant 0 : index
    %196 = vector.load %arg4[%c0_62, %c38, %c0_63] : memref<2x81x128xf32, #tpu.memory_space<vmem>>, vector<1x1x128xf32>
    %197 = vector.shape_cast %196 : vector<1x1x128xf32> to vector<128xf32>
    %198 = vector.shape_cast %197 : vector<128xf32> to vector<1x1x1x128xf32>
    %199 = vector.broadcast %198 : vector<1x1x1x128xf32> to vector<1x8x8x128xf32>
    %200 = arith.mulf %195, %199 : vector<1x8x8x128xf32>
    %201 = arith.addf %194, %200 : vector<1x8x8x128xf32>
    %202 = vector.extract_strided_slice %166 {offsets = [0, 5, 0, 0], sizes = [1, 8, 8, 128], strides = [1, 1, 1, 1]} : vector<1x16x8x128xf32> to vector<1x8x8x128xf32>
    %c0_64 = arith.constant 0 : index
    %c47 = arith.constant 47 : index
    %c0_65 = arith.constant 0 : index
    %203 = vector.load %arg4[%c0_64, %c47, %c0_65] : memref<2x81x128xf32, #tpu.memory_space<vmem>>, vector<1x1x128xf32>
    %204 = vector.shape_cast %203 : vector<1x1x128xf32> to vector<128xf32>
    %205 = vector.shape_cast %204 : vector<128xf32> to vector<1x1x1x128xf32>
    %206 = vector.broadcast %205 : vector<1x1x1x128xf32> to vector<1x8x8x128xf32>
    %207 = arith.mulf %202, %206 : vector<1x8x8x128xf32>
    %208 = arith.addf %201, %207 : vector<1x8x8x128xf32>
    %209 = vector.extract_strided_slice %166 {offsets = [0, 6, 0, 0], sizes = [1, 8, 8, 128], strides = [1, 1, 1, 1]} : vector<1x16x8x128xf32> to vector<1x8x8x128xf32>
    %c0_66 = arith.constant 0 : index
    %c56 = arith.constant 56 : index
    %c0_67 = arith.constant 0 : index
    %210 = vector.load %arg4[%c0_66, %c56, %c0_67] : memref<2x81x128xf32, #tpu.memory_space<vmem>>, vector<1x1x128xf32>
    %211 = vector.shape_cast %210 : vector<1x1x128xf32> to vector<128xf32>
    %212 = vector.shape_cast %211 : vector<128xf32> to vector<1x1x1x128xf32>
    %213 = vector.broadcast %212 : vector<1x1x1x128xf32> to vector<1x8x8x128xf32>
    %214 = arith.mulf %209, %213 : vector<1x8x8x128xf32>
    %215 = arith.addf %208, %214 : vector<1x8x8x128xf32>
    %216 = vector.extract_strided_slice %166 {offsets = [0, 7, 0, 0], sizes = [1, 8, 8, 128], strides = [1, 1, 1, 1]} : vector<1x16x8x128xf32> to vector<1x8x8x128xf32>
    %c0_68 = arith.constant 0 : index
    %c65 = arith.constant 65 : index
    %c0_69 = arith.constant 0 : index
    %217 = vector.load %arg4[%c0_68, %c65, %c0_69] : memref<2x81x128xf32, #tpu.memory_space<vmem>>, vector<1x1x128xf32>
    %218 = vector.shape_cast %217 : vector<1x1x128xf32> to vector<128xf32>
    %219 = vector.shape_cast %218 : vector<128xf32> to vector<1x1x1x128xf32>
    %220 = vector.broadcast %219 : vector<1x1x1x128xf32> to vector<1x8x8x128xf32>
    %221 = arith.mulf %216, %220 : vector<1x8x8x128xf32>
    %222 = arith.addf %215, %221 : vector<1x8x8x128xf32>
    %223 = vector.extract_strided_slice %166 {offsets = [0, 8, 0, 0], sizes = [1, 8, 8, 128], strides = [1, 1, 1, 1]} : vector<1x16x8x128xf32> to vector<1x8x8x128xf32>
    %c0_70 = arith.constant 0 : index
    %c74 = arith.constant 74 : index
    %c0_71 = arith.constant 0 : index
    %224 = vector.load %arg4[%c0_70, %c74, %c0_71] : memref<2x81x128xf32, #tpu.memory_space<vmem>>, vector<1x1x128xf32>
    %225 = vector.shape_cast %224 : vector<1x1x128xf32> to vector<128xf32>
    %226 = vector.shape_cast %225 : vector<128xf32> to vector<1x1x1x128xf32>
    %227 = vector.broadcast %226 : vector<1x1x1x128xf32> to vector<1x8x8x128xf32>
    %228 = arith.mulf %223, %227 : vector<1x8x8x128xf32>
    %229 = arith.addf %222, %228 : vector<1x8x8x128xf32>
    %230 = vector.extract_strided_slice %36 {offsets = [0, 0, 7, 0], sizes = [1, 16, 8, 128], strides = [1, 1, 1, 1]} : vector<1x16x24x128xf32> to vector<1x16x8x128xf32>
    %231 = vector.extract_strided_slice %230 {offsets = [0, 0, 0, 0], sizes = [1, 8, 8, 128], strides = [1, 1, 1, 1]} : vector<1x16x8x128xf32> to vector<1x8x8x128xf32>
    %c0_72 = arith.constant 0 : index
    %c3 = arith.constant 3 : index
    %c0_73 = arith.constant 0 : index
    %232 = vector.load %arg4[%c0_72, %c3, %c0_73] : memref<2x81x128xf32, #tpu.memory_space<vmem>>, vector<1x1x128xf32>
    %233 = vector.shape_cast %232 : vector<1x1x128xf32> to vector<128xf32>
    %234 = vector.shape_cast %233 : vector<128xf32> to vector<1x1x1x128xf32>
    %235 = vector.broadcast %234 : vector<1x1x1x128xf32> to vector<1x8x8x128xf32>
    %236 = arith.mulf %231, %235 : vector<1x8x8x128xf32>
    %237 = arith.addf %229, %236 : vector<1x8x8x128xf32>
    %238 = vector.extract_strided_slice %230 {offsets = [0, 1, 0, 0], sizes = [1, 8, 8, 128], strides = [1, 1, 1, 1]} : vector<1x16x8x128xf32> to vector<1x8x8x128xf32>
    %c0_74 = arith.constant 0 : index
    %c12 = arith.constant 12 : index
    %c0_75 = arith.constant 0 : index
    %239 = vector.load %arg4[%c0_74, %c12, %c0_75] : memref<2x81x128xf32, #tpu.memory_space<vmem>>, vector<1x1x128xf32>
    %240 = vector.shape_cast %239 : vector<1x1x128xf32> to vector<128xf32>
    %241 = vector.shape_cast %240 : vector<128xf32> to vector<1x1x1x128xf32>
    %242 = vector.broadcast %241 : vector<1x1x1x128xf32> to vector<1x8x8x128xf32>
    %243 = arith.mulf %238, %242 : vector<1x8x8x128xf32>
    %244 = arith.addf %237, %243 : vector<1x8x8x128xf32>
    %245 = vector.extract_strided_slice %230 {offsets = [0, 2, 0, 0], sizes = [1, 8, 8, 128], strides = [1, 1, 1, 1]} : vector<1x16x8x128xf32> to vector<1x8x8x128xf32>
    %c0_76 = arith.constant 0 : index
    %c21 = arith.constant 21 : index
    %c0_77 = arith.constant 0 : index
    %246 = vector.load %arg4[%c0_76, %c21, %c0_77] : memref<2x81x128xf32, #tpu.memory_space<vmem>>, vector<1x1x128xf32>
    %247 = vector.shape_cast %246 : vector<1x1x128xf32> to vector<128xf32>
    %248 = vector.shape_cast %247 : vector<128xf32> to vector<1x1x1x128xf32>
    %249 = vector.broadcast %248 : vector<1x1x1x128xf32> to vector<1x8x8x128xf32>
    %250 = arith.mulf %245, %249 : vector<1x8x8x128xf32>
    %251 = arith.addf %244, %250 : vector<1x8x8x128xf32>
    %252 = vector.extract_strided_slice %230 {offsets = [0, 3, 0, 0], sizes = [1, 8, 8, 128], strides = [1, 1, 1, 1]} : vector<1x16x8x128xf32> to vector<1x8x8x128xf32>
    %c0_78 = arith.constant 0 : index
    %c30 = arith.constant 30 : index
    %c0_79 = arith.constant 0 : index
    %253 = vector.load %arg4[%c0_78, %c30, %c0_79] : memref<2x81x128xf32, #tpu.memory_space<vmem>>, vector<1x1x128xf32>
    %254 = vector.shape_cast %253 : vector<1x1x128xf32> to vector<128xf32>
    %255 = vector.shape_cast %254 : vector<128xf32> to vector<1x1x1x128xf32>
    %256 = vector.broadcast %255 : vector<1x1x1x128xf32> to vector<1x8x8x128xf32>
    %257 = arith.mulf %252, %256 : vector<1x8x8x128xf32>
    %258 = arith.addf %251, %257 : vector<1x8x8x128xf32>
    %259 = vector.extract_strided_slice %230 {offsets = [0, 4, 0, 0], sizes = [1, 8, 8, 128], strides = [1, 1, 1, 1]} : vector<1x16x8x128xf32> to vector<1x8x8x128xf32>
    %c0_80 = arith.constant 0 : index
    %c39 = arith.constant 39 : index
    %c0_81 = arith.constant 0 : index
    %260 = vector.load %arg4[%c0_80, %c39, %c0_81] : memref<2x81x128xf32, #tpu.memory_space<vmem>>, vector<1x1x128xf32>
    %261 = vector.shape_cast %260 : vector<1x1x128xf32> to vector<128xf32>
    %262 = vector.shape_cast %261 : vector<128xf32> to vector<1x1x1x128xf32>
    %263 = vector.broadcast %262 : vector<1x1x1x128xf32> to vector<1x8x8x128xf32>
    %264 = arith.mulf %259, %263 : vector<1x8x8x128xf32>
    %265 = arith.addf %258, %264 : vector<1x8x8x128xf32>
    %266 = vector.extract_strided_slice %230 {offsets = [0, 5, 0, 0], sizes = [1, 8, 8, 128], strides = [1, 1, 1, 1]} : vector<1x16x8x128xf32> to vector<1x8x8x128xf32>
    %c0_82 = arith.constant 0 : index
    %c48 = arith.constant 48 : index
    %c0_83 = arith.constant 0 : index
    %267 = vector.load %arg4[%c0_82, %c48, %c0_83] : memref<2x81x128xf32, #tpu.memory_space<vmem>>, vector<1x1x128xf32>
    %268 = vector.shape_cast %267 : vector<1x1x128xf32> to vector<128xf32>
    %269 = vector.shape_cast %268 : vector<128xf32> to vector<1x1x1x128xf32>
    %270 = vector.broadcast %269 : vector<1x1x1x128xf32> to vector<1x8x8x128xf32>
    %271 = arith.mulf %266, %270 : vector<1x8x8x128xf32>
    %272 = arith.addf %265, %271 : vector<1x8x8x128xf32>
    %273 = vector.extract_strided_slice %230 {offsets = [0, 6, 0, 0], sizes = [1, 8, 8, 128], strides = [1, 1, 1, 1]} : vector<1x16x8x128xf32> to vector<1x8x8x128xf32>
    %c0_84 = arith.constant 0 : index
    %c57 = arith.constant 57 : index
    %c0_85 = arith.constant 0 : index
    %274 = vector.load %arg4[%c0_84, %c57, %c0_85] : memref<2x81x128xf32, #tpu.memory_space<vmem>>, vector<1x1x128xf32>
    %275 = vector.shape_cast %274 : vector<1x1x128xf32> to vector<128xf32>
    %276 = vector.shape_cast %275 : vector<128xf32> to vector<1x1x1x128xf32>
    %277 = vector.broadcast %276 : vector<1x1x1x128xf32> to vector<1x8x8x128xf32>
    %278 = arith.mulf %273, %277 : vector<1x8x8x128xf32>
    %279 = arith.addf %272, %278 : vector<1x8x8x128xf32>
    %280 = vector.extract_strided_slice %230 {offsets = [0, 7, 0, 0], sizes = [1, 8, 8, 128], strides = [1, 1, 1, 1]} : vector<1x16x8x128xf32> to vector<1x8x8x128xf32>
    %c0_86 = arith.constant 0 : index
    %c66 = arith.constant 66 : index
    %c0_87 = arith.constant 0 : index
    %281 = vector.load %arg4[%c0_86, %c66, %c0_87] : memref<2x81x128xf32, #tpu.memory_space<vmem>>, vector<1x1x128xf32>
    %282 = vector.shape_cast %281 : vector<1x1x128xf32> to vector<128xf32>
    %283 = vector.shape_cast %282 : vector<128xf32> to vector<1x1x1x128xf32>
    %284 = vector.broadcast %283 : vector<1x1x1x128xf32> to vector<1x8x8x128xf32>
    %285 = arith.mulf %280, %284 : vector<1x8x8x128xf32>
    %286 = arith.addf %279, %285 : vector<1x8x8x128xf32>
    %287 = vector.extract_strided_slice %230 {offsets = [0, 8, 0, 0], sizes = [1, 8, 8, 128], strides = [1, 1, 1, 1]} : vector<1x16x8x128xf32> to vector<1x8x8x128xf32>
    %c0_88 = arith.constant 0 : index
    %c75 = arith.constant 75 : index
    %c0_89 = arith.constant 0 : index
    %288 = vector.load %arg4[%c0_88, %c75, %c0_89] : memref<2x81x128xf32, #tpu.memory_space<vmem>>, vector<1x1x128xf32>
    %289 = vector.shape_cast %288 : vector<1x1x128xf32> to vector<128xf32>
    %290 = vector.shape_cast %289 : vector<128xf32> to vector<1x1x1x128xf32>
    %291 = vector.broadcast %290 : vector<1x1x1x128xf32> to vector<1x8x8x128xf32>
    %292 = arith.mulf %287, %291 : vector<1x8x8x128xf32>
    %293 = arith.addf %286, %292 : vector<1x8x8x128xf32>
    %294 = vector.extract_strided_slice %36 {offsets = [0, 0, 8, 0], sizes = [1, 16, 8, 128], strides = [1, 1, 1, 1]} : vector<1x16x24x128xf32> to vector<1x16x8x128xf32>
    %295 = vector.extract_strided_slice %294 {offsets = [0, 0, 0, 0], sizes = [1, 8, 8, 128], strides = [1, 1, 1, 1]} : vector<1x16x8x128xf32> to vector<1x8x8x128xf32>
    %c0_90 = arith.constant 0 : index
    %c4 = arith.constant 4 : index
    %c0_91 = arith.constant 0 : index
    %296 = vector.load %arg4[%c0_90, %c4, %c0_91] : memref<2x81x128xf32, #tpu.memory_space<vmem>>, vector<1x1x128xf32>
    %297 = vector.shape_cast %296 : vector<1x1x128xf32> to vector<128xf32>
    %298 = vector.shape_cast %297 : vector<128xf32> to vector<1x1x1x128xf32>
    %299 = vector.broadcast %298 : vector<1x1x1x128xf32> to vector<1x8x8x128xf32>
    %300 = arith.mulf %295, %299 : vector<1x8x8x128xf32>
    %301 = arith.addf %293, %300 : vector<1x8x8x128xf32>
    %302 = vector.extract_strided_slice %294 {offsets = [0, 1, 0, 0], sizes = [1, 8, 8, 128], strides = [1, 1, 1, 1]} : vector<1x16x8x128xf32> to vector<1x8x8x128xf32>
    %c0_92 = arith.constant 0 : index
    %c13 = arith.constant 13 : index
    %c0_93 = arith.constant 0 : index
    %303 = vector.load %arg4[%c0_92, %c13, %c0_93] : memref<2x81x128xf32, #tpu.memory_space<vmem>>, vector<1x1x128xf32>
    %304 = vector.shape_cast %303 : vector<1x1x128xf32> to vector<128xf32>
    %305 = vector.shape_cast %304 : vector<128xf32> to vector<1x1x1x128xf32>
    %306 = vector.broadcast %305 : vector<1x1x1x128xf32> to vector<1x8x8x128xf32>
    %307 = arith.mulf %302, %306 : vector<1x8x8x128xf32>
    %308 = arith.addf %301, %307 : vector<1x8x8x128xf32>
    %309 = vector.extract_strided_slice %294 {offsets = [0, 2, 0, 0], sizes = [1, 8, 8, 128], strides = [1, 1, 1, 1]} : vector<1x16x8x128xf32> to vector<1x8x8x128xf32>
    %c0_94 = arith.constant 0 : index
    %c22 = arith.constant 22 : index
    %c0_95 = arith.constant 0 : index
    %310 = vector.load %arg4[%c0_94, %c22, %c0_95] : memref<2x81x128xf32, #tpu.memory_space<vmem>>, vector<1x1x128xf32>
    %311 = vector.shape_cast %310 : vector<1x1x128xf32> to vector<128xf32>
    %312 = vector.shape_cast %311 : vector<128xf32> to vector<1x1x1x128xf32>
    %313 = vector.broadcast %312 : vector<1x1x1x128xf32> to vector<1x8x8x128xf32>
    %314 = arith.mulf %309, %313 : vector<1x8x8x128xf32>
    %315 = arith.addf %308, %314 : vector<1x8x8x128xf32>
    %316 = vector.extract_strided_slice %294 {offsets = [0, 3, 0, 0], sizes = [1, 8, 8, 128], strides = [1, 1, 1, 1]} : vector<1x16x8x128xf32> to vector<1x8x8x128xf32>
    %c0_96 = arith.constant 0 : index
    %c31 = arith.constant 31 : index
    %c0_97 = arith.constant 0 : index
    %317 = vector.load %arg4[%c0_96, %c31, %c0_97] : memref<2x81x128xf32, #tpu.memory_space<vmem>>, vector<1x1x128xf32>
    %318 = vector.shape_cast %317 : vector<1x1x128xf32> to vector<128xf32>
    %319 = vector.shape_cast %318 : vector<128xf32> to vector<1x1x1x128xf32>
    %320 = vector.broadcast %319 : vector<1x1x1x128xf32> to vector<1x8x8x128xf32>
    %321 = arith.mulf %316, %320 : vector<1x8x8x128xf32>
    %322 = arith.addf %315, %321 : vector<1x8x8x128xf32>
    %323 = vector.extract_strided_slice %294 {offsets = [0, 4, 0, 0], sizes = [1, 8, 8, 128], strides = [1, 1, 1, 1]} : vector<1x16x8x128xf32> to vector<1x8x8x128xf32>
    %c0_98 = arith.constant 0 : index
    %c40 = arith.constant 40 : index
    %c0_99 = arith.constant 0 : index
    %324 = vector.load %arg4[%c0_98, %c40, %c0_99] : memref<2x81x128xf32, #tpu.memory_space<vmem>>, vector<1x1x128xf32>
    %325 = vector.shape_cast %324 : vector<1x1x128xf32> to vector<128xf32>
    %326 = vector.shape_cast %325 : vector<128xf32> to vector<1x1x1x128xf32>
    %327 = vector.broadcast %326 : vector<1x1x1x128xf32> to vector<1x8x8x128xf32>
    %328 = arith.mulf %323, %327 : vector<1x8x8x128xf32>
    %329 = arith.addf %322, %328 : vector<1x8x8x128xf32>
    %330 = vector.extract_strided_slice %294 {offsets = [0, 5, 0, 0], sizes = [1, 8, 8, 128], strides = [1, 1, 1, 1]} : vector<1x16x8x128xf32> to vector<1x8x8x128xf32>
    %c0_100 = arith.constant 0 : index
    %c49 = arith.constant 49 : index
    %c0_101 = arith.constant 0 : index
    %331 = vector.load %arg4[%c0_100, %c49, %c0_101] : memref<2x81x128xf32, #tpu.memory_space<vmem>>, vector<1x1x128xf32>
    %332 = vector.shape_cast %331 : vector<1x1x128xf32> to vector<128xf32>
    %333 = vector.shape_cast %332 : vector<128xf32> to vector<1x1x1x128xf32>
    %334 = vector.broadcast %333 : vector<1x1x1x128xf32> to vector<1x8x8x128xf32>
    %335 = arith.mulf %330, %334 : vector<1x8x8x128xf32>
    %336 = arith.addf %329, %335 : vector<1x8x8x128xf32>
    %337 = vector.extract_strided_slice %294 {offsets = [0, 6, 0, 0], sizes = [1, 8, 8, 128], strides = [1, 1, 1, 1]} : vector<1x16x8x128xf32> to vector<1x8x8x128xf32>
    %c0_102 = arith.constant 0 : index
    %c58 = arith.constant 58 : index
    %c0_103 = arith.constant 0 : index
    %338 = vector.load %arg4[%c0_102, %c58, %c0_103] : memref<2x81x128xf32, #tpu.memory_space<vmem>>, vector<1x1x128xf32>
    %339 = vector.shape_cast %338 : vector<1x1x128xf32> to vector<128xf32>
    %340 = vector.shape_cast %339 : vector<128xf32> to vector<1x1x1x128xf32>
    %341 = vector.broadcast %340 : vector<1x1x1x128xf32> to vector<1x8x8x128xf32>
    %342 = arith.mulf %337, %341 : vector<1x8x8x128xf32>
    %343 = arith.addf %336, %342 : vector<1x8x8x128xf32>
    %344 = vector.extract_strided_slice %294 {offsets = [0, 7, 0, 0], sizes = [1, 8, 8, 128], strides = [1, 1, 1, 1]} : vector<1x16x8x128xf32> to vector<1x8x8x128xf32>
    %c0_104 = arith.constant 0 : index
    %c67 = arith.constant 67 : index
    %c0_105 = arith.constant 0 : index
    %345 = vector.load %arg4[%c0_104, %c67, %c0_105] : memref<2x81x128xf32, #tpu.memory_space<vmem>>, vector<1x1x128xf32>
    %346 = vector.shape_cast %345 : vector<1x1x128xf32> to vector<128xf32>
    %347 = vector.shape_cast %346 : vector<128xf32> to vector<1x1x1x128xf32>
    %348 = vector.broadcast %347 : vector<1x1x1x128xf32> to vector<1x8x8x128xf32>
    %349 = arith.mulf %344, %348 : vector<1x8x8x128xf32>
    %350 = arith.addf %343, %349 : vector<1x8x8x128xf32>
    %351 = vector.extract_strided_slice %294 {offsets = [0, 8, 0, 0], sizes = [1, 8, 8, 128], strides = [1, 1, 1, 1]} : vector<1x16x8x128xf32> to vector<1x8x8x128xf32>
    %c0_106 = arith.constant 0 : index
    %c76 = arith.constant 76 : index
    %c0_107 = arith.constant 0 : index
    %352 = vector.load %arg4[%c0_106, %c76, %c0_107] : memref<2x81x128xf32, #tpu.memory_space<vmem>>, vector<1x1x128xf32>
    %353 = vector.shape_cast %352 : vector<1x1x128xf32> to vector<128xf32>
    %354 = vector.shape_cast %353 : vector<128xf32> to vector<1x1x1x128xf32>
    %355 = vector.broadcast %354 : vector<1x1x1x128xf32> to vector<1x8x8x128xf32>
    %356 = arith.mulf %351, %355 : vector<1x8x8x128xf32>
    %357 = arith.addf %350, %356 : vector<1x8x8x128xf32>
    %358 = vector.extract_strided_slice %36 {offsets = [0, 0, 9, 0], sizes = [1, 16, 8, 128], strides = [1, 1, 1, 1]} : vector<1x16x24x128xf32> to vector<1x16x8x128xf32>
    %359 = vector.extract_strided_slice %358 {offsets = [0, 0, 0, 0], sizes = [1, 8, 8, 128], strides = [1, 1, 1, 1]} : vector<1x16x8x128xf32> to vector<1x8x8x128xf32>
    %c0_108 = arith.constant 0 : index
    %c5 = arith.constant 5 : index
    %c0_109 = arith.constant 0 : index
    %360 = vector.load %arg4[%c0_108, %c5, %c0_109] : memref<2x81x128xf32, #tpu.memory_space<vmem>>, vector<1x1x128xf32>
    %361 = vector.shape_cast %360 : vector<1x1x128xf32> to vector<128xf32>
    %362 = vector.shape_cast %361 : vector<128xf32> to vector<1x1x1x128xf32>
    %363 = vector.broadcast %362 : vector<1x1x1x128xf32> to vector<1x8x8x128xf32>
    %364 = arith.mulf %359, %363 : vector<1x8x8x128xf32>
    %365 = arith.addf %357, %364 : vector<1x8x8x128xf32>
    %366 = vector.extract_strided_slice %358 {offsets = [0, 1, 0, 0], sizes = [1, 8, 8, 128], strides = [1, 1, 1, 1]} : vector<1x16x8x128xf32> to vector<1x8x8x128xf32>
    %c0_110 = arith.constant 0 : index
    %c14 = arith.constant 14 : index
    %c0_111 = arith.constant 0 : index
    %367 = vector.load %arg4[%c0_110, %c14, %c0_111] : memref<2x81x128xf32, #tpu.memory_space<vmem>>, vector<1x1x128xf32>
    %368 = vector.shape_cast %367 : vector<1x1x128xf32> to vector<128xf32>
    %369 = vector.shape_cast %368 : vector<128xf32> to vector<1x1x1x128xf32>
    %370 = vector.broadcast %369 : vector<1x1x1x128xf32> to vector<1x8x8x128xf32>
    %371 = arith.mulf %366, %370 : vector<1x8x8x128xf32>
    %372 = arith.addf %365, %371 : vector<1x8x8x128xf32>
    %373 = vector.extract_strided_slice %358 {offsets = [0, 2, 0, 0], sizes = [1, 8, 8, 128], strides = [1, 1, 1, 1]} : vector<1x16x8x128xf32> to vector<1x8x8x128xf32>
    %c0_112 = arith.constant 0 : index
    %c23 = arith.constant 23 : index
    %c0_113 = arith.constant 0 : index
    %374 = vector.load %arg4[%c0_112, %c23, %c0_113] : memref<2x81x128xf32, #tpu.memory_space<vmem>>, vector<1x1x128xf32>
    %375 = vector.shape_cast %374 : vector<1x1x128xf32> to vector<128xf32>
    %376 = vector.shape_cast %375 : vector<128xf32> to vector<1x1x1x128xf32>
    %377 = vector.broadcast %376 : vector<1x1x1x128xf32> to vector<1x8x8x128xf32>
    %378 = arith.mulf %373, %377 : vector<1x8x8x128xf32>
    %379 = arith.addf %372, %378 : vector<1x8x8x128xf32>
    %380 = vector.extract_strided_slice %358 {offsets = [0, 3, 0, 0], sizes = [1, 8, 8, 128], strides = [1, 1, 1, 1]} : vector<1x16x8x128xf32> to vector<1x8x8x128xf32>
    %c0_114 = arith.constant 0 : index
    %c32 = arith.constant 32 : index
    %c0_115 = arith.constant 0 : index
    %381 = vector.load %arg4[%c0_114, %c32, %c0_115] : memref<2x81x128xf32, #tpu.memory_space<vmem>>, vector<1x1x128xf32>
    %382 = vector.shape_cast %381 : vector<1x1x128xf32> to vector<128xf32>
    %383 = vector.shape_cast %382 : vector<128xf32> to vector<1x1x1x128xf32>
    %384 = vector.broadcast %383 : vector<1x1x1x128xf32> to vector<1x8x8x128xf32>
    %385 = arith.mulf %380, %384 : vector<1x8x8x128xf32>
    %386 = arith.addf %379, %385 : vector<1x8x8x128xf32>
    %387 = vector.extract_strided_slice %358 {offsets = [0, 4, 0, 0], sizes = [1, 8, 8, 128], strides = [1, 1, 1, 1]} : vector<1x16x8x128xf32> to vector<1x8x8x128xf32>
    %c0_116 = arith.constant 0 : index
    %c41 = arith.constant 41 : index
    %c0_117 = arith.constant 0 : index
    %388 = vector.load %arg4[%c0_116, %c41, %c0_117] : memref<2x81x128xf32, #tpu.memory_space<vmem>>, vector<1x1x128xf32>
    %389 = vector.shape_cast %388 : vector<1x1x128xf32> to vector<128xf32>
    %390 = vector.shape_cast %389 : vector<128xf32> to vector<1x1x1x128xf32>
    %391 = vector.broadcast %390 : vector<1x1x1x128xf32> to vector<1x8x8x128xf32>
    %392 = arith.mulf %387, %391 : vector<1x8x8x128xf32>
    %393 = arith.addf %386, %392 : vector<1x8x8x128xf32>
    %394 = vector.extract_strided_slice %358 {offsets = [0, 5, 0, 0], sizes = [1, 8, 8, 128], strides = [1, 1, 1, 1]} : vector<1x16x8x128xf32> to vector<1x8x8x128xf32>
    %c0_118 = arith.constant 0 : index
    %c50 = arith.constant 50 : index
    %c0_119 = arith.constant 0 : index
    %395 = vector.load %arg4[%c0_118, %c50, %c0_119] : memref<2x81x128xf32, #tpu.memory_space<vmem>>, vector<1x1x128xf32>
    %396 = vector.shape_cast %395 : vector<1x1x128xf32> to vector<128xf32>
    %397 = vector.shape_cast %396 : vector<128xf32> to vector<1x1x1x128xf32>
    %398 = vector.broadcast %397 : vector<1x1x1x128xf32> to vector<1x8x8x128xf32>
    %399 = arith.mulf %394, %398 : vector<1x8x8x128xf32>
    %400 = arith.addf %393, %399 : vector<1x8x8x128xf32>
    %401 = vector.extract_strided_slice %358 {offsets = [0, 6, 0, 0], sizes = [1, 8, 8, 128], strides = [1, 1, 1, 1]} : vector<1x16x8x128xf32> to vector<1x8x8x128xf32>
    %c0_120 = arith.constant 0 : index
    %c59 = arith.constant 59 : index
    %c0_121 = arith.constant 0 : index
    %402 = vector.load %arg4[%c0_120, %c59, %c0_121] : memref<2x81x128xf32, #tpu.memory_space<vmem>>, vector<1x1x128xf32>
    %403 = vector.shape_cast %402 : vector<1x1x128xf32> to vector<128xf32>
    %404 = vector.shape_cast %403 : vector<128xf32> to vector<1x1x1x128xf32>
    %405 = vector.broadcast %404 : vector<1x1x1x128xf32> to vector<1x8x8x128xf32>
    %406 = arith.mulf %401, %405 : vector<1x8x8x128xf32>
    %407 = arith.addf %400, %406 : vector<1x8x8x128xf32>
    %408 = vector.extract_strided_slice %358 {offsets = [0, 7, 0, 0], sizes = [1, 8, 8, 128], strides = [1, 1, 1, 1]} : vector<1x16x8x128xf32> to vector<1x8x8x128xf32>
    %c0_122 = arith.constant 0 : index
    %c68 = arith.constant 68 : index
    %c0_123 = arith.constant 0 : index
    %409 = vector.load %arg4[%c0_122, %c68, %c0_123] : memref<2x81x128xf32, #tpu.memory_space<vmem>>, vector<1x1x128xf32>
    %410 = vector.shape_cast %409 : vector<1x1x128xf32> to vector<128xf32>
    %411 = vector.shape_cast %410 : vector<128xf32> to vector<1x1x1x128xf32>
    %412 = vector.broadcast %411 : vector<1x1x1x128xf32> to vector<1x8x8x128xf32>
    %413 = arith.mulf %408, %412 : vector<1x8x8x128xf32>
    %414 = arith.addf %407, %413 : vector<1x8x8x128xf32>
    %415 = vector.extract_strided_slice %358 {offsets = [0, 8, 0, 0], sizes = [1, 8, 8, 128], strides = [1, 1, 1, 1]} : vector<1x16x8x128xf32> to vector<1x8x8x128xf32>
    %c0_124 = arith.constant 0 : index
    %c77 = arith.constant 77 : index
    %c0_125 = arith.constant 0 : index
    %416 = vector.load %arg4[%c0_124, %c77, %c0_125] : memref<2x81x128xf32, #tpu.memory_space<vmem>>, vector<1x1x128xf32>
    %417 = vector.shape_cast %416 : vector<1x1x128xf32> to vector<128xf32>
    %418 = vector.shape_cast %417 : vector<128xf32> to vector<1x1x1x128xf32>
    %419 = vector.broadcast %418 : vector<1x1x1x128xf32> to vector<1x8x8x128xf32>
    %420 = arith.mulf %415, %419 : vector<1x8x8x128xf32>
    %421 = arith.addf %414, %420 : vector<1x8x8x128xf32>
    %422 = vector.extract_strided_slice %36 {offsets = [0, 0, 10, 0], sizes = [1, 16, 8, 128], strides = [1, 1, 1, 1]} : vector<1x16x24x128xf32> to vector<1x16x8x128xf32>
    %423 = vector.extract_strided_slice %422 {offsets = [0, 0, 0, 0], sizes = [1, 8, 8, 128], strides = [1, 1, 1, 1]} : vector<1x16x8x128xf32> to vector<1x8x8x128xf32>
    %c0_126 = arith.constant 0 : index
    %c6 = arith.constant 6 : index
    %c0_127 = arith.constant 0 : index
    %424 = vector.load %arg4[%c0_126, %c6, %c0_127] : memref<2x81x128xf32, #tpu.memory_space<vmem>>, vector<1x1x128xf32>
    %425 = vector.shape_cast %424 : vector<1x1x128xf32> to vector<128xf32>
    %426 = vector.shape_cast %425 : vector<128xf32> to vector<1x1x1x128xf32>
    %427 = vector.broadcast %426 : vector<1x1x1x128xf32> to vector<1x8x8x128xf32>
    %428 = arith.mulf %423, %427 : vector<1x8x8x128xf32>
    %429 = arith.addf %421, %428 : vector<1x8x8x128xf32>
    %430 = vector.extract_strided_slice %422 {offsets = [0, 1, 0, 0], sizes = [1, 8, 8, 128], strides = [1, 1, 1, 1]} : vector<1x16x8x128xf32> to vector<1x8x8x128xf32>
    %c0_128 = arith.constant 0 : index
    %c15 = arith.constant 15 : index
    %c0_129 = arith.constant 0 : index
    %431 = vector.load %arg4[%c0_128, %c15, %c0_129] : memref<2x81x128xf32, #tpu.memory_space<vmem>>, vector<1x1x128xf32>
    %432 = vector.shape_cast %431 : vector<1x1x128xf32> to vector<128xf32>
    %433 = vector.shape_cast %432 : vector<128xf32> to vector<1x1x1x128xf32>
    %434 = vector.broadcast %433 : vector<1x1x1x128xf32> to vector<1x8x8x128xf32>
    %435 = arith.mulf %430, %434 : vector<1x8x8x128xf32>
    %436 = arith.addf %429, %435 : vector<1x8x8x128xf32>
    %437 = vector.extract_strided_slice %422 {offsets = [0, 2, 0, 0], sizes = [1, 8, 8, 128], strides = [1, 1, 1, 1]} : vector<1x16x8x128xf32> to vector<1x8x8x128xf32>
    %c0_130 = arith.constant 0 : index
    %c24 = arith.constant 24 : index
    %c0_131 = arith.constant 0 : index
    %438 = vector.load %arg4[%c0_130, %c24, %c0_131] : memref<2x81x128xf32, #tpu.memory_space<vmem>>, vector<1x1x128xf32>
    %439 = vector.shape_cast %438 : vector<1x1x128xf32> to vector<128xf32>
    %440 = vector.shape_cast %439 : vector<128xf32> to vector<1x1x1x128xf32>
    %441 = vector.broadcast %440 : vector<1x1x1x128xf32> to vector<1x8x8x128xf32>
    %442 = arith.mulf %437, %441 : vector<1x8x8x128xf32>
    %443 = arith.addf %436, %442 : vector<1x8x8x128xf32>
    %444 = vector.extract_strided_slice %422 {offsets = [0, 3, 0, 0], sizes = [1, 8, 8, 128], strides = [1, 1, 1, 1]} : vector<1x16x8x128xf32> to vector<1x8x8x128xf32>
    %c0_132 = arith.constant 0 : index
    %c33 = arith.constant 33 : index
    %c0_133 = arith.constant 0 : index
    %445 = vector.load %arg4[%c0_132, %c33, %c0_133] : memref<2x81x128xf32, #tpu.memory_space<vmem>>, vector<1x1x128xf32>
    %446 = vector.shape_cast %445 : vector<1x1x128xf32> to vector<128xf32>
    %447 = vector.shape_cast %446 : vector<128xf32> to vector<1x1x1x128xf32>
    %448 = vector.broadcast %447 : vector<1x1x1x128xf32> to vector<1x8x8x128xf32>
    %449 = arith.mulf %444, %448 : vector<1x8x8x128xf32>
    %450 = arith.addf %443, %449 : vector<1x8x8x128xf32>
    %451 = vector.extract_strided_slice %422 {offsets = [0, 4, 0, 0], sizes = [1, 8, 8, 128], strides = [1, 1, 1, 1]} : vector<1x16x8x128xf32> to vector<1x8x8x128xf32>
    %c0_134 = arith.constant 0 : index
    %c42 = arith.constant 42 : index
    %c0_135 = arith.constant 0 : index
    %452 = vector.load %arg4[%c0_134, %c42, %c0_135] : memref<2x81x128xf32, #tpu.memory_space<vmem>>, vector<1x1x128xf32>
    %453 = vector.shape_cast %452 : vector<1x1x128xf32> to vector<128xf32>
    %454 = vector.shape_cast %453 : vector<128xf32> to vector<1x1x1x128xf32>
    %455 = vector.broadcast %454 : vector<1x1x1x128xf32> to vector<1x8x8x128xf32>
    %456 = arith.mulf %451, %455 : vector<1x8x8x128xf32>
    %457 = arith.addf %450, %456 : vector<1x8x8x128xf32>
    %458 = vector.extract_strided_slice %422 {offsets = [0, 5, 0, 0], sizes = [1, 8, 8, 128], strides = [1, 1, 1, 1]} : vector<1x16x8x128xf32> to vector<1x8x8x128xf32>
    %c0_136 = arith.constant 0 : index
    %c51 = arith.constant 51 : index
    %c0_137 = arith.constant 0 : index
    %459 = vector.load %arg4[%c0_136, %c51, %c0_137] : memref<2x81x128xf32, #tpu.memory_space<vmem>>, vector<1x1x128xf32>
    %460 = vector.shape_cast %459 : vector<1x1x128xf32> to vector<128xf32>
    %461 = vector.shape_cast %460 : vector<128xf32> to vector<1x1x1x128xf32>
    %462 = vector.broadcast %461 : vector<1x1x1x128xf32> to vector<1x8x8x128xf32>
    %463 = arith.mulf %458, %462 : vector<1x8x8x128xf32>
    %464 = arith.addf %457, %463 : vector<1x8x8x128xf32>
    %465 = vector.extract_strided_slice %422 {offsets = [0, 6, 0, 0], sizes = [1, 8, 8, 128], strides = [1, 1, 1, 1]} : vector<1x16x8x128xf32> to vector<1x8x8x128xf32>
    %c0_138 = arith.constant 0 : index
    %c60 = arith.constant 60 : index
    %c0_139 = arith.constant 0 : index
    %466 = vector.load %arg4[%c0_138, %c60, %c0_139] : memref<2x81x128xf32, #tpu.memory_space<vmem>>, vector<1x1x128xf32>
    %467 = vector.shape_cast %466 : vector<1x1x128xf32> to vector<128xf32>
    %468 = vector.shape_cast %467 : vector<128xf32> to vector<1x1x1x128xf32>
    %469 = vector.broadcast %468 : vector<1x1x1x128xf32> to vector<1x8x8x128xf32>
    %470 = arith.mulf %465, %469 : vector<1x8x8x128xf32>
    %471 = arith.addf %464, %470 : vector<1x8x8x128xf32>
    %472 = vector.extract_strided_slice %422 {offsets = [0, 7, 0, 0], sizes = [1, 8, 8, 128], strides = [1, 1, 1, 1]} : vector<1x16x8x128xf32> to vector<1x8x8x128xf32>
    %c0_140 = arith.constant 0 : index
    %c69 = arith.constant 69 : index
    %c0_141 = arith.constant 0 : index
    %473 = vector.load %arg4[%c0_140, %c69, %c0_141] : memref<2x81x128xf32, #tpu.memory_space<vmem>>, vector<1x1x128xf32>
    %474 = vector.shape_cast %473 : vector<1x1x128xf32> to vector<128xf32>
    %475 = vector.shape_cast %474 : vector<128xf32> to vector<1x1x1x128xf32>
    %476 = vector.broadcast %475 : vector<1x1x1x128xf32> to vector<1x8x8x128xf32>
    %477 = arith.mulf %472, %476 : vector<1x8x8x128xf32>
    %478 = arith.addf %471, %477 : vector<1x8x8x128xf32>
    %479 = vector.extract_strided_slice %422 {offsets = [0, 8, 0, 0], sizes = [1, 8, 8, 128], strides = [1, 1, 1, 1]} : vector<1x16x8x128xf32> to vector<1x8x8x128xf32>
    %c0_142 = arith.constant 0 : index
    %c78 = arith.constant 78 : index
    %c0_143 = arith.constant 0 : index
    %480 = vector.load %arg4[%c0_142, %c78, %c0_143] : memref<2x81x128xf32, #tpu.memory_space<vmem>>, vector<1x1x128xf32>
    %481 = vector.shape_cast %480 : vector<1x1x128xf32> to vector<128xf32>
    %482 = vector.shape_cast %481 : vector<128xf32> to vector<1x1x1x128xf32>
    %483 = vector.broadcast %482 : vector<1x1x1x128xf32> to vector<1x8x8x128xf32>
    %484 = arith.mulf %479, %483 : vector<1x8x8x128xf32>
    %485 = arith.addf %478, %484 : vector<1x8x8x128xf32>
    %486 = vector.extract_strided_slice %36 {offsets = [0, 0, 11, 0], sizes = [1, 16, 8, 128], strides = [1, 1, 1, 1]} : vector<1x16x24x128xf32> to vector<1x16x8x128xf32>
    %487 = vector.extract_strided_slice %486 {offsets = [0, 0, 0, 0], sizes = [1, 8, 8, 128], strides = [1, 1, 1, 1]} : vector<1x16x8x128xf32> to vector<1x8x8x128xf32>
    %c0_144 = arith.constant 0 : index
    %c7 = arith.constant 7 : index
    %c0_145 = arith.constant 0 : index
    %488 = vector.load %arg4[%c0_144, %c7, %c0_145] : memref<2x81x128xf32, #tpu.memory_space<vmem>>, vector<1x1x128xf32>
    %489 = vector.shape_cast %488 : vector<1x1x128xf32> to vector<128xf32>
    %490 = vector.shape_cast %489 : vector<128xf32> to vector<1x1x1x128xf32>
    %491 = vector.broadcast %490 : vector<1x1x1x128xf32> to vector<1x8x8x128xf32>
    %492 = arith.mulf %487, %491 : vector<1x8x8x128xf32>
    %493 = arith.addf %485, %492 : vector<1x8x8x128xf32>
    %494 = vector.extract_strided_slice %486 {offsets = [0, 1, 0, 0], sizes = [1, 8, 8, 128], strides = [1, 1, 1, 1]} : vector<1x16x8x128xf32> to vector<1x8x8x128xf32>
    %c0_146 = arith.constant 0 : index
    %c16 = arith.constant 16 : index
    %c0_147 = arith.constant 0 : index
    %495 = vector.load %arg4[%c0_146, %c16, %c0_147] : memref<2x81x128xf32, #tpu.memory_space<vmem>>, vector<1x1x128xf32>
    %496 = vector.shape_cast %495 : vector<1x1x128xf32> to vector<128xf32>
    %497 = vector.shape_cast %496 : vector<128xf32> to vector<1x1x1x128xf32>
    %498 = vector.broadcast %497 : vector<1x1x1x128xf32> to vector<1x8x8x128xf32>
    %499 = arith.mulf %494, %498 : vector<1x8x8x128xf32>
    %500 = arith.addf %493, %499 : vector<1x8x8x128xf32>
    %501 = vector.extract_strided_slice %486 {offsets = [0, 2, 0, 0], sizes = [1, 8, 8, 128], strides = [1, 1, 1, 1]} : vector<1x16x8x128xf32> to vector<1x8x8x128xf32>
    %c0_148 = arith.constant 0 : index
    %c25 = arith.constant 25 : index
    %c0_149 = arith.constant 0 : index
    %502 = vector.load %arg4[%c0_148, %c25, %c0_149] : memref<2x81x128xf32, #tpu.memory_space<vmem>>, vector<1x1x128xf32>
    %503 = vector.shape_cast %502 : vector<1x1x128xf32> to vector<128xf32>
    %504 = vector.shape_cast %503 : vector<128xf32> to vector<1x1x1x128xf32>
    %505 = vector.broadcast %504 : vector<1x1x1x128xf32> to vector<1x8x8x128xf32>
    %506 = arith.mulf %501, %505 : vector<1x8x8x128xf32>
    %507 = arith.addf %500, %506 : vector<1x8x8x128xf32>
    %508 = vector.extract_strided_slice %486 {offsets = [0, 3, 0, 0], sizes = [1, 8, 8, 128], strides = [1, 1, 1, 1]} : vector<1x16x8x128xf32> to vector<1x8x8x128xf32>
    %c0_150 = arith.constant 0 : index
    %c34 = arith.constant 34 : index
    %c0_151 = arith.constant 0 : index
    %509 = vector.load %arg4[%c0_150, %c34, %c0_151] : memref<2x81x128xf32, #tpu.memory_space<vmem>>, vector<1x1x128xf32>
    %510 = vector.shape_cast %509 : vector<1x1x128xf32> to vector<128xf32>
    %511 = vector.shape_cast %510 : vector<128xf32> to vector<1x1x1x128xf32>
    %512 = vector.broadcast %511 : vector<1x1x1x128xf32> to vector<1x8x8x128xf32>
    %513 = arith.mulf %508, %512 : vector<1x8x8x128xf32>
    %514 = arith.addf %507, %513 : vector<1x8x8x128xf32>
    %515 = vector.extract_strided_slice %486 {offsets = [0, 4, 0, 0], sizes = [1, 8, 8, 128], strides = [1, 1, 1, 1]} : vector<1x16x8x128xf32> to vector<1x8x8x128xf32>
    %c0_152 = arith.constant 0 : index
    %c43 = arith.constant 43 : index
    %c0_153 = arith.constant 0 : index
    %516 = vector.load %arg4[%c0_152, %c43, %c0_153] : memref<2x81x128xf32, #tpu.memory_space<vmem>>, vector<1x1x128xf32>
    %517 = vector.shape_cast %516 : vector<1x1x128xf32> to vector<128xf32>
    %518 = vector.shape_cast %517 : vector<128xf32> to vector<1x1x1x128xf32>
    %519 = vector.broadcast %518 : vector<1x1x1x128xf32> to vector<1x8x8x128xf32>
    %520 = arith.mulf %515, %519 : vector<1x8x8x128xf32>
    %521 = arith.addf %514, %520 : vector<1x8x8x128xf32>
    %522 = vector.extract_strided_slice %486 {offsets = [0, 5, 0, 0], sizes = [1, 8, 8, 128], strides = [1, 1, 1, 1]} : vector<1x16x8x128xf32> to vector<1x8x8x128xf32>
    %c0_154 = arith.constant 0 : index
    %c52 = arith.constant 52 : index
    %c0_155 = arith.constant 0 : index
    %523 = vector.load %arg4[%c0_154, %c52, %c0_155] : memref<2x81x128xf32, #tpu.memory_space<vmem>>, vector<1x1x128xf32>
    %524 = vector.shape_cast %523 : vector<1x1x128xf32> to vector<128xf32>
    %525 = vector.shape_cast %524 : vector<128xf32> to vector<1x1x1x128xf32>
    %526 = vector.broadcast %525 : vector<1x1x1x128xf32> to vector<1x8x8x128xf32>
    %527 = arith.mulf %522, %526 : vector<1x8x8x128xf32>
    %528 = arith.addf %521, %527 : vector<1x8x8x128xf32>
    %529 = vector.extract_strided_slice %486 {offsets = [0, 6, 0, 0], sizes = [1, 8, 8, 128], strides = [1, 1, 1, 1]} : vector<1x16x8x128xf32> to vector<1x8x8x128xf32>
    %c0_156 = arith.constant 0 : index
    %c61 = arith.constant 61 : index
    %c0_157 = arith.constant 0 : index
    %530 = vector.load %arg4[%c0_156, %c61, %c0_157] : memref<2x81x128xf32, #tpu.memory_space<vmem>>, vector<1x1x128xf32>
    %531 = vector.shape_cast %530 : vector<1x1x128xf32> to vector<128xf32>
    %532 = vector.shape_cast %531 : vector<128xf32> to vector<1x1x1x128xf32>
    %533 = vector.broadcast %532 : vector<1x1x1x128xf32> to vector<1x8x8x128xf32>
    %534 = arith.mulf %529, %533 : vector<1x8x8x128xf32>
    %535 = arith.addf %528, %534 : vector<1x8x8x128xf32>
    %536 = vector.extract_strided_slice %486 {offsets = [0, 7, 0, 0], sizes = [1, 8, 8, 128], strides = [1, 1, 1, 1]} : vector<1x16x8x128xf32> to vector<1x8x8x128xf32>
    %c0_158 = arith.constant 0 : index
    %c70 = arith.constant 70 : index
    %c0_159 = arith.constant 0 : index
    %537 = vector.load %arg4[%c0_158, %c70, %c0_159] : memref<2x81x128xf32, #tpu.memory_space<vmem>>, vector<1x1x128xf32>
    %538 = vector.shape_cast %537 : vector<1x1x128xf32> to vector<128xf32>
    %539 = vector.shape_cast %538 : vector<128xf32> to vector<1x1x1x128xf32>
    %540 = vector.broadcast %539 : vector<1x1x1x128xf32> to vector<1x8x8x128xf32>
    %541 = arith.mulf %536, %540 : vector<1x8x8x128xf32>
    %542 = arith.addf %535, %541 : vector<1x8x8x128xf32>
    %543 = vector.extract_strided_slice %486 {offsets = [0, 8, 0, 0], sizes = [1, 8, 8, 128], strides = [1, 1, 1, 1]} : vector<1x16x8x128xf32> to vector<1x8x8x128xf32>
    %c0_160 = arith.constant 0 : index
    %c79 = arith.constant 79 : index
    %c0_161 = arith.constant 0 : index
    %544 = vector.load %arg4[%c0_160, %c79, %c0_161] : memref<2x81x128xf32, #tpu.memory_space<vmem>>, vector<1x1x128xf32>
    %545 = vector.shape_cast %544 : vector<1x1x128xf32> to vector<128xf32>
    %546 = vector.shape_cast %545 : vector<128xf32> to vector<1x1x1x128xf32>
    %547 = vector.broadcast %546 : vector<1x1x1x128xf32> to vector<1x8x8x128xf32>
    %548 = arith.mulf %543, %547 : vector<1x8x8x128xf32>
    %549 = arith.addf %542, %548 : vector<1x8x8x128xf32>
    %550 = vector.extract_strided_slice %36 {offsets = [0, 0, 12, 0], sizes = [1, 16, 8, 128], strides = [1, 1, 1, 1]} : vector<1x16x24x128xf32> to vector<1x16x8x128xf32>
    %551 = vector.extract_strided_slice %550 {offsets = [0, 0, 0, 0], sizes = [1, 8, 8, 128], strides = [1, 1, 1, 1]} : vector<1x16x8x128xf32> to vector<1x8x8x128xf32>
    %c0_162 = arith.constant 0 : index
    %c8 = arith.constant 8 : index
    %c0_163 = arith.constant 0 : index
    %552 = vector.load %arg4[%c0_162, %c8, %c0_163] : memref<2x81x128xf32, #tpu.memory_space<vmem>>, vector<1x1x128xf32>
    %553 = vector.shape_cast %552 : vector<1x1x128xf32> to vector<128xf32>
    %554 = vector.shape_cast %553 : vector<128xf32> to vector<1x1x1x128xf32>
    %555 = vector.broadcast %554 : vector<1x1x1x128xf32> to vector<1x8x8x128xf32>
    %556 = arith.mulf %551, %555 : vector<1x8x8x128xf32>
    %557 = arith.addf %549, %556 : vector<1x8x8x128xf32>
    %558 = vector.extract_strided_slice %550 {offsets = [0, 1, 0, 0], sizes = [1, 8, 8, 128], strides = [1, 1, 1, 1]} : vector<1x16x8x128xf32> to vector<1x8x8x128xf32>
    %c0_164 = arith.constant 0 : index
    %c17 = arith.constant 17 : index
    %c0_165 = arith.constant 0 : index
    %559 = vector.load %arg4[%c0_164, %c17, %c0_165] : memref<2x81x128xf32, #tpu.memory_space<vmem>>, vector<1x1x128xf32>
    %560 = vector.shape_cast %559 : vector<1x1x128xf32> to vector<128xf32>
    %561 = vector.shape_cast %560 : vector<128xf32> to vector<1x1x1x128xf32>
    %562 = vector.broadcast %561 : vector<1x1x1x128xf32> to vector<1x8x8x128xf32>
    %563 = arith.mulf %558, %562 : vector<1x8x8x128xf32>
    %564 = arith.addf %557, %563 : vector<1x8x8x128xf32>
    %565 = vector.extract_strided_slice %550 {offsets = [0, 2, 0, 0], sizes = [1, 8, 8, 128], strides = [1, 1, 1, 1]} : vector<1x16x8x128xf32> to vector<1x8x8x128xf32>
    %c0_166 = arith.constant 0 : index
    %c26 = arith.constant 26 : index
    %c0_167 = arith.constant 0 : index
    %566 = vector.load %arg4[%c0_166, %c26, %c0_167] : memref<2x81x128xf32, #tpu.memory_space<vmem>>, vector<1x1x128xf32>
    %567 = vector.shape_cast %566 : vector<1x1x128xf32> to vector<128xf32>
    %568 = vector.shape_cast %567 : vector<128xf32> to vector<1x1x1x128xf32>
    %569 = vector.broadcast %568 : vector<1x1x1x128xf32> to vector<1x8x8x128xf32>
    %570 = arith.mulf %565, %569 : vector<1x8x8x128xf32>
    %571 = arith.addf %564, %570 : vector<1x8x8x128xf32>
    %572 = vector.extract_strided_slice %550 {offsets = [0, 3, 0, 0], sizes = [1, 8, 8, 128], strides = [1, 1, 1, 1]} : vector<1x16x8x128xf32> to vector<1x8x8x128xf32>
    %c0_168 = arith.constant 0 : index
    %c35 = arith.constant 35 : index
    %c0_169 = arith.constant 0 : index
    %573 = vector.load %arg4[%c0_168, %c35, %c0_169] : memref<2x81x128xf32, #tpu.memory_space<vmem>>, vector<1x1x128xf32>
    %574 = vector.shape_cast %573 : vector<1x1x128xf32> to vector<128xf32>
    %575 = vector.shape_cast %574 : vector<128xf32> to vector<1x1x1x128xf32>
    %576 = vector.broadcast %575 : vector<1x1x1x128xf32> to vector<1x8x8x128xf32>
    %577 = arith.mulf %572, %576 : vector<1x8x8x128xf32>
    %578 = arith.addf %571, %577 : vector<1x8x8x128xf32>
    %579 = vector.extract_strided_slice %550 {offsets = [0, 4, 0, 0], sizes = [1, 8, 8, 128], strides = [1, 1, 1, 1]} : vector<1x16x8x128xf32> to vector<1x8x8x128xf32>
    %c0_170 = arith.constant 0 : index
    %c44 = arith.constant 44 : index
    %c0_171 = arith.constant 0 : index
    %580 = vector.load %arg4[%c0_170, %c44, %c0_171] : memref<2x81x128xf32, #tpu.memory_space<vmem>>, vector<1x1x128xf32>
    %581 = vector.shape_cast %580 : vector<1x1x128xf32> to vector<128xf32>
    %582 = vector.shape_cast %581 : vector<128xf32> to vector<1x1x1x128xf32>
    %583 = vector.broadcast %582 : vector<1x1x1x128xf32> to vector<1x8x8x128xf32>
    %584 = arith.mulf %579, %583 : vector<1x8x8x128xf32>
    %585 = arith.addf %578, %584 : vector<1x8x8x128xf32>
    %586 = vector.extract_strided_slice %550 {offsets = [0, 5, 0, 0], sizes = [1, 8, 8, 128], strides = [1, 1, 1, 1]} : vector<1x16x8x128xf32> to vector<1x8x8x128xf32>
    %c0_172 = arith.constant 0 : index
    %c53 = arith.constant 53 : index
    %c0_173 = arith.constant 0 : index
    %587 = vector.load %arg4[%c0_172, %c53, %c0_173] : memref<2x81x128xf32, #tpu.memory_space<vmem>>, vector<1x1x128xf32>
    %588 = vector.shape_cast %587 : vector<1x1x128xf32> to vector<128xf32>
    %589 = vector.shape_cast %588 : vector<128xf32> to vector<1x1x1x128xf32>
    %590 = vector.broadcast %589 : vector<1x1x1x128xf32> to vector<1x8x8x128xf32>
    %591 = arith.mulf %586, %590 : vector<1x8x8x128xf32>
    %592 = arith.addf %585, %591 : vector<1x8x8x128xf32>
    %593 = vector.extract_strided_slice %550 {offsets = [0, 6, 0, 0], sizes = [1, 8, 8, 128], strides = [1, 1, 1, 1]} : vector<1x16x8x128xf32> to vector<1x8x8x128xf32>
    %c0_174 = arith.constant 0 : index
    %c62 = arith.constant 62 : index
    %c0_175 = arith.constant 0 : index
    %594 = vector.load %arg4[%c0_174, %c62, %c0_175] : memref<2x81x128xf32, #tpu.memory_space<vmem>>, vector<1x1x128xf32>
    %595 = vector.shape_cast %594 : vector<1x1x128xf32> to vector<128xf32>
    %596 = vector.shape_cast %595 : vector<128xf32> to vector<1x1x1x128xf32>
    %597 = vector.broadcast %596 : vector<1x1x1x128xf32> to vector<1x8x8x128xf32>
    %598 = arith.mulf %593, %597 : vector<1x8x8x128xf32>
    %599 = arith.addf %592, %598 : vector<1x8x8x128xf32>
    %600 = vector.extract_strided_slice %550 {offsets = [0, 7, 0, 0], sizes = [1, 8, 8, 128], strides = [1, 1, 1, 1]} : vector<1x16x8x128xf32> to vector<1x8x8x128xf32>
    %c0_176 = arith.constant 0 : index
    %c71 = arith.constant 71 : index
    %c0_177 = arith.constant 0 : index
    %601 = vector.load %arg4[%c0_176, %c71, %c0_177] : memref<2x81x128xf32, #tpu.memory_space<vmem>>, vector<1x1x128xf32>
    %602 = vector.shape_cast %601 : vector<1x1x128xf32> to vector<128xf32>
    %603 = vector.shape_cast %602 : vector<128xf32> to vector<1x1x1x128xf32>
    %604 = vector.broadcast %603 : vector<1x1x1x128xf32> to vector<1x8x8x128xf32>
    %605 = arith.mulf %600, %604 : vector<1x8x8x128xf32>
    %606 = arith.addf %599, %605 : vector<1x8x8x128xf32>
    %607 = vector.extract_strided_slice %550 {offsets = [0, 8, 0, 0], sizes = [1, 8, 8, 128], strides = [1, 1, 1, 1]} : vector<1x16x8x128xf32> to vector<1x8x8x128xf32>
    %c0_178 = arith.constant 0 : index
    %c80 = arith.constant 80 : index
    %c0_179 = arith.constant 0 : index
    %608 = vector.load %arg4[%c0_178, %c80, %c0_179] : memref<2x81x128xf32, #tpu.memory_space<vmem>>, vector<1x1x128xf32>
    %609 = vector.shape_cast %608 : vector<1x1x128xf32> to vector<128xf32>
    %610 = vector.shape_cast %609 : vector<128xf32> to vector<1x1x1x128xf32>
    %611 = vector.broadcast %610 : vector<1x1x1x128xf32> to vector<1x8x8x128xf32>
    %612 = arith.mulf %607, %611 : vector<1x8x8x128xf32>
    %613 = arith.addf %606, %612 : vector<1x8x8x128xf32>
    %614 = vector.shape_cast %613 : vector<1x8x8x128xf32> to vector<64x128xf32>
    %c0_180 = arith.constant 0 : index
    %c0_181 = arith.constant 0 : index
    %c0_182 = arith.constant 0 : index
    %615 = vector.load %arg5[%c0_180, %c0_181, %c0_182] : memref<2x3x128xf32, #tpu.memory_space<vmem>>, vector<1x1x128xf32>
    %616 = vector.shape_cast %615 : vector<1x1x128xf32> to vector<128xf32>
    %617 = vector.shape_cast %616 : vector<128xf32> to vector<1x128xf32>
    %618 = vector.broadcast %617 : vector<1x128xf32> to vector<64x128xf32>
    %619 = arith.addf %614, %618 : vector<64x128xf32>
    %cst_183 = arith.constant 5.000000e-01 : f32
    %620 = vector.broadcast %cst_183 : f32 to vector<64x128xf32>
    %621 = arith.mulf %620, %619 : vector<64x128xf32>
    %cst_184 = arith.constant 4.471500e-02 : f32
    %622 = vector.broadcast %cst_184 : f32 to vector<64x128xf32>
    %623 = arith.mulf %622, %619 : vector<64x128xf32>
    %624 = arith.mulf %623, %619 : vector<64x128xf32>
    %625 = arith.mulf %624, %619 : vector<64x128xf32>
    %626 = arith.addf %619, %625 : vector<64x128xf32>
    %cst_185 = arith.constant 0.797884583 : f32
    %627 = vector.broadcast %cst_185 : f32 to vector<64x128xf32>
    %628 = arith.mulf %627, %626 : vector<64x128xf32>
    %629 = math.tanh %628 : vector<64x128xf32>
    %cst_186 = arith.constant 1.000000e+00 : f32
    %630 = vector.broadcast %cst_186 : f32 to vector<64x128xf32>
    %631 = arith.addf %630, %629 : vector<64x128xf32>
    %632 = arith.mulf %621, %631 : vector<64x128xf32>
    %c0_187 = arith.constant 0 : index
    %c1_188 = arith.constant 1 : index
    %c0_189 = arith.constant 0 : index
    %633 = vector.load %arg5[%c0_187, %c1_188, %c0_189] : memref<2x3x128xf32, #tpu.memory_space<vmem>>, vector<1x1x128xf32>
    %634 = vector.shape_cast %633 : vector<1x1x128xf32> to vector<128xf32>
    %635 = vector.shape_cast %634 : vector<128xf32> to vector<1x128xf32>
    %636 = vector.broadcast %635 : vector<1x128xf32> to vector<64x128xf32>
    %637 = arith.mulf %636, %632 : vector<64x128xf32>
    %c0_190 = arith.constant 0 : index
    %c2_191 = arith.constant 2 : index
    %c0_192 = arith.constant 0 : index
    %638 = vector.load %arg5[%c0_190, %c2_191, %c0_192] : memref<2x3x128xf32, #tpu.memory_space<vmem>>, vector<1x1x128xf32>
    %639 = vector.shape_cast %638 : vector<1x1x128xf32> to vector<128xf32>
    %640 = vector.shape_cast %639 : vector<128xf32> to vector<1x128xf32>
    %641 = vector.broadcast %640 : vector<1x128xf32> to vector<64x128xf32>
    %642 = arith.addf %637, %641 : vector<64x128xf32>
    %643 = arith.addf %31, %642 : vector<64x128xf32>
    %644 = arith.truncf %643 : vector<64x128xf32> to vector<64x128xbf16>
    %c0_193 = arith.constant 0 : index
    %c0_194 = arith.constant 0 : index
    %c0_195 = arith.constant 0 : index
    %645 = vector.load %arg6[%c0_193, %c0_194, %c0_195] : memref<2x128x128xbf16, #tpu.memory_space<vmem>>, vector<1x128x128xbf16>
    %646 = vector.shape_cast %645 : vector<1x128x128xbf16> to vector<128x128xbf16>
    %cst_196 = arith.constant dense<0.000000e+00> : vector<64x128xf32>
    %647 = tpu.matmul %644, %646, %cst_196 {dimension_numbers = #tpu.dot_dimension_numbers<[1], [0], [0], [1], [0, 0, 1, 1], [], []>} : vector<64x128xbf16>, vector<128x128xbf16>, vector<64x128xf32> -> vector<64x128xf32>
    %c0_197 = arith.constant 0 : index
    %c0_198 = arith.constant 0 : index
    %c0_199 = arith.constant 0 : index
    %648 = vector.load %arg7[%c0_197, %c0_198, %c0_199] : memref<2x3x128xf32, #tpu.memory_space<vmem>>, vector<1x1x128xf32>
    %649 = vector.shape_cast %648 : vector<1x1x128xf32> to vector<128xf32>
    %650 = vector.shape_cast %649 : vector<128xf32> to vector<1x128xf32>
    %651 = vector.broadcast %650 : vector<1x128xf32> to vector<64x128xf32>
    %652 = arith.addf %647, %651 : vector<64x128xf32>
    %cst_200 = arith.constant 5.000000e-01 : f32
    %653 = vector.broadcast %cst_200 : f32 to vector<64x128xf32>
    %654 = arith.mulf %653, %652 : vector<64x128xf32>
    %cst_201 = arith.constant 4.471500e-02 : f32
    %655 = vector.broadcast %cst_201 : f32 to vector<64x128xf32>
    %656 = arith.mulf %655, %652 : vector<64x128xf32>
    %657 = arith.mulf %656, %652 : vector<64x128xf32>
    %658 = arith.mulf %657, %652 : vector<64x128xf32>
    %659 = arith.addf %652, %658 : vector<64x128xf32>
    %cst_202 = arith.constant 0.797884583 : f32
    %660 = vector.broadcast %cst_202 : f32 to vector<64x128xf32>
    %661 = arith.mulf %660, %659 : vector<64x128xf32>
    %662 = math.tanh %661 : vector<64x128xf32>
    %cst_203 = arith.constant 1.000000e+00 : f32
    %663 = vector.broadcast %cst_203 : f32 to vector<64x128xf32>
    %664 = arith.addf %663, %662 : vector<64x128xf32>
    %665 = arith.mulf %654, %664 : vector<64x128xf32>
    %c0_204 = arith.constant 0 : index
    %c1_205 = arith.constant 1 : index
    %c0_206 = arith.constant 0 : index
    %666 = vector.load %arg7[%c0_204, %c1_205, %c0_206] : memref<2x3x128xf32, #tpu.memory_space<vmem>>, vector<1x1x128xf32>
    %667 = vector.shape_cast %666 : vector<1x1x128xf32> to vector<128xf32>
    %668 = vector.shape_cast %667 : vector<128xf32> to vector<1x128xf32>
    %669 = vector.broadcast %668 : vector<1x128xf32> to vector<64x128xf32>
    %670 = arith.mulf %669, %665 : vector<64x128xf32>
    %c0_207 = arith.constant 0 : index
    %c2_208 = arith.constant 2 : index
    %c0_209 = arith.constant 0 : index
    %671 = vector.load %arg7[%c0_207, %c2_208, %c0_209] : memref<2x3x128xf32, #tpu.memory_space<vmem>>, vector<1x1x128xf32>
    %672 = vector.shape_cast %671 : vector<1x1x128xf32> to vector<128xf32>
    %673 = vector.shape_cast %672 : vector<128xf32> to vector<1x128xf32>
    %674 = vector.broadcast %673 : vector<1x128xf32> to vector<64x128xf32>
    %675 = arith.addf %670, %674 : vector<64x128xf32>
    %676 = vector.shape_cast %675 : vector<64x128xf32> to vector<1x8x8x128xf32>
    %677 = tpu.concatenate %32, %676, %32 in 1 : vector<1x4x8x128xf32>, vector<1x8x8x128xf32>, vector<1x4x8x128xf32> -> vector<1x16x8x128xf32>
    %678 = tpu.concatenate %33, %677, %33 in 2 : vector<1x16x8x128xf32>, vector<1x16x8x128xf32>, vector<1x16x8x128xf32> -> vector<1x16x24x128xf32>
    %cst_210 = arith.constant 0.000000e+00 : f32
    %679 = vector.broadcast %cst_210 : f32 to vector<1x8x8x128xf32>
    %680 = vector.extract_strided_slice %678 {offsets = [0, 0, 4, 0], sizes = [1, 16, 8, 128], strides = [1, 1, 1, 1]} : vector<1x16x24x128xf32> to vector<1x16x8x128xf32>
    %681 = vector.extract_strided_slice %680 {offsets = [0, 0, 0, 0], sizes = [1, 8, 8, 128], strides = [1, 1, 1, 1]} : vector<1x16x8x128xf32> to vector<1x8x8x128xf32>
    %c1_211 = arith.constant 1 : index
    %c0_212 = arith.constant 0 : index
    %c0_213 = arith.constant 0 : index
    %682 = vector.load %arg4[%c1_211, %c0_212, %c0_213] : memref<2x81x128xf32, #tpu.memory_space<vmem>>, vector<1x1x128xf32>
    %683 = vector.shape_cast %682 : vector<1x1x128xf32> to vector<128xf32>
    %684 = vector.shape_cast %683 : vector<128xf32> to vector<1x1x1x128xf32>
    %685 = vector.broadcast %684 : vector<1x1x1x128xf32> to vector<1x8x8x128xf32>
    %686 = arith.mulf %681, %685 : vector<1x8x8x128xf32>
    %687 = arith.addf %679, %686 : vector<1x8x8x128xf32>
    %688 = vector.extract_strided_slice %680 {offsets = [0, 1, 0, 0], sizes = [1, 8, 8, 128], strides = [1, 1, 1, 1]} : vector<1x16x8x128xf32> to vector<1x8x8x128xf32>
    %c1_214 = arith.constant 1 : index
    %c9_215 = arith.constant 9 : index
    %c0_216 = arith.constant 0 : index
    %689 = vector.load %arg4[%c1_214, %c9_215, %c0_216] : memref<2x81x128xf32, #tpu.memory_space<vmem>>, vector<1x1x128xf32>
    %690 = vector.shape_cast %689 : vector<1x1x128xf32> to vector<128xf32>
    %691 = vector.shape_cast %690 : vector<128xf32> to vector<1x1x1x128xf32>
    %692 = vector.broadcast %691 : vector<1x1x1x128xf32> to vector<1x8x8x128xf32>
    %693 = arith.mulf %688, %692 : vector<1x8x8x128xf32>
    %694 = arith.addf %687, %693 : vector<1x8x8x128xf32>
    %695 = vector.extract_strided_slice %680 {offsets = [0, 2, 0, 0], sizes = [1, 8, 8, 128], strides = [1, 1, 1, 1]} : vector<1x16x8x128xf32> to vector<1x8x8x128xf32>
    %c1_217 = arith.constant 1 : index
    %c18_218 = arith.constant 18 : index
    %c0_219 = arith.constant 0 : index
    %696 = vector.load %arg4[%c1_217, %c18_218, %c0_219] : memref<2x81x128xf32, #tpu.memory_space<vmem>>, vector<1x1x128xf32>
    %697 = vector.shape_cast %696 : vector<1x1x128xf32> to vector<128xf32>
    %698 = vector.shape_cast %697 : vector<128xf32> to vector<1x1x1x128xf32>
    %699 = vector.broadcast %698 : vector<1x1x1x128xf32> to vector<1x8x8x128xf32>
    %700 = arith.mulf %695, %699 : vector<1x8x8x128xf32>
    %701 = arith.addf %694, %700 : vector<1x8x8x128xf32>
    %702 = vector.extract_strided_slice %680 {offsets = [0, 3, 0, 0], sizes = [1, 8, 8, 128], strides = [1, 1, 1, 1]} : vector<1x16x8x128xf32> to vector<1x8x8x128xf32>
    %c1_220 = arith.constant 1 : index
    %c27_221 = arith.constant 27 : index
    %c0_222 = arith.constant 0 : index
    %703 = vector.load %arg4[%c1_220, %c27_221, %c0_222] : memref<2x81x128xf32, #tpu.memory_space<vmem>>, vector<1x1x128xf32>
    %704 = vector.shape_cast %703 : vector<1x1x128xf32> to vector<128xf32>
    %705 = vector.shape_cast %704 : vector<128xf32> to vector<1x1x1x128xf32>
    %706 = vector.broadcast %705 : vector<1x1x1x128xf32> to vector<1x8x8x128xf32>
    %707 = arith.mulf %702, %706 : vector<1x8x8x128xf32>
    %708 = arith.addf %701, %707 : vector<1x8x8x128xf32>
    %709 = vector.extract_strided_slice %680 {offsets = [0, 4, 0, 0], sizes = [1, 8, 8, 128], strides = [1, 1, 1, 1]} : vector<1x16x8x128xf32> to vector<1x8x8x128xf32>
    %c1_223 = arith.constant 1 : index
    %c36_224 = arith.constant 36 : index
    %c0_225 = arith.constant 0 : index
    %710 = vector.load %arg4[%c1_223, %c36_224, %c0_225] : memref<2x81x128xf32, #tpu.memory_space<vmem>>, vector<1x1x128xf32>
    %711 = vector.shape_cast %710 : vector<1x1x128xf32> to vector<128xf32>
    %712 = vector.shape_cast %711 : vector<128xf32> to vector<1x1x1x128xf32>
    %713 = vector.broadcast %712 : vector<1x1x1x128xf32> to vector<1x8x8x128xf32>
    %714 = arith.mulf %709, %713 : vector<1x8x8x128xf32>
    %715 = arith.addf %708, %714 : vector<1x8x8x128xf32>
    %716 = vector.extract_strided_slice %680 {offsets = [0, 5, 0, 0], sizes = [1, 8, 8, 128], strides = [1, 1, 1, 1]} : vector<1x16x8x128xf32> to vector<1x8x8x128xf32>
    %c1_226 = arith.constant 1 : index
    %c45_227 = arith.constant 45 : index
    %c0_228 = arith.constant 0 : index
    %717 = vector.load %arg4[%c1_226, %c45_227, %c0_228] : memref<2x81x128xf32, #tpu.memory_space<vmem>>, vector<1x1x128xf32>
    %718 = vector.shape_cast %717 : vector<1x1x128xf32> to vector<128xf32>
    %719 = vector.shape_cast %718 : vector<128xf32> to vector<1x1x1x128xf32>
    %720 = vector.broadcast %719 : vector<1x1x1x128xf32> to vector<1x8x8x128xf32>
    %721 = arith.mulf %716, %720 : vector<1x8x8x128xf32>
    %722 = arith.addf %715, %721 : vector<1x8x8x128xf32>
    %723 = vector.extract_strided_slice %680 {offsets = [0, 6, 0, 0], sizes = [1, 8, 8, 128], strides = [1, 1, 1, 1]} : vector<1x16x8x128xf32> to vector<1x8x8x128xf32>
    %c1_229 = arith.constant 1 : index
    %c54_230 = arith.constant 54 : index
    %c0_231 = arith.constant 0 : index
    %724 = vector.load %arg4[%c1_229, %c54_230, %c0_231] : memref<2x81x128xf32, #tpu.memory_space<vmem>>, vector<1x1x128xf32>
    %725 = vector.shape_cast %724 : vector<1x1x128xf32> to vector<128xf32>
    %726 = vector.shape_cast %725 : vector<128xf32> to vector<1x1x1x128xf32>
    %727 = vector.broadcast %726 : vector<1x1x1x128xf32> to vector<1x8x8x128xf32>
    %728 = arith.mulf %723, %727 : vector<1x8x8x128xf32>
    %729 = arith.addf %722, %728 : vector<1x8x8x128xf32>
    %730 = vector.extract_strided_slice %680 {offsets = [0, 7, 0, 0], sizes = [1, 8, 8, 128], strides = [1, 1, 1, 1]} : vector<1x16x8x128xf32> to vector<1x8x8x128xf32>
    %c1_232 = arith.constant 1 : index
    %c63_233 = arith.constant 63 : index
    %c0_234 = arith.constant 0 : index
    %731 = vector.load %arg4[%c1_232, %c63_233, %c0_234] : memref<2x81x128xf32, #tpu.memory_space<vmem>>, vector<1x1x128xf32>
    %732 = vector.shape_cast %731 : vector<1x1x128xf32> to vector<128xf32>
    %733 = vector.shape_cast %732 : vector<128xf32> to vector<1x1x1x128xf32>
    %734 = vector.broadcast %733 : vector<1x1x1x128xf32> to vector<1x8x8x128xf32>
    %735 = arith.mulf %730, %734 : vector<1x8x8x128xf32>
    %736 = arith.addf %729, %735 : vector<1x8x8x128xf32>
    %737 = vector.extract_strided_slice %680 {offsets = [0, 8, 0, 0], sizes = [1, 8, 8, 128], strides = [1, 1, 1, 1]} : vector<1x16x8x128xf32> to vector<1x8x8x128xf32>
    %c1_235 = arith.constant 1 : index
    %c72_236 = arith.constant 72 : index
    %c0_237 = arith.constant 0 : index
    %738 = vector.load %arg4[%c1_235, %c72_236, %c0_237] : memref<2x81x128xf32, #tpu.memory_space<vmem>>, vector<1x1x128xf32>
    %739 = vector.shape_cast %738 : vector<1x1x128xf32> to vector<128xf32>
    %740 = vector.shape_cast %739 : vector<128xf32> to vector<1x1x1x128xf32>
    %741 = vector.broadcast %740 : vector<1x1x1x128xf32> to vector<1x8x8x128xf32>
    %742 = arith.mulf %737, %741 : vector<1x8x8x128xf32>
    %743 = arith.addf %736, %742 : vector<1x8x8x128xf32>
    %744 = vector.extract_strided_slice %678 {offsets = [0, 0, 5, 0], sizes = [1, 16, 8, 128], strides = [1, 1, 1, 1]} : vector<1x16x24x128xf32> to vector<1x16x8x128xf32>
    %745 = vector.extract_strided_slice %744 {offsets = [0, 0, 0, 0], sizes = [1, 8, 8, 128], strides = [1, 1, 1, 1]} : vector<1x16x8x128xf32> to vector<1x8x8x128xf32>
    %c1_238 = arith.constant 1 : index
    %c1_239 = arith.constant 1 : index
    %c0_240 = arith.constant 0 : index
    %746 = vector.load %arg4[%c1_238, %c1_239, %c0_240] : memref<2x81x128xf32, #tpu.memory_space<vmem>>, vector<1x1x128xf32>
    %747 = vector.shape_cast %746 : vector<1x1x128xf32> to vector<128xf32>
    %748 = vector.shape_cast %747 : vector<128xf32> to vector<1x1x1x128xf32>
    %749 = vector.broadcast %748 : vector<1x1x1x128xf32> to vector<1x8x8x128xf32>
    %750 = arith.mulf %745, %749 : vector<1x8x8x128xf32>
    %751 = arith.addf %743, %750 : vector<1x8x8x128xf32>
    %752 = vector.extract_strided_slice %744 {offsets = [0, 1, 0, 0], sizes = [1, 8, 8, 128], strides = [1, 1, 1, 1]} : vector<1x16x8x128xf32> to vector<1x8x8x128xf32>
    %c1_241 = arith.constant 1 : index
    %c10_242 = arith.constant 10 : index
    %c0_243 = arith.constant 0 : index
    %753 = vector.load %arg4[%c1_241, %c10_242, %c0_243] : memref<2x81x128xf32, #tpu.memory_space<vmem>>, vector<1x1x128xf32>
    %754 = vector.shape_cast %753 : vector<1x1x128xf32> to vector<128xf32>
    %755 = vector.shape_cast %754 : vector<128xf32> to vector<1x1x1x128xf32>
    %756 = vector.broadcast %755 : vector<1x1x1x128xf32> to vector<1x8x8x128xf32>
    %757 = arith.mulf %752, %756 : vector<1x8x8x128xf32>
    %758 = arith.addf %751, %757 : vector<1x8x8x128xf32>
    %759 = vector.extract_strided_slice %744 {offsets = [0, 2, 0, 0], sizes = [1, 8, 8, 128], strides = [1, 1, 1, 1]} : vector<1x16x8x128xf32> to vector<1x8x8x128xf32>
    %c1_244 = arith.constant 1 : index
    %c19_245 = arith.constant 19 : index
    %c0_246 = arith.constant 0 : index
    %760 = vector.load %arg4[%c1_244, %c19_245, %c0_246] : memref<2x81x128xf32, #tpu.memory_space<vmem>>, vector<1x1x128xf32>
    %761 = vector.shape_cast %760 : vector<1x1x128xf32> to vector<128xf32>
    %762 = vector.shape_cast %761 : vector<128xf32> to vector<1x1x1x128xf32>
    %763 = vector.broadcast %762 : vector<1x1x1x128xf32> to vector<1x8x8x128xf32>
    %764 = arith.mulf %759, %763 : vector<1x8x8x128xf32>
    %765 = arith.addf %758, %764 : vector<1x8x8x128xf32>
    %766 = vector.extract_strided_slice %744 {offsets = [0, 3, 0, 0], sizes = [1, 8, 8, 128], strides = [1, 1, 1, 1]} : vector<1x16x8x128xf32> to vector<1x8x8x128xf32>
    %c1_247 = arith.constant 1 : index
    %c28_248 = arith.constant 28 : index
    %c0_249 = arith.constant 0 : index
    %767 = vector.load %arg4[%c1_247, %c28_248, %c0_249] : memref<2x81x128xf32, #tpu.memory_space<vmem>>, vector<1x1x128xf32>
    %768 = vector.shape_cast %767 : vector<1x1x128xf32> to vector<128xf32>
    %769 = vector.shape_cast %768 : vector<128xf32> to vector<1x1x1x128xf32>
    %770 = vector.broadcast %769 : vector<1x1x1x128xf32> to vector<1x8x8x128xf32>
    %771 = arith.mulf %766, %770 : vector<1x8x8x128xf32>
    %772 = arith.addf %765, %771 : vector<1x8x8x128xf32>
    %773 = vector.extract_strided_slice %744 {offsets = [0, 4, 0, 0], sizes = [1, 8, 8, 128], strides = [1, 1, 1, 1]} : vector<1x16x8x128xf32> to vector<1x8x8x128xf32>
    %c1_250 = arith.constant 1 : index
    %c37_251 = arith.constant 37 : index
    %c0_252 = arith.constant 0 : index
    %774 = vector.load %arg4[%c1_250, %c37_251, %c0_252] : memref<2x81x128xf32, #tpu.memory_space<vmem>>, vector<1x1x128xf32>
    %775 = vector.shape_cast %774 : vector<1x1x128xf32> to vector<128xf32>
    %776 = vector.shape_cast %775 : vector<128xf32> to vector<1x1x1x128xf32>
    %777 = vector.broadcast %776 : vector<1x1x1x128xf32> to vector<1x8x8x128xf32>
    %778 = arith.mulf %773, %777 : vector<1x8x8x128xf32>
    %779 = arith.addf %772, %778 : vector<1x8x8x128xf32>
    %780 = vector.extract_strided_slice %744 {offsets = [0, 5, 0, 0], sizes = [1, 8, 8, 128], strides = [1, 1, 1, 1]} : vector<1x16x8x128xf32> to vector<1x8x8x128xf32>
    %c1_253 = arith.constant 1 : index
    %c46_254 = arith.constant 46 : index
    %c0_255 = arith.constant 0 : index
    %781 = vector.load %arg4[%c1_253, %c46_254, %c0_255] : memref<2x81x128xf32, #tpu.memory_space<vmem>>, vector<1x1x128xf32>
    %782 = vector.shape_cast %781 : vector<1x1x128xf32> to vector<128xf32>
    %783 = vector.shape_cast %782 : vector<128xf32> to vector<1x1x1x128xf32>
    %784 = vector.broadcast %783 : vector<1x1x1x128xf32> to vector<1x8x8x128xf32>
    %785 = arith.mulf %780, %784 : vector<1x8x8x128xf32>
    %786 = arith.addf %779, %785 : vector<1x8x8x128xf32>
    %787 = vector.extract_strided_slice %744 {offsets = [0, 6, 0, 0], sizes = [1, 8, 8, 128], strides = [1, 1, 1, 1]} : vector<1x16x8x128xf32> to vector<1x8x8x128xf32>
    %c1_256 = arith.constant 1 : index
    %c55_257 = arith.constant 55 : index
    %c0_258 = arith.constant 0 : index
    %788 = vector.load %arg4[%c1_256, %c55_257, %c0_258] : memref<2x81x128xf32, #tpu.memory_space<vmem>>, vector<1x1x128xf32>
    %789 = vector.shape_cast %788 : vector<1x1x128xf32> to vector<128xf32>
    %790 = vector.shape_cast %789 : vector<128xf32> to vector<1x1x1x128xf32>
    %791 = vector.broadcast %790 : vector<1x1x1x128xf32> to vector<1x8x8x128xf32>
    %792 = arith.mulf %787, %791 : vector<1x8x8x128xf32>
    %793 = arith.addf %786, %792 : vector<1x8x8x128xf32>
    %794 = vector.extract_strided_slice %744 {offsets = [0, 7, 0, 0], sizes = [1, 8, 8, 128], strides = [1, 1, 1, 1]} : vector<1x16x8x128xf32> to vector<1x8x8x128xf32>
    %c1_259 = arith.constant 1 : index
    %c64_260 = arith.constant 64 : index
    %c0_261 = arith.constant 0 : index
    %795 = vector.load %arg4[%c1_259, %c64_260, %c0_261] : memref<2x81x128xf32, #tpu.memory_space<vmem>>, vector<1x1x128xf32>
    %796 = vector.shape_cast %795 : vector<1x1x128xf32> to vector<128xf32>
    %797 = vector.shape_cast %796 : vector<128xf32> to vector<1x1x1x128xf32>
    %798 = vector.broadcast %797 : vector<1x1x1x128xf32> to vector<1x8x8x128xf32>
    %799 = arith.mulf %794, %798 : vector<1x8x8x128xf32>
    %800 = arith.addf %793, %799 : vector<1x8x8x128xf32>
    %801 = vector.extract_strided_slice %744 {offsets = [0, 8, 0, 0], sizes = [1, 8, 8, 128], strides = [1, 1, 1, 1]} : vector<1x16x8x128xf32> to vector<1x8x8x128xf32>
    %c1_262 = arith.constant 1 : index
    %c73_263 = arith.constant 73 : index
    %c0_264 = arith.constant 0 : index
    %802 = vector.load %arg4[%c1_262, %c73_263, %c0_264] : memref<2x81x128xf32, #tpu.memory_space<vmem>>, vector<1x1x128xf32>
    %803 = vector.shape_cast %802 : vector<1x1x128xf32> to vector<128xf32>
    %804 = vector.shape_cast %803 : vector<128xf32> to vector<1x1x1x128xf32>
    %805 = vector.broadcast %804 : vector<1x1x1x128xf32> to vector<1x8x8x128xf32>
    %806 = arith.mulf %801, %805 : vector<1x8x8x128xf32>
    %807 = arith.addf %800, %806 : vector<1x8x8x128xf32>
    %808 = vector.extract_strided_slice %678 {offsets = [0, 0, 6, 0], sizes = [1, 16, 8, 128], strides = [1, 1, 1, 1]} : vector<1x16x24x128xf32> to vector<1x16x8x128xf32>
    %809 = vector.extract_strided_slice %808 {offsets = [0, 0, 0, 0], sizes = [1, 8, 8, 128], strides = [1, 1, 1, 1]} : vector<1x16x8x128xf32> to vector<1x8x8x128xf32>
    %c1_265 = arith.constant 1 : index
    %c2_266 = arith.constant 2 : index
    %c0_267 = arith.constant 0 : index
    %810 = vector.load %arg4[%c1_265, %c2_266, %c0_267] : memref<2x81x128xf32, #tpu.memory_space<vmem>>, vector<1x1x128xf32>
    %811 = vector.shape_cast %810 : vector<1x1x128xf32> to vector<128xf32>
    %812 = vector.shape_cast %811 : vector<128xf32> to vector<1x1x1x128xf32>
    %813 = vector.broadcast %812 : vector<1x1x1x128xf32> to vector<1x8x8x128xf32>
    %814 = arith.mulf %809, %813 : vector<1x8x8x128xf32>
    %815 = arith.addf %807, %814 : vector<1x8x8x128xf32>
    %816 = vector.extract_strided_slice %808 {offsets = [0, 1, 0, 0], sizes = [1, 8, 8, 128], strides = [1, 1, 1, 1]} : vector<1x16x8x128xf32> to vector<1x8x8x128xf32>
    %c1_268 = arith.constant 1 : index
    %c11_269 = arith.constant 11 : index
    %c0_270 = arith.constant 0 : index
    %817 = vector.load %arg4[%c1_268, %c11_269, %c0_270] : memref<2x81x128xf32, #tpu.memory_space<vmem>>, vector<1x1x128xf32>
    %818 = vector.shape_cast %817 : vector<1x1x128xf32> to vector<128xf32>
    %819 = vector.shape_cast %818 : vector<128xf32> to vector<1x1x1x128xf32>
    %820 = vector.broadcast %819 : vector<1x1x1x128xf32> to vector<1x8x8x128xf32>
    %821 = arith.mulf %816, %820 : vector<1x8x8x128xf32>
    %822 = arith.addf %815, %821 : vector<1x8x8x128xf32>
    %823 = vector.extract_strided_slice %808 {offsets = [0, 2, 0, 0], sizes = [1, 8, 8, 128], strides = [1, 1, 1, 1]} : vector<1x16x8x128xf32> to vector<1x8x8x128xf32>
    %c1_271 = arith.constant 1 : index
    %c20_272 = arith.constant 20 : index
    %c0_273 = arith.constant 0 : index
    %824 = vector.load %arg4[%c1_271, %c20_272, %c0_273] : memref<2x81x128xf32, #tpu.memory_space<vmem>>, vector<1x1x128xf32>
    %825 = vector.shape_cast %824 : vector<1x1x128xf32> to vector<128xf32>
    %826 = vector.shape_cast %825 : vector<128xf32> to vector<1x1x1x128xf32>
    %827 = vector.broadcast %826 : vector<1x1x1x128xf32> to vector<1x8x8x128xf32>
    %828 = arith.mulf %823, %827 : vector<1x8x8x128xf32>
    %829 = arith.addf %822, %828 : vector<1x8x8x128xf32>
    %830 = vector.extract_strided_slice %808 {offsets = [0, 3, 0, 0], sizes = [1, 8, 8, 128], strides = [1, 1, 1, 1]} : vector<1x16x8x128xf32> to vector<1x8x8x128xf32>
    %c1_274 = arith.constant 1 : index
    %c29_275 = arith.constant 29 : index
    %c0_276 = arith.constant 0 : index
    %831 = vector.load %arg4[%c1_274, %c29_275, %c0_276] : memref<2x81x128xf32, #tpu.memory_space<vmem>>, vector<1x1x128xf32>
    %832 = vector.shape_cast %831 : vector<1x1x128xf32> to vector<128xf32>
    %833 = vector.shape_cast %832 : vector<128xf32> to vector<1x1x1x128xf32>
    %834 = vector.broadcast %833 : vector<1x1x1x128xf32> to vector<1x8x8x128xf32>
    %835 = arith.mulf %830, %834 : vector<1x8x8x128xf32>
    %836 = arith.addf %829, %835 : vector<1x8x8x128xf32>
    %837 = vector.extract_strided_slice %808 {offsets = [0, 4, 0, 0], sizes = [1, 8, 8, 128], strides = [1, 1, 1, 1]} : vector<1x16x8x128xf32> to vector<1x8x8x128xf32>
    %c1_277 = arith.constant 1 : index
    %c38_278 = arith.constant 38 : index
    %c0_279 = arith.constant 0 : index
    %838 = vector.load %arg4[%c1_277, %c38_278, %c0_279] : memref<2x81x128xf32, #tpu.memory_space<vmem>>, vector<1x1x128xf32>
    %839 = vector.shape_cast %838 : vector<1x1x128xf32> to vector<128xf32>
    %840 = vector.shape_cast %839 : vector<128xf32> to vector<1x1x1x128xf32>
    %841 = vector.broadcast %840 : vector<1x1x1x128xf32> to vector<1x8x8x128xf32>
    %842 = arith.mulf %837, %841 : vector<1x8x8x128xf32>
    %843 = arith.addf %836, %842 : vector<1x8x8x128xf32>
    %844 = vector.extract_strided_slice %808 {offsets = [0, 5, 0, 0], sizes = [1, 8, 8, 128], strides = [1, 1, 1, 1]} : vector<1x16x8x128xf32> to vector<1x8x8x128xf32>
    %c1_280 = arith.constant 1 : index
    %c47_281 = arith.constant 47 : index
    %c0_282 = arith.constant 0 : index
    %845 = vector.load %arg4[%c1_280, %c47_281, %c0_282] : memref<2x81x128xf32, #tpu.memory_space<vmem>>, vector<1x1x128xf32>
    %846 = vector.shape_cast %845 : vector<1x1x128xf32> to vector<128xf32>
    %847 = vector.shape_cast %846 : vector<128xf32> to vector<1x1x1x128xf32>
    %848 = vector.broadcast %847 : vector<1x1x1x128xf32> to vector<1x8x8x128xf32>
    %849 = arith.mulf %844, %848 : vector<1x8x8x128xf32>
    %850 = arith.addf %843, %849 : vector<1x8x8x128xf32>
    %851 = vector.extract_strided_slice %808 {offsets = [0, 6, 0, 0], sizes = [1, 8, 8, 128], strides = [1, 1, 1, 1]} : vector<1x16x8x128xf32> to vector<1x8x8x128xf32>
    %c1_283 = arith.constant 1 : index
    %c56_284 = arith.constant 56 : index
    %c0_285 = arith.constant 0 : index
    %852 = vector.load %arg4[%c1_283, %c56_284, %c0_285] : memref<2x81x128xf32, #tpu.memory_space<vmem>>, vector<1x1x128xf32>
    %853 = vector.shape_cast %852 : vector<1x1x128xf32> to vector<128xf32>
    %854 = vector.shape_cast %853 : vector<128xf32> to vector<1x1x1x128xf32>
    %855 = vector.broadcast %854 : vector<1x1x1x128xf32> to vector<1x8x8x128xf32>
    %856 = arith.mulf %851, %855 : vector<1x8x8x128xf32>
    %857 = arith.addf %850, %856 : vector<1x8x8x128xf32>
    %858 = vector.extract_strided_slice %808 {offsets = [0, 7, 0, 0], sizes = [1, 8, 8, 128], strides = [1, 1, 1, 1]} : vector<1x16x8x128xf32> to vector<1x8x8x128xf32>
    %c1_286 = arith.constant 1 : index
    %c65_287 = arith.constant 65 : index
    %c0_288 = arith.constant 0 : index
    %859 = vector.load %arg4[%c1_286, %c65_287, %c0_288] : memref<2x81x128xf32, #tpu.memory_space<vmem>>, vector<1x1x128xf32>
    %860 = vector.shape_cast %859 : vector<1x1x128xf32> to vector<128xf32>
    %861 = vector.shape_cast %860 : vector<128xf32> to vector<1x1x1x128xf32>
    %862 = vector.broadcast %861 : vector<1x1x1x128xf32> to vector<1x8x8x128xf32>
    %863 = arith.mulf %858, %862 : vector<1x8x8x128xf32>
    %864 = arith.addf %857, %863 : vector<1x8x8x128xf32>
    %865 = vector.extract_strided_slice %808 {offsets = [0, 8, 0, 0], sizes = [1, 8, 8, 128], strides = [1, 1, 1, 1]} : vector<1x16x8x128xf32> to vector<1x8x8x128xf32>
    %c1_289 = arith.constant 1 : index
    %c74_290 = arith.constant 74 : index
    %c0_291 = arith.constant 0 : index
    %866 = vector.load %arg4[%c1_289, %c74_290, %c0_291] : memref<2x81x128xf32, #tpu.memory_space<vmem>>, vector<1x1x128xf32>
    %867 = vector.shape_cast %866 : vector<1x1x128xf32> to vector<128xf32>
    %868 = vector.shape_cast %867 : vector<128xf32> to vector<1x1x1x128xf32>
    %869 = vector.broadcast %868 : vector<1x1x1x128xf32> to vector<1x8x8x128xf32>
    %870 = arith.mulf %865, %869 : vector<1x8x8x128xf32>
    %871 = arith.addf %864, %870 : vector<1x8x8x128xf32>
    %872 = vector.extract_strided_slice %678 {offsets = [0, 0, 7, 0], sizes = [1, 16, 8, 128], strides = [1, 1, 1, 1]} : vector<1x16x24x128xf32> to vector<1x16x8x128xf32>
    %873 = vector.extract_strided_slice %872 {offsets = [0, 0, 0, 0], sizes = [1, 8, 8, 128], strides = [1, 1, 1, 1]} : vector<1x16x8x128xf32> to vector<1x8x8x128xf32>
    %c1_292 = arith.constant 1 : index
    %c3_293 = arith.constant 3 : index
    %c0_294 = arith.constant 0 : index
    %874 = vector.load %arg4[%c1_292, %c3_293, %c0_294] : memref<2x81x128xf32, #tpu.memory_space<vmem>>, vector<1x1x128xf32>
    %875 = vector.shape_cast %874 : vector<1x1x128xf32> to vector<128xf32>
    %876 = vector.shape_cast %875 : vector<128xf32> to vector<1x1x1x128xf32>
    %877 = vector.broadcast %876 : vector<1x1x1x128xf32> to vector<1x8x8x128xf32>
    %878 = arith.mulf %873, %877 : vector<1x8x8x128xf32>
    %879 = arith.addf %871, %878 : vector<1x8x8x128xf32>
    %880 = vector.extract_strided_slice %872 {offsets = [0, 1, 0, 0], sizes = [1, 8, 8, 128], strides = [1, 1, 1, 1]} : vector<1x16x8x128xf32> to vector<1x8x8x128xf32>
    %c1_295 = arith.constant 1 : index
    %c12_296 = arith.constant 12 : index
    %c0_297 = arith.constant 0 : index
    %881 = vector.load %arg4[%c1_295, %c12_296, %c0_297] : memref<2x81x128xf32, #tpu.memory_space<vmem>>, vector<1x1x128xf32>
    %882 = vector.shape_cast %881 : vector<1x1x128xf32> to vector<128xf32>
    %883 = vector.shape_cast %882 : vector<128xf32> to vector<1x1x1x128xf32>
    %884 = vector.broadcast %883 : vector<1x1x1x128xf32> to vector<1x8x8x128xf32>
    %885 = arith.mulf %880, %884 : vector<1x8x8x128xf32>
    %886 = arith.addf %879, %885 : vector<1x8x8x128xf32>
    %887 = vector.extract_strided_slice %872 {offsets = [0, 2, 0, 0], sizes = [1, 8, 8, 128], strides = [1, 1, 1, 1]} : vector<1x16x8x128xf32> to vector<1x8x8x128xf32>
    %c1_298 = arith.constant 1 : index
    %c21_299 = arith.constant 21 : index
    %c0_300 = arith.constant 0 : index
    %888 = vector.load %arg4[%c1_298, %c21_299, %c0_300] : memref<2x81x128xf32, #tpu.memory_space<vmem>>, vector<1x1x128xf32>
    %889 = vector.shape_cast %888 : vector<1x1x128xf32> to vector<128xf32>
    %890 = vector.shape_cast %889 : vector<128xf32> to vector<1x1x1x128xf32>
    %891 = vector.broadcast %890 : vector<1x1x1x128xf32> to vector<1x8x8x128xf32>
    %892 = arith.mulf %887, %891 : vector<1x8x8x128xf32>
    %893 = arith.addf %886, %892 : vector<1x8x8x128xf32>
    %894 = vector.extract_strided_slice %872 {offsets = [0, 3, 0, 0], sizes = [1, 8, 8, 128], strides = [1, 1, 1, 1]} : vector<1x16x8x128xf32> to vector<1x8x8x128xf32>
    %c1_301 = arith.constant 1 : index
    %c30_302 = arith.constant 30 : index
    %c0_303 = arith.constant 0 : index
    %895 = vector.load %arg4[%c1_301, %c30_302, %c0_303] : memref<2x81x128xf32, #tpu.memory_space<vmem>>, vector<1x1x128xf32>
    %896 = vector.shape_cast %895 : vector<1x1x128xf32> to vector<128xf32>
    %897 = vector.shape_cast %896 : vector<128xf32> to vector<1x1x1x128xf32>
    %898 = vector.broadcast %897 : vector<1x1x1x128xf32> to vector<1x8x8x128xf32>
    %899 = arith.mulf %894, %898 : vector<1x8x8x128xf32>
    %900 = arith.addf %893, %899 : vector<1x8x8x128xf32>
    %901 = vector.extract_strided_slice %872 {offsets = [0, 4, 0, 0], sizes = [1, 8, 8, 128], strides = [1, 1, 1, 1]} : vector<1x16x8x128xf32> to vector<1x8x8x128xf32>
    %c1_304 = arith.constant 1 : index
    %c39_305 = arith.constant 39 : index
    %c0_306 = arith.constant 0 : index
    %902 = vector.load %arg4[%c1_304, %c39_305, %c0_306] : memref<2x81x128xf32, #tpu.memory_space<vmem>>, vector<1x1x128xf32>
    %903 = vector.shape_cast %902 : vector<1x1x128xf32> to vector<128xf32>
    %904 = vector.shape_cast %903 : vector<128xf32> to vector<1x1x1x128xf32>
    %905 = vector.broadcast %904 : vector<1x1x1x128xf32> to vector<1x8x8x128xf32>
    %906 = arith.mulf %901, %905 : vector<1x8x8x128xf32>
    %907 = arith.addf %900, %906 : vector<1x8x8x128xf32>
    %908 = vector.extract_strided_slice %872 {offsets = [0, 5, 0, 0], sizes = [1, 8, 8, 128], strides = [1, 1, 1, 1]} : vector<1x16x8x128xf32> to vector<1x8x8x128xf32>
    %c1_307 = arith.constant 1 : index
    %c48_308 = arith.constant 48 : index
    %c0_309 = arith.constant 0 : index
    %909 = vector.load %arg4[%c1_307, %c48_308, %c0_309] : memref<2x81x128xf32, #tpu.memory_space<vmem>>, vector<1x1x128xf32>
    %910 = vector.shape_cast %909 : vector<1x1x128xf32> to vector<128xf32>
    %911 = vector.shape_cast %910 : vector<128xf32> to vector<1x1x1x128xf32>
    %912 = vector.broadcast %911 : vector<1x1x1x128xf32> to vector<1x8x8x128xf32>
    %913 = arith.mulf %908, %912 : vector<1x8x8x128xf32>
    %914 = arith.addf %907, %913 : vector<1x8x8x128xf32>
    %915 = vector.extract_strided_slice %872 {offsets = [0, 6, 0, 0], sizes = [1, 8, 8, 128], strides = [1, 1, 1, 1]} : vector<1x16x8x128xf32> to vector<1x8x8x128xf32>
    %c1_310 = arith.constant 1 : index
    %c57_311 = arith.constant 57 : index
    %c0_312 = arith.constant 0 : index
    %916 = vector.load %arg4[%c1_310, %c57_311, %c0_312] : memref<2x81x128xf32, #tpu.memory_space<vmem>>, vector<1x1x128xf32>
    %917 = vector.shape_cast %916 : vector<1x1x128xf32> to vector<128xf32>
    %918 = vector.shape_cast %917 : vector<128xf32> to vector<1x1x1x128xf32>
    %919 = vector.broadcast %918 : vector<1x1x1x128xf32> to vector<1x8x8x128xf32>
    %920 = arith.mulf %915, %919 : vector<1x8x8x128xf32>
    %921 = arith.addf %914, %920 : vector<1x8x8x128xf32>
    %922 = vector.extract_strided_slice %872 {offsets = [0, 7, 0, 0], sizes = [1, 8, 8, 128], strides = [1, 1, 1, 1]} : vector<1x16x8x128xf32> to vector<1x8x8x128xf32>
    %c1_313 = arith.constant 1 : index
    %c66_314 = arith.constant 66 : index
    %c0_315 = arith.constant 0 : index
    %923 = vector.load %arg4[%c1_313, %c66_314, %c0_315] : memref<2x81x128xf32, #tpu.memory_space<vmem>>, vector<1x1x128xf32>
    %924 = vector.shape_cast %923 : vector<1x1x128xf32> to vector<128xf32>
    %925 = vector.shape_cast %924 : vector<128xf32> to vector<1x1x1x128xf32>
    %926 = vector.broadcast %925 : vector<1x1x1x128xf32> to vector<1x8x8x128xf32>
    %927 = arith.mulf %922, %926 : vector<1x8x8x128xf32>
    %928 = arith.addf %921, %927 : vector<1x8x8x128xf32>
    %929 = vector.extract_strided_slice %872 {offsets = [0, 8, 0, 0], sizes = [1, 8, 8, 128], strides = [1, 1, 1, 1]} : vector<1x16x8x128xf32> to vector<1x8x8x128xf32>
    %c1_316 = arith.constant 1 : index
    %c75_317 = arith.constant 75 : index
    %c0_318 = arith.constant 0 : index
    %930 = vector.load %arg4[%c1_316, %c75_317, %c0_318] : memref<2x81x128xf32, #tpu.memory_space<vmem>>, vector<1x1x128xf32>
    %931 = vector.shape_cast %930 : vector<1x1x128xf32> to vector<128xf32>
    %932 = vector.shape_cast %931 : vector<128xf32> to vector<1x1x1x128xf32>
    %933 = vector.broadcast %932 : vector<1x1x1x128xf32> to vector<1x8x8x128xf32>
    %934 = arith.mulf %929, %933 : vector<1x8x8x128xf32>
    %935 = arith.addf %928, %934 : vector<1x8x8x128xf32>
    %936 = vector.extract_strided_slice %678 {offsets = [0, 0, 8, 0], sizes = [1, 16, 8, 128], strides = [1, 1, 1, 1]} : vector<1x16x24x128xf32> to vector<1x16x8x128xf32>
    %937 = vector.extract_strided_slice %936 {offsets = [0, 0, 0, 0], sizes = [1, 8, 8, 128], strides = [1, 1, 1, 1]} : vector<1x16x8x128xf32> to vector<1x8x8x128xf32>
    %c1_319 = arith.constant 1 : index
    %c4_320 = arith.constant 4 : index
    %c0_321 = arith.constant 0 : index
    %938 = vector.load %arg4[%c1_319, %c4_320, %c0_321] : memref<2x81x128xf32, #tpu.memory_space<vmem>>, vector<1x1x128xf32>
    %939 = vector.shape_cast %938 : vector<1x1x128xf32> to vector<128xf32>
    %940 = vector.shape_cast %939 : vector<128xf32> to vector<1x1x1x128xf32>
    %941 = vector.broadcast %940 : vector<1x1x1x128xf32> to vector<1x8x8x128xf32>
    %942 = arith.mulf %937, %941 : vector<1x8x8x128xf32>
    %943 = arith.addf %935, %942 : vector<1x8x8x128xf32>
    %944 = vector.extract_strided_slice %936 {offsets = [0, 1, 0, 0], sizes = [1, 8, 8, 128], strides = [1, 1, 1, 1]} : vector<1x16x8x128xf32> to vector<1x8x8x128xf32>
    %c1_322 = arith.constant 1 : index
    %c13_323 = arith.constant 13 : index
    %c0_324 = arith.constant 0 : index
    %945 = vector.load %arg4[%c1_322, %c13_323, %c0_324] : memref<2x81x128xf32, #tpu.memory_space<vmem>>, vector<1x1x128xf32>
    %946 = vector.shape_cast %945 : vector<1x1x128xf32> to vector<128xf32>
    %947 = vector.shape_cast %946 : vector<128xf32> to vector<1x1x1x128xf32>
    %948 = vector.broadcast %947 : vector<1x1x1x128xf32> to vector<1x8x8x128xf32>
    %949 = arith.mulf %944, %948 : vector<1x8x8x128xf32>
    %950 = arith.addf %943, %949 : vector<1x8x8x128xf32>
    %951 = vector.extract_strided_slice %936 {offsets = [0, 2, 0, 0], sizes = [1, 8, 8, 128], strides = [1, 1, 1, 1]} : vector<1x16x8x128xf32> to vector<1x8x8x128xf32>
    %c1_325 = arith.constant 1 : index
    %c22_326 = arith.constant 22 : index
    %c0_327 = arith.constant 0 : index
    %952 = vector.load %arg4[%c1_325, %c22_326, %c0_327] : memref<2x81x128xf32, #tpu.memory_space<vmem>>, vector<1x1x128xf32>
    %953 = vector.shape_cast %952 : vector<1x1x128xf32> to vector<128xf32>
    %954 = vector.shape_cast %953 : vector<128xf32> to vector<1x1x1x128xf32>
    %955 = vector.broadcast %954 : vector<1x1x1x128xf32> to vector<1x8x8x128xf32>
    %956 = arith.mulf %951, %955 : vector<1x8x8x128xf32>
    %957 = arith.addf %950, %956 : vector<1x8x8x128xf32>
    %958 = vector.extract_strided_slice %936 {offsets = [0, 3, 0, 0], sizes = [1, 8, 8, 128], strides = [1, 1, 1, 1]} : vector<1x16x8x128xf32> to vector<1x8x8x128xf32>
    %c1_328 = arith.constant 1 : index
    %c31_329 = arith.constant 31 : index
    %c0_330 = arith.constant 0 : index
    %959 = vector.load %arg4[%c1_328, %c31_329, %c0_330] : memref<2x81x128xf32, #tpu.memory_space<vmem>>, vector<1x1x128xf32>
    %960 = vector.shape_cast %959 : vector<1x1x128xf32> to vector<128xf32>
    %961 = vector.shape_cast %960 : vector<128xf32> to vector<1x1x1x128xf32>
    %962 = vector.broadcast %961 : vector<1x1x1x128xf32> to vector<1x8x8x128xf32>
    %963 = arith.mulf %958, %962 : vector<1x8x8x128xf32>
    %964 = arith.addf %957, %963 : vector<1x8x8x128xf32>
    %965 = vector.extract_strided_slice %936 {offsets = [0, 4, 0, 0], sizes = [1, 8, 8, 128], strides = [1, 1, 1, 1]} : vector<1x16x8x128xf32> to vector<1x8x8x128xf32>
    %c1_331 = arith.constant 1 : index
    %c40_332 = arith.constant 40 : index
    %c0_333 = arith.constant 0 : index
    %966 = vector.load %arg4[%c1_331, %c40_332, %c0_333] : memref<2x81x128xf32, #tpu.memory_space<vmem>>, vector<1x1x128xf32>
    %967 = vector.shape_cast %966 : vector<1x1x128xf32> to vector<128xf32>
    %968 = vector.shape_cast %967 : vector<128xf32> to vector<1x1x1x128xf32>
    %969 = vector.broadcast %968 : vector<1x1x1x128xf32> to vector<1x8x8x128xf32>
    %970 = arith.mulf %965, %969 : vector<1x8x8x128xf32>
    %971 = arith.addf %964, %970 : vector<1x8x8x128xf32>
    %972 = vector.extract_strided_slice %936 {offsets = [0, 5, 0, 0], sizes = [1, 8, 8, 128], strides = [1, 1, 1, 1]} : vector<1x16x8x128xf32> to vector<1x8x8x128xf32>
    %c1_334 = arith.constant 1 : index
    %c49_335 = arith.constant 49 : index
    %c0_336 = arith.constant 0 : index
    %973 = vector.load %arg4[%c1_334, %c49_335, %c0_336] : memref<2x81x128xf32, #tpu.memory_space<vmem>>, vector<1x1x128xf32>
    %974 = vector.shape_cast %973 : vector<1x1x128xf32> to vector<128xf32>
    %975 = vector.shape_cast %974 : vector<128xf32> to vector<1x1x1x128xf32>
    %976 = vector.broadcast %975 : vector<1x1x1x128xf32> to vector<1x8x8x128xf32>
    %977 = arith.mulf %972, %976 : vector<1x8x8x128xf32>
    %978 = arith.addf %971, %977 : vector<1x8x8x128xf32>
    %979 = vector.extract_strided_slice %936 {offsets = [0, 6, 0, 0], sizes = [1, 8, 8, 128], strides = [1, 1, 1, 1]} : vector<1x16x8x128xf32> to vector<1x8x8x128xf32>
    %c1_337 = arith.constant 1 : index
    %c58_338 = arith.constant 58 : index
    %c0_339 = arith.constant 0 : index
    %980 = vector.load %arg4[%c1_337, %c58_338, %c0_339] : memref<2x81x128xf32, #tpu.memory_space<vmem>>, vector<1x1x128xf32>
    %981 = vector.shape_cast %980 : vector<1x1x128xf32> to vector<128xf32>
    %982 = vector.shape_cast %981 : vector<128xf32> to vector<1x1x1x128xf32>
    %983 = vector.broadcast %982 : vector<1x1x1x128xf32> to vector<1x8x8x128xf32>
    %984 = arith.mulf %979, %983 : vector<1x8x8x128xf32>
    %985 = arith.addf %978, %984 : vector<1x8x8x128xf32>
    %986 = vector.extract_strided_slice %936 {offsets = [0, 7, 0, 0], sizes = [1, 8, 8, 128], strides = [1, 1, 1, 1]} : vector<1x16x8x128xf32> to vector<1x8x8x128xf32>
    %c1_340 = arith.constant 1 : index
    %c67_341 = arith.constant 67 : index
    %c0_342 = arith.constant 0 : index
    %987 = vector.load %arg4[%c1_340, %c67_341, %c0_342] : memref<2x81x128xf32, #tpu.memory_space<vmem>>, vector<1x1x128xf32>
    %988 = vector.shape_cast %987 : vector<1x1x128xf32> to vector<128xf32>
    %989 = vector.shape_cast %988 : vector<128xf32> to vector<1x1x1x128xf32>
    %990 = vector.broadcast %989 : vector<1x1x1x128xf32> to vector<1x8x8x128xf32>
    %991 = arith.mulf %986, %990 : vector<1x8x8x128xf32>
    %992 = arith.addf %985, %991 : vector<1x8x8x128xf32>
    %993 = vector.extract_strided_slice %936 {offsets = [0, 8, 0, 0], sizes = [1, 8, 8, 128], strides = [1, 1, 1, 1]} : vector<1x16x8x128xf32> to vector<1x8x8x128xf32>
    %c1_343 = arith.constant 1 : index
    %c76_344 = arith.constant 76 : index
    %c0_345 = arith.constant 0 : index
    %994 = vector.load %arg4[%c1_343, %c76_344, %c0_345] : memref<2x81x128xf32, #tpu.memory_space<vmem>>, vector<1x1x128xf32>
    %995 = vector.shape_cast %994 : vector<1x1x128xf32> to vector<128xf32>
    %996 = vector.shape_cast %995 : vector<128xf32> to vector<1x1x1x128xf32>
    %997 = vector.broadcast %996 : vector<1x1x1x128xf32> to vector<1x8x8x128xf32>
    %998 = arith.mulf %993, %997 : vector<1x8x8x128xf32>
    %999 = arith.addf %992, %998 : vector<1x8x8x128xf32>
    %1000 = vector.extract_strided_slice %678 {offsets = [0, 0, 9, 0], sizes = [1, 16, 8, 128], strides = [1, 1, 1, 1]} : vector<1x16x24x128xf32> to vector<1x16x8x128xf32>
    %1001 = vector.extract_strided_slice %1000 {offsets = [0, 0, 0, 0], sizes = [1, 8, 8, 128], strides = [1, 1, 1, 1]} : vector<1x16x8x128xf32> to vector<1x8x8x128xf32>
    %c1_346 = arith.constant 1 : index
    %c5_347 = arith.constant 5 : index
    %c0_348 = arith.constant 0 : index
    %1002 = vector.load %arg4[%c1_346, %c5_347, %c0_348] : memref<2x81x128xf32, #tpu.memory_space<vmem>>, vector<1x1x128xf32>
    %1003 = vector.shape_cast %1002 : vector<1x1x128xf32> to vector<128xf32>
    %1004 = vector.shape_cast %1003 : vector<128xf32> to vector<1x1x1x128xf32>
    %1005 = vector.broadcast %1004 : vector<1x1x1x128xf32> to vector<1x8x8x128xf32>
    %1006 = arith.mulf %1001, %1005 : vector<1x8x8x128xf32>
    %1007 = arith.addf %999, %1006 : vector<1x8x8x128xf32>
    %1008 = vector.extract_strided_slice %1000 {offsets = [0, 1, 0, 0], sizes = [1, 8, 8, 128], strides = [1, 1, 1, 1]} : vector<1x16x8x128xf32> to vector<1x8x8x128xf32>
    %c1_349 = arith.constant 1 : index
    %c14_350 = arith.constant 14 : index
    %c0_351 = arith.constant 0 : index
    %1009 = vector.load %arg4[%c1_349, %c14_350, %c0_351] : memref<2x81x128xf32, #tpu.memory_space<vmem>>, vector<1x1x128xf32>
    %1010 = vector.shape_cast %1009 : vector<1x1x128xf32> to vector<128xf32>
    %1011 = vector.shape_cast %1010 : vector<128xf32> to vector<1x1x1x128xf32>
    %1012 = vector.broadcast %1011 : vector<1x1x1x128xf32> to vector<1x8x8x128xf32>
    %1013 = arith.mulf %1008, %1012 : vector<1x8x8x128xf32>
    %1014 = arith.addf %1007, %1013 : vector<1x8x8x128xf32>
    %1015 = vector.extract_strided_slice %1000 {offsets = [0, 2, 0, 0], sizes = [1, 8, 8, 128], strides = [1, 1, 1, 1]} : vector<1x16x8x128xf32> to vector<1x8x8x128xf32>
    %c1_352 = arith.constant 1 : index
    %c23_353 = arith.constant 23 : index
    %c0_354 = arith.constant 0 : index
    %1016 = vector.load %arg4[%c1_352, %c23_353, %c0_354] : memref<2x81x128xf32, #tpu.memory_space<vmem>>, vector<1x1x128xf32>
    %1017 = vector.shape_cast %1016 : vector<1x1x128xf32> to vector<128xf32>
    %1018 = vector.shape_cast %1017 : vector<128xf32> to vector<1x1x1x128xf32>
    %1019 = vector.broadcast %1018 : vector<1x1x1x128xf32> to vector<1x8x8x128xf32>
    %1020 = arith.mulf %1015, %1019 : vector<1x8x8x128xf32>
    %1021 = arith.addf %1014, %1020 : vector<1x8x8x128xf32>
    %1022 = vector.extract_strided_slice %1000 {offsets = [0, 3, 0, 0], sizes = [1, 8, 8, 128], strides = [1, 1, 1, 1]} : vector<1x16x8x128xf32> to vector<1x8x8x128xf32>
    %c1_355 = arith.constant 1 : index
    %c32_356 = arith.constant 32 : index
    %c0_357 = arith.constant 0 : index
    %1023 = vector.load %arg4[%c1_355, %c32_356, %c0_357] : memref<2x81x128xf32, #tpu.memory_space<vmem>>, vector<1x1x128xf32>
    %1024 = vector.shape_cast %1023 : vector<1x1x128xf32> to vector<128xf32>
    %1025 = vector.shape_cast %1024 : vector<128xf32> to vector<1x1x1x128xf32>
    %1026 = vector.broadcast %1025 : vector<1x1x1x128xf32> to vector<1x8x8x128xf32>
    %1027 = arith.mulf %1022, %1026 : vector<1x8x8x128xf32>
    %1028 = arith.addf %1021, %1027 : vector<1x8x8x128xf32>
    %1029 = vector.extract_strided_slice %1000 {offsets = [0, 4, 0, 0], sizes = [1, 8, 8, 128], strides = [1, 1, 1, 1]} : vector<1x16x8x128xf32> to vector<1x8x8x128xf32>
    %c1_358 = arith.constant 1 : index
    %c41_359 = arith.constant 41 : index
    %c0_360 = arith.constant 0 : index
    %1030 = vector.load %arg4[%c1_358, %c41_359, %c0_360] : memref<2x81x128xf32, #tpu.memory_space<vmem>>, vector<1x1x128xf32>
    %1031 = vector.shape_cast %1030 : vector<1x1x128xf32> to vector<128xf32>
    %1032 = vector.shape_cast %1031 : vector<128xf32> to vector<1x1x1x128xf32>
    %1033 = vector.broadcast %1032 : vector<1x1x1x128xf32> to vector<1x8x8x128xf32>
    %1034 = arith.mulf %1029, %1033 : vector<1x8x8x128xf32>
    %1035 = arith.addf %1028, %1034 : vector<1x8x8x128xf32>
    %1036 = vector.extract_strided_slice %1000 {offsets = [0, 5, 0, 0], sizes = [1, 8, 8, 128], strides = [1, 1, 1, 1]} : vector<1x16x8x128xf32> to vector<1x8x8x128xf32>
    %c1_361 = arith.constant 1 : index
    %c50_362 = arith.constant 50 : index
    %c0_363 = arith.constant 0 : index
    %1037 = vector.load %arg4[%c1_361, %c50_362, %c0_363] : memref<2x81x128xf32, #tpu.memory_space<vmem>>, vector<1x1x128xf32>
    %1038 = vector.shape_cast %1037 : vector<1x1x128xf32> to vector<128xf32>
    %1039 = vector.shape_cast %1038 : vector<128xf32> to vector<1x1x1x128xf32>
    %1040 = vector.broadcast %1039 : vector<1x1x1x128xf32> to vector<1x8x8x128xf32>
    %1041 = arith.mulf %1036, %1040 : vector<1x8x8x128xf32>
    %1042 = arith.addf %1035, %1041 : vector<1x8x8x128xf32>
    %1043 = vector.extract_strided_slice %1000 {offsets = [0, 6, 0, 0], sizes = [1, 8, 8, 128], strides = [1, 1, 1, 1]} : vector<1x16x8x128xf32> to vector<1x8x8x128xf32>
    %c1_364 = arith.constant 1 : index
    %c59_365 = arith.constant 59 : index
    %c0_366 = arith.constant 0 : index
    %1044 = vector.load %arg4[%c1_364, %c59_365, %c0_366] : memref<2x81x128xf32, #tpu.memory_space<vmem>>, vector<1x1x128xf32>
    %1045 = vector.shape_cast %1044 : vector<1x1x128xf32> to vector<128xf32>
    %1046 = vector.shape_cast %1045 : vector<128xf32> to vector<1x1x1x128xf32>
    %1047 = vector.broadcast %1046 : vector<1x1x1x128xf32> to vector<1x8x8x128xf32>
    %1048 = arith.mulf %1043, %1047 : vector<1x8x8x128xf32>
    %1049 = arith.addf %1042, %1048 : vector<1x8x8x128xf32>
    %1050 = vector.extract_strided_slice %1000 {offsets = [0, 7, 0, 0], sizes = [1, 8, 8, 128], strides = [1, 1, 1, 1]} : vector<1x16x8x128xf32> to vector<1x8x8x128xf32>
    %c1_367 = arith.constant 1 : index
    %c68_368 = arith.constant 68 : index
    %c0_369 = arith.constant 0 : index
    %1051 = vector.load %arg4[%c1_367, %c68_368, %c0_369] : memref<2x81x128xf32, #tpu.memory_space<vmem>>, vector<1x1x128xf32>
    %1052 = vector.shape_cast %1051 : vector<1x1x128xf32> to vector<128xf32>
    %1053 = vector.shape_cast %1052 : vector<128xf32> to vector<1x1x1x128xf32>
    %1054 = vector.broadcast %1053 : vector<1x1x1x128xf32> to vector<1x8x8x128xf32>
    %1055 = arith.mulf %1050, %1054 : vector<1x8x8x128xf32>
    %1056 = arith.addf %1049, %1055 : vector<1x8x8x128xf32>
    %1057 = vector.extract_strided_slice %1000 {offsets = [0, 8, 0, 0], sizes = [1, 8, 8, 128], strides = [1, 1, 1, 1]} : vector<1x16x8x128xf32> to vector<1x8x8x128xf32>
    %c1_370 = arith.constant 1 : index
    %c77_371 = arith.constant 77 : index
    %c0_372 = arith.constant 0 : index
    %1058 = vector.load %arg4[%c1_370, %c77_371, %c0_372] : memref<2x81x128xf32, #tpu.memory_space<vmem>>, vector<1x1x128xf32>
    %1059 = vector.shape_cast %1058 : vector<1x1x128xf32> to vector<128xf32>
    %1060 = vector.shape_cast %1059 : vector<128xf32> to vector<1x1x1x128xf32>
    %1061 = vector.broadcast %1060 : vector<1x1x1x128xf32> to vector<1x8x8x128xf32>
    %1062 = arith.mulf %1057, %1061 : vector<1x8x8x128xf32>
    %1063 = arith.addf %1056, %1062 : vector<1x8x8x128xf32>
    %1064 = vector.extract_strided_slice %678 {offsets = [0, 0, 10, 0], sizes = [1, 16, 8, 128], strides = [1, 1, 1, 1]} : vector<1x16x24x128xf32> to vector<1x16x8x128xf32>
    %1065 = vector.extract_strided_slice %1064 {offsets = [0, 0, 0, 0], sizes = [1, 8, 8, 128], strides = [1, 1, 1, 1]} : vector<1x16x8x128xf32> to vector<1x8x8x128xf32>
    %c1_373 = arith.constant 1 : index
    %c6_374 = arith.constant 6 : index
    %c0_375 = arith.constant 0 : index
    %1066 = vector.load %arg4[%c1_373, %c6_374, %c0_375] : memref<2x81x128xf32, #tpu.memory_space<vmem>>, vector<1x1x128xf32>
    %1067 = vector.shape_cast %1066 : vector<1x1x128xf32> to vector<128xf32>
    %1068 = vector.shape_cast %1067 : vector<128xf32> to vector<1x1x1x128xf32>
    %1069 = vector.broadcast %1068 : vector<1x1x1x128xf32> to vector<1x8x8x128xf32>
    %1070 = arith.mulf %1065, %1069 : vector<1x8x8x128xf32>
    %1071 = arith.addf %1063, %1070 : vector<1x8x8x128xf32>
    %1072 = vector.extract_strided_slice %1064 {offsets = [0, 1, 0, 0], sizes = [1, 8, 8, 128], strides = [1, 1, 1, 1]} : vector<1x16x8x128xf32> to vector<1x8x8x128xf32>
    %c1_376 = arith.constant 1 : index
    %c15_377 = arith.constant 15 : index
    %c0_378 = arith.constant 0 : index
    %1073 = vector.load %arg4[%c1_376, %c15_377, %c0_378] : memref<2x81x128xf32, #tpu.memory_space<vmem>>, vector<1x1x128xf32>
    %1074 = vector.shape_cast %1073 : vector<1x1x128xf32> to vector<128xf32>
    %1075 = vector.shape_cast %1074 : vector<128xf32> to vector<1x1x1x128xf32>
    %1076 = vector.broadcast %1075 : vector<1x1x1x128xf32> to vector<1x8x8x128xf32>
    %1077 = arith.mulf %1072, %1076 : vector<1x8x8x128xf32>
    %1078 = arith.addf %1071, %1077 : vector<1x8x8x128xf32>
    %1079 = vector.extract_strided_slice %1064 {offsets = [0, 2, 0, 0], sizes = [1, 8, 8, 128], strides = [1, 1, 1, 1]} : vector<1x16x8x128xf32> to vector<1x8x8x128xf32>
    %c1_379 = arith.constant 1 : index
    %c24_380 = arith.constant 24 : index
    %c0_381 = arith.constant 0 : index
    %1080 = vector.load %arg4[%c1_379, %c24_380, %c0_381] : memref<2x81x128xf32, #tpu.memory_space<vmem>>, vector<1x1x128xf32>
    %1081 = vector.shape_cast %1080 : vector<1x1x128xf32> to vector<128xf32>
    %1082 = vector.shape_cast %1081 : vector<128xf32> to vector<1x1x1x128xf32>
    %1083 = vector.broadcast %1082 : vector<1x1x1x128xf32> to vector<1x8x8x128xf32>
    %1084 = arith.mulf %1079, %1083 : vector<1x8x8x128xf32>
    %1085 = arith.addf %1078, %1084 : vector<1x8x8x128xf32>
    %1086 = vector.extract_strided_slice %1064 {offsets = [0, 3, 0, 0], sizes = [1, 8, 8, 128], strides = [1, 1, 1, 1]} : vector<1x16x8x128xf32> to vector<1x8x8x128xf32>
    %c1_382 = arith.constant 1 : index
    %c33_383 = arith.constant 33 : index
    %c0_384 = arith.constant 0 : index
    %1087 = vector.load %arg4[%c1_382, %c33_383, %c0_384] : memref<2x81x128xf32, #tpu.memory_space<vmem>>, vector<1x1x128xf32>
    %1088 = vector.shape_cast %1087 : vector<1x1x128xf32> to vector<128xf32>
    %1089 = vector.shape_cast %1088 : vector<128xf32> to vector<1x1x1x128xf32>
    %1090 = vector.broadcast %1089 : vector<1x1x1x128xf32> to vector<1x8x8x128xf32>
    %1091 = arith.mulf %1086, %1090 : vector<1x8x8x128xf32>
    %1092 = arith.addf %1085, %1091 : vector<1x8x8x128xf32>
    %1093 = vector.extract_strided_slice %1064 {offsets = [0, 4, 0, 0], sizes = [1, 8, 8, 128], strides = [1, 1, 1, 1]} : vector<1x16x8x128xf32> to vector<1x8x8x128xf32>
    %c1_385 = arith.constant 1 : index
    %c42_386 = arith.constant 42 : index
    %c0_387 = arith.constant 0 : index
    %1094 = vector.load %arg4[%c1_385, %c42_386, %c0_387] : memref<2x81x128xf32, #tpu.memory_space<vmem>>, vector<1x1x128xf32>
    %1095 = vector.shape_cast %1094 : vector<1x1x128xf32> to vector<128xf32>
    %1096 = vector.shape_cast %1095 : vector<128xf32> to vector<1x1x1x128xf32>
    %1097 = vector.broadcast %1096 : vector<1x1x1x128xf32> to vector<1x8x8x128xf32>
    %1098 = arith.mulf %1093, %1097 : vector<1x8x8x128xf32>
    %1099 = arith.addf %1092, %1098 : vector<1x8x8x128xf32>
    %1100 = vector.extract_strided_slice %1064 {offsets = [0, 5, 0, 0], sizes = [1, 8, 8, 128], strides = [1, 1, 1, 1]} : vector<1x16x8x128xf32> to vector<1x8x8x128xf32>
    %c1_388 = arith.constant 1 : index
    %c51_389 = arith.constant 51 : index
    %c0_390 = arith.constant 0 : index
    %1101 = vector.load %arg4[%c1_388, %c51_389, %c0_390] : memref<2x81x128xf32, #tpu.memory_space<vmem>>, vector<1x1x128xf32>
    %1102 = vector.shape_cast %1101 : vector<1x1x128xf32> to vector<128xf32>
    %1103 = vector.shape_cast %1102 : vector<128xf32> to vector<1x1x1x128xf32>
    %1104 = vector.broadcast %1103 : vector<1x1x1x128xf32> to vector<1x8x8x128xf32>
    %1105 = arith.mulf %1100, %1104 : vector<1x8x8x128xf32>
    %1106 = arith.addf %1099, %1105 : vector<1x8x8x128xf32>
    %1107 = vector.extract_strided_slice %1064 {offsets = [0, 6, 0, 0], sizes = [1, 8, 8, 128], strides = [1, 1, 1, 1]} : vector<1x16x8x128xf32> to vector<1x8x8x128xf32>
    %c1_391 = arith.constant 1 : index
    %c60_392 = arith.constant 60 : index
    %c0_393 = arith.constant 0 : index
    %1108 = vector.load %arg4[%c1_391, %c60_392, %c0_393] : memref<2x81x128xf32, #tpu.memory_space<vmem>>, vector<1x1x128xf32>
    %1109 = vector.shape_cast %1108 : vector<1x1x128xf32> to vector<128xf32>
    %1110 = vector.shape_cast %1109 : vector<128xf32> to vector<1x1x1x128xf32>
    %1111 = vector.broadcast %1110 : vector<1x1x1x128xf32> to vector<1x8x8x128xf32>
    %1112 = arith.mulf %1107, %1111 : vector<1x8x8x128xf32>
    %1113 = arith.addf %1106, %1112 : vector<1x8x8x128xf32>
    %1114 = vector.extract_strided_slice %1064 {offsets = [0, 7, 0, 0], sizes = [1, 8, 8, 128], strides = [1, 1, 1, 1]} : vector<1x16x8x128xf32> to vector<1x8x8x128xf32>
    %c1_394 = arith.constant 1 : index
    %c69_395 = arith.constant 69 : index
    %c0_396 = arith.constant 0 : index
    %1115 = vector.load %arg4[%c1_394, %c69_395, %c0_396] : memref<2x81x128xf32, #tpu.memory_space<vmem>>, vector<1x1x128xf32>
    %1116 = vector.shape_cast %1115 : vector<1x1x128xf32> to vector<128xf32>
    %1117 = vector.shape_cast %1116 : vector<128xf32> to vector<1x1x1x128xf32>
    %1118 = vector.broadcast %1117 : vector<1x1x1x128xf32> to vector<1x8x8x128xf32>
    %1119 = arith.mulf %1114, %1118 : vector<1x8x8x128xf32>
    %1120 = arith.addf %1113, %1119 : vector<1x8x8x128xf32>
    %1121 = vector.extract_strided_slice %1064 {offsets = [0, 8, 0, 0], sizes = [1, 8, 8, 128], strides = [1, 1, 1, 1]} : vector<1x16x8x128xf32> to vector<1x8x8x128xf32>
    %c1_397 = arith.constant 1 : index
    %c78_398 = arith.constant 78 : index
    %c0_399 = arith.constant 0 : index
    %1122 = vector.load %arg4[%c1_397, %c78_398, %c0_399] : memref<2x81x128xf32, #tpu.memory_space<vmem>>, vector<1x1x128xf32>
    %1123 = vector.shape_cast %1122 : vector<1x1x128xf32> to vector<128xf32>
    %1124 = vector.shape_cast %1123 : vector<128xf32> to vector<1x1x1x128xf32>
    %1125 = vector.broadcast %1124 : vector<1x1x1x128xf32> to vector<1x8x8x128xf32>
    %1126 = arith.mulf %1121, %1125 : vector<1x8x8x128xf32>
    %1127 = arith.addf %1120, %1126 : vector<1x8x8x128xf32>
    %1128 = vector.extract_strided_slice %678 {offsets = [0, 0, 11, 0], sizes = [1, 16, 8, 128], strides = [1, 1, 1, 1]} : vector<1x16x24x128xf32> to vector<1x16x8x128xf32>
    %1129 = vector.extract_strided_slice %1128 {offsets = [0, 0, 0, 0], sizes = [1, 8, 8, 128], strides = [1, 1, 1, 1]} : vector<1x16x8x128xf32> to vector<1x8x8x128xf32>
    %c1_400 = arith.constant 1 : index
    %c7_401 = arith.constant 7 : index
    %c0_402 = arith.constant 0 : index
    %1130 = vector.load %arg4[%c1_400, %c7_401, %c0_402] : memref<2x81x128xf32, #tpu.memory_space<vmem>>, vector<1x1x128xf32>
    %1131 = vector.shape_cast %1130 : vector<1x1x128xf32> to vector<128xf32>
    %1132 = vector.shape_cast %1131 : vector<128xf32> to vector<1x1x1x128xf32>
    %1133 = vector.broadcast %1132 : vector<1x1x1x128xf32> to vector<1x8x8x128xf32>
    %1134 = arith.mulf %1129, %1133 : vector<1x8x8x128xf32>
    %1135 = arith.addf %1127, %1134 : vector<1x8x8x128xf32>
    %1136 = vector.extract_strided_slice %1128 {offsets = [0, 1, 0, 0], sizes = [1, 8, 8, 128], strides = [1, 1, 1, 1]} : vector<1x16x8x128xf32> to vector<1x8x8x128xf32>
    %c1_403 = arith.constant 1 : index
    %c16_404 = arith.constant 16 : index
    %c0_405 = arith.constant 0 : index
    %1137 = vector.load %arg4[%c1_403, %c16_404, %c0_405] : memref<2x81x128xf32, #tpu.memory_space<vmem>>, vector<1x1x128xf32>
    %1138 = vector.shape_cast %1137 : vector<1x1x128xf32> to vector<128xf32>
    %1139 = vector.shape_cast %1138 : vector<128xf32> to vector<1x1x1x128xf32>
    %1140 = vector.broadcast %1139 : vector<1x1x1x128xf32> to vector<1x8x8x128xf32>
    %1141 = arith.mulf %1136, %1140 : vector<1x8x8x128xf32>
    %1142 = arith.addf %1135, %1141 : vector<1x8x8x128xf32>
    %1143 = vector.extract_strided_slice %1128 {offsets = [0, 2, 0, 0], sizes = [1, 8, 8, 128], strides = [1, 1, 1, 1]} : vector<1x16x8x128xf32> to vector<1x8x8x128xf32>
    %c1_406 = arith.constant 1 : index
    %c25_407 = arith.constant 25 : index
    %c0_408 = arith.constant 0 : index
    %1144 = vector.load %arg4[%c1_406, %c25_407, %c0_408] : memref<2x81x128xf32, #tpu.memory_space<vmem>>, vector<1x1x128xf32>
    %1145 = vector.shape_cast %1144 : vector<1x1x128xf32> to vector<128xf32>
    %1146 = vector.shape_cast %1145 : vector<128xf32> to vector<1x1x1x128xf32>
    %1147 = vector.broadcast %1146 : vector<1x1x1x128xf32> to vector<1x8x8x128xf32>
    %1148 = arith.mulf %1143, %1147 : vector<1x8x8x128xf32>
    %1149 = arith.addf %1142, %1148 : vector<1x8x8x128xf32>
    %1150 = vector.extract_strided_slice %1128 {offsets = [0, 3, 0, 0], sizes = [1, 8, 8, 128], strides = [1, 1, 1, 1]} : vector<1x16x8x128xf32> to vector<1x8x8x128xf32>
    %c1_409 = arith.constant 1 : index
    %c34_410 = arith.constant 34 : index
    %c0_411 = arith.constant 0 : index
    %1151 = vector.load %arg4[%c1_409, %c34_410, %c0_411] : memref<2x81x128xf32, #tpu.memory_space<vmem>>, vector<1x1x128xf32>
    %1152 = vector.shape_cast %1151 : vector<1x1x128xf32> to vector<128xf32>
    %1153 = vector.shape_cast %1152 : vector<128xf32> to vector<1x1x1x128xf32>
    %1154 = vector.broadcast %1153 : vector<1x1x1x128xf32> to vector<1x8x8x128xf32>
    %1155 = arith.mulf %1150, %1154 : vector<1x8x8x128xf32>
    %1156 = arith.addf %1149, %1155 : vector<1x8x8x128xf32>
    %1157 = vector.extract_strided_slice %1128 {offsets = [0, 4, 0, 0], sizes = [1, 8, 8, 128], strides = [1, 1, 1, 1]} : vector<1x16x8x128xf32> to vector<1x8x8x128xf32>
    %c1_412 = arith.constant 1 : index
    %c43_413 = arith.constant 43 : index
    %c0_414 = arith.constant 0 : index
    %1158 = vector.load %arg4[%c1_412, %c43_413, %c0_414] : memref<2x81x128xf32, #tpu.memory_space<vmem>>, vector<1x1x128xf32>
    %1159 = vector.shape_cast %1158 : vector<1x1x128xf32> to vector<128xf32>
    %1160 = vector.shape_cast %1159 : vector<128xf32> to vector<1x1x1x128xf32>
    %1161 = vector.broadcast %1160 : vector<1x1x1x128xf32> to vector<1x8x8x128xf32>
    %1162 = arith.mulf %1157, %1161 : vector<1x8x8x128xf32>
    %1163 = arith.addf %1156, %1162 : vector<1x8x8x128xf32>
    %1164 = vector.extract_strided_slice %1128 {offsets = [0, 5, 0, 0], sizes = [1, 8, 8, 128], strides = [1, 1, 1, 1]} : vector<1x16x8x128xf32> to vector<1x8x8x128xf32>
    %c1_415 = arith.constant 1 : index
    %c52_416 = arith.constant 52 : index
    %c0_417 = arith.constant 0 : index
    %1165 = vector.load %arg4[%c1_415, %c52_416, %c0_417] : memref<2x81x128xf32, #tpu.memory_space<vmem>>, vector<1x1x128xf32>
    %1166 = vector.shape_cast %1165 : vector<1x1x128xf32> to vector<128xf32>
    %1167 = vector.shape_cast %1166 : vector<128xf32> to vector<1x1x1x128xf32>
    %1168 = vector.broadcast %1167 : vector<1x1x1x128xf32> to vector<1x8x8x128xf32>
    %1169 = arith.mulf %1164, %1168 : vector<1x8x8x128xf32>
    %1170 = arith.addf %1163, %1169 : vector<1x8x8x128xf32>
    %1171 = vector.extract_strided_slice %1128 {offsets = [0, 6, 0, 0], sizes = [1, 8, 8, 128], strides = [1, 1, 1, 1]} : vector<1x16x8x128xf32> to vector<1x8x8x128xf32>
    %c1_418 = arith.constant 1 : index
    %c61_419 = arith.constant 61 : index
    %c0_420 = arith.constant 0 : index
    %1172 = vector.load %arg4[%c1_418, %c61_419, %c0_420] : memref<2x81x128xf32, #tpu.memory_space<vmem>>, vector<1x1x128xf32>
    %1173 = vector.shape_cast %1172 : vector<1x1x128xf32> to vector<128xf32>
    %1174 = vector.shape_cast %1173 : vector<128xf32> to vector<1x1x1x128xf32>
    %1175 = vector.broadcast %1174 : vector<1x1x1x128xf32> to vector<1x8x8x128xf32>
    %1176 = arith.mulf %1171, %1175 : vector<1x8x8x128xf32>
    %1177 = arith.addf %1170, %1176 : vector<1x8x8x128xf32>
    %1178 = vector.extract_strided_slice %1128 {offsets = [0, 7, 0, 0], sizes = [1, 8, 8, 128], strides = [1, 1, 1, 1]} : vector<1x16x8x128xf32> to vector<1x8x8x128xf32>
    %c1_421 = arith.constant 1 : index
    %c70_422 = arith.constant 70 : index
    %c0_423 = arith.constant 0 : index
    %1179 = vector.load %arg4[%c1_421, %c70_422, %c0_423] : memref<2x81x128xf32, #tpu.memory_space<vmem>>, vector<1x1x128xf32>
    %1180 = vector.shape_cast %1179 : vector<1x1x128xf32> to vector<128xf32>
    %1181 = vector.shape_cast %1180 : vector<128xf32> to vector<1x1x1x128xf32>
    %1182 = vector.broadcast %1181 : vector<1x1x1x128xf32> to vector<1x8x8x128xf32>
    %1183 = arith.mulf %1178, %1182 : vector<1x8x8x128xf32>
    %1184 = arith.addf %1177, %1183 : vector<1x8x8x128xf32>
    %1185 = vector.extract_strided_slice %1128 {offsets = [0, 8, 0, 0], sizes = [1, 8, 8, 128], strides = [1, 1, 1, 1]} : vector<1x16x8x128xf32> to vector<1x8x8x128xf32>
    %c1_424 = arith.constant 1 : index
    %c79_425 = arith.constant 79 : index
    %c0_426 = arith.constant 0 : index
    %1186 = vector.load %arg4[%c1_424, %c79_425, %c0_426] : memref<2x81x128xf32, #tpu.memory_space<vmem>>, vector<1x1x128xf32>
    %1187 = vector.shape_cast %1186 : vector<1x1x128xf32> to vector<128xf32>
    %1188 = vector.shape_cast %1187 : vector<128xf32> to vector<1x1x1x128xf32>
    %1189 = vector.broadcast %1188 : vector<1x1x1x128xf32> to vector<1x8x8x128xf32>
    %1190 = arith.mulf %1185, %1189 : vector<1x8x8x128xf32>
    %1191 = arith.addf %1184, %1190 : vector<1x8x8x128xf32>
    %1192 = vector.extract_strided_slice %678 {offsets = [0, 0, 12, 0], sizes = [1, 16, 8, 128], strides = [1, 1, 1, 1]} : vector<1x16x24x128xf32> to vector<1x16x8x128xf32>
    %1193 = vector.extract_strided_slice %1192 {offsets = [0, 0, 0, 0], sizes = [1, 8, 8, 128], strides = [1, 1, 1, 1]} : vector<1x16x8x128xf32> to vector<1x8x8x128xf32>
    %c1_427 = arith.constant 1 : index
    %c8_428 = arith.constant 8 : index
    %c0_429 = arith.constant 0 : index
    %1194 = vector.load %arg4[%c1_427, %c8_428, %c0_429] : memref<2x81x128xf32, #tpu.memory_space<vmem>>, vector<1x1x128xf32>
    %1195 = vector.shape_cast %1194 : vector<1x1x128xf32> to vector<128xf32>
    %1196 = vector.shape_cast %1195 : vector<128xf32> to vector<1x1x1x128xf32>
    %1197 = vector.broadcast %1196 : vector<1x1x1x128xf32> to vector<1x8x8x128xf32>
    %1198 = arith.mulf %1193, %1197 : vector<1x8x8x128xf32>
    %1199 = arith.addf %1191, %1198 : vector<1x8x8x128xf32>
    %1200 = vector.extract_strided_slice %1192 {offsets = [0, 1, 0, 0], sizes = [1, 8, 8, 128], strides = [1, 1, 1, 1]} : vector<1x16x8x128xf32> to vector<1x8x8x128xf32>
    %c1_430 = arith.constant 1 : index
    %c17_431 = arith.constant 17 : index
    %c0_432 = arith.constant 0 : index
    %1201 = vector.load %arg4[%c1_430, %c17_431, %c0_432] : memref<2x81x128xf32, #tpu.memory_space<vmem>>, vector<1x1x128xf32>
    %1202 = vector.shape_cast %1201 : vector<1x1x128xf32> to vector<128xf32>
    %1203 = vector.shape_cast %1202 : vector<128xf32> to vector<1x1x1x128xf32>
    %1204 = vector.broadcast %1203 : vector<1x1x1x128xf32> to vector<1x8x8x128xf32>
    %1205 = arith.mulf %1200, %1204 : vector<1x8x8x128xf32>
    %1206 = arith.addf %1199, %1205 : vector<1x8x8x128xf32>
    %1207 = vector.extract_strided_slice %1192 {offsets = [0, 2, 0, 0], sizes = [1, 8, 8, 128], strides = [1, 1, 1, 1]} : vector<1x16x8x128xf32> to vector<1x8x8x128xf32>
    %c1_433 = arith.constant 1 : index
    %c26_434 = arith.constant 26 : index
    %c0_435 = arith.constant 0 : index
    %1208 = vector.load %arg4[%c1_433, %c26_434, %c0_435] : memref<2x81x128xf32, #tpu.memory_space<vmem>>, vector<1x1x128xf32>
    %1209 = vector.shape_cast %1208 : vector<1x1x128xf32> to vector<128xf32>
    %1210 = vector.shape_cast %1209 : vector<128xf32> to vector<1x1x1x128xf32>
    %1211 = vector.broadcast %1210 : vector<1x1x1x128xf32> to vector<1x8x8x128xf32>
    %1212 = arith.mulf %1207, %1211 : vector<1x8x8x128xf32>
    %1213 = arith.addf %1206, %1212 : vector<1x8x8x128xf32>
    %1214 = vector.extract_strided_slice %1192 {offsets = [0, 3, 0, 0], sizes = [1, 8, 8, 128], strides = [1, 1, 1, 1]} : vector<1x16x8x128xf32> to vector<1x8x8x128xf32>
    %c1_436 = arith.constant 1 : index
    %c35_437 = arith.constant 35 : index
    %c0_438 = arith.constant 0 : index
    %1215 = vector.load %arg4[%c1_436, %c35_437, %c0_438] : memref<2x81x128xf32, #tpu.memory_space<vmem>>, vector<1x1x128xf32>
    %1216 = vector.shape_cast %1215 : vector<1x1x128xf32> to vector<128xf32>
    %1217 = vector.shape_cast %1216 : vector<128xf32> to vector<1x1x1x128xf32>
    %1218 = vector.broadcast %1217 : vector<1x1x1x128xf32> to vector<1x8x8x128xf32>
    %1219 = arith.mulf %1214, %1218 : vector<1x8x8x128xf32>
    %1220 = arith.addf %1213, %1219 : vector<1x8x8x128xf32>
    %1221 = vector.extract_strided_slice %1192 {offsets = [0, 4, 0, 0], sizes = [1, 8, 8, 128], strides = [1, 1, 1, 1]} : vector<1x16x8x128xf32> to vector<1x8x8x128xf32>
    %c1_439 = arith.constant 1 : index
    %c44_440 = arith.constant 44 : index
    %c0_441 = arith.constant 0 : index
    %1222 = vector.load %arg4[%c1_439, %c44_440, %c0_441] : memref<2x81x128xf32, #tpu.memory_space<vmem>>, vector<1x1x128xf32>
    %1223 = vector.shape_cast %1222 : vector<1x1x128xf32> to vector<128xf32>
    %1224 = vector.shape_cast %1223 : vector<128xf32> to vector<1x1x1x128xf32>
    %1225 = vector.broadcast %1224 : vector<1x1x1x128xf32> to vector<1x8x8x128xf32>
    %1226 = arith.mulf %1221, %1225 : vector<1x8x8x128xf32>
    %1227 = arith.addf %1220, %1226 : vector<1x8x8x128xf32>
    %1228 = vector.extract_strided_slice %1192 {offsets = [0, 5, 0, 0], sizes = [1, 8, 8, 128], strides = [1, 1, 1, 1]} : vector<1x16x8x128xf32> to vector<1x8x8x128xf32>
    %c1_442 = arith.constant 1 : index
    %c53_443 = arith.constant 53 : index
    %c0_444 = arith.constant 0 : index
    %1229 = vector.load %arg4[%c1_442, %c53_443, %c0_444] : memref<2x81x128xf32, #tpu.memory_space<vmem>>, vector<1x1x128xf32>
    %1230 = vector.shape_cast %1229 : vector<1x1x128xf32> to vector<128xf32>
    %1231 = vector.shape_cast %1230 : vector<128xf32> to vector<1x1x1x128xf32>
    %1232 = vector.broadcast %1231 : vector<1x1x1x128xf32> to vector<1x8x8x128xf32>
    %1233 = arith.mulf %1228, %1232 : vector<1x8x8x128xf32>
    %1234 = arith.addf %1227, %1233 : vector<1x8x8x128xf32>
    %1235 = vector.extract_strided_slice %1192 {offsets = [0, 6, 0, 0], sizes = [1, 8, 8, 128], strides = [1, 1, 1, 1]} : vector<1x16x8x128xf32> to vector<1x8x8x128xf32>
    %c1_445 = arith.constant 1 : index
    %c62_446 = arith.constant 62 : index
    %c0_447 = arith.constant 0 : index
    %1236 = vector.load %arg4[%c1_445, %c62_446, %c0_447] : memref<2x81x128xf32, #tpu.memory_space<vmem>>, vector<1x1x128xf32>
    %1237 = vector.shape_cast %1236 : vector<1x1x128xf32> to vector<128xf32>
    %1238 = vector.shape_cast %1237 : vector<128xf32> to vector<1x1x1x128xf32>
    %1239 = vector.broadcast %1238 : vector<1x1x1x128xf32> to vector<1x8x8x128xf32>
    %1240 = arith.mulf %1235, %1239 : vector<1x8x8x128xf32>
    %1241 = arith.addf %1234, %1240 : vector<1x8x8x128xf32>
    %1242 = vector.extract_strided_slice %1192 {offsets = [0, 7, 0, 0], sizes = [1, 8, 8, 128], strides = [1, 1, 1, 1]} : vector<1x16x8x128xf32> to vector<1x8x8x128xf32>
    %c1_448 = arith.constant 1 : index
    %c71_449 = arith.constant 71 : index
    %c0_450 = arith.constant 0 : index
    %1243 = vector.load %arg4[%c1_448, %c71_449, %c0_450] : memref<2x81x128xf32, #tpu.memory_space<vmem>>, vector<1x1x128xf32>
    %1244 = vector.shape_cast %1243 : vector<1x1x128xf32> to vector<128xf32>
    %1245 = vector.shape_cast %1244 : vector<128xf32> to vector<1x1x1x128xf32>
    %1246 = vector.broadcast %1245 : vector<1x1x1x128xf32> to vector<1x8x8x128xf32>
    %1247 = arith.mulf %1242, %1246 : vector<1x8x8x128xf32>
    %1248 = arith.addf %1241, %1247 : vector<1x8x8x128xf32>
    %1249 = vector.extract_strided_slice %1192 {offsets = [0, 8, 0, 0], sizes = [1, 8, 8, 128], strides = [1, 1, 1, 1]} : vector<1x16x8x128xf32> to vector<1x8x8x128xf32>
    %c1_451 = arith.constant 1 : index
    %c80_452 = arith.constant 80 : index
    %c0_453 = arith.constant 0 : index
    %1250 = vector.load %arg4[%c1_451, %c80_452, %c0_453] : memref<2x81x128xf32, #tpu.memory_space<vmem>>, vector<1x1x128xf32>
    %1251 = vector.shape_cast %1250 : vector<1x1x128xf32> to vector<128xf32>
    %1252 = vector.shape_cast %1251 : vector<128xf32> to vector<1x1x1x128xf32>
    %1253 = vector.broadcast %1252 : vector<1x1x1x128xf32> to vector<1x8x8x128xf32>
    %1254 = arith.mulf %1249, %1253 : vector<1x8x8x128xf32>
    %1255 = arith.addf %1248, %1254 : vector<1x8x8x128xf32>
    %1256 = vector.shape_cast %1255 : vector<1x8x8x128xf32> to vector<64x128xf32>
    %c1_454 = arith.constant 1 : index
    %c0_455 = arith.constant 0 : index
    %c0_456 = arith.constant 0 : index
    %1257 = vector.load %arg5[%c1_454, %c0_455, %c0_456] : memref<2x3x128xf32, #tpu.memory_space<vmem>>, vector<1x1x128xf32>
    %1258 = vector.shape_cast %1257 : vector<1x1x128xf32> to vector<128xf32>
    %1259 = vector.shape_cast %1258 : vector<128xf32> to vector<1x128xf32>
    %1260 = vector.broadcast %1259 : vector<1x128xf32> to vector<64x128xf32>
    %1261 = arith.addf %1256, %1260 : vector<64x128xf32>
    %cst_457 = arith.constant 5.000000e-01 : f32
    %1262 = vector.broadcast %cst_457 : f32 to vector<64x128xf32>
    %1263 = arith.mulf %1262, %1261 : vector<64x128xf32>
    %cst_458 = arith.constant 4.471500e-02 : f32
    %1264 = vector.broadcast %cst_458 : f32 to vector<64x128xf32>
    %1265 = arith.mulf %1264, %1261 : vector<64x128xf32>
    %1266 = arith.mulf %1265, %1261 : vector<64x128xf32>
    %1267 = arith.mulf %1266, %1261 : vector<64x128xf32>
    %1268 = arith.addf %1261, %1267 : vector<64x128xf32>
    %cst_459 = arith.constant 0.797884583 : f32
    %1269 = vector.broadcast %cst_459 : f32 to vector<64x128xf32>
    %1270 = arith.mulf %1269, %1268 : vector<64x128xf32>
    %1271 = math.tanh %1270 : vector<64x128xf32>
    %cst_460 = arith.constant 1.000000e+00 : f32
    %1272 = vector.broadcast %cst_460 : f32 to vector<64x128xf32>
    %1273 = arith.addf %1272, %1271 : vector<64x128xf32>
    %1274 = arith.mulf %1263, %1273 : vector<64x128xf32>
    %c1_461 = arith.constant 1 : index
    %c1_462 = arith.constant 1 : index
    %c0_463 = arith.constant 0 : index
    %1275 = vector.load %arg5[%c1_461, %c1_462, %c0_463] : memref<2x3x128xf32, #tpu.memory_space<vmem>>, vector<1x1x128xf32>
    %1276 = vector.shape_cast %1275 : vector<1x1x128xf32> to vector<128xf32>
    %1277 = vector.shape_cast %1276 : vector<128xf32> to vector<1x128xf32>
    %1278 = vector.broadcast %1277 : vector<1x128xf32> to vector<64x128xf32>
    %1279 = arith.mulf %1278, %1274 : vector<64x128xf32>
    %c1_464 = arith.constant 1 : index
    %c2_465 = arith.constant 2 : index
    %c0_466 = arith.constant 0 : index
    %1280 = vector.load %arg5[%c1_464, %c2_465, %c0_466] : memref<2x3x128xf32, #tpu.memory_space<vmem>>, vector<1x1x128xf32>
    %1281 = vector.shape_cast %1280 : vector<1x1x128xf32> to vector<128xf32>
    %1282 = vector.shape_cast %1281 : vector<128xf32> to vector<1x128xf32>
    %1283 = vector.broadcast %1282 : vector<1x128xf32> to vector<64x128xf32>
    %1284 = arith.addf %1279, %1283 : vector<64x128xf32>
    %1285 = arith.addf %675, %1284 : vector<64x128xf32>
    %1286 = arith.truncf %1285 : vector<64x128xf32> to vector<64x128xbf16>
    %c1_467 = arith.constant 1 : index
    %c0_468 = arith.constant 0 : index
    %c0_469 = arith.constant 0 : index
    %1287 = vector.load %arg6[%c1_467, %c0_468, %c0_469] : memref<2x128x128xbf16, #tpu.memory_space<vmem>>, vector<1x128x128xbf16>
    %1288 = vector.shape_cast %1287 : vector<1x128x128xbf16> to vector<128x128xbf16>
    %cst_470 = arith.constant dense<0.000000e+00> : vector<64x128xf32>
    %1289 = tpu.matmul %1286, %1288, %cst_470 {dimension_numbers = #tpu.dot_dimension_numbers<[1], [0], [0], [1], [0, 0, 1, 1], [], []>} : vector<64x128xbf16>, vector<128x128xbf16>, vector<64x128xf32> -> vector<64x128xf32>
    %c1_471 = arith.constant 1 : index
    %c0_472 = arith.constant 0 : index
    %c0_473 = arith.constant 0 : index
    %1290 = vector.load %arg7[%c1_471, %c0_472, %c0_473] : memref<2x3x128xf32, #tpu.memory_space<vmem>>, vector<1x1x128xf32>
    %1291 = vector.shape_cast %1290 : vector<1x1x128xf32> to vector<128xf32>
    %1292 = vector.shape_cast %1291 : vector<128xf32> to vector<1x128xf32>
    %1293 = vector.broadcast %1292 : vector<1x128xf32> to vector<64x128xf32>
    %1294 = arith.addf %1289, %1293 : vector<64x128xf32>
    %cst_474 = arith.constant 5.000000e-01 : f32
    %1295 = vector.broadcast %cst_474 : f32 to vector<64x128xf32>
    %1296 = arith.mulf %1295, %1294 : vector<64x128xf32>
    %cst_475 = arith.constant 4.471500e-02 : f32
    %1297 = vector.broadcast %cst_475 : f32 to vector<64x128xf32>
    %1298 = arith.mulf %1297, %1294 : vector<64x128xf32>
    %1299 = arith.mulf %1298, %1294 : vector<64x128xf32>
    %1300 = arith.mulf %1299, %1294 : vector<64x128xf32>
    %1301 = arith.addf %1294, %1300 : vector<64x128xf32>
    %cst_476 = arith.constant 0.797884583 : f32
    %1302 = vector.broadcast %cst_476 : f32 to vector<64x128xf32>
    %1303 = arith.mulf %1302, %1301 : vector<64x128xf32>
    %1304 = math.tanh %1303 : vector<64x128xf32>
    %cst_477 = arith.constant 1.000000e+00 : f32
    %1305 = vector.broadcast %cst_477 : f32 to vector<64x128xf32>
    %1306 = arith.addf %1305, %1304 : vector<64x128xf32>
    %1307 = arith.mulf %1296, %1306 : vector<64x128xf32>
    %c1_478 = arith.constant 1 : index
    %c1_479 = arith.constant 1 : index
    %c0_480 = arith.constant 0 : index
    %1308 = vector.load %arg7[%c1_478, %c1_479, %c0_480] : memref<2x3x128xf32, #tpu.memory_space<vmem>>, vector<1x1x128xf32>
    %1309 = vector.shape_cast %1308 : vector<1x1x128xf32> to vector<128xf32>
    %1310 = vector.shape_cast %1309 : vector<128xf32> to vector<1x128xf32>
    %1311 = vector.broadcast %1310 : vector<1x128xf32> to vector<64x128xf32>
    %1312 = arith.mulf %1311, %1307 : vector<64x128xf32>
    %c1_481 = arith.constant 1 : index
    %c2_482 = arith.constant 2 : index
    %c0_483 = arith.constant 0 : index
    %1313 = vector.load %arg7[%c1_481, %c2_482, %c0_483] : memref<2x3x128xf32, #tpu.memory_space<vmem>>, vector<1x1x128xf32>
    %1314 = vector.shape_cast %1313 : vector<1x1x128xf32> to vector<128xf32>
    %1315 = vector.shape_cast %1314 : vector<128xf32> to vector<1x128xf32>
    %1316 = vector.broadcast %1315 : vector<1x128xf32> to vector<64x128xf32>
    %1317 = arith.addf %1312, %1316 : vector<64x128xf32>
    %1318 = vector.shape_cast %1317 : vector<64x128xf32> to vector<1x64x128xf32>
    %cst_484 = arith.constant dense<0.000000e+00> : vector<1x128xf32>
    %1319 = vector.multi_reduction <add>, %1318, %cst_484 [1] : vector<1x64x128xf32> to vector<1x128xf32>
    %cst_485 = arith.constant 6.400000e+01 : f32
    %1320 = vector.broadcast %cst_485 : f32 to vector<1x128xf32>
    %1321 = arith.divf %1319, %1320 : vector<1x128xf32>
    %1322 = arith.truncf %1321 : vector<1x128xf32> to vector<1x128xbf16>
    %c0_486 = arith.constant 0 : index
    %c0_487 = arith.constant 0 : index
    %c0_488 = arith.constant 0 : index
    %1323 = vector.load %arg8[%c0_486, %c0_487, %c0_488] : memref<1x128x128xbf16, #tpu.memory_space<vmem>>, vector<1x128x128xbf16>
    %1324 = vector.shape_cast %1323 : vector<1x128x128xbf16> to vector<128x128xbf16>
    %cst_489 = arith.constant dense<0.000000e+00> : vector<1x128xf32>
    %1325 = tpu.matmul %1322, %1324, %cst_489 {dimension_numbers = #tpu.dot_dimension_numbers<[1], [0], [0], [1], [0, 0, 1, 1], [], []>} : vector<1x128xbf16>, vector<128x128xbf16>, vector<1x128xf32> -> vector<1x128xf32>
    %c0_490 = arith.constant 0 : index
    %c0_491 = arith.constant 0 : index
    %c0_492 = arith.constant 0 : index
    %1326 = vector.load %arg9[%c0_490, %c0_491, %c0_492] : memref<1x1x128xf32, #tpu.memory_space<vmem>>, vector<1x1x128xf32>
    %1327 = vector.shape_cast %1326 : vector<1x1x128xf32> to vector<128xf32>
    %1328 = vector.shape_cast %1327 : vector<128xf32> to vector<1x128xf32>
    %1329 = arith.addf %1325, %1328 : vector<1x128xf32>
    %cst_493 = arith.constant 5.000000e-01 : f32
    %1330 = vector.broadcast %cst_493 : f32 to vector<1x128xf32>
    %1331 = arith.mulf %1330, %1329 : vector<1x128xf32>
    %cst_494 = arith.constant 4.471500e-02 : f32
    %1332 = vector.broadcast %cst_494 : f32 to vector<1x128xf32>
    %1333 = arith.mulf %1332, %1329 : vector<1x128xf32>
    %1334 = arith.mulf %1333, %1329 : vector<1x128xf32>
    %1335 = arith.mulf %1334, %1329 : vector<1x128xf32>
    %1336 = arith.addf %1329, %1335 : vector<1x128xf32>
    %cst_495 = arith.constant 0.797884583 : f32
    %1337 = vector.broadcast %cst_495 : f32 to vector<1x128xf32>
    %1338 = arith.mulf %1337, %1336 : vector<1x128xf32>
    %1339 = math.tanh %1338 : vector<1x128xf32>
    %cst_496 = arith.constant 1.000000e+00 : f32
    %1340 = vector.broadcast %cst_496 : f32 to vector<1x128xf32>
    %1341 = arith.addf %1340, %1339 : vector<1x128xf32>
    %1342 = arith.mulf %1331, %1341 : vector<1x128xf32>
    %1343 = arith.truncf %1342 : vector<1x128xf32> to vector<1x128xbf16>
    %c0_497 = arith.constant 0 : index
    %c0_498 = arith.constant 0 : index
    %1344 = vector.load %arg10[%c0_497, %c0_498] : memref<128x128xbf16, #tpu.memory_space<vmem>>, vector<128x128xbf16>
    %cst_499 = arith.constant dense<0.000000e+00> : vector<1x128xf32>
    %1345 = tpu.matmul %1343, %1344, %cst_499 {dimension_numbers = #tpu.dot_dimension_numbers<[1], [0], [0], [1], [0, 0, 1, 1], [], []>} : vector<1x128xbf16>, vector<128x128xbf16>, vector<1x128xf32> -> vector<1x128xf32>
    %c0_500 = arith.constant 0 : index
    %c0_501 = arith.constant 0 : index
    %1346 = vector.load %arg11[%c0_500, %c0_501] : memref<1x128xf32, #tpu.memory_space<vmem>>, vector<1x128xf32>
    %1347 = vector.shape_cast %1346 : vector<1x128xf32> to vector<128xf32>
    %1348 = vector.shape_cast %1347 : vector<128xf32> to vector<1x128xf32>
    %1349 = arith.addf %1345, %1348 : vector<1x128xf32>
    %1350 = vector.shape_cast %1349 : vector<1x128xf32> to vector<1x1x128xf32>
    %c0_502 = arith.constant 0 : index
    %c0_503 = arith.constant 0 : index
    %c0_504 = arith.constant 0 : index
    %1351 = vector.load %arg12[%c0_502, %c0_503, %c0_504] : memref<1x1x128xf32, #tpu.memory_space<vmem>>, vector<1x1x128xf32>
    tpu.vector_store %arg12[%c0_502, %c0_503, %c0_504], %1350 {strides = array<i32>} : memref<1x1x128xf32, #tpu.memory_space<vmem>>, vector<1x1x128xf32>,
    return
  }
  func.func @transform_0(%arg0: i32) -> (i32, i32, i32) {
    %c0_i32 = arith.constant 0 : i32
    %c0_i32_0 = arith.constant 0 : i32
    %c0_i32_1 = arith.constant 0 : i32
    return %arg0, %c0_i32, %c0_i32_0 : i32, i32, i32
  }
  func.func @transform_1(%arg0: i32) -> (i32, i32) {
    %c0_i32 = arith.constant 0 : i32
    %c0_i32_0 = arith.constant 0 : i32
    %c0_i32_1 = arith.constant 0 : i32
    return %c0_i32, %c0_i32_0 : i32, i32
  }
  func.func @transform_2(%arg0: i32) -> (i32, i32) {
    %c0_i32 = arith.constant 0 : i32
    %c0_i32_0 = arith.constant 0 : i32
    %c0_i32_1 = arith.constant 0 : i32
    return %c0_i32, %c0_i32_0 : i32, i32
  }
  func.func @transform_3(%arg0: i32) -> (i32, i32, i32) {
    %c0_i32 = arith.constant 0 : i32
    %c0_i32_0 = arith.constant 0 : i32
    %c0_i32_1 = arith.constant 0 : i32
    %c0_i32_2 = arith.constant 0 : i32
    return %c0_i32, %c0_i32_0, %c0_i32_1 : i32, i32, i32
  }
  func.func @transform_4(%arg0: i32) -> (i32, i32, i32) {
    %c0_i32 = arith.constant 0 : i32
    %c0_i32_0 = arith.constant 0 : i32
    %c0_i32_1 = arith.constant 0 : i32
    %c0_i32_2 = arith.constant 0 : i32
    return %c0_i32, %c0_i32_0, %c0_i32_1 : i32, i32, i32
  }
  func.func @transform_5(%arg0: i32) -> (i32, i32, i32) {
    %c0_i32 = arith.constant 0 : i32
    %c0_i32_0 = arith.constant 0 : i32
    %c0_i32_1 = arith.constant 0 : i32
    %c0_i32_2 = arith.constant 0 : i32
    return %c0_i32, %c0_i32_0, %c0_i32_1 : i32, i32, i32
  }
  func.func @transform_6(%arg0: i32) -> (i32, i32, i32) {
    %c0_i32 = arith.constant 0 : i32
    %c0_i32_0 = arith.constant 0 : i32
    %c0_i32_1 = arith.constant 0 : i32
    %c0_i32_2 = arith.constant 0 : i32
    return %c0_i32, %c0_i32_0, %c0_i32_1 : i32, i32, i32
  }
  func.func @transform_7(%arg0: i32) -> (i32, i32, i32) {
    %c0_i32 = arith.constant 0 : i32
    %c0_i32_0 = arith.constant 0 : i32
    %c0_i32_1 = arith.constant 0 : i32
    %c0_i32_2 = arith.constant 0 : i32
    return %c0_i32, %c0_i32_0, %c0_i32_1 : i32, i32, i32
  }
  func.func @transform_8(%arg0: i32) -> (i32, i32, i32) {
    %c0_i32 = arith.constant 0 : i32
    %c0_i32_0 = arith.constant 0 : i32
    %c0_i32_1 = arith.constant 0 : i32
    %c0_i32_2 = arith.constant 0 : i32
    return %c0_i32, %c0_i32_0, %c0_i32_1 : i32, i32, i32
  }
  func.func @transform_9(%arg0: i32) -> (i32, i32) {
    %c0_i32 = arith.constant 0 : i32
    %c0_i32_0 = arith.constant 0 : i32
    %c0_i32_1 = arith.constant 0 : i32
    return %c0_i32, %c0_i32_0 : i32, i32
  }
  func.func @transform_10(%arg0: i32) -> (i32, i32) {
    %c0_i32 = arith.constant 0 : i32
    %c0_i32_0 = arith.constant 0 : i32
    %c0_i32_1 = arith.constant 0 : i32
    return %c0_i32, %c0_i32_0 : i32, i32
  }
  func.func @transform_11(%arg0: i32) -> (i32, i32, i32) {
    %c0_i32 = arith.constant 0 : i32
    %c0_i32_0 = arith.constant 0 : i32
    %c0_i32_1 = arith.constant 0 : i32
    return %arg0, %c0_i32, %c0_i32_0 : i32, i32, i32
  }
}

</mosaic_0001>

<llo_original>
// kernel: _lambda_.1
$region0: #{_lambda_.1}
  #allocation0 [shape = 'u32[]', space=smem, size = 0x4, offset = 0x4, fixed_abs, tag = 'smem constant byte address 0x4 - core index']
  #allocation1 [shape = 'u32[144,128]{1,0:T(1,128)}', space=vmem, size = 0x12000, scoped, tag = 'internal scratch']
  %s0 = inlined_call_operand.vmem [shape: bf16[2,64,128], index: 0, kind: input, shape index: {}]
  %s1 = inlined_call_operand.vmem [shape: bf16[128,128], index: 1, kind: input, shape index: {}]
  %s2 = inlined_call_operand.vmem [shape: f32[3,128], index: 2, kind: input, shape index: {}]
  %s3 = inlined_call_operand.vmem [shape: f32[2,81,128], index: 3, kind: input, shape index: {}]
  %s4 = inlined_call_operand.vmem [shape: f32[2,3,128], index: 4, kind: input, shape index: {}]
  %s5 = inlined_call_operand.vmem [shape: bf16[2,128,128], index: 5, kind: input, shape index: {}]
  %s6 = inlined_call_operand.vmem [shape: f32[2,3,128], index: 6, kind: input, shape index: {}]
  %s7 = inlined_call_operand.vmem [shape: bf16[1,128,128], index: 7, kind: input, shape index: {}]
  %s8 = inlined_call_operand.vmem [shape: f32[1,1,128], index: 8, kind: input, shape index: {}]
  %s9 = inlined_call_operand.vmem [shape: bf16[128,128], index: 9, kind: input, shape index: {}]
  %s10 = inlined_call_operand.vmem [shape: f32[1,128], index: 10, kind: input, shape index: {}]
  %s11 = inlined_call_operand.hbm [shape: f32[2,1,128], index: 11, kind: output, shape index: {}]
  %s12 = sld [smem:[#allocation0]]
  $region77: #{_lambda_.1} parent=0
    _
  %s14 = ssub.s32 1, %s12
  %s15 = scalar_select 0, %s14, %s12
  $region1: #{_lambda_.1} parent=0
    #allocation2 [shape = 'u8[1024]{0}', space=vmem, size = 0x400, scoped, tag = 'output window, operand 0']
    #allocation3 [shape = 's32[2]{0}', space=sflag, size = 0x8, scoped, tag = 'scoped memory for _lambda_.1']
    %16 = vsyncpa [#allocation3], 0
    %s17 = scalar_lea.sflag [#allocation3], 1
    %18 = vsyncpa %s17, 0
    loop: start=0, step=1, limit=4
    $region2: #{_lambda_.1} parent=1 // loop_pre_header
      _
    $region3: #{_lambda_.1} parent=1 // loop_header
      %s20 = sphi 0, %s24
      %p21 = scmp.ge.s32.totalorder %s20, 4
      %s30 = sphi 0, %s32
      %s33 = sphi 0, %s30
      %s34 = sphi 0, %s33
      %s50 = sphi 0, %s34
      %s54 = sphi 0, %s54
      %s56 = sphi 0, %s54
      %s57 = sphi 0, %s56
      %s71 = sphi 0, %s57
      %s75 = sphi 0, %s75
      %s77 = sphi 0, %s75
      %s78 = sphi 0, %s77
      %s92 = sphi 0, %s78
      %s96 = sphi 0, %s96
      %s98 = sphi 0, %s96
      %s99 = sphi 0, %s98
      %s113 = sphi 0, %s99
      %s117 = sphi 0, %s117
      %s119 = sphi 0, %s117
      %s120 = sphi 0, %s119
      %s134 = sphi 0, %s120
      %s138 = sphi 0, %s138
      %s140 = sphi 0, %s138
      %s141 = sphi 0, %s140
      %s155 = sphi 0, %s141
      %s159 = sphi 0, %s159
      %s161 = sphi 0, %s159
      %s162 = sphi 0, %s161
      %s176 = sphi 0, %s162
      %s180 = sphi 0, %s180
      %s182 = sphi 0, %s180
      %s183 = sphi 0, %s182
      %s197 = sphi 0, %s183
      %s201 = sphi 0, %s201
      %s203 = sphi 0, %s201
      %s204 = sphi 0, %s203
      %s218 = sphi 0, %s204
      %s222 = sphi 0, %s222
      %s224 = sphi 0, %s222
      %s225 = sphi 0, %s224
      %s239 = sphi 0, %s225
      %s243 = sphi 0, %s243
      %s245 = sphi 0, %s243
      %s246 = sphi 0, %s245
      %s260 = sphi 0, %s246
      %s266 = sphi 0, %s268
      %s269 = sphi 0, %s266
      %s270 = sphi 0, %s269
      %s286 = sphi 0, %s270
    $region4: #{_lambda_.1} parent=1 // loop_header_branch
      %23 = sbr.rel (%p21) target = $region8
    $region5: #{_lambda_.1} parent=1 // loop_body
      %s25 = ssub.s32 %s20, 1
      %s26 = ssub.s32 %s20, 2
      %s27 = sadd.s32 %s20, 1
      %s28 = ssub.s32 %s20, %s27
      %p29 = scmp.eq.s32.totalorder %s28, 0
      %s31 = sadd.s32 %s30, 1
      %s32 = scalar_select %p29, %s30, %s31
      %p35 = pneg %p29
      %p36 = scmp.eq.s32.totalorder %s20, 1
      %p37 = por %p35, %p36
      %p38 = scmp.ne.s32.totalorder %s30, %s33
      %p39 = scmp.eq.s32.totalorder %s20, 0
      %p40 = por %p38, %p39
      %p41 = scmp.ne.s32.totalorder %s30, %s33
      %p42 = scmp.eq.s32.totalorder %s25, 1
      %p43 = por %p41, %p42
      %p44 = scmp.ne.s32.totalorder %s33, %s34
      %p45 = scmp.eq.s32.totalorder %s25, 0
      %p46 = por %p44, %p45
      %p47 = scmp.ne.s32.totalorder %s33, %s34
      %p48 = scmp.eq.s32.totalorder %s26, 1
      %p49 = por %p47, %p48
      %p51 = scmp.ne.s32.totalorder %s34, %s50
      %p52 = scmp.eq.s32.totalorder %s26, 0
      %p53 = por %p51, %p52
      %s55 = sadd.s32 %s54, 1
      %p58 = scmp.eq.s32.totalorder %s20, 1
      %p59 = scmp.ne.s32.totalorder %s54, %s56
      %p60 = scmp.eq.s32.totalorder %s20, 0
      %p61 = por %p59, %p60
      %p62 = scmp.ne.s32.totalorder %s54, %s56
      %p63 = scmp.eq.s32.totalorder %s25, 1
      %p64 = por %p62, %p63
      %p65 = scmp.ne.s32.totalorder %s56, %s57
      %p66 = scmp.eq.s32.totalorder %s25, 0
      %p67 = por %p65, %p66
      %p68 = scmp.ne.s32.totalorder %s56, %s57
      %p69 = scmp.eq.s32.totalorder %s26, 1
      %p70 = por %p68, %p69
      %p72 = scmp.ne.s32.totalorder %s57, %s71
      %p73 = scmp.eq.s32.totalorder %s26, 0
      %p74 = por %p72, %p73
      %s76 = sadd.s32 %s75, 1
      %p79 = scmp.eq.s32.totalorder %s20, 1
      %p80 = scmp.ne.s32.totalorder %s75, %s77
      %p81 = scmp.eq.s32.totalorder %s20, 0
      %p82 = por %p80, %p81
      %p83 = scmp.ne.s32.totalorder %s75, %s77
      %p84 = scmp.eq.s32.totalorder %s25, 1
      %p85 = por %p83, %p84
      %p86 = scmp.ne.s32.totalorder %s77, %s78
      %p87 = scmp.eq.s32.totalorder %s25, 0
      %p88 = por %p86, %p87
      %p89 = scmp.ne.s32.totalorder %s77, %s78
      %p90 = scmp.eq.s32.totalorder %s26, 1
      %p91 = por %p89, %p90
      %p93 = scmp.ne.s32.totalorder %s78, %s92
      %p94 = scmp.eq.s32.totalorder %s26, 0
      %p95 = por %p93, %p94
      %s97 = sadd.s32 %s96, 1
      %p100 = scmp.eq.s32.totalorder %s20, 1
      %p101 = scmp.ne.s32.totalorder %s96, %s98
      %p102 = scmp.eq.s32.totalorder %s20, 0
      %p103 = por %p101, %p102
      %p104 = scmp.ne.s32.totalorder %s96, %s98
      %p105 = scmp.eq.s32.totalorder %s25, 1
      %p106 = por %p104, %p105
      %p107 = scmp.ne.s32.totalorder %s98, %s99
      %p108 = scmp.eq.s32.totalorder %s25, 0
      %p109 = por %p107, %p108
      %p110 = scmp.ne.s32.totalorder %s98, %s99
      %p111 = scmp.eq.s32.totalorder %s26, 1
      %p112 = por %p110, %p111
      %p114 = scmp.ne.s32.totalorder %s99, %s113
      %p115 = scmp.eq.s32.totalorder %s26, 0
      %p116 = por %p114, %p115
      %s118 = sadd.s32 %s117, 1
      %p121 = scmp.eq.s32.totalorder %s20, 1
      %p122 = scmp.ne.s32.totalorder %s117, %s119
      %p123 = scmp.eq.s32.totalorder %s20, 0
      %p124 = por %p122, %p123
      %p125 = scmp.ne.s32.totalorder %s117, %s119
      %p126 = scmp.eq.s32.totalorder %s25, 1
      %p127 = por %p125, %p126
      %p128 = scmp.ne.s32.totalorder %s119, %s120
      %p129 = scmp.eq.s32.totalorder %s25, 0
      %p130 = por %p128, %p129
      %p131 = scmp.ne.s32.totalorder %s119, %s120
      %p132 = scmp.eq.s32.totalorder %s26, 1
      %p133 = por %p131, %p132
      %p135 = scmp.ne.s32.totalorder %s120, %s134
      %p136 = scmp.eq.s32.totalorder %s26, 0
      %p137 = por %p135, %p136
      %s139 = sadd.s32 %s138, 1
      %p142 = scmp.eq.s32.totalorder %s20, 1
      %p143 = scmp.ne.s32.totalorder %s138, %s140
      %p144 = scmp.eq.s32.totalorder %s20, 0
      %p145 = por %p143, %p144
      %p146 = scmp.ne.s32.totalorder %s138, %s140
      %p147 = scmp.eq.s32.totalorder %s25, 1
      %p148 = por %p146, %p147
      %p149 = scmp.ne.s32.totalorder %s140, %s141
      %p150 = scmp.eq.s32.totalorder %s25, 0
      %p151 = por %p149, %p150
      %p152 = scmp.ne.s32.totalorder %s140, %s141
      %p153 = scmp.eq.s32.totalorder %s26, 1
      %p154 = por %p152, %p153
      %p156 = scmp.ne.s32.totalorder %s141, %s155
      %p157 = scmp.eq.s32.totalorder %s26, 0
      %p158 = por %p156, %p157
      %s160 = sadd.s32 %s159, 1
      %p163 = scmp.eq.s32.totalorder %s20, 1
      %p164 = scmp.ne.s32.totalorder %s159, %s161
      %p165 = scmp.eq.s32.totalorder %s20, 0
      %p166 = por %p164, %p165
      %p167 = scmp.ne.s32.totalorder %s159, %s161
      %p168 = scmp.eq.s32.totalorder %s25, 1
      %p169 = por %p167, %p168
      %p170 = scmp.ne.s32.totalorder %s161, %s162
      %p171 = scmp.eq.s32.totalorder %s25, 0
      %p172 = por %p170, %p171
      %p173 = scmp.ne.s32.totalorder %s161, %s162
      %p174 = scmp.eq.s32.totalorder %s26, 1
      %p175 = por %p173, %p174
      %p177 = scmp.ne.s32.totalorder %s162, %s176
      %p178 = scmp.eq.s32.totalorder %s26, 0
      %p179 = por %p177, %p178
      %s181 = sadd.s32 %s180, 1
      %p184 = scmp.eq.s32.totalorder %s20, 1
      %p185 = scmp.ne.s32.totalorder %s180, %s182
      %p186 = scmp.eq.s32.totalorder %s20, 0
      %p187 = por %p185, %p186
      %p188 = scmp.ne.s32.totalorder %s180, %s182
      %p189 = scmp.eq.s32.totalorder %s25, 1
      %p190 = por %p188, %p189
      %p191 = scmp.ne.s32.totalorder %s182, %s183
      %p192 = scmp.eq.s32.totalorder %s25, 0
      %p193 = por %p191, %p192
      %p194 = scmp.ne.s32.totalorder %s182, %s183
      %p195 = scmp.eq.s32.totalorder %s26, 1
      %p196 = por %p194, %p195
      %p198 = scmp.ne.s32.totalorder %s183, %s197
      %p199 = scmp.eq.s32.totalorder %s26, 0
      %p200 = por %p198, %p199
      %s202 = sadd.s32 %s201, 1
      %p205 = scmp.eq.s32.totalorder %s20, 1
      %p206 = scmp.ne.s32.totalorder %s201, %s203
      %p207 = scmp.eq.s32.totalorder %s20, 0
      %p208 = por %p206, %p207
      %p209 = scmp.ne.s32.totalorder %s201, %s203
      %p210 = scmp.eq.s32.totalorder %s25, 1
      %p211 = por %p209, %p210
      %p212 = scmp.ne.s32.totalorder %s203, %s204
      %p213 = scmp.eq.s32.totalorder %s25, 0
      %p214 = por %p212, %p213
      %p215 = scmp.ne.s32.totalorder %s203, %s204
      %p216 = scmp.eq.s32.totalorder %s26, 1
      %p217 = por %p215, %p216
      %p219 = scmp.ne.s32.totalorder %s204, %s218
      %p220 = scmp.eq.s32.totalorder %s26, 0
      %p221 = por %p219, %p220
      %s223 = sadd.s32 %s222, 1
      %p226 = scmp.eq.s32.totalorder %s20, 1
      %p227 = scmp.ne.s32.totalorder %s222, %s224
      %p228 = scmp.eq.s32.totalorder %s20, 0
      %p229 = por %p227, %p228
      %p230 = scmp.ne.s32.totalorder %s222, %s224
      %p231 = scmp.eq.s32.totalorder %s25, 1
      %p232 = por %p230, %p231
      %p233 = scmp.ne.s32.totalorder %s224, %s225
      %p234 = scmp.eq.s32.totalorder %s25, 0
      %p235 = por %p233, %p234
      %p236 = scmp.ne.s32.totalorder %s224, %s225
      %p237 = scmp.eq.s32.totalorder %s26, 1
      %p238 = por %p236, %p237
      %p240 = scmp.ne.s32.totalorder %s225, %s239
      %p241 = scmp.eq.s32.totalorder %s26, 0
      %p242 = por %p240, %p241
      %s244 = sadd.s32 %s243, 1
      %p247 = scmp.eq.s32.totalorder %s20, 1
      %p248 = scmp.ne.s32.totalorder %s243, %s245
      %p249 = scmp.eq.s32.totalorder %s20, 0
      %p250 = por %p248, %p249
      %p251 = scmp.ne.s32.totalorder %s243, %s245
      %p252 = scmp.eq.s32.totalorder %s25, 1
      %p253 = por %p251, %p252
      %p254 = scmp.ne.s32.totalorder %s245, %s246
      %p255 = scmp.eq.s32.totalorder %s25, 0
      %p256 = por %p254, %p255
      %p257 = scmp.ne.s32.totalorder %s245, %s246
      %p258 = scmp.eq.s32.totalorder %s26, 1
      %p259 = por %p257, %p258
      %p261 = scmp.ne.s32.totalorder %s246, %s260
      %p262 = scmp.eq.s32.totalorder %s26, 0
      %p263 = por %p261, %p262
      %s264 = ssub.s32 %s20, %s27
      %p265 = scmp.eq.s32.totalorder %s264, 0
      %s267 = sadd.s32 %s266, 1
      %s268 = scalar_select %p265, %s266, %s267
      %p271 = pneg %p265
      %p272 = scmp.eq.s32.totalorder %s20, 1
      %p273 = por %p271, %p272
      %p274 = scmp.ne.s32.totalorder %s266, %s269
      %p275 = scmp.eq.s32.totalorder %s20, 0
      %p276 = por %p274, %p275
      %p277 = scmp.ne.s32.totalorder %s266, %s269
      %p278 = scmp.eq.s32.totalorder %s25, 1
      %p279 = por %p277, %p278
      %p280 = scmp.ne.s32.totalorder %s269, %s270
      %p281 = scmp.eq.s32.totalorder %s25, 0
      %p282 = por %p280, %p281
      %p283 = scmp.ne.s32.totalorder %s269, %s270
      %p284 = scmp.eq.s32.totalorder %s26, 1
      %p285 = por %p283, %p284
      %p287 = scmp.ne.s32.totalorder %s270, %s286
      %p288 = scmp.eq.s32.totalorder %s26, 0
      %p289 = por %p287, %p288
      %p290 = scmp.le.s32.totalorder 1, %s20
      %p291 = scmp.lt.s32.totalorder %s20, 3
      %p292 = pnand %p290, %p291
      %p293 = pneg %p292
      // Predicated region
      $region9: #{_lambda_.1} parent=5 // pred_check
        _
      $region10: #{_lambda_.1} parent=5 // pred_check_branch
        %295 = sbr.rel (%p292) target = $region12
      $region11: #{_lambda_.1} parent=5 // pred_region
        %s296 = ssub.s32 %s20, 1
        // Predicated region
        $region13: #{_lambda_.1} parent=11 // pred_check
          %p297 = pneg %p67
        $region14: #{_lambda_.1} parent=11 // pred_check_branch
          %299 = sbr.rel (%p297) target = $region16
        $region15: #{_lambda_.1} parent=11 // pred_region
          _
        $region16: #{_lambda_.1} parent=11 // pred_fallthru
          _
        // Predicated region
        $region17: #{_lambda_.1} parent=11 // pred_check
          %p300 = pneg %p88
        $region18: #{_lambda_.1} parent=11 // pred_check_branch
          %302 = sbr.rel (%p300) target = $region20
        $region19: #{_lambda_.1} parent=11 // pred_region
          _
        $region20: #{_lambda_.1} parent=11 // pred_fallthru
          _
        // Predicated region
        $region21: #{_lambda_.1} parent=11 // pred_check
          %p303 = pneg %p109
        $region22: #{_lambda_.1} parent=11 // pred_check_branch
          %305 = sbr.rel (%p303) target = $region24
        $region23: #{_lambda_.1} parent=11 // pred_region
          _
        $region24: #{_lambda_.1} parent=11 // pred_fallthru
          _
        // Predicated region
        $region25: #{_lambda_.1} parent=11 // pred_check
          %p306 = pneg %p130
        $region26: #{_lambda_.1} parent=11 // pred_check_branch
          %308 = sbr.rel (%p306) target = $region28
        $region27: #{_lambda_.1} parent=11 // pred_region
          _
        $region28: #{_lambda_.1} parent=11 // pred_fallthru
          _
        // Predicated region
        $region29: #{_lambda_.1} parent=11 // pred_check
          %p309 = pneg %p151
        $region30: #{_lambda_.1} parent=11 // pred_check_branch
          %311 = sbr.rel (%p309) target = $region32
        $region31: #{_lambda_.1} parent=11 // pred_region
          _
        $region32: #{_lambda_.1} parent=11 // pred_fallthru
          _
        // Predicated region
        $region33: #{_lambda_.1} parent=11 // pred_check
          %p312 = pneg %p172
        $region34: #{_lambda_.1} parent=11 // pred_check_branch
          %314 = sbr.rel (%p312) target = $region36
        $region35: #{_lambda_.1} parent=11 // pred_region
          _
        $region36: #{_lambda_.1} parent=11 // pred_fallthru
          _
        // Predicated region
        $region37: #{_lambda_.1} parent=11 // pred_check
          %p315 = pneg %p193
        $region38: #{_lambda_.1} parent=11 // pred_check_branch
          %317 = sbr.rel (%p315) target = $region40
        $region39: #{_lambda_.1} parent=11 // pred_region
          _
        $region40: #{_lambda_.1} parent=11 // pred_fallthru
          _
        // Predicated region
        $region41: #{_lambda_.1} parent=11 // pred_check
          %p318 = pneg %p214
        $region42: #{_lambda_.1} parent=11 // pred_check_branch
          %320 = sbr.rel (%p318) target = $region44
        $region43: #{_lambda_.1} parent=11 // pred_region
          _
        $region44: #{_lambda_.1} parent=11 // pred_fallthru
          _
        // Predicated region
        $region45: #{_lambda_.1} parent=11 // pred_check
          %p321 = pneg %p235
        $region46: #{_lambda_.1} parent=11 // pred_check_branch
          %323 = sbr.rel (%p321) target = $region48
        $region47: #{_lambda_.1} parent=11 // pred_region
          _
        $region48: #{_lambda_.1} parent=11 // pred_fallthru
          _
        // Predicated region
        $region49: #{_lambda_.1} parent=11 // pred_check
          %p324 = pneg %p256
        $region50: #{_lambda_.1} parent=11 // pred_check_branch
          %326 = sbr.rel (%p324) target = $region52
        $region51: #{_lambda_.1} parent=11 // pred_region
          _
        $region52: #{_lambda_.1} parent=11 // pred_fallthru
          _
      $region12: #{_lambda_.1} parent=5 // pred_fallthru
        _
      %p327 = scmp.lt.s32.totalorder %s20, 2
      // Predicated region
      $region53: #{_lambda_.1} parent=5 // pred_check
        %p328 = pneg %p327
      $region54: #{_lambda_.1} parent=5 // pred_check_branch
        %330 = sbr.rel (%p328) target = $region56
      $region55: #{_lambda_.1} parent=5 // pred_region
        // Predicated region
        $region57: #{_lambda_.1} parent=55 // pred_check
          %p331 = pneg %p40
        $region58: #{_lambda_.1} parent=55 // pred_check_branch
          %333 = sbr.rel (%p331) target = $region60
        $region59: #{_lambda_.1} parent=55 // pred_region
          %p334 = scmp.lt.s32.totalorder %s20, 1
          %s335 = scalar_select %p334, %s20, 1
          %s336 = smul.addr %s335, 8
          %s337 = smul.addr %s336, 4
          %s338 = scalar_lea.vmem %s0, %s337
        $region60: #{_lambda_.1} parent=55 // pred_fallthru
          _
      $region56: #{_lambda_.1} parent=5 // pred_fallthru
        _
      %p339 = scmp.le.s32.totalorder 1, %s20
      %p340 = scmp.lt.s32.totalorder %s20, 3
      %p341 = pnand %p339, %p340
      %p342 = pneg %p341
      // Predicated region
      $region61: #{_lambda_.1} parent=5 // pred_check
        _
      $region62: #{_lambda_.1} parent=5 // pred_check_branch
        %344 = sbr.rel (%p341) target = $region64
      $region63: #{_lambda_.1} parent=5 // pred_region
        %s345 = ssub.s32 %s20, 1
        %p346 = scmp.lt.s32.totalorder %s25, 1
        %s347 = scalar_select %p346, %s25, 1
        %s348 = smul.addr %s347, 8
        %s349 = smul.addr %s348, 4
        %s350 = scalar_lea.vmem %s0, %s349
        %p351 = pneg %p46
        %p352 = pneg %p43
        %p353 = pneg %p67
        %p354 = pneg %p64
        %p355 = pneg %p88
        %p356 = pneg %p85
        %p357 = pneg %p109
        %p358 = pneg %p106
        %p359 = pneg %p130
        %p360 = pneg %p127
        %p361 = pneg %p151
        %p362 = pneg %p148
        %p363 = pneg %p172
        %p364 = pneg %p169
        %p365 = pneg %p193
        %p366 = pneg %p190
        %p367 = pneg %p214
        %p368 = pneg %p211
        %p369 = pneg %p235
        %p370 = pneg %p232
        %p371 = pneg %p256
        %p372 = pneg %p253
        %p373 = pneg %p282
        %p374 = pneg %p279
        %s375 = sand.u32 %s269, 1
        %s376 = scalar_lea.sflag [#allocation3], %s375
        %s377 = sand.u32 %s269, 1
        %s378 = scalar_lea.vmem [#allocation2], %s377
        %p379 = scmp.lt.s32.totalorder %s25, 1
        %s380 = scalar_select %p379, %s25, 1
        %s381 = smul.addr %s380, 8
        %s382 = smul.addr %s381, 4
        %s383 = scalar_lea.vmem %s0, %s382
        %v385 = vld [vmem:[%s383] sm:$0xf]
        %v386 = vld [vmem:[%s383 + $0x4] sm:$0xf]
        %v387 = vld [vmem:[%s383 + $0x8] sm:$0xf]
        %v388 = vld [vmem:[%s383 + $0xc] sm:$0xf]
        %v389 = vld [vmem:[%s383 + $0x10] sm:$0xf]
        %v390 = vld [vmem:[%s383 + $0x14] sm:$0xf]
        %v391 = vld [vmem:[%s383 + $0x18] sm:$0xf]
        %v392 = vld [vmem:[%s383 + $0x1c] sm:$0xf]
        %v393 = vld [vmem:[%s1] sm:$0xf]
        %v394 = vld [vmem:[%s1 + $0x4] sm:$0xf]
        %v395 = vld [vmem:[%s1 + $0x8] sm:$0xf]
        %v396 = vld [vmem:[%s1 + $0xc] sm:$0xf]
        %v397 = vld [vmem:[%s1 + $0x10] sm:$0xf]
        %v398 = vld [vmem:[%s1 + $0x14] sm:$0xf]
        %v399 = vld [vmem:[%s1 + $0x18] sm:$0xf]
        %v400 = vld [vmem:[%s1 + $0x1c] sm:$0xf]
        %v401 = vld [vmem:[%s1 + $0x20] sm:$0xf]
        %v402 = vld [vmem:[%s1 + $0x24] sm:$0xf]
        %v403 = vld [vmem:[%s1 + $0x28] sm:$0xf]
        %v404 = vld [vmem:[%s1 + $0x2c] sm:$0xf]
        %v405 = vld [vmem:[%s1 + $0x30] sm:$0xf]
        %v406 = vld [vmem:[%s1 + $0x34] sm:$0xf]
        %v407 = vld [vmem:[%s1 + $0x38] sm:$0xf]
        %v408 = vld [vmem:[%s1 + $0x3c] sm:$0xf]
        %v409 = vld [vmem:[%s2] sm:$0x1]
        %v410 = vlaneseq
        %v411 = vshrl.u32 %v410, 7
        %v412 = vsub.s32 0, %v411
        %v413 = vrot.slane %v409, %v412
        %v422 = vunpack.c.l.b16 %v385
        %v423 = vunpack.c.l.b16 %v386
        %v424 = vunpack.c.l.b16 %v387
        %v425 = vunpack.c.l.b16 %v388
        %v426 = vunpack.c.l.b16 %v389
        %v427 = vunpack.c.l.b16 %v390
        %v428 = vunpack.c.l.b16 %v391
        %v429 = vunpack.c.l.b16 %v392
        %v430 = vpack.c.b16 %v423, %v422
        %v431 = vpack.c.b16 %v425, %v424
        %v432 = vpack.c.b16 %v427, %v426
        %v433 = vpack.c.b16 %v429, %v428
        %v454 = vunpack.c.l.b16 %v393
        %v455 = vunpack.c.l.b16 %v394
        %v456 = vunpack.c.l.b16 %v395
        %v457 = vunpack.c.l.b16 %v396
        %v458 = vunpack.c.l.b16 %v397
        %v459 = vunpack.c.l.b16 %v398
        %v460 = vunpack.c.l.b16 %v399
        %v461 = vunpack.c.l.b16 %v400
        %v462 = vunpack.c.l.b16 %v401
        %v463 = vunpack.c.l.b16 %v402
        %v464 = vunpack.c.l.b16 %v403
        %v465 = vunpack.c.l.b16 %v404
        %v466 = vunpack.c.l.b16 %v405
        %v467 = vunpack.c.l.b16 %v406
        %v468 = vunpack.c.l.b16 %v407
        %v469 = vunpack.c.l.b16 %v408
        %v470 = vpack.c.b16 %v455, %v454
        %v471 = vpack.c.b16 %v457, %v456
        %v472 = vpack.c.b16 %v459, %v458
        %v473 = vpack.c.b16 %v461, %v460
        %v474 = vpack.c.b16 %v463, %v462
        %v475 = vpack.c.b16 %v465, %v464
        %v476 = vpack.c.b16 %v467, %v466
        %v477 = vpack.c.b16 %v469, %v468
        %486 = vmatprep.subr.bf16.mxu0 0
        %487 = vmatpush1.bf16.msra.mxu0 %v470
        %488 = vmatprep.subr.bf16.mxu0 0
        %489 = vmatpush1.bf16.msra.mxu0 %v471
        %490 = vmatprep.subr.bf16.mxu0 0
        %491 = vmatpush1.bf16.msra.mxu0 %v472
        %492 = vmatprep.subr.bf16.mxu0 0
        %493 = vmatpush1.bf16.msra.mxu0 %v473
        %494 = vmatprep.subr.bf16.mxu0 0
        %495 = vmatpush1.bf16.msra.mxu0 %v474
        %496 = vmatprep.subr.bf16.mxu0 0
        %497 = vmatpush1.bf16.msra.mxu0 %v475
        %498 = vmatprep.subr.bf16.mxu0 0
        %499 = vmatpush1.bf16.msra.mxu0 %v476
        %500 = vmatprep.subr.bf16.mxu0 0
        %501 = vmatpush1.bf16.msra.mxu0 %v477
        %502 = vmatprep.subr.bf16.mxu0 0
        %503 = vmatpush1.bf16.msra.mxu0 0
        %504 = vmatprep.subr.bf16.mxu0 0
        %505 = vmatpush1.bf16.msra.mxu0 0
        %506 = vmatprep.subr.bf16.mxu0 0
        %507 = vmatpush1.bf16.msra.mxu0 0
        %508 = vmatprep.subr.bf16.mxu0 0
        %509 = vmatpush1.bf16.msra.mxu0 0
        %510 = vmatprep.subr.bf16.mxu0 0
        %511 = vmatpush1.bf16.msra.mxu0 0
        %512 = vmatprep.subr.bf16.mxu0 0
        %513 = vmatpush1.bf16.msra.mxu0 0
        %514 = vmatprep.subr.bf16.mxu0 0
        %515 = vmatpush1.bf16.msra.mxu0 0
        %516 = vmatprep.subr.bf16.mxu0 0
        %517 = vmatpush1.bf16.msra.mxu0 0
        %518 = vmatprep.mubr.bf16.mxu0 0
        %519 = vmatmul.mubr.bf16.gmra.mrb[0].mxu0 %v430
        %v520 = vpop.f32.mrb[0].mxu0
        %v521 = vadd.f32 %v413, %v520
        %v522 = vpop.f32.mrb[0].mxu0
        %v523 = vpop.f32.mrb[0].mxu0
        %v524 = vadd.f32 %v413, %v523
        %v525 = vpop.f32.mrb[0].mxu0
        %526 = vmatprep.mubr.bf16.mxu0 0
        %527 = vmatmul.mubr.bf16.gmra.mrb[0].mxu0 %v431
        %v528 = vpop.f32.mrb[0].mxu0
        %v529 = vadd.f32 %v413, %v528
        %v530 = vpop.f32.mrb[0].mxu0
        %v531 = vpop.f32.mrb[0].mxu0
        %v532 = vadd.f32 %v413, %v531
        %v533 = vpop.f32.mrb[0].mxu0
        %534 = vmatprep.mubr.bf16.mxu0 0
        %535 = vmatmul.mubr.bf16.gmra.mrb[0].mxu0 %v432
        %v536 = vpop.f32.mrb[0].mxu0
        %v537 = vadd.f32 %v413, %v536
        %v538 = vpop.f32.mrb[0].mxu0
        %v539 = vpop.f32.mrb[0].mxu0
        %v540 = vadd.f32 %v413, %v539
        %v541 = vpop.f32.mrb[0].mxu0
        %542 = vmatprep.mubr.bf16.mxu0 0
        %543 = vmatmul.mubr.bf16.gmra.mrb[0].mxu0 %v433
        %v544 = vpop.f32.mrb[0].mxu0
        %v545 = vadd.f32 %v413, %v544
        %v546 = vpop.f32.mrb[0].mxu0
        %v547 = vpop.f32.mrb[0].mxu0
        %v548 = vadd.f32 %v413, %v547
        %v549 = vpop.f32.mrb[0].mxu0
        %550 = vdwg.mxu0
        %v551 = vmul.f32 %v521, 0.5
        %v552 = vmul.f32 %v524, 0.5
        %v553 = vmul.f32 %v529, 0.5
        %v554 = vmul.f32 %v532, 0.5
        %v555 = vmul.f32 %v537, 0.5
        %v556 = vmul.f32 %v540, 0.5
        %v557 = vmul.f32 %v545, 0.5
        %v558 = vmul.f32 %v548, 0.5
        %v559 = vmul.f32 %v521, 0.044715
        %v560 = vmul.f32 %v524, 0.044715
        %v561 = vmul.f32 %v529, 0.044715
        %v562 = vmul.f32 %v532, 0.044715
        %v563 = vmul.f32 %v537, 0.044715
        %v564 = vmul.f32 %v540, 0.044715
        %v565 = vmul.f32 %v545, 0.044715
        %v566 = vmul.f32 %v548, 0.044715
        %v567 = vmul.f32 %v559, %v521
        %v568 = vmul.f32 %v560, %v524
        %v569 = vmul.f32 %v561, %v529
        %v570 = vmul.f32 %v562, %v532
        %v571 = vmul.f32 %v563, %v537
        %v572 = vmul.f32 %v564, %v540
        %v573 = vmul.f32 %v565, %v545
        %v574 = vmul.f32 %v566, %v548
        %v575 = vmul.f32 %v567, %v521
        %v576 = vmul.f32 %v568, %v524
        %v577 = vmul.f32 %v569, %v529
        %v578 = vmul.f32 %v570, %v532
        %v579 = vmul.f32 %v571, %v537
        %v580 = vmul.f32 %v572, %v540
        %v581 = vmul.f32 %v573, %v545
        %v582 = vmul.f32 %v574, %v548
        %v583 = vadd.f32 %v521, %v575
        %v584 = vadd.f32 %v524, %v576
        %v585 = vadd.f32 %v529, %v577
        %v586 = vadd.f32 %v532, %v578
        %v587 = vadd.f32 %v537, %v579
        %v588 = vadd.f32 %v540, %v580
        %v589 = vadd.f32 %v545, %v581
        %v590 = vadd.f32 %v548, %v582
        %v591 = vmul.f32 %v583, 0.7978846
        %v592 = vmul.f32 %v584, 0.7978846
        %v593 = vmul.f32 %v585, 0.7978846
        %v594 = vmul.f32 %v586, 0.7978846
        %v595 = vmul.f32 %v587, 0.7978846
        %v596 = vmul.f32 %v588, 0.7978846
        %v597 = vmul.f32 %v589, 0.7978846
        %v598 = vmul.f32 %v590, 0.7978846
        %v599 = vtanh.pop %v591
        %v600 = vtanh.pop %v592
        %v601 = vtanh.pop %v593
        %v602 = vtanh.pop %v594
        %v603 = vtanh.pop %v595
        %v604 = vtanh.pop %v596
        %v605 = vtanh.pop %v597
        %v606 = vtanh.pop %v598
        %v607 = vadd.f32 %v599, 1.0
        %v608 = vadd.f32 %v600, 1.0
        %v609 = vadd.f32 %v601, 1.0
        %v610 = vadd.f32 %v602, 1.0
        %v611 = vadd.f32 %v603, 1.0
        %v612 = vadd.f32 %v604, 1.0
        %v613 = vadd.f32 %v605, 1.0
        %v614 = vadd.f32 %v606, 1.0
        %v615 = vmul.f32 %v551, %v607
        %v616 = vmul.f32 %v552, %v608
        %v617 = vmul.f32 %v553, %v609
        %v618 = vmul.f32 %v554, %v610
        %v619 = vmul.f32 %v555, %v611
        %v620 = vmul.f32 %v556, %v612
        %v621 = vmul.f32 %v557, %v613
        %v622 = vmul.f32 %v558, %v614
        %v623 = vld [vmem:[%s2 + $0x1] sm:$0x1]
        %v624 = vlaneseq
        %v625 = vshrl.u32 %v624, 7
        %v626 = vsub.s32 0, %v625
        %v627 = vrot.slane %v623, %v626
        %v628 = vmul.f32 %v627, %v615
        %v629 = vmul.f32 %v627, %v616
        %v630 = vmul.f32 %v627, %v617
        %v631 = vmul.f32 %v627, %v618
        %v632 = vmul.f32 %v627, %v619
        %v633 = vmul.f32 %v627, %v620
        %v634 = vmul.f32 %v627, %v621
        %v635 = vmul.f32 %v627, %v622
        %v636 = vld [vmem:[%s2 + $0x2] sm:$0x1]
        %v637 = vlaneseq
        %v638 = vshrl.u32 %v637, 7
        %v639 = vsub.s32 0, %v638
        %v640 = vrot.slane %v636, %v639
        %v641 = vadd.f32 %v628, %v640
        %v642 = vadd.f32 %v629, %v640
        %v643 = vadd.f32 %v630, %v640
        %v644 = vadd.f32 %v631, %v640
        %v645 = vadd.f32 %v632, %v640
        %v646 = vadd.f32 %v633, %v640
        %v647 = vadd.f32 %v634, %v640
        %v648 = vadd.f32 %v635, %v640
        %v649 = vld [vmem:[%s3] sm:$0x1]
        %v650 = vlaneseq
        %v651 = vshrl.u32 %v650, 7
        %v652 = vsub.s32 0, %v651
        %v653 = vrot.slane %v649, %v652
        %v654 = vmul.f32 %v653, 0.0
        %v655 = vmul.f32 %v641, %v653
        %v656 = vmul.f32 %v642, %v653
        %v657 = vmul.f32 %v643, %v653
        %v658 = vmul.f32 %v644, %v653
        %v659 = vadd.f32 %v654, 0.0
        %v660 = vadd.f32 %v655, 0.0
        %v661 = vadd.f32 %v656, 0.0
        %v662 = vadd.f32 %v657, 0.0
        %v663 = vadd.f32 %v658, 0.0
        %v664 = vld [vmem:[%s3 + $0x9] sm:$0x1]
        %v665 = vlaneseq
        %v666 = vshrl.u32 %v665, 7
        %v667 = vsub.s32 0, %v666
        %v668 = vrot.slane %v664, %v667
        %v669 = vmul.f32 %v668, 0.0
        %v670 = vmul.f32 %v641, %v668
        %v671 = vmul.f32 %v642, %v668
        %v672 = vmul.f32 %v643, %v668
        %v673 = vmul.f32 %v644, %v668
        %v674 = vmul.f32 %v645, %v668
        %v675 = vadd.f32 %v659, %v669
        %v676 = vadd.f32 %v659, %v670
        %v677 = vadd.f32 %v660, %v671
        %v678 = vadd.f32 %v661, %v672
        %v679 = vadd.f32 %v662, %v673
        %v680 = vadd.f32 %v663, %v674
        %v681 = vld [vmem:[%s3 + $0x12] sm:$0x1]
        %v682 = vlaneseq
        %v683 = vshrl.u32 %v682, 7
        %v684 = vsub.s32 0, %v683
        %v685 = vrot.slane %v681, %v684
        %v686 = vmul.f32 %v685, 0.0
        %v687 = vmul.f32 %v641, %v685
        %v688 = vmul.f32 %v642, %v685
        %v689 = vmul.f32 %v643, %v685
        %v690 = vmul.f32 %v644, %v685
        %v691 = vmul.f32 %v645, %v685
        %v692 = vmul.f32 %v646, %v685
        %v693 = vadd.f32 %v675, %v686
        %v694 = vadd.f32 %v675, %v687
        %v695 = vadd.f32 %v676, %v688
        %v696 = vadd.f32 %v677, %v689
        %v697 = vadd.f32 %v678, %v690
        %v698 = vadd.f32 %v679, %v691
        %v699 = vadd.f32 %v680, %v692
        %v700 = vld [vmem:[%s3 + $0x1b] sm:$0x1]
        %v701 = vlaneseq
        %v702 = vshrl.u32 %v701, 7
        %v703 = vsub.s32 0, %v702
        %v704 = vrot.slane %v700, %v703
        %v705 = vmul.f32 %v704, 0.0
        %v706 = vmul.f32 %v641, %v704
        %v707 = vmul.f32 %v642, %v704
        %v708 = vmul.f32 %v643, %v704
        %v709 = vmul.f32 %v644, %v704
        %v710 = vmul.f32 %v645, %v704
        %v711 = vmul.f32 %v646, %v704
        %v712 = vmul.f32 %v647, %v704
        %v713 = vadd.f32 %v693, %v705
        %v714 = vadd.f32 %v693, %v706
        %v715 = vadd.f32 %v694, %v707
        %v716 = vadd.f32 %v695, %v708
        %v717 = vadd.f32 %v696, %v709
        %v718 = vadd.f32 %v697, %v710
        %v719 = vadd.f32 %v698, %v711
        %v720 = vadd.f32 %v699, %v712
        %v721 = vld [vmem:[%s3 + $0x24] sm:$0x1]
        %v722 = vlaneseq
        %v723 = vshrl.u32 %v722, 7
        %v724 = vsub.s32 0, %v723
        %v725 = vrot.slane %v721, %v724
        %v726 = vmul.f32 %v725, 0.0
        %v727 = vmul.f32 %v641, %v725
        %v728 = vmul.f32 %v642, %v725
        %v729 = vmul.f32 %v643, %v725
        %v730 = vmul.f32 %v644, %v725
        %v731 = vmul.f32 %v645, %v725
        %v732 = vmul.f32 %v646, %v725
        %v733 = vmul.f32 %v647, %v725
        %v734 = vmul.f32 %v648, %v725
        %v735 = vadd.f32 %v713, %v726
        %v736 = vadd.f32 %v713, %v727
        %v737 = vadd.f32 %v714, %v728
        %v738 = vadd.f32 %v715, %v729
        %v739 = vadd.f32 %v716, %v730
        %v740 = vadd.f32 %v717, %v731
        %v741 = vadd.f32 %v718, %v732
        %v742 = vadd.f32 %v719, %v733
        %v743 = vadd.f32 %v720, %v734
        %v744 = vld [vmem:[%s3 + $0x2d] sm:$0x1]
        %v745 = vlaneseq
        %v746 = vshrl.u32 %v745, 7
        %v747 = vsub.s32 0, %v746
        %v748 = vrot.slane %v744, %v747
        %v749 = vmul.f32 %v748, 0.0
        %v750 = vmul.f32 %v642, %v748
        %v751 = vmul.f32 %v643, %v748
        %v752 = vmul.f32 %v644, %v748
        %v753 = vmul.f32 %v645, %v748
        %v754 = vmul.f32 %v646, %v748
        %v755 = vmul.f32 %v647, %v748
        %v756 = vmul.f32 %v648, %v748
        %v757 = vadd.f32 %v735, %v749
        %v758 = vadd.f32 %v736, %v750
        %v759 = vadd.f32 %v737, %v751
        %v760 = vadd.f32 %v738, %v752
        %v761 = vadd.f32 %v739, %v753
        %v762 = vadd.f32 %v740, %v754
        %v763 = vadd.f32 %v741, %v755
        %v764 = vadd.f32 %v742, %v756
        %v765 = vadd.f32 %v743, %v749
        %v766 = vld [vmem:[%s3 + $0x36] sm:$0x1]
        %v767 = vlaneseq
        %v768 = vshrl.u32 %v767, 7
        %v769 = vsub.s32 0, %v768
        %v770 = vrot.slane %v766, %v769
        %v771 = vmul.f32 %v770, 0.0
        %v772 = vmul.f32 %v643, %v770
        %v773 = vmul.f32 %v644, %v770
        %v774 = vmul.f32 %v645, %v770
        %v775 = vmul.f32 %v646, %v770
        %v776 = vmul.f32 %v647, %v770
        %v777 = vmul.f32 %v648, %v770
        %v778 = vadd.f32 %v757, %v771
        %v779 = vadd.f32 %v758, %v772
        %v780 = vadd.f32 %v759, %v773
        %v781 = vadd.f32 %v760, %v774
        %v782 = vadd.f32 %v761, %v775
        %v783 = vadd.f32 %v762, %v776
        %v784 = vadd.f32 %v763, %v777
        %v785 = vadd.f32 %v764, %v771
        %v786 = vadd.f32 %v765, %v771
        %v787 = vld [vmem:[%s3 + $0x3f] sm:$0x1]
        %v788 = vlaneseq
        %v789 = vshrl.u32 %v788, 7
        %v790 = vsub.s32 0, %v789
        %v791 = vrot.slane %v787, %v790
        %v792 = vmul.f32 %v791, 0.0
        %v793 = vmul.f32 %v644, %v791
        %v794 = vmul.f32 %v645, %v791
        %v795 = vmul.f32 %v646, %v791
        %v796 = vmul.f32 %v647, %v791
        %v797 = vmul.f32 %v648, %v791
        %v798 = vadd.f32 %v778, %v792
        %v799 = vadd.f32 %v779, %v793
        %v800 = vadd.f32 %v780, %v794
        %v801 = vadd.f32 %v781, %v795
        %v802 = vadd.f32 %v782, %v796
        %v803 = vadd.f32 %v783, %v797
        %v804 = vadd.f32 %v784, %v792
        %v805 = vadd.f32 %v785, %v792
        %v806 = vadd.f32 %v786, %v792
        %v807 = vld [vmem:[%s3 + $0x48] sm:$0x1]
        %v808 = vlaneseq
        %v809 = vshrl.u32 %v808, 7
        %v810 = vsub.s32 0, %v809
        %v811 = vrot.slane %v807, %v810
        %v812 = vmul.f32 %v811, 0.0
        %v813 = vmul.f32 %v645, %v811
        %v814 = vmul.f32 %v646, %v811
        %v815 = vmul.f32 %v647, %v811
        %v816 = vmul.f32 %v648, %v811
        %v817 = vadd.f32 %v798, %v812
        %v818 = vadd.f32 %v799, %v813
        %v819 = vadd.f32 %v800, %v814
        %v820 = vadd.f32 %v801, %v815
        %v821 = vadd.f32 %v802, %v816
        %v822 = vadd.f32 %v803, %v812
        %v823 = vadd.f32 %v804, %v812
        %v824 = vadd.f32 %v805, %v812
        %v825 = vadd.f32 %v806, %v812
        %v826 = vld [vmem:[%s3 + $0x1] sm:$0x1]
        %v827 = vlaneseq
        %v828 = vshrl.u32 %v827, 7
        %v829 = vsub.s32 0, %v828
        %v830 = vrot.slane %v826, %v829
        %v831 = vmul.f32 %v830, 0.0
        %v832 = vmul.f32 %v641, %v830
        %v833 = vmul.f32 %v642, %v830
        %v834 = vmul.f32 %v643, %v830
        %v835 = vmul.f32 %v644, %v830
        %vm841 = vcmask 1046528
        %v842 = vrot.slane %v831, 1
        %v843 = vsel %vm841, %v842, %v842
        %v844 = vrot.slane %v832, 1
        %v845 = vsel %vm841, %v842, %v844
        %v846 = vrot.slane %v833, 1
        %v847 = vsel %vm841, %v842, %v846
        %v848 = vrot.slane %v834, 1
        %v849 = vsel %vm841, %v842, %v848
        %v850 = vrot.slane %v835, 1
        %v851 = vsel %vm841, %v842, %v850
        %v862 = vadd.f32 %v817, %v843
        %v863 = vadd.f32 %v818, %v842
        %v864 = vadd.f32 %v819, %v842
        %v865 = vadd.f32 %v820, %v842
        %v866 = vadd.f32 %v821, %v842
        %v867 = vadd.f32 %v817, %v845
        %v868 = vadd.f32 %v822, %v844
        %v869 = vadd.f32 %v817, %v847
        %v870 = vadd.f32 %v823, %v846
        %v871 = vadd.f32 %v817, %v849
        %v872 = vadd.f32 %v824, %v848
        %v873 = vadd.f32 %v817, %v851
        %v874 = vadd.f32 %v825, %v850
        %v875 = vld [vmem:[%s3 + $0xa] sm:$0x1]
        %v876 = vlaneseq
        %v877 = vshrl.u32 %v876, 7
        %v878 = vsub.s32 0, %v877
        %v879 = vrot.slane %v875, %v878
        %v880 = vmul.f32 %v879, 0.0
        %v881 = vmul.f32 %v641, %v879
        %v882 = vmul.f32 %v642, %v879
        %v883 = vmul.f32 %v643, %v879
        %v884 = vmul.f32 %v644, %v879
        %v885 = vmul.f32 %v645, %v879
        %v892 = vrot.slane %v880, 1
        %v893 = vsel %vm841, %v892, %v892
        %v894 = vrot.slane %v881, 1
        %v895 = vsel %vm841, %v892, %v894
        %v896 = vrot.slane %v882, 1
        %v897 = vsel %vm841, %v892, %v896
        %v898 = vrot.slane %v883, 1
        %v899 = vsel %vm841, %v892, %v898
        %v900 = vrot.slane %v884, 1
        %v901 = vsel %vm841, %v892, %v900
        %v902 = vrot.slane %v885, 1
        %v903 = vsel %vm841, %v892, %v902
        %v916 = vadd.f32 %v862, %v893
        %v917 = vadd.f32 %v863, %v892
        %v918 = vadd.f32 %v864, %v892
        %v919 = vadd.f32 %v865, %v892
        %v920 = vadd.f32 %v862, %v895
        %v921 = vadd.f32 %v866, %v894
        %v922 = vadd.f32 %v867, %v897
        %v923 = vadd.f32 %v868, %v896
        %v924 = vadd.f32 %v869, %v899
        %v925 = vadd.f32 %v870, %v898
        %v926 = vadd.f32 %v871, %v901
        %v927 = vadd.f32 %v872, %v900
        %v928 = vadd.f32 %v873, %v903
        %v929 = vadd.f32 %v874, %v902
        %v930 = vld [vmem:[%s3 + $0x13] sm:$0x1]
        %v931 = vlaneseq
        %v932 = vshrl.u32 %v931, 7
        %v933 = vsub.s32 0, %v932
        %v934 = vrot.slane %v930, %v933
        %v935 = vmul.f32 %v934, 0.0
        %v936 = vmul.f32 %v641, %v934
        %v937 = vmul.f32 %v642, %v934
        %v938 = vmul.f32 %v643, %v934
        %v939 = vmul.f32 %v644, %v934
        %v940 = vmul.f32 %v645, %v934
        %v941 = vmul.f32 %v646, %v934
        %v949 = vrot.slane %v935, 1
        %v950 = vsel %vm841, %v949, %v949
        %v951 = vrot.slane %v936, 1
        %v952 = vsel %vm841, %v949, %v951
        %v953 = vrot.slane %v937, 1
        %v954 = vsel %vm841, %v949, %v953
        %v955 = vrot.slane %v938, 1
        %v956 = vsel %vm841, %v949, %v955
        %v957 = vrot.slane %v939, 1
        %v958 = vsel %vm841, %v949, %v957
        %v959 = vrot.slane %v940, 1
        %v960 = vsel %vm841, %v949, %v959
        %v961 = vrot.slane %v941, 1
        %v962 = vsel %vm841, %v949, %v961
        %v977 = vadd.f32 %v916, %v950
        %v978 = vadd.f32 %v917, %v949
        %v979 = vadd.f32 %v918, %v949
        %v980 = vadd.f32 %v916, %v952
        %v981 = vadd.f32 %v919, %v951
        %v982 = vadd.f32 %v920, %v954
        %v983 = vadd.f32 %v921, %v953
        %v984 = vadd.f32 %v922, %v956
        %v985 = vadd.f32 %v923, %v955
        %v986 = vadd.f32 %v924, %v958
        %v987 = vadd.f32 %v925, %v957
        %v988 = vadd.f32 %v926, %v960
        %v989 = vadd.f32 %v927, %v959
        %v990 = vadd.f32 %v928, %v962
        %v991 = vadd.f32 %v929, %v961
        %v992 = vld [vmem:[%s3 + $0x1c] sm:$0x1]
        %v993 = vlaneseq
        %v994 = vshrl.u32 %v993, 7
        %v995 = vsub.s32 0, %v994
        %v996 = vrot.slane %v992, %v995
        %v997 = vmul.f32 %v996, 0.0
        %v998 = vmul.f32 %v641, %v996
        %v999 = vmul.f32 %v642, %v996
        %v1000 = vmul.f32 %v643, %v996
        %v1001 = vmul.f32 %v644, %v996
        %v1002 = vmul.f32 %v645, %v996
        %v1003 = vmul.f32 %v646, %v996
        %v1004 = vmul.f32 %v647, %v996
        %v1013 = vrot.slane %v997, 1
        %v1014 = vsel %vm841, %v1013, %v1013
        %v1015 = vrot.slane %v998, 1
        %v1016 = vsel %vm841, %v1013, %v1015
        %v1017 = vrot.slane %v999, 1
        %v1018 = vsel %vm841, %v1013, %v1017
        %v1019 = vrot.slane %v1000, 1
        %v1020 = vsel %vm841, %v1013, %v1019
        %v1021 = vrot.slane %v1001, 1
        %v1022 = vsel %vm841, %v1013, %v1021
        %v1023 = vrot.slane %v1002, 1
        %v1024 = vsel %vm841, %v1013, %v1023
        %v1025 = vrot.slane %v1003, 1
        %v1026 = vsel %vm841, %v1013, %v1025
        %v1027 = vrot.slane %v1004, 1
        %v1028 = vsel %vm841, %v1013, %v1027
        %v1045 = vadd.f32 %v977, %v1014
        %v1046 = vadd.f32 %v978, %v1013
        %v1047 = vadd.f32 %v977, %v1016
        %v1048 = vadd.f32 %v979, %v1015
        %v1049 = vadd.f32 %v980, %v1018
        %v1050 = vadd.f32 %v981, %v1017
        %v1051 = vadd.f32 %v982, %v1020
        %v1052 = vadd.f32 %v983, %v1019
        %v1053 = vadd.f32 %v984, %v1022
        %v1054 = vadd.f32 %v985, %v1021
        %v1055 = vadd.f32 %v986, %v1024
        %v1056 = vadd.f32 %v987, %v1023
        %v1057 = vadd.f32 %v988, %v1026
        %v1058 = vadd.f32 %v989, %v1025
        %v1059 = vadd.f32 %v990, %v1028
        %v1060 = vadd.f32 %v991, %v1027
        %v1061 = vld [vmem:[%s3 + $0x25] sm:$0x1]
        %v1062 = vlaneseq
        %v1063 = vshrl.u32 %v1062, 7
        %v1064 = vsub.s32 0, %v1063
        %v1065 = vrot.slane %v1061, %v1064
        %v1066 = vmul.f32 %v1065, 0.0
        %v1067 = vmul.f32 %v641, %v1065
        %v1068 = vmul.f32 %v642, %v1065
        %v1069 = vmul.f32 %v643, %v1065
        %v1070 = vmul.f32 %v644, %v1065
        %v1071 = vmul.f32 %v645, %v1065
        %v1072 = vmul.f32 %v646, %v1065
        %v1073 = vmul.f32 %v647, %v1065
        %v1074 = vmul.f32 %v648, %v1065
        %v1084 = vrot.slane %v1066, 1
        %v1085 = vrot.slane %v1067, 1
        %v1086 = vsel %vm841, %v1084, %v1085
        %v1087 = vrot.slane %v1068, 1
        %v1088 = vsel %vm841, %v1084, %v1087
        %v1089 = vrot.slane %v1069, 1
        %v1090 = vsel %vm841, %v1084, %v1089
        %v1091 = vrot.slane %v1070, 1
        %v1092 = vsel %vm841, %v1084, %v1091
        %v1093 = vrot.slane %v1071, 1
        %v1094 = vsel %vm841, %v1084, %v1093
        %v1095 = vrot.slane %v1072, 1
        %v1096 = vsel %vm841, %v1084, %v1095
        %v1097 = vrot.slane %v1073, 1
        %v1098 = vsel %vm841, %v1084, %v1097
        %v1099 = vrot.slane %v1074, 1
        %v1100 = vsel %vm841, %v1084, %v1099
        %v1117 = vadd.f32 %v1045, %v1086
        %v1118 = vadd.f32 %v1046, %v1085
        %v1119 = vadd.f32 %v1047, %v1088
        %v1120 = vadd.f32 %v1048, %v1087
        %v1121 = vadd.f32 %v1049, %v1090
        %v1122 = vadd.f32 %v1050, %v1089
        %v1123 = vadd.f32 %v1051, %v1092
        %v1124 = vadd.f32 %v1052, %v1091
        %v1125 = vadd.f32 %v1053, %v1094
        %v1126 = vadd.f32 %v1054, %v1093
        %v1127 = vadd.f32 %v1055, %v1096
        %v1128 = vadd.f32 %v1056, %v1095
        %v1129 = vadd.f32 %v1057, %v1098
        %v1130 = vadd.f32 %v1058, %v1097
        %v1131 = vadd.f32 %v1059, %v1100
        %v1132 = vadd.f32 %v1060, %v1099
        %v1133 = vld [vmem:[%s3 + $0x2e] sm:$0x1]
        %v1134 = vlaneseq
        %v1135 = vshrl.u32 %v1134, 7
        %v1136 = vsub.s32 0, %v1135
        %v1137 = vrot.slane %v1133, %v1136
        %v1138 = vmul.f32 %v1137, 0.0
        %v1139 = vmul.f32 %v642, %v1137
        %v1140 = vmul.f32 %v643, %v1137
        %v1141 = vmul.f32 %v644, %v1137
        %v1142 = vmul.f32 %v645, %v1137
        %v1143 = vmul.f32 %v646, %v1137
        %v1144 = vmul.f32 %v647, %v1137
        %v1145 = vmul.f32 %v648, %v1137
        %v1154 = vrot.slane %v1138, 1
        %v1155 = vrot.slane %v1139, 1
        %v1156 = vsel %vm841, %v1154, %v1155
        %v1157 = vrot.slane %v1140, 1
        %v1158 = vsel %vm841, %v1154, %v1157
        %v1159 = vrot.slane %v1141, 1
        %v1160 = vsel %vm841, %v1154, %v1159
        %v1161 = vrot.slane %v1142, 1
        %v1162 = vsel %vm841, %v1154, %v1161
        %v1163 = vrot.slane %v1143, 1
        %v1164 = vsel %vm841, %v1154, %v1163
        %v1165 = vrot.slane %v1144, 1
        %v1166 = vsel %vm841, %v1154, %v1165
        %v1167 = vrot.slane %v1145, 1
        %v1168 = vsel %vm841, %v1154, %v1167
        %v1169 = vsel %vm841, %v1154, %v1154
        %v1186 = vadd.f32 %v1117, %v1156
        %v1187 = vadd.f32 %v1118, %v1155
        %v1188 = vadd.f32 %v1119, %v1158
        %v1189 = vadd.f32 %v1120, %v1157
        %v1190 = vadd.f32 %v1121, %v1160
        %v1191 = vadd.f32 %v1122, %v1159
        %v1192 = vadd.f32 %v1123, %v1162
        %v1193 = vadd.f32 %v1124, %v1161
        %v1194 = vadd.f32 %v1125, %v1164
        %v1195 = vadd.f32 %v1126, %v1163
        %v1196 = vadd.f32 %v1127, %v1166
        %v1197 = vadd.f32 %v1128, %v1165
        %v1198 = vadd.f32 %v1129, %v1168
        %v1199 = vadd.f32 %v1130, %v1167
        %v1200 = vadd.f32 %v1131, %v1169
        %v1201 = vadd.f32 %v1132, %v1154
        %v1202 = vld [vmem:[%s3 + $0x37] sm:$0x1]
        %v1203 = vlaneseq
        %v1204 = vshrl.u32 %v1203, 7
        %v1205 = vsub.s32 0, %v1204
        %v1206 = vrot.slane %v1202, %v1205
        %v1207 = vmul.f32 %v1206, 0.0
        %v1208 = vmul.f32 %v643, %v1206
        %v1209 = vmul.f32 %v644, %v1206
        %v1210 = vmul.f32 %v645, %v1206
        %v1211 = vmul.f32 %v646, %v1206
        %v1212 = vmul.f32 %v647, %v1206
        %v1213 = vmul.f32 %v648, %v1206
        %v1221 = vrot.slane %v1207, 1
        %v1222 = vrot.slane %v1208, 1
        %v1223 = vsel %vm841, %v1221, %v1222
        %v1224 = vrot.slane %v1209, 1
        %v1225 = vsel %vm841, %v1221, %v1224
        %v1226 = vrot.slane %v1210, 1
        %v1227 = vsel %vm841, %v1221, %v1226
        %v1228 = vrot.slane %v1211, 1
        %v1229 = vsel %vm841, %v1221, %v1228
        %v1230 = vrot.slane %v1212, 1
        %v1231 = vsel %vm841, %v1221, %v1230
        %v1232 = vrot.slane %v1213, 1
        %v1233 = vsel %vm841, %v1221, %v1232
        %v1234 = vsel %vm841, %v1221, %v1221
        %v1249 = vadd.f32 %v1186, %v1223
        %v1250 = vadd.f32 %v1187, %v1222
        %v1251 = vadd.f32 %v1188, %v1225
        %v1252 = vadd.f32 %v1189, %v1224
        %v1253 = vadd.f32 %v1190, %v1227
        %v1254 = vadd.f32 %v1191, %v1226
        %v1255 = vadd.f32 %v1192, %v1229
        %v1256 = vadd.f32 %v1193, %v1228
        %v1257 = vadd.f32 %v1194, %v1231
        %v1258 = vadd.f32 %v1195, %v1230
        %v1259 = vadd.f32 %v1196, %v1233
        %v1260 = vadd.f32 %v1197, %v1232
        %v1261 = vadd.f32 %v1198, %v1234
        %v1262 = vadd.f32 %v1199, %v1221
        %v1263 = vadd.f32 %v1200, %v1234
        %v1264 = vadd.f32 %v1201, %v1221
        %v1265 = vld [vmem:[%s3 + $0x40] sm:$0x1]
        %v1266 = vlaneseq
        %v1267 = vshrl.u32 %v1266, 7
        %v1268 = vsub.s32 0, %v1267
        %v1269 = vrot.slane %v1265, %v1268
        %v1270 = vmul.f32 %v1269, 0.0
        %v1271 = vmul.f32 %v644, %v1269
        %v1272 = vmul.f32 %v645, %v1269
        %v1273 = vmul.f32 %v646, %v1269
        %v1274 = vmul.f32 %v647, %v1269
        %v1275 = vmul.f32 %v648, %v1269
        %v1282 = vrot.slane %v1270, 1
        %v1283 = vrot.slane %v1271, 1
        %v1284 = vsel %vm841, %v1282, %v1283
        %v1285 = vrot.slane %v1272, 1
        %v1286 = vsel %vm841, %v1282, %v1285
        %v1287 = vrot.slane %v1273, 1
        %v1288 = vsel %vm841, %v1282, %v1287
        %v1289 = vrot.slane %v1274, 1
        %v1290 = vsel %vm841, %v1282, %v1289
        %v1291 = vrot.slane %v1275, 1
        %v1292 = vsel %vm841, %v1282, %v1291
        %v1293 = vsel %vm841, %v1282, %v1282
        %v1306 = vadd.f32 %v1249, %v1284
        %v1307 = vadd.f32 %v1250, %v1283
        %v1308 = vadd.f32 %v1251, %v1286
        %v1309 = vadd.f32 %v1252, %v1285
        %v1310 = vadd.f32 %v1253, %v1288
        %v1311 = vadd.f32 %v1254, %v1287
        %v1312 = vadd.f32 %v1255, %v1290
        %v1313 = vadd.f32 %v1256, %v1289
        %v1314 = vadd.f32 %v1257, %v1292
        %v1315 = vadd.f32 %v1258, %v1291
        %v1316 = vadd.f32 %v1259, %v1293
        %v1317 = vadd.f32 %v1260, %v1282
        %v1318 = vadd.f32 %v1261, %v1293
        %v1319 = vadd.f32 %v1262, %v1282
        %v1320 = vadd.f32 %v1263, %v1293
        %v1321 = vadd.f32 %v1264, %v1282
        %v1322 = vld [vmem:[%s3 + $0x49] sm:$0x1]
        %v1323 = vlaneseq
        %v1324 = vshrl.u32 %v1323, 7
        %v1325 = vsub.s32 0, %v1324
        %v1326 = vrot.slane %v1322, %v1325
        %v1327 = vmul.f32 %v1326, 0.0
        %v1328 = vmul.f32 %v645, %v1326
        %v1329 = vmul.f32 %v646, %v1326
        %v1330 = vmul.f32 %v647, %v1326
        %v1331 = vmul.f32 %v648, %v1326
        %v1337 = vrot.slane %v1327, 1
        %v1338 = vrot.slane %v1328, 1
        %v1339 = vsel %vm841, %v1337, %v1338
        %v1340 = vrot.slane %v1329, 1
        %v1341 = vsel %vm841, %v1337, %v1340
        %v1342 = vrot.slane %v1330, 1
        %v1343 = vsel %vm841, %v1337, %v1342
        %v1344 = vrot.slane %v1331, 1
        %v1345 = vsel %vm841, %v1337, %v1344
        %v1346 = vsel %vm841, %v1337, %v1337
        %v1357 = vadd.f32 %v1306, %v1339
        %v1358 = vadd.f32 %v1307, %v1338
        %v1359 = vadd.f32 %v1308, %v1341
        %v1360 = vadd.f32 %v1309, %v1340
        %v1361 = vadd.f32 %v1310, %v1343
        %v1362 = vadd.f32 %v1311, %v1342
        %v1363 = vadd.f32 %v1312, %v1345
        %v1364 = vadd.f32 %v1313, %v1344
        %v1365 = vadd.f32 %v1314, %v1346
        %v1366 = vadd.f32 %v1315, %v1337
        %v1367 = vadd.f32 %v1316, %v1346
        %v1368 = vadd.f32 %v1317, %v1337
        %v1369 = vadd.f32 %v1318, %v1346
        %v1370 = vadd.f32 %v1319, %v1337
        %v1371 = vadd.f32 %v1320, %v1346
        %v1372 = vadd.f32 %v1321, %v1337
        %v1373 = vld [vmem:[%s3 + $0x2] sm:$0x1]
        %v1374 = vlaneseq
        %v1375 = vshrl.u32 %v1374, 7
        %v1376 = vsub.s32 0, %v1375
        %v1377 = vrot.slane %v1373, %v1376
        %v1378 = vmul.f32 %v1377, 0.0
        %v1379 = vmul.f32 %v641, %v1377
        %v1380 = vmul.f32 %v642, %v1377
        %v1381 = vmul.f32 %v643, %v1377
        %v1382 = vmul.f32 %v644, %v1377
        %vm1388 = vcmask 1045504
        %v1389 = vrot.slane %v1378, 2
        %v1390 = vsel %vm1388, %v1389, %v1389
        %v1391 = vrot.slane %v1379, 2
        %v1392 = vsel %vm1388, %v1389, %v1391
        %v1393 = vrot.slane %v1380, 2
        %v1394 = vsel %vm1388, %v1389, %v1393
        %v1395 = vrot.slane %v1381, 2
        %v1396 = vsel %vm1388, %v1389, %v1395
        %v1397 = vrot.slane %v1382, 2
        %v1398 = vsel %vm1388, %v1389, %v1397
        %v1409 = vadd.f32 %v1357, %v1390
        %v1410 = vadd.f32 %v1358, %v1389
        %v1411 = vadd.f32 %v1359, %v1390
        %v1412 = vadd.f32 %v1360, %v1389
        %v1413 = vadd.f32 %v1361, %v1390
        %v1414 = vadd.f32 %v1362, %v1389
        %v1415 = vadd.f32 %v1363, %v1390
        %v1416 = vadd.f32 %v1364, %v1389
        %v1417 = vadd.f32 %v1365, %v1392
        %v1418 = vadd.f32 %v1366, %v1391
        %v1419 = vadd.f32 %v1367, %v1394
        %v1420 = vadd.f32 %v1368, %v1393
        %v1421 = vadd.f32 %v1369, %v1396
        %v1422 = vadd.f32 %v1370, %v1395
        %v1423 = vadd.f32 %v1371, %v1398
        %v1424 = vadd.f32 %v1372, %v1397
        %v1425 = vld [vmem:[%s3 + $0xb] sm:$0x1]
        %v1426 = vlaneseq
        %v1427 = vshrl.u32 %v1426, 7
        %v1428 = vsub.s32 0, %v1427
        %v1429 = vrot.slane %v1425, %v1428
        %v1430 = vmul.f32 %v1429, 0.0
        %v1431 = vmul.f32 %v641, %v1429
        %v1432 = vmul.f32 %v642, %v1429
        %v1433 = vmul.f32 %v643, %v1429
        %v1434 = vmul.f32 %v644, %v1429
        %v1435 = vmul.f32 %v645, %v1429
        %v1442 = vrot.slane %v1430, 2
        %v1443 = vsel %vm1388, %v1442, %v1442
        %v1444 = vrot.slane %v1431, 2
        %v1445 = vsel %vm1388, %v1442, %v1444
        %v1446 = vrot.slane %v1432, 2
        %v1447 = vsel %vm1388, %v1442, %v1446
        %v1448 = vrot.slane %v1433, 2
        %v1449 = vsel %vm1388, %v1442, %v1448
        %v1450 = vrot.slane %v1434, 2
        %v1451 = vsel %vm1388, %v1442, %v1450
        %v1452 = vrot.slane %v1435, 2
        %v1453 = vsel %vm1388, %v1442, %v1452
        %v1466 = vadd.f32 %v1409, %v1443
        %v1467 = vadd.f32 %v1410, %v1442
        %v1468 = vadd.f32 %v1411, %v1443
        %v1469 = vadd.f32 %v1412, %v1442
        %v1470 = vadd.f32 %v1413, %v1443
        %v1471 = vadd.f32 %v1414, %v1442
        %v1472 = vadd.f32 %v1415, %v1445
        %v1473 = vadd.f32 %v1416, %v1444
        %v1474 = vadd.f32 %v1417, %v1447
        %v1475 = vadd.f32 %v1418, %v1446
        %v1476 = vadd.f32 %v1419, %v1449
        %v1477 = vadd.f32 %v1420, %v1448
        %v1478 = vadd.f32 %v1421, %v1451
        %v1479 = vadd.f32 %v1422, %v1450
        %v1480 = vadd.f32 %v1423, %v1453
        %v1481 = vadd.f32 %v1424, %v1452
        %v1482 = vld [vmem:[%s3 + $0x14] sm:$0x1]
        %v1483 = vlaneseq
        %v1484 = vshrl.u32 %v1483, 7
        %v1485 = vsub.s32 0, %v1484
        %v1486 = vrot.slane %v1482, %v1485
        %v1487 = vmul.f32 %v1486, 0.0
        %v1488 = vmul.f32 %v641, %v1486
        %v1489 = vmul.f32 %v642, %v1486
        %v1490 = vmul.f32 %v643, %v1486
        %v1491 = vmul.f32 %v644, %v1486
        %v1492 = vmul.f32 %v645, %v1486
        %v1493 = vmul.f32 %v646, %v1486
        %v1501 = vrot.slane %v1487, 2
        %v1502 = vsel %vm1388, %v1501, %v1501
        %v1503 = vrot.slane %v1488, 2
        %v1504 = vsel %vm1388, %v1501, %v1503
        %v1505 = vrot.slane %v1489, 2
        %v1506 = vsel %vm1388, %v1501, %v1505
        %v1507 = vrot.slane %v1490, 2
        %v1508 = vsel %vm1388, %v1501, %v1507
        %v1509 = vrot.slane %v1491, 2
        %v1510 = vsel %vm1388, %v1501, %v1509
        %v1511 = vrot.slane %v1492, 2
        %v1512 = vsel %vm1388, %v1501, %v1511
        %v1513 = vrot.slane %v1493, 2
        %v1514 = vsel %vm1388, %v1501, %v1513
        %v1529 = vadd.f32 %v1466, %v1502
        %v1530 = vadd.f32 %v1467, %v1501
        %v1531 = vadd.f32 %v1468, %v1502
        %v1532 = vadd.f32 %v1469, %v1501
        %v1533 = vadd.f32 %v1470, %v1504
        %v1534 = vadd.f32 %v1471, %v1503
        %v1535 = vadd.f32 %v1472, %v1506
        %v1536 = vadd.f32 %v1473, %v1505
        %v1537 = vadd.f32 %v1474, %v1508
        %v1538 = vadd.f32 %v1475, %v1507
        %v1539 = vadd.f32 %v1476, %v1510
        %v1540 = vadd.f32 %v1477, %v1509
        %v1541 = vadd.f32 %v1478, %v1512
        %v1542 = vadd.f32 %v1479, %v1511
        %v1543 = vadd.f32 %v1480, %v1514
        %v1544 = vadd.f32 %v1481, %v1513
        %v1545 = vld [vmem:[%s3 + $0x1d] sm:$0x1]
        %v1546 = vlaneseq
        %v1547 = vshrl.u32 %v1546, 7
        %v1548 = vsub.s32 0, %v1547
        %v1549 = vrot.slane %v1545, %v1548
        %v1550 = vmul.f32 %v1549, 0.0
        %v1551 = vmul.f32 %v641, %v1549
        %v1552 = vmul.f32 %v642, %v1549
        %v1553 = vmul.f32 %v643, %v1549
        %v1554 = vmul.f32 %v644, %v1549
        %v1555 = vmul.f32 %v645, %v1549
        %v1556 = vmul.f32 %v646, %v1549
        %v1557 = vmul.f32 %v647, %v1549
        %v1566 = vrot.slane %v1550, 2
        %v1567 = vsel %vm1388, %v1566, %v1566
        %v1568 = vrot.slane %v1551, 2
        %v1569 = vsel %vm1388, %v1566, %v1568
        %v1570 = vrot.slane %v1552, 2
        %v1571 = vsel %vm1388, %v1566, %v1570
        %v1572 = vrot.slane %v1553, 2
        %v1573 = vsel %vm1388, %v1566, %v1572
        %v1574 = vrot.slane %v1554, 2
        %v1575 = vsel %vm1388, %v1566, %v1574
        %v1576 = vrot.slane %v1555, 2
        %v1577 = vsel %vm1388, %v1566, %v1576
        %v1578 = vrot.slane %v1556, 2
        %v1579 = vsel %vm1388, %v1566, %v1578
        %v1580 = vrot.slane %v1557, 2
        %v1581 = vsel %vm1388, %v1566, %v1580
        %v1598 = vadd.f32 %v1529, %v1567
        %v1599 = vadd.f32 %v1530, %v1566
        %v1600 = vadd.f32 %v1531, %v1569
        %v1601 = vadd.f32 %v1532, %v1568
        %v1602 = vadd.f32 %v1533, %v1571
        %v1603 = vadd.f32 %v1534, %v1570
        %v1604 = vadd.f32 %v1535, %v1573
        %v1605 = vadd.f32 %v1536, %v1572
        %v1606 = vadd.f32 %v1537, %v1575
        %v1607 = vadd.f32 %v1538, %v1574
        %v1608 = vadd.f32 %v1539, %v1577
        %v1609 = vadd.f32 %v1540, %v1576
        %v1610 = vadd.f32 %v1541, %v1579
        %v1611 = vadd.f32 %v1542, %v1578
        %v1612 = vadd.f32 %v1543, %v1581
        %v1613 = vadd.f32 %v1544, %v1580
        %v1614 = vld [vmem:[%s3 + $0x26] sm:$0x1]
        %v1615 = vlaneseq
        %v1616 = vshrl.u32 %v1615, 7
        %v1617 = vsub.s32 0, %v1616
        %v1618 = vrot.slane %v1614, %v1617
        %v1619 = vmul.f32 %v1618, 0.0
        %v1620 = vmul.f32 %v641, %v1618
        %v1621 = vmul.f32 %v642, %v1618
        %v1622 = vmul.f32 %v643, %v1618
        %v1623 = vmul.f32 %v644, %v1618
        %v1624 = vmul.f32 %v645, %v1618
        %v1625 = vmul.f32 %v646, %v1618
        %v1626 = vmul.f32 %v647, %v1618
        %v1627 = vmul.f32 %v648, %v1618
        %v1637 = vrot.slane %v1619, 2
        %v1638 = vrot.slane %v1620, 2
        %v1639 = vsel %vm1388, %v1637, %v1638
        %v1640 = vrot.slane %v1621, 2
        %v1641 = vsel %vm1388, %v1637, %v1640
        %v1642 = vrot.slane %v1622, 2
        %v1643 = vsel %vm1388, %v1637, %v1642
        %v1644 = vrot.slane %v1623, 2
        %v1645 = vsel %vm1388, %v1637, %v1644
        %v1646 = vrot.slane %v1624, 2
        %v1647 = vsel %vm1388, %v1637, %v1646
        %v1648 = vrot.slane %v1625, 2
        %v1649 = vsel %vm1388, %v1637, %v1648
        %v1650 = vrot.slane %v1626, 2
        %v1651 = vsel %vm1388, %v1637, %v1650
        %v1652 = vrot.slane %v1627, 2
        %v1653 = vsel %vm1388, %v1637, %v1652
        %v1670 = vadd.f32 %v1598, %v1639
        %v1671 = vadd.f32 %v1599, %v1638
        %v1672 = vadd.f32 %v1600, %v1641
        %v1673 = vadd.f32 %v1601, %v1640
        %v1674 = vadd.f32 %v1602, %v1643
        %v1675 = vadd.f32 %v1603, %v1642
        %v1676 = vadd.f32 %v1604, %v1645
        %v1677 = vadd.f32 %v1605, %v1644
        %v1678 = vadd.f32 %v1606, %v1647
        %v1679 = vadd.f32 %v1607, %v1646
        %v1680 = vadd.f32 %v1608, %v1649
        %v1681 = vadd.f32 %v1609, %v1648
        %v1682 = vadd.f32 %v1610, %v1651
        %v1683 = vadd.f32 %v1611, %v1650
        %v1684 = vadd.f32 %v1612, %v1653
        %v1685 = vadd.f32 %v1613, %v1652
        %v1686 = vld [vmem:[%s3 + $0x2f] sm:$0x1]
        %v1687 = vlaneseq
        %v1688 = vshrl.u32 %v1687, 7
        %v1689 = vsub.s32 0, %v1688
        %v1690 = vrot.slane %v1686, %v1689
        %v1691 = vmul.f32 %v1690, 0.0
        %v1692 = vmul.f32 %v642, %v1690
        %v1693 = vmul.f32 %v643, %v1690
        %v1694 = vmul.f32 %v644, %v1690
        %v1695 = vmul.f32 %v645, %v1690
        %v1696 = vmul.f32 %v646, %v1690
        %v1697 = vmul.f32 %v647, %v1690
        %v1698 = vmul.f32 %v648, %v1690
        %v1707 = vrot.slane %v1691, 2
        %v1708 = vrot.slane %v1692, 2
        %v1709 = vsel %vm1388, %v1707, %v1708
        %v1710 = vrot.slane %v1693, 2
        %v1711 = vsel %vm1388, %v1707, %v1710
        %v1712 = vrot.slane %v1694, 2
        %v1713 = vsel %vm1388, %v1707, %v1712
        %v1714 = vrot.slane %v1695, 2
        %v1715 = vsel %vm1388, %v1707, %v1714
        %v1716 = vrot.slane %v1696, 2
        %v1717 = vsel %vm1388, %v1707, %v1716
        %v1718 = vrot.slane %v1697, 2
        %v1719 = vsel %vm1388, %v1707, %v1718
        %v1720 = vrot.slane %v1698, 2
        %v1721 = vsel %vm1388, %v1707, %v1720
        %v1722 = vsel %vm1388, %v1707, %v1707
        %v1739 = vadd.f32 %v1670, %v1709
        %v1740 = vadd.f32 %v1671, %v1708
        %v1741 = vadd.f32 %v1672, %v1711
        %v1742 = vadd.f32 %v1673, %v1710
        %v1743 = vadd.f32 %v1674, %v1713
        %v1744 = vadd.f32 %v1675, %v1712
        %v1745 = vadd.f32 %v1676, %v1715
        %v1746 = vadd.f32 %v1677, %v1714
        %v1747 = vadd.f32 %v1678, %v1717
        %v1748 = vadd.f32 %v1679, %v1716
        %v1749 = vadd.f32 %v1680, %v1719
        %v1750 = vadd.f32 %v1681, %v1718
        %v1751 = vadd.f32 %v1682, %v1721
        %v1752 = vadd.f32 %v1683, %v1720
        %v1753 = vadd.f32 %v1684, %v1722
        %v1754 = vadd.f32 %v1685, %v1707
        %v1755 = vld [vmem:[%s3 + $0x38] sm:$0x1]
        %v1756 = vlaneseq
        %v1757 = vshrl.u32 %v1756, 7
        %v1758 = vsub.s32 0, %v1757
        %v1759 = vrot.slane %v1755, %v1758
        %v1760 = vmul.f32 %v1759, 0.0
        %v1761 = vmul.f32 %v643, %v1759
        %v1762 = vmul.f32 %v644, %v1759
        %v1763 = vmul.f32 %v645, %v1759
        %v1764 = vmul.f32 %v646, %v1759
        %v1765 = vmul.f32 %v647, %v1759
        %v1766 = vmul.f32 %v648, %v1759
        %v1774 = vrot.slane %v1760, 2
        %v1775 = vrot.slane %v1761, 2
        %v1776 = vsel %vm1388, %v1774, %v1775
        %v1777 = vrot.slane %v1762, 2
        %v1778 = vsel %vm1388, %v1774, %v1777
        %v1779 = vrot.slane %v1763, 2
        %v1780 = vsel %vm1388, %v1774, %v1779
        %v1781 = vrot.slane %v1764, 2
        %v1782 = vsel %vm1388, %v1774, %v1781
        %v1783 = vrot.slane %v1765, 2
        %v1784 = vsel %vm1388, %v1774, %v1783
        %v1785 = vrot.slane %v1766, 2
        %v1786 = vsel %vm1388, %v1774, %v1785
        %v1787 = vsel %vm1388, %v1774, %v1774
        %v1802 = vadd.f32 %v1739, %v1776
        %v1803 = vadd.f32 %v1740, %v1775
        %v1804 = vadd.f32 %v1741, %v1778
        %v1805 = vadd.f32 %v1742, %v1777
        %v1806 = vadd.f32 %v1743, %v1780
        %v1807 = vadd.f32 %v1744, %v1779
        %v1808 = vadd.f32 %v1745, %v1782
        %v1809 = vadd.f32 %v1746, %v1781
        %v1810 = vadd.f32 %v1747, %v1784
        %v1811 = vadd.f32 %v1748, %v1783
        %v1812 = vadd.f32 %v1749, %v1786
        %v1813 = vadd.f32 %v1750, %v1785
        %v1814 = vadd.f32 %v1751, %v1787
        %v1815 = vadd.f32 %v1752, %v1774
        %v1816 = vadd.f32 %v1753, %v1787
        %v1817 = vadd.f32 %v1754, %v1774
        %v1818 = vld [vmem:[%s3 + $0x41] sm:$0x1]
        %v1819 = vlaneseq
        %v1820 = vshrl.u32 %v1819, 7
        %v1821 = vsub.s32 0, %v1820
        %v1822 = vrot.slane %v1818, %v1821
        %v1823 = vmul.f32 %v1822, 0.0
        %v1824 = vmul.f32 %v644, %v1822
        %v1825 = vmul.f32 %v645, %v1822
        %v1826 = vmul.f32 %v646, %v1822
        %v1827 = vmul.f32 %v647, %v1822
        %v1828 = vmul.f32 %v648, %v1822
        %v1835 = vrot.slane %v1823, 2
        %v1836 = vrot.slane %v1824, 2
        %v1837 = vsel %vm1388, %v1835, %v1836
        %v1838 = vrot.slane %v1825, 2
        %v1839 = vsel %vm1388, %v1835, %v1838
        %v1840 = vrot.slane %v1826, 2
        %v1841 = vsel %vm1388, %v1835, %v1840
        %v1842 = vrot.slane %v1827, 2
        %v1843 = vsel %vm1388, %v1835, %v1842
        %v1844 = vrot.slane %v1828, 2
        %v1845 = vsel %vm1388, %v1835, %v1844
        %v1846 = vsel %vm1388, %v1835, %v1835
        %v1859 = vadd.f32 %v1802, %v1837
        %v1860 = vadd.f32 %v1803, %v1836
        %v1861 = vadd.f32 %v1804, %v1839
        %v1862 = vadd.f32 %v1805, %v1838
        %v1863 = vadd.f32 %v1806, %v1841
        %v1864 = vadd.f32 %v1807, %v1840
        %v1865 = vadd.f32 %v1808, %v1843
        %v1866 = vadd.f32 %v1809, %v1842
        %v1867 = vadd.f32 %v1810, %v1845
        %v1868 = vadd.f32 %v1811, %v1844
        %v1869 = vadd.f32 %v1812, %v1846
        %v1870 = vadd.f32 %v1813, %v1835
        %v1871 = vadd.f32 %v1814, %v1846
        %v1872 = vadd.f32 %v1815, %v1835
        %v1873 = vadd.f32 %v1816, %v1846
        %v1874 = vadd.f32 %v1817, %v1835
        %v1875 = vld [vmem:[%s3 + $0x4a] sm:$0x1]
        %v1876 = vlaneseq
        %v1877 = vshrl.u32 %v1876, 7
        %v1878 = vsub.s32 0, %v1877
        %v1879 = vrot.slane %v1875, %v1878
        %v1880 = vmul.f32 %v1879, 0.0
        %v1881 = vmul.f32 %v645, %v1879
        %v1882 = vmul.f32 %v646, %v1879
        %v1883 = vmul.f32 %v647, %v1879
        %v1884 = vmul.f32 %v648, %v1879
        %v1890 = vrot.slane %v1880, 2
        %v1891 = vrot.slane %v1881, 2
        %v1892 = vsel %vm1388, %v1890, %v1891
        %v1893 = vrot.slane %v1882, 2
        %v1894 = vsel %vm1388, %v1890, %v1893
        %v1895 = vrot.slane %v1883, 2
        %v1896 = vsel %vm1388, %v1890, %v1895
        %v1897 = vrot.slane %v1884, 2
        %v1898 = vsel %vm1388, %v1890, %v1897
        %v1899 = vsel %vm1388, %v1890, %v1890
        %v1910 = vadd.f32 %v1859, %v1892
        %v1911 = vadd.f32 %v1860, %v1891
        %v1912 = vadd.f32 %v1861, %v1894
        %v1913 = vadd.f32 %v1862, %v1893
        %v1914 = vadd.f32 %v1863, %v1896
        %v1915 = vadd.f32 %v1864, %v1895
        %v1916 = vadd.f32 %v1865, %v1898
        %v1917 = vadd.f32 %v1866, %v1897
        %v1918 = vadd.f32 %v1867, %v1899
        %v1919 = vadd.f32 %v1868, %v1890
        %v1920 = vadd.f32 %v1869, %v1899
        %v1921 = vadd.f32 %v1870, %v1890
        %v1922 = vadd.f32 %v1871, %v1899
        %v1923 = vadd.f32 %v1872, %v1890
        %v1924 = vadd.f32 %v1873, %v1899
        %v1925 = vadd.f32 %v1874, %v1890
        %v1926 = vld [vmem:[%s3 + $0x3] sm:$0x1]
        %v1927 = vlaneseq
        %v1928 = vshrl.u32 %v1927, 7
        %v1929 = vsub.s32 0, %v1928
        %v1930 = vrot.slane %v1926, %v1929
        %v1931 = vmul.f32 %v1930, 0.0
        %v1932 = vmul.f32 %v641, %v1930
        %v1933 = vmul.f32 %v642, %v1930
        %v1934 = vmul.f32 %v643, %v1930
        %v1935 = vmul.f32 %v644, %v1930
        %vm1941 = vcmask 1044480
        %v1942 = vrot.slane %v1931, 3
        %v1943 = vsel %vm1941, %v1942, %v1942
        %v1944 = vrot.slane %v1932, 3
        %v1945 = vsel %vm1941, %v1942, %v1944
        %v1946 = vrot.slane %v1933, 3
        %v1947 = vsel %vm1941, %v1942, %v1946
        %v1948 = vrot.slane %v1934, 3
        %v1949 = vsel %vm1941, %v1942, %v1948
        %v1950 = vrot.slane %v1935, 3
        %v1951 = vsel %vm1941, %v1942, %v1950
        %v1962 = vadd.f32 %v1910, %v1943
        %v1963 = vadd.f32 %v1911, %v1942
        %v1964 = vadd.f32 %v1912, %v1943
        %v1965 = vadd.f32 %v1913, %v1942
        %v1966 = vadd.f32 %v1914, %v1943
        %v1967 = vadd.f32 %v1915, %v1942
        %v1968 = vadd.f32 %v1916, %v1943
        %v1969 = vadd.f32 %v1917, %v1942
        %v1970 = vadd.f32 %v1918, %v1945
        %v1971 = vadd.f32 %v1919, %v1944
        %v1972 = vadd.f32 %v1920, %v1947
        %v1973 = vadd.f32 %v1921, %v1946
        %v1974 = vadd.f32 %v1922, %v1949
        %v1975 = vadd.f32 %v1923, %v1948
        %v1976 = vadd.f32 %v1924, %v1951
        %v1977 = vadd.f32 %v1925, %v1950
        %v1978 = vld [vmem:[%s3 + $0xc] sm:$0x1]
        %v1979 = vlaneseq
        %v1980 = vshrl.u32 %v1979, 7
        %v1981 = vsub.s32 0, %v1980
        %v1982 = vrot.slane %v1978, %v1981
        %v1983 = vmul.f32 %v1982, 0.0
        %v1984 = vmul.f32 %v641, %v1982
        %v1985 = vmul.f32 %v642, %v1982
        %v1986 = vmul.f32 %v643, %v1982
        %v1987 = vmul.f32 %v644, %v1982
        %v1988 = vmul.f32 %v645, %v1982
        %v1995 = vrot.slane %v1983, 3
        %v1996 = vsel %vm1941, %v1995, %v1995
        %v1997 = vrot.slane %v1984, 3
        %v1998 = vsel %vm1941, %v1995, %v1997
        %v1999 = vrot.slane %v1985, 3
        %v2000 = vsel %vm1941, %v1995, %v1999
        %v2001 = vrot.slane %v1986, 3
        %v2002 = vsel %vm1941, %v1995, %v2001
        %v2003 = vrot.slane %v1987, 3
        %v2004 = vsel %vm1941, %v1995, %v2003
        %v2005 = vrot.slane %v1988, 3
        %v2006 = vsel %vm1941, %v1995, %v2005
        %v2019 = vadd.f32 %v1962, %v1996
        %v2020 = vadd.f32 %v1963, %v1995
        %v2021 = vadd.f32 %v1964, %v1996
        %v2022 = vadd.f32 %v1965, %v1995
        %v2023 = vadd.f32 %v1966, %v1996
        %v2024 = vadd.f32 %v1967, %v1995
        %v2025 = vadd.f32 %v1968, %v1998
        %v2026 = vadd.f32 %v1969, %v1997
        %v2027 = vadd.f32 %v1970, %v2000
        %v2028 = vadd.f32 %v1971, %v1999
        %v2029 = vadd.f32 %v1972, %v2002
        %v2030 = vadd.f32 %v1973, %v2001
        %v2031 = vadd.f32 %v1974, %v2004
        %v2032 = vadd.f32 %v1975, %v2003
        %v2033 = vadd.f32 %v1976, %v2006
        %v2034 = vadd.f32 %v1977, %v2005
        %v2035 = vld [vmem:[%s3 + $0x15] sm:$0x1]
        %v2036 = vlaneseq
        %v2037 = vshrl.u32 %v2036, 7
        %v2038 = vsub.s32 0, %v2037
        %v2039 = vrot.slane %v2035, %v2038
        %v2040 = vmul.f32 %v2039, 0.0
        %v2041 = vmul.f32 %v641, %v2039
        %v2042 = vmul.f32 %v642, %v2039
        %v2043 = vmul.f32 %v643, %v2039
        %v2044 = vmul.f32 %v644, %v2039
        %v2045 = vmul.f32 %v645, %v2039
        %v2046 = vmul.f32 %v646, %v2039
        %v2054 = vrot.slane %v2040, 3
        %v2055 = vsel %vm1941, %v2054, %v2054
        %v2056 = vrot.slane %v2041, 3
        %v2057 = vsel %vm1941, %v2054, %v2056
        %v2058 = vrot.slane %v2042, 3
        %v2059 = vsel %vm1941, %v2054, %v2058
        %v2060 = vrot.slane %v2043, 3
        %v2061 = vsel %vm1941, %v2054, %v2060
        %v2062 = vrot.slane %v2044, 3
        %v2063 = vsel %vm1941, %v2054, %v2062
        %v2064 = vrot.slane %v2045, 3
        %v2065 = vsel %vm1941, %v2054, %v2064
        %v2066 = vrot.slane %v2046, 3
        %v2067 = vsel %vm1941, %v2054, %v2066
        %v2082 = vadd.f32 %v2019, %v2055
        %v2083 = vadd.f32 %v2020, %v2054
        %v2084 = vadd.f32 %v2021, %v2055
        %v2085 = vadd.f32 %v2022, %v2054
        %v2086 = vadd.f32 %v2023, %v2057
        %v2087 = vadd.f32 %v2024, %v2056
        %v2088 = vadd.f32 %v2025, %v2059
        %v2089 = vadd.f32 %v2026, %v2058
        %v2090 = vadd.f32 %v2027, %v2061
        %v2091 = vadd.f32 %v2028, %v2060
        %v2092 = vadd.f32 %v2029, %v2063
        %v2093 = vadd.f32 %v2030, %v2062
        %v2094 = vadd.f32 %v2031, %v2065
        %v2095 = vadd.f32 %v2032, %v2064
        %v2096 = vadd.f32 %v2033, %v2067
        %v2097 = vadd.f32 %v2034, %v2066
        %v2098 = vld [vmem:[%s3 + $0x1e] sm:$0x1]
        %v2099 = vlaneseq
        %v2100 = vshrl.u32 %v2099, 7
        %v2101 = vsub.s32 0, %v2100
        %v2102 = vrot.slane %v2098, %v2101
        %v2103 = vmul.f32 %v2102, 0.0
        %v2104 = vmul.f32 %v641, %v2102
        %v2105 = vmul.f32 %v642, %v2102
        %v2106 = vmul.f32 %v643, %v2102
        %v2107 = vmul.f32 %v644, %v2102
        %v2108 = vmul.f32 %v645, %v2102
        %v2109 = vmul.f32 %v646, %v2102
        %v2110 = vmul.f32 %v647, %v2102
        %v2119 = vrot.slane %v2103, 3
        %v2120 = vsel %vm1941, %v2119, %v2119
        %v2121 = vrot.slane %v2104, 3
        %v2122 = vsel %vm1941, %v2119, %v2121
        %v2123 = vrot.slane %v2105, 3
        %v2124 = vsel %vm1941, %v2119, %v2123
        %v2125 = vrot.slane %v2106, 3
        %v2126 = vsel %vm1941, %v2119, %v2125
        %v2127 = vrot.slane %v2107, 3
        %v2128 = vsel %vm1941, %v2119, %v2127
        %v2129 = vrot.slane %v2108, 3
        %v2130 = vsel %vm1941, %v2119, %v2129
        %v2131 = vrot.slane %v2109, 3
        %v2132 = vsel %vm1941, %v2119, %v2131
        %v2133 = vrot.slane %v2110, 3
        %v2134 = vsel %vm1941, %v2119, %v2133
        %v2151 = vadd.f32 %v2082, %v2120
        %v2152 = vadd.f32 %v2083, %v2119
        %v2153 = vadd.f32 %v2084, %v2122
        %v2154 = vadd.f32 %v2085, %v2121
        %v2155 = vadd.f32 %v2086, %v2124
        %v2156 = vadd.f32 %v2087, %v2123
        %v2157 = vadd.f32 %v2088, %v2126
        %v2158 = vadd.f32 %v2089, %v2125
        %v2159 = vadd.f32 %v2090, %v2128
        %v2160 = vadd.f32 %v2091, %v2127
        %v2161 = vadd.f32 %v2092, %v2130
        %v2162 = vadd.f32 %v2093, %v2129
        %v2163 = vadd.f32 %v2094, %v2132
        %v2164 = vadd.f32 %v2095, %v2131
        %v2165 = vadd.f32 %v2096, %v2134
        %v2166 = vadd.f32 %v2097, %v2133
        %v2167 = vld [vmem:[%s3 + $0x27] sm:$0x1]
        %v2168 = vlaneseq
        %v2169 = vshrl.u32 %v2168, 7
        %v2170 = vsub.s32 0, %v2169
        %v2171 = vrot.slane %v2167, %v2170
        %v2172 = vmul.f32 %v2171, 0.0
        %v2173 = vmul.f32 %v641, %v2171
        %v2174 = vmul.f32 %v642, %v2171
        %v2175 = vmul.f32 %v643, %v2171
        %v2176 = vmul.f32 %v644, %v2171
        %v2177 = vmul.f32 %v645, %v2171
        %v2178 = vmul.f32 %v646, %v2171
        %v2179 = vmul.f32 %v647, %v2171
        %v2180 = vmul.f32 %v648, %v2171
        %v2190 = vrot.slane %v2172, 3
        %v2191 = vrot.slane %v2173, 3
        %v2192 = vsel %vm1941, %v2190, %v2191
        %v2193 = vrot.slane %v2174, 3
        %v2194 = vsel %vm1941, %v2190, %v2193
        %v2195 = vrot.slane %v2175, 3
        %v2196 = vsel %vm1941, %v2190, %v2195
        %v2197 = vrot.slane %v2176, 3
        %v2198 = vsel %vm1941, %v2190, %v2197
        %v2199 = vrot.slane %v2177, 3
        %v2200 = vsel %vm1941, %v2190, %v2199
        %v2201 = vrot.slane %v2178, 3
        %v2202 = vsel %vm1941, %v2190, %v2201
        %v2203 = vrot.slane %v2179, 3
        %v2204 = vsel %vm1941, %v2190, %v2203
        %v2205 = vrot.slane %v2180, 3
        %v2206 = vsel %vm1941, %v2190, %v2205
        %v2223 = vadd.f32 %v2151, %v2192
        %v2224 = vadd.f32 %v2152, %v2191
        %v2225 = vadd.f32 %v2153, %v2194
        %v2226 = vadd.f32 %v2154, %v2193
        %v2227 = vadd.f32 %v2155, %v2196
        %v2228 = vadd.f32 %v2156, %v2195
        %v2229 = vadd.f32 %v2157, %v2198
        %v2230 = vadd.f32 %v2158, %v2197
        %v2231 = vadd.f32 %v2159, %v2200
        %v2232 = vadd.f32 %v2160, %v2199
        %v2233 = vadd.f32 %v2161, %v2202
        %v2234 = vadd.f32 %v2162, %v2201
        %v2235 = vadd.f32 %v2163, %v2204
        %v2236 = vadd.f32 %v2164, %v2203
        %v2237 = vadd.f32 %v2165, %v2206
        %v2238 = vadd.f32 %v2166, %v2205
        %v2239 = vld [vmem:[%s3 + $0x30] sm:$0x1]
        %v2240 = vlaneseq
        %v2241 = vshrl.u32 %v2240, 7
        %v2242 = vsub.s32 0, %v2241
        %v2243 = vrot.slane %v2239, %v2242
        %v2244 = vmul.f32 %v2243, 0.0
        %v2245 = vmul.f32 %v642, %v2243
        %v2246 = vmul.f32 %v643, %v2243
        %v2247 = vmul.f32 %v644, %v2243
        %v2248 = vmul.f32 %v645, %v2243
        %v2249 = vmul.f32 %v646, %v2243
        %v2250 = vmul.f32 %v647, %v2243
        %v2251 = vmul.f32 %v648, %v2243
        %v2260 = vrot.slane %v2244, 3
        %v2261 = vrot.slane %v2245, 3
        %v2262 = vsel %vm1941, %v2260, %v2261
        %v2263 = vrot.slane %v2246, 3
        %v2264 = vsel %vm1941, %v2260, %v2263
        %v2265 = vrot.slane %v2247, 3
        %v2266 = vsel %vm1941, %v2260, %v2265
        %v2267 = vrot.slane %v2248, 3
        %v2268 = vsel %vm1941, %v2260, %v2267
        %v2269 = vrot.slane %v2249, 3
        %v2270 = vsel %vm1941, %v2260, %v2269
        %v2271 = vrot.slane %v2250, 3
        %v2272 = vsel %vm1941, %v2260, %v2271
        %v2273 = vrot.slane %v2251, 3
        %v2274 = vsel %vm1941, %v2260, %v2273
        %v2275 = vsel %vm1941, %v2260, %v2260
        %v2292 = vadd.f32 %v2223, %v2262
        %v2293 = vadd.f32 %v2224, %v2261
        %v2294 = vadd.f32 %v2225, %v2264
        %v2295 = vadd.f32 %v2226, %v2263
        %v2296 = vadd.f32 %v2227, %v2266
        %v2297 = vadd.f32 %v2228, %v2265
        %v2298 = vadd.f32 %v2229, %v2268
        %v2299 = vadd.f32 %v2230, %v2267
        %v2300 = vadd.f32 %v2231, %v2270
        %v2301 = vadd.f32 %v2232, %v2269
        %v2302 = vadd.f32 %v2233, %v2272
        %v2303 = vadd.f32 %v2234, %v2271
        %v2304 = vadd.f32 %v2235, %v2274
        %v2305 = vadd.f32 %v2236, %v2273
        %v2306 = vadd.f32 %v2237, %v2275
        %v2307 = vadd.f32 %v2238, %v2260
        %v2308 = vld [vmem:[%s3 + $0x39] sm:$0x1]
        %v2309 = vlaneseq
        %v2310 = vshrl.u32 %v2309, 7
        %v2311 = vsub.s32 0, %v2310
        %v2312 = vrot.slane %v2308, %v2311
        %v2313 = vmul.f32 %v2312, 0.0
        %v2314 = vmul.f32 %v643, %v2312
        %v2315 = vmul.f32 %v644, %v2312
        %v2316 = vmul.f32 %v645, %v2312
        %v2317 = vmul.f32 %v646, %v2312
        %v2318 = vmul.f32 %v647, %v2312
        %v2319 = vmul.f32 %v648, %v2312
        %v2327 = vrot.slane %v2313, 3
        %v2328 = vrot.slane %v2314, 3
        %v2329 = vsel %vm1941, %v2327, %v2328
        %v2330 = vrot.slane %v2315, 3
        %v2331 = vsel %vm1941, %v2327, %v2330
        %v2332 = vrot.slane %v2316, 3
        %v2333 = vsel %vm1941, %v2327, %v2332
        %v2334 = vrot.slane %v2317, 3
        %v2335 = vsel %vm1941, %v2327, %v2334
        %v2336 = vrot.slane %v2318, 3
        %v2337 = vsel %vm1941, %v2327, %v2336
        %v2338 = vrot.slane %v2319, 3
        %v2339 = vsel %vm1941, %v2327, %v2338
        %v2340 = vsel %vm1941, %v2327, %v2327
        %v2355 = vadd.f32 %v2292, %v2329
        %v2356 = vadd.f32 %v2293, %v2328
        %v2357 = vadd.f32 %v2294, %v2331
        %v2358 = vadd.f32 %v2295, %v2330
        %v2359 = vadd.f32 %v2296, %v2333
        %v2360 = vadd.f32 %v2297, %v2332
        %v2361 = vadd.f32 %v2298, %v2335
        %v2362 = vadd.f32 %v2299, %v2334
        %v2363 = vadd.f32 %v2300, %v2337
        %v2364 = vadd.f32 %v2301, %v2336
        %v2365 = vadd.f32 %v2302, %v2339
        %v2366 = vadd.f32 %v2303, %v2338
        %v2367 = vadd.f32 %v2304, %v2340
        %v2368 = vadd.f32 %v2305, %v2327
        %v2369 = vadd.f32 %v2306, %v2340
        %v2370 = vadd.f32 %v2307, %v2327
        %v2371 = vld [vmem:[%s3 + $0x42] sm:$0x1]
        %v2372 = vlaneseq
        %v2373 = vshrl.u32 %v2372, 7
        %v2374 = vsub.s32 0, %v2373
        %v2375 = vrot.slane %v2371, %v2374
        %v2376 = vmul.f32 %v2375, 0.0
        %v2377 = vmul.f32 %v644, %v2375
        %v2378 = vmul.f32 %v645, %v2375
        %v2379 = vmul.f32 %v646, %v2375
        %v2380 = vmul.f32 %v647, %v2375
        %v2381 = vmul.f32 %v648, %v2375
        %v2388 = vrot.slane %v2376, 3
        %v2389 = vrot.slane %v2377, 3
        %v2390 = vsel %vm1941, %v2388, %v2389
        %v2391 = vrot.slane %v2378, 3
        %v2392 = vsel %vm1941, %v2388, %v2391
        %v2393 = vrot.slane %v2379, 3
        %v2394 = vsel %vm1941, %v2388, %v2393
        %v2395 = vrot.slane %v2380, 3
        %v2396 = vsel %vm1941, %v2388, %v2395
        %v2397 = vrot.slane %v2381, 3
        %v2398 = vsel %vm1941, %v2388, %v2397
        %v2399 = vsel %vm1941, %v2388, %v2388
        %v2412 = vadd.f32 %v2355, %v2390
        %v2413 = vadd.f32 %v2356, %v2389
        %v2414 = vadd.f32 %v2357, %v2392
        %v2415 = vadd.f32 %v2358, %v2391
        %v2416 = vadd.f32 %v2359, %v2394
        %v2417 = vadd.f32 %v2360, %v2393
        %v2418 = vadd.f32 %v2361, %v2396
        %v2419 = vadd.f32 %v2362, %v2395
        %v2420 = vadd.f32 %v2363, %v2398
        %v2421 = vadd.f32 %v2364, %v2397
        %v2422 = vadd.f32 %v2365, %v2399
        %v2423 = vadd.f32 %v2366, %v2388
        %v2424 = vadd.f32 %v2367, %v2399
        %v2425 = vadd.f32 %v2368, %v2388
        %v2426 = vadd.f32 %v2369, %v2399
        %v2427 = vadd.f32 %v2370, %v2388
        %v2428 = vld [vmem:[%s3 + $0x4b] sm:$0x1]
        %v2429 = vlaneseq
        %v2430 = vshrl.u32 %v2429, 7
        %v2431 = vsub.s32 0, %v2430
        %v2432 = vrot.slane %v2428, %v2431
        %v2433 = vmul.f32 %v2432, 0.0
        %v2434 = vmul.f32 %v645, %v2432
        %v2435 = vmul.f32 %v646, %v2432
        %v2436 = vmul.f32 %v647, %v2432
        %v2437 = vmul.f32 %v648, %v2432
        %v2443 = vrot.slane %v2433, 3
        %v2444 = vrot.slane %v2434, 3
        %v2445 = vsel %vm1941, %v2443, %v2444
        %v2446 = vrot.slane %v2435, 3
        %v2447 = vsel %vm1941, %v2443, %v2446
        %v2448 = vrot.slane %v2436, 3
        %v2449 = vsel %vm1941, %v2443, %v2448
        %v2450 = vrot.slane %v2437, 3
        %v2451 = vsel %vm1941, %v2443, %v2450
        %v2452 = vsel %vm1941, %v2443, %v2443
        %v2463 = vadd.f32 %v2412, %v2445
        %v2464 = vadd.f32 %v2413, %v2444
        %v2465 = vadd.f32 %v2414, %v2447
        %v2466 = vadd.f32 %v2415, %v2446
        %v2467 = vadd.f32 %v2416, %v2449
        %v2468 = vadd.f32 %v2417, %v2448
        %v2469 = vadd.f32 %v2418, %v2451
        %v2470 = vadd.f32 %v2419, %v2450
        %v2471 = vadd.f32 %v2420, %v2452
        %v2472 = vadd.f32 %v2421, %v2443
        %v2473 = vadd.f32 %v2422, %v2452
        %v2474 = vadd.f32 %v2423, %v2443
        %v2475 = vadd.f32 %v2424, %v2452
        %v2476 = vadd.f32 %v2425, %v2443
        %v2477 = vadd.f32 %v2426, %v2452
        %v2478 = vadd.f32 %v2427, %v2443
        %v2479 = vld [vmem:[%s3 + $0x4] sm:$0x1]
        %v2480 = vlaneseq
        %v2481 = vshrl.u32 %v2480, 7
        %v2482 = vsub.s32 0, %v2481
        %v2483 = vrot.slane %v2479, %v2482
        %v2484 = vmul.f32 %v2483, 0.0
        %v2485 = vmul.f32 %v641, %v2483
        %v2486 = vmul.f32 %v642, %v2483
        %v2487 = vmul.f32 %v643, %v2483
        %v2488 = vmul.f32 %v644, %v2483
        %v2494 = vrot.slane %v2484, 4
        %v2495 = vrot.slane %v2485, 4
        %v2496 = vrot.slane %v2486, 4
        %v2497 = vrot.slane %v2487, 4
        %v2498 = vrot.slane %v2488, 4
        %v2504 = vadd.f32 %v2463, %v2494
        %v2505 = vadd.f32 %v2464, %v2494
        %v2506 = vadd.f32 %v2465, %v2494
        %v2507 = vadd.f32 %v2466, %v2494
        %v2508 = vadd.f32 %v2467, %v2494
        %v2509 = vadd.f32 %v2468, %v2494
        %v2510 = vadd.f32 %v2469, %v2494
        %v2511 = vadd.f32 %v2470, %v2494
        %v2512 = vadd.f32 %v2471, %v2495
        %v2513 = vadd.f32 %v2472, %v2495
        %v2514 = vadd.f32 %v2473, %v2496
        %v2515 = vadd.f32 %v2474, %v2496
        %v2516 = vadd.f32 %v2475, %v2497
        %v2517 = vadd.f32 %v2476, %v2497
        %v2518 = vadd.f32 %v2477, %v2498
        %v2519 = vadd.f32 %v2478, %v2498
        %v2520 = vld [vmem:[%s3 + $0xd] sm:$0x1]
        %v2521 = vlaneseq
        %v2522 = vshrl.u32 %v2521, 7
        %v2523 = vsub.s32 0, %v2522
        %v2524 = vrot.slane %v2520, %v2523
        %v2525 = vmul.f32 %v2524, 0.0
        %v2526 = vmul.f32 %v641, %v2524
        %v2527 = vmul.f32 %v642, %v2524
        %v2528 = vmul.f32 %v643, %v2524
        %v2529 = vmul.f32 %v644, %v2524
        %v2530 = vmul.f32 %v645, %v2524
        %v2537 = vrot.slane %v2525, 4
        %v2538 = vrot.slane %v2526, 4
        %v2539 = vrot.slane %v2527, 4
        %v2540 = vrot.slane %v2528, 4
        %v2541 = vrot.slane %v2529, 4
        %v2542 = vrot.slane %v2530, 4
        %v2549 = vadd.f32 %v2504, %v2537
        %v2550 = vadd.f32 %v2505, %v2537
        %v2551 = vadd.f32 %v2506, %v2537
        %v2552 = vadd.f32 %v2507, %v2537
        %v2553 = vadd.f32 %v2508, %v2537
        %v2554 = vadd.f32 %v2509, %v2537
        %v2555 = vadd.f32 %v2510, %v2538
        %v2556 = vadd.f32 %v2511, %v2538
        %v2557 = vadd.f32 %v2512, %v2539
        %v2558 = vadd.f32 %v2513, %v2539
        %v2559 = vadd.f32 %v2514, %v2540
        %v2560 = vadd.f32 %v2515, %v2540
        %v2561 = vadd.f32 %v2516, %v2541
        %v2562 = vadd.f32 %v2517, %v2541
        %v2563 = vadd.f32 %v2518, %v2542
        %v2564 = vadd.f32 %v2519, %v2542
        %v2565 = vld [vmem:[%s3 + $0x16] sm:$0x1]
        %v2566 = vlaneseq
        %v2567 = vshrl.u32 %v2566, 7
        %v2568 = vsub.s32 0, %v2567
        %v2569 = vrot.slane %v2565, %v2568
        %v2570 = vmul.f32 %v2569, 0.0
        %v2571 = vmul.f32 %v641, %v2569
        %v2572 = vmul.f32 %v642, %v2569
        %v2573 = vmul.f32 %v643, %v2569
        %v2574 = vmul.f32 %v644, %v2569
        %v2575 = vmul.f32 %v645, %v2569
        %v2576 = vmul.f32 %v646, %v2569
        %v2584 = vrot.slane %v2570, 4
        %v2585 = vrot.slane %v2571, 4
        %v2586 = vrot.slane %v2572, 4
        %v2587 = vrot.slane %v2573, 4
        %v2588 = vrot.slane %v2574, 4
        %v2589 = vrot.slane %v2575, 4
        %v2590 = vrot.slane %v2576, 4
        %v2598 = vadd.f32 %v2549, %v2584
        %v2599 = vadd.f32 %v2550, %v2584
        %v2600 = vadd.f32 %v2551, %v2584
        %v2601 = vadd.f32 %v2552, %v2584
        %v2602 = vadd.f32 %v2553, %v2585
        %v2603 = vadd.f32 %v2554, %v2585
        %v2604 = vadd.f32 %v2555, %v2586
        %v2605 = vadd.f32 %v2556, %v2586
        %v2606 = vadd.f32 %v2557, %v2587
        %v2607 = vadd.f32 %v2558, %v2587
        %v2608 = vadd.f32 %v2559, %v2588
        %v2609 = vadd.f32 %v2560, %v2588
        %v2610 = vadd.f32 %v2561, %v2589
        %v2611 = vadd.f32 %v2562, %v2589
        %v2612 = vadd.f32 %v2563, %v2590
        %v2613 = vadd.f32 %v2564, %v2590
        %v2614 = vld [vmem:[%s3 + $0x1f] sm:$0x1]
        %v2615 = vlaneseq
        %v2616 = vshrl.u32 %v2615, 7
        %v2617 = vsub.s32 0, %v2616
        %v2618 = vrot.slane %v2614, %v2617
        %v2619 = vmul.f32 %v2618, 0.0
        %v2620 = vmul.f32 %v641, %v2618
        %v2621 = vmul.f32 %v642, %v2618
        %v2622 = vmul.f32 %v643, %v2618
        %v2623 = vmul.f32 %v644, %v2618
        %v2624 = vmul.f32 %v645, %v2618
        %v2625 = vmul.f32 %v646, %v2618
        %v2626 = vmul.f32 %v647, %v2618
        %v2635 = vrot.slane %v2619, 4
        %v2636 = vrot.slane %v2620, 4
        %v2637 = vrot.slane %v2621, 4
        %v2638 = vrot.slane %v2622, 4
        %v2639 = vrot.slane %v2623, 4
        %v2640 = vrot.slane %v2624, 4
        %v2641 = vrot.slane %v2625, 4
        %v2642 = vrot.slane %v2626, 4
        %v2651 = vadd.f32 %v2598, %v2635
        %v2652 = vadd.f32 %v2599, %v2635
        %v2653 = vadd.f32 %v2600, %v2636
        %v2654 = vadd.f32 %v2601, %v2636
        %v2655 = vadd.f32 %v2602, %v2637
        %v2656 = vadd.f32 %v2603, %v2637
        %v2657 = vadd.f32 %v2604, %v2638
        %v2658 = vadd.f32 %v2605, %v2638
        %v2659 = vadd.f32 %v2606, %v2639
        %v2660 = vadd.f32 %v2607, %v2639
        %v2661 = vadd.f32 %v2608, %v2640
        %v2662 = vadd.f32 %v2609, %v2640
        %v2663 = vadd.f32 %v2610, %v2641
        %v2664 = vadd.f32 %v2611, %v2641
        %v2665 = vadd.f32 %v2612, %v2642
        %v2666 = vadd.f32 %v2613, %v2642
        %v2667 = vld [vmem:[%s3 + $0x28] sm:$0x1]
        %v2668 = vlaneseq
        %v2669 = vshrl.u32 %v2668, 7
        %v2670 = vsub.s32 0, %v2669
        %v2671 = vrot.slane %v2667, %v2670
        %v2672 = vmul.f32 %v641, %v2671
        %v2673 = vmul.f32 %v642, %v2671
        %v2674 = vmul.f32 %v643, %v2671
        %v2675 = vmul.f32 %v644, %v2671
        %v2676 = vmul.f32 %v645, %v2671
        %v2677 = vmul.f32 %v646, %v2671
        %v2678 = vmul.f32 %v647, %v2671
        %v2679 = vmul.f32 %v648, %v2671
        %v2688 = vrot.slane %v2672, 4
        %v2689 = vrot.slane %v2673, 4
        %v2690 = vrot.slane %v2674, 4
        %v2691 = vrot.slane %v2675, 4
        %v2692 = vrot.slane %v2676, 4
        %v2693 = vrot.slane %v2677, 4
        %v2694 = vrot.slane %v2678, 4
        %v2695 = vrot.slane %v2679, 4
        %v2704 = vadd.f32 %v2651, %v2688
        %v2705 = vadd.f32 %v2652, %v2688
        %v2706 = vadd.f32 %v2653, %v2689
        %v2707 = vadd.f32 %v2654, %v2689
        %v2708 = vadd.f32 %v2655, %v2690
        %v2709 = vadd.f32 %v2656, %v2690
        %v2710 = vadd.f32 %v2657, %v2691
        %v2711 = vadd.f32 %v2658, %v2691
        %v2712 = vadd.f32 %v2659, %v2692
        %v2713 = vadd.f32 %v2660, %v2692
        %v2714 = vadd.f32 %v2661, %v2693
        %v2715 = vadd.f32 %v2662, %v2693
        %v2716 = vadd.f32 %v2663, %v2694
        %v2717 = vadd.f32 %v2664, %v2694
        %v2718 = vadd.f32 %v2665, %v2695
        %v2719 = vadd.f32 %v2666, %v2695
        %v2720 = vld [vmem:[%s3 + $0x31] sm:$0x1]
        %v2721 = vlaneseq
        %v2722 = vshrl.u32 %v2721, 7
        %v2723 = vsub.s32 0, %v2722
        %v2724 = vrot.slane %v2720, %v2723
        %v2725 = vmul.f32 %v642, %v2724
        %v2726 = vmul.f32 %v643, %v2724
        %v2727 = vmul.f32 %v644, %v2724
        %v2728 = vmul.f32 %v645, %v2724
        %v2729 = vmul.f32 %v646, %v2724
        %v2730 = vmul.f32 %v647, %v2724
        %v2731 = vmul.f32 %v648, %v2724
        %v2732 = vmul.f32 %v2724, 0.0
        %v2741 = vrot.slane %v2725, 4
        %v2742 = vrot.slane %v2726, 4
        %v2743 = vrot.slane %v2727, 4
        %v2744 = vrot.slane %v2728, 4
        %v2745 = vrot.slane %v2729, 4
        %v2746 = vrot.slane %v2730, 4
        %v2747 = vrot.slane %v2731, 4
        %v2748 = vrot.slane %v2732, 4
        %v2757 = vadd.f32 %v2704, %v2741
        %v2758 = vadd.f32 %v2705, %v2741
        %v2759 = vadd.f32 %v2706, %v2742
        %v2760 = vadd.f32 %v2707, %v2742
        %v2761 = vadd.f32 %v2708, %v2743
        %v2762 = vadd.f32 %v2709, %v2743
        %v2763 = vadd.f32 %v2710, %v2744
        %v2764 = vadd.f32 %v2711, %v2744
        %v2765 = vadd.f32 %v2712, %v2745
        %v2766 = vadd.f32 %v2713, %v2745
        %v2767 = vadd.f32 %v2714, %v2746
        %v2768 = vadd.f32 %v2715, %v2746
        %v2769 = vadd.f32 %v2716, %v2747
        %v2770 = vadd.f32 %v2717, %v2747
        %v2771 = vadd.f32 %v2718, %v2748
        %v2772 = vadd.f32 %v2719, %v2748
        %v2773 = vld [vmem:[%s3 + $0x3a] sm:$0x1]
        %v2774 = vlaneseq
        %v2775 = vshrl.u32 %v2774, 7
        %v2776 = vsub.s32 0, %v2775
        %v2777 = vrot.slane %v2773, %v2776
        %v2778 = vmul.f32 %v643, %v2777
        %v2779 = vmul.f32 %v644, %v2777
        %v2780 = vmul.f32 %v645, %v2777
        %v2781 = vmul.f32 %v646, %v2777
        %v2782 = vmul.f32 %v647, %v2777
        %v2783 = vmul.f32 %v648, %v2777
        %v2784 = vmul.f32 %v2777, 0.0
        %v2792 = vrot.slane %v2778, 4
        %v2793 = vrot.slane %v2779, 4
        %v2794 = vrot.slane %v2780, 4
        %v2795 = vrot.slane %v2781, 4
        %v2796 = vrot.slane %v2782, 4
        %v2797 = vrot.slane %v2783, 4
        %v2798 = vrot.slane %v2784, 4
        %v2806 = vadd.f32 %v2757, %v2792
        %v2807 = vadd.f32 %v2758, %v2792
        %v2808 = vadd.f32 %v2759, %v2793
        %v2809 = vadd.f32 %v2760, %v2793
        %v2810 = vadd.f32 %v2761, %v2794
        %v2811 = vadd.f32 %v2762, %v2794
        %v2812 = vadd.f32 %v2763, %v2795
        %v2813 = vadd.f32 %v2764, %v2795
        %v2814 = vadd.f32 %v2765, %v2796
        %v2815 = vadd.f32 %v2766, %v2796
        %v2816 = vadd.f32 %v2767, %v2797
        %v2817 = vadd.f32 %v2768, %v2797
        %v2818 = vadd.f32 %v2769, %v2798
        %v2819 = vadd.f32 %v2770, %v2798
        %v2820 = vadd.f32 %v2771, %v2798
        %v2821 = vadd.f32 %v2772, %v2798
        %v2822 = vld [vmem:[%s3 + $0x43] sm:$0x1]
        %v2823 = vlaneseq
        %v2824 = vshrl.u32 %v2823, 7
        %v2825 = vsub.s32 0, %v2824
        %v2826 = vrot.slane %v2822, %v2825
        %v2827 = vmul.f32 %v644, %v2826
        %v2828 = vmul.f32 %v645, %v2826
        %v2829 = vmul.f32 %v646, %v2826
        %v2830 = vmul.f32 %v647, %v2826
        %v2831 = vmul.f32 %v648, %v2826
        %v2832 = vmul.f32 %v2826, 0.0
        %v2839 = vrot.slane %v2827, 4
        %v2840 = vrot.slane %v2828, 4
        %v2841 = vrot.slane %v2829, 4
        %v2842 = vrot.slane %v2830, 4
        %v2843 = vrot.slane %v2831, 4
        %v2844 = vrot.slane %v2832, 4
        %v2851 = vadd.f32 %v2806, %v2839
        %v2852 = vadd.f32 %v2807, %v2839
        %v2853 = vadd.f32 %v2808, %v2840
        %v2854 = vadd.f32 %v2809, %v2840
        %v2855 = vadd.f32 %v2810, %v2841
        %v2856 = vadd.f32 %v2811, %v2841
        %v2857 = vadd.f32 %v2812, %v2842
        %v2858 = vadd.f32 %v2813, %v2842
        %v2859 = vadd.f32 %v2814, %v2843
        %v2860 = vadd.f32 %v2815, %v2843
        %v2861 = vadd.f32 %v2816, %v2844
        %v2862 = vadd.f32 %v2817, %v2844
        %v2863 = vadd.f32 %v2818, %v2844
        %v2864 = vadd.f32 %v2819, %v2844
        %v2865 = vadd.f32 %v2820, %v2844
        %v2866 = vadd.f32 %v2821, %v2844
        %v2867 = vld [vmem:[%s3 + $0x4c] sm:$0x1]
        %v2868 = vlaneseq
        %v2869 = vshrl.u32 %v2868, 7
        %v2870 = vsub.s32 0, %v2869
        %v2871 = vrot.slane %v2867, %v2870
        %v2872 = vmul.f32 %v645, %v2871
        %v2873 = vmul.f32 %v646, %v2871
        %v2874 = vmul.f32 %v647, %v2871
        %v2875 = vmul.f32 %v648, %v2871
        %v2876 = vmul.f32 %v2871, 0.0
        %v2882 = vrot.slane %v2872, 4
        %v2883 = vrot.slane %v2873, 4
        %v2884 = vrot.slane %v2874, 4
        %v2885 = vrot.slane %v2875, 4
        %v2886 = vrot.slane %v2876, 4
        %v2892 = vadd.f32 %v2851, %v2882
        %v2893 = vadd.f32 %v2852, %v2882
        %v2894 = vadd.f32 %v2853, %v2883
        %v2895 = vadd.f32 %v2854, %v2883
        %v2896 = vadd.f32 %v2855, %v2884
        %v2897 = vadd.f32 %v2856, %v2884
        %v2898 = vadd.f32 %v2857, %v2885
        %v2899 = vadd.f32 %v2858, %v2885
        %v2900 = vadd.f32 %v2859, %v2886
        %v2901 = vadd.f32 %v2860, %v2886
        %v2902 = vadd.f32 %v2861, %v2886
        %v2903 = vadd.f32 %v2862, %v2886
        %v2904 = vadd.f32 %v2863, %v2886
        %v2905 = vadd.f32 %v2864, %v2886
        %v2906 = vadd.f32 %v2865, %v2886
        %v2907 = vadd.f32 %v2866, %v2886
        %v2908 = vld [vmem:[%s3 + $0x5] sm:$0x1]
        %v2909 = vlaneseq
        %v2910 = vshrl.u32 %v2909, 7
        %v2911 = vsub.s32 0, %v2910
        %v2912 = vrot.slane %v2908, %v2911
        %v2913 = vmul.f32 %v2912, 0.0
        %v2914 = vmul.f32 %v641, %v2912
        %v2915 = vmul.f32 %v642, %v2912
        %v2916 = vmul.f32 %v643, %v2912
        %v2917 = vmul.f32 %v644, %v2912
        %vm2923 = vcmask 1042432
        %v2924 = vrot.slane %v2913, 5
        %v2925 = vsel %vm2923, %v2924, %v2924
        %v2926 = vrot.slane %v2914, 5
        %v2927 = vsel %vm2923, %v2926, %v2924
        %v2928 = vrot.slane %v2915, 5
        %v2929 = vsel %vm2923, %v2928, %v2924
        %v2930 = vrot.slane %v2916, 5
        %v2931 = vsel %vm2923, %v2930, %v2924
        %v2932 = vrot.slane %v2917, 5
        %v2933 = vsel %vm2923, %v2932, %v2924
        %v2944 = vadd.f32 %v2892, %v2924
        %v2945 = vadd.f32 %v2893, %v2925
        %v2946 = vadd.f32 %v2894, %v2924
        %v2947 = vadd.f32 %v2895, %v2925
        %v2948 = vadd.f32 %v2896, %v2924
        %v2949 = vadd.f32 %v2897, %v2925
        %v2950 = vadd.f32 %v2898, %v2924
        %v2951 = vadd.f32 %v2899, %v2925
        %v2952 = vadd.f32 %v2900, %v2926
        %v2953 = vadd.f32 %v2901, %v2927
        %v2954 = vadd.f32 %v2902, %v2928
        %v2955 = vadd.f32 %v2903, %v2929
        %v2956 = vadd.f32 %v2904, %v2930
        %v2957 = vadd.f32 %v2905, %v2931
        %v2958 = vadd.f32 %v2906, %v2932
        %v2959 = vadd.f32 %v2907, %v2933
        %v2960 = vld [vmem:[%s3 + $0xe] sm:$0x1]
        %v2961 = vlaneseq
        %v2962 = vshrl.u32 %v2961, 7
        %v2963 = vsub.s32 0, %v2962
        %v2964 = vrot.slane %v2960, %v2963
        %v2965 = vmul.f32 %v2964, 0.0
        %v2966 = vmul.f32 %v641, %v2964
        %v2967 = vmul.f32 %v642, %v2964
        %v2968 = vmul.f32 %v643, %v2964
        %v2969 = vmul.f32 %v644, %v2964
        %v2970 = vmul.f32 %v645, %v2964
        %v2977 = vrot.slane %v2965, 5
        %v2978 = vsel %vm2923, %v2977, %v2977
        %v2979 = vrot.slane %v2966, 5
        %v2980 = vsel %vm2923, %v2979, %v2977
        %v2981 = vrot.slane %v2967, 5
        %v2982 = vsel %vm2923, %v2981, %v2977
        %v2983 = vrot.slane %v2968, 5
        %v2984 = vsel %vm2923, %v2983, %v2977
        %v2985 = vrot.slane %v2969, 5
        %v2986 = vsel %vm2923, %v2985, %v2977
        %v2987 = vrot.slane %v2970, 5
        %v2988 = vsel %vm2923, %v2987, %v2977
        %v3001 = vadd.f32 %v2944, %v2977
        %v3002 = vadd.f32 %v2945, %v2978
        %v3003 = vadd.f32 %v2946, %v2977
        %v3004 = vadd.f32 %v2947, %v2978
        %v3005 = vadd.f32 %v2948, %v2977
        %v3006 = vadd.f32 %v2949, %v2978
        %v3007 = vadd.f32 %v2950, %v2979
        %v3008 = vadd.f32 %v2951, %v2980
        %v3009 = vadd.f32 %v2952, %v2981
        %v3010 = vadd.f32 %v2953, %v2982
        %v3011 = vadd.f32 %v2954, %v2983
        %v3012 = vadd.f32 %v2955, %v2984
        %v3013 = vadd.f32 %v2956, %v2985
        %v3014 = vadd.f32 %v2957, %v2986
        %v3015 = vadd.f32 %v2958, %v2987
        %v3016 = vadd.f32 %v2959, %v2988
        %v3017 = vld [vmem:[%s3 + $0x17] sm:$0x1]
        %v3018 = vlaneseq
        %v3019 = vshrl.u32 %v3018, 7
        %v3020 = vsub.s32 0, %v3019
        %v3021 = vrot.slane %v3017, %v3020
        %v3022 = vmul.f32 %v3021, 0.0
        %v3023 = vmul.f32 %v641, %v3021
        %v3024 = vmul.f32 %v642, %v3021
        %v3025 = vmul.f32 %v643, %v3021
        %v3026 = vmul.f32 %v644, %v3021
        %v3027 = vmul.f32 %v645, %v3021
        %v3028 = vmul.f32 %v646, %v3021
        %v3036 = vrot.slane %v3022, 5
        %v3037 = vsel %vm2923, %v3036, %v3036
        %v3038 = vrot.slane %v3023, 5
        %v3039 = vsel %vm2923, %v3038, %v3036
        %v3040 = vrot.slane %v3024, 5
        %v3041 = vsel %vm2923, %v3040, %v3036
        %v3042 = vrot.slane %v3025, 5
        %v3043 = vsel %vm2923, %v3042, %v3036
        %v3044 = vrot.slane %v3026, 5
        %v3045 = vsel %vm2923, %v3044, %v3036
        %v3046 = vrot.slane %v3027, 5
        %v3047 = vsel %vm2923, %v3046, %v3036
        %v3048 = vrot.slane %v3028, 5
        %v3049 = vsel %vm2923, %v3048, %v3036
        %v3064 = vadd.f32 %v3001, %v3036
        %v3065 = vadd.f32 %v3002, %v3037
        %v3066 = vadd.f32 %v3003, %v3036
        %v3067 = vadd.f32 %v3004, %v3037
        %v3068 = vadd.f32 %v3005, %v3038
        %v3069 = vadd.f32 %v3006, %v3039
        %v3070 = vadd.f32 %v3007, %v3040
        %v3071 = vadd.f32 %v3008, %v3041
        %v3072 = vadd.f32 %v3009, %v3042
        %v3073 = vadd.f32 %v3010, %v3043
        %v3074 = vadd.f32 %v3011, %v3044
        %v3075 = vadd.f32 %v3012, %v3045
        %v3076 = vadd.f32 %v3013, %v3046
        %v3077 = vadd.f32 %v3014, %v3047
        %v3078 = vadd.f32 %v3015, %v3048
        %v3079 = vadd.f32 %v3016, %v3049
        %v3080 = vld [vmem:[%s3 + $0x20] sm:$0x1]
        %v3081 = vlaneseq
        %v3082 = vshrl.u32 %v3081, 7
        %v3083 = vsub.s32 0, %v3082
        %v3084 = vrot.slane %v3080, %v3083
        %v3085 = vmul.f32 %v3084, 0.0
        %v3086 = vmul.f32 %v641, %v3084
        %v3087 = vmul.f32 %v642, %v3084
        %v3088 = vmul.f32 %v643, %v3084
        %v3089 = vmul.f32 %v644, %v3084
        %v3090 = vmul.f32 %v645, %v3084
        %v3091 = vmul.f32 %v646, %v3084
        %v3092 = vmul.f32 %v647, %v3084
        %v3101 = vrot.slane %v3085, 5
        %v3102 = vsel %vm2923, %v3101, %v3101
        %v3103 = vrot.slane %v3086, 5
        %v3104 = vsel %vm2923, %v3103, %v3101
        %v3105 = vrot.slane %v3087, 5
        %v3106 = vsel %vm2923, %v3105, %v3101
        %v3107 = vrot.slane %v3088, 5
        %v3108 = vsel %vm2923, %v3107, %v3101
        %v3109 = vrot.slane %v3089, 5
        %v3110 = vsel %vm2923, %v3109, %v3101
        %v3111 = vrot.slane %v3090, 5
        %v3112 = vsel %vm2923, %v3111, %v3101
        %v3113 = vrot.slane %v3091, 5
        %v3114 = vsel %vm2923, %v3113, %v3101
        %v3115 = vrot.slane %v3092, 5
        %v3116 = vsel %vm2923, %v3115, %v3101
        %v3133 = vadd.f32 %v3064, %v3101
        %v3134 = vadd.f32 %v3065, %v3102
        %v3135 = vadd.f32 %v3066, %v3103
        %v3136 = vadd.f32 %v3067, %v3104
        %v3137 = vadd.f32 %v3068, %v3105
        %v3138 = vadd.f32 %v3069, %v3106
        %v3139 = vadd.f32 %v3070, %v3107
        %v3140 = vadd.f32 %v3071, %v3108
        %v3141 = vadd.f32 %v3072, %v3109
        %v3142 = vadd.f32 %v3073, %v3110
        %v3143 = vadd.f32 %v3074, %v3111
        %v3144 = vadd.f32 %v3075, %v3112
        %v3145 = vadd.f32 %v3076, %v3113
        %v3146 = vadd.f32 %v3077, %v3114
        %v3147 = vadd.f32 %v3078, %v3115
        %v3148 = vadd.f32 %v3079, %v3116
        %v3149 = vld [vmem:[%s3 + $0x29] sm:$0x1]
        %v3150 = vlaneseq
        %v3151 = vshrl.u32 %v3150, 7
        %v3152 = vsub.s32 0, %v3151
        %v3153 = vrot.slane %v3149, %v3152
        %v3154 = vmul.f32 %v641, %v3153
        %v3155 = vmul.f32 %v3153, 0.0
        %v3156 = vmul.f32 %v642, %v3153
        %v3157 = vmul.f32 %v643, %v3153
        %v3158 = vmul.f32 %v644, %v3153
        %v3159 = vmul.f32 %v645, %v3153
        %v3160 = vmul.f32 %v646, %v3153
        %v3161 = vmul.f32 %v647, %v3153
        %v3162 = vmul.f32 %v648, %v3153
        %v3172 = vrot.slane %v3154, 5
        %v3173 = vrot.slane %v3155, 5
        %v3174 = vsel %vm2923, %v3172, %v3173
        %v3175 = vrot.slane %v3156, 5
        %v3176 = vsel %vm2923, %v3175, %v3173
        %v3177 = vrot.slane %v3157, 5
        %v3178 = vsel %vm2923, %v3177, %v3173
        %v3179 = vrot.slane %v3158, 5
        %v3180 = vsel %vm2923, %v3179, %v3173
        %v3181 = vrot.slane %v3159, 5
        %v3182 = vsel %vm2923, %v3181, %v3173
        %v3183 = vrot.slane %v3160, 5
        %v3184 = vsel %vm2923, %v3183, %v3173
        %v3185 = vrot.slane %v3161, 5
        %v3186 = vsel %vm2923, %v3185, %v3173
        %v3187 = vrot.slane %v3162, 5
        %v3188 = vsel %vm2923, %v3187, %v3173
        %v3205 = vadd.f32 %v3133, %v3172
        %v3206 = vadd.f32 %v3134, %v3174
        %v3207 = vadd.f32 %v3135, %v3175
        %v3208 = vadd.f32 %v3136, %v3176
        %v3209 = vadd.f32 %v3137, %v3177
        %v3210 = vadd.f32 %v3138, %v3178
        %v3211 = vadd.f32 %v3139, %v3179
        %v3212 = vadd.f32 %v3140, %v3180
        %v3213 = vadd.f32 %v3141, %v3181
        %v3214 = vadd.f32 %v3142, %v3182
        %v3215 = vadd.f32 %v3143, %v3183
        %v3216 = vadd.f32 %v3144, %v3184
        %v3217 = vadd.f32 %v3145, %v3185
        %v3218 = vadd.f32 %v3146, %v3186
        %v3219 = vadd.f32 %v3147, %v3187
        %v3220 = vadd.f32 %v3148, %v3188
        %v3221 = vld [vmem:[%s3 + $0x32] sm:$0x1]
        %v3222 = vlaneseq
        %v3223 = vshrl.u32 %v3222, 7
        %v3224 = vsub.s32 0, %v3223
        %v3225 = vrot.slane %v3221, %v3224
        %v3226 = vmul.f32 %v642, %v3225
        %v3227 = vmul.f32 %v3225, 0.0
        %v3228 = vmul.f32 %v643, %v3225
        %v3229 = vmul.f32 %v644, %v3225
        %v3230 = vmul.f32 %v645, %v3225
        %v3231 = vmul.f32 %v646, %v3225
        %v3232 = vmul.f32 %v647, %v3225
        %v3233 = vmul.f32 %v648, %v3225
        %v3242 = vrot.slane %v3226, 5
        %v3243 = vrot.slane %v3227, 5
        %v3244 = vsel %vm2923, %v3242, %v3243
        %v3245 = vrot.slane %v3228, 5
        %v3246 = vsel %vm2923, %v3245, %v3243
        %v3247 = vrot.slane %v3229, 5
        %v3248 = vsel %vm2923, %v3247, %v3243
        %v3249 = vrot.slane %v3230, 5
        %v3250 = vsel %vm2923, %v3249, %v3243
        %v3251 = vrot.slane %v3231, 5
        %v3252 = vsel %vm2923, %v3251, %v3243
        %v3253 = vrot.slane %v3232, 5
        %v3254 = vsel %vm2923, %v3253, %v3243
        %v3255 = vrot.slane %v3233, 5
        %v3256 = vsel %vm2923, %v3255, %v3243
        %v3257 = vsel %vm2923, %v3243, %v3243
        %v3274 = vadd.f32 %v3205, %v3242
        %v3275 = vadd.f32 %v3206, %v3244
        %v3276 = vadd.f32 %v3207, %v3245
        %v3277 = vadd.f32 %v3208, %v3246
        %v3278 = vadd.f32 %v3209, %v3247
        %v3279 = vadd.f32 %v3210, %v3248
        %v3280 = vadd.f32 %v3211, %v3249
        %v3281 = vadd.f32 %v3212, %v3250
        %v3282 = vadd.f32 %v3213, %v3251
        %v3283 = vadd.f32 %v3214, %v3252
        %v3284 = vadd.f32 %v3215, %v3253
        %v3285 = vadd.f32 %v3216, %v3254
        %v3286 = vadd.f32 %v3217, %v3255
        %v3287 = vadd.f32 %v3218, %v3256
        %v3288 = vadd.f32 %v3219, %v3243
        %v3289 = vadd.f32 %v3220, %v3257
        %v3290 = vld [vmem:[%s3 + $0x3b] sm:$0x1]
        %v3291 = vlaneseq
        %v3292 = vshrl.u32 %v3291, 7
        %v3293 = vsub.s32 0, %v3292
        %v3294 = vrot.slane %v3290, %v3293
        %v3295 = vmul.f32 %v643, %v3294
        %v3296 = vmul.f32 %v3294, 0.0
        %v3297 = vmul.f32 %v644, %v3294
        %v3298 = vmul.f32 %v645, %v3294
        %v3299 = vmul.f32 %v646, %v3294
        %v3300 = vmul.f32 %v647, %v3294
        %v3301 = vmul.f32 %v648, %v3294
        %v3309 = vrot.slane %v3295, 5
        %v3310 = vrot.slane %v3296, 5
        %v3311 = vsel %vm2923, %v3309, %v3310
        %v3312 = vrot.slane %v3297, 5
        %v3313 = vsel %vm2923, %v3312, %v3310
        %v3314 = vrot.slane %v3298, 5
        %v3315 = vsel %vm2923, %v3314, %v3310
        %v3316 = vrot.slane %v3299, 5
        %v3317 = vsel %vm2923, %v3316, %v3310
        %v3318 = vrot.slane %v3300, 5
        %v3319 = vsel %vm2923, %v3318, %v3310
        %v3320 = vrot.slane %v3301, 5
        %v3321 = vsel %vm2923, %v3320, %v3310
        %v3322 = vsel %vm2923, %v3310, %v3310
        %v3337 = vadd.f32 %v3274, %v3309
        %v3338 = vadd.f32 %v3275, %v3311
        %v3339 = vadd.f32 %v3276, %v3312
        %v3340 = vadd.f32 %v3277, %v3313
        %v3341 = vadd.f32 %v3278, %v3314
        %v3342 = vadd.f32 %v3279, %v3315
        %v3343 = vadd.f32 %v3280, %v3316
        %v3344 = vadd.f32 %v3281, %v3317
        %v3345 = vadd.f32 %v3282, %v3318
        %v3346 = vadd.f32 %v3283, %v3319
        %v3347 = vadd.f32 %v3284, %v3320
        %v3348 = vadd.f32 %v3285, %v3321
        %v3349 = vadd.f32 %v3286, %v3310
        %v3350 = vadd.f32 %v3287, %v3322
        %v3351 = vadd.f32 %v3288, %v3310
        %v3352 = vadd.f32 %v3289, %v3322
        %v3353 = vld [vmem:[%s3 + $0x44] sm:$0x1]
        %v3354 = vlaneseq
        %v3355 = vshrl.u32 %v3354, 7
        %v3356 = vsub.s32 0, %v3355
        %v3357 = vrot.slane %v3353, %v3356
        %v3358 = vmul.f32 %v644, %v3357
        %v3359 = vmul.f32 %v3357, 0.0
        %v3360 = vmul.f32 %v645, %v3357
        %v3361 = vmul.f32 %v646, %v3357
        %v3362 = vmul.f32 %v647, %v3357
        %v3363 = vmul.f32 %v648, %v3357
        %v3370 = vrot.slane %v3358, 5
        %v3371 = vrot.slane %v3359, 5
        %v3372 = vsel %vm2923, %v3370, %v3371
        %v3373 = vrot.slane %v3360, 5
        %v3374 = vsel %vm2923, %v3373, %v3371
        %v3375 = vrot.slane %v3361, 5
        %v3376 = vsel %vm2923, %v3375, %v3371
        %v3377 = vrot.slane %v3362, 5
        %v3378 = vsel %vm2923, %v3377, %v3371
        %v3379 = vrot.slane %v3363, 5
        %v3380 = vsel %vm2923, %v3379, %v3371
        %v3381 = vsel %vm2923, %v3371, %v3371
        %v3394 = vadd.f32 %v3337, %v3370
        %v3395 = vadd.f32 %v3338, %v3372
        %v3396 = vadd.f32 %v3339, %v3373
        %v3397 = vadd.f32 %v3340, %v3374
        %v3398 = vadd.f32 %v3341, %v3375
        %v3399 = vadd.f32 %v3342, %v3376
        %v3400 = vadd.f32 %v3343, %v3377
        %v3401 = vadd.f32 %v3344, %v3378
        %v3402 = vadd.f32 %v3345, %v3379
        %v3403 = vadd.f32 %v3346, %v3380
        %v3404 = vadd.f32 %v3347, %v3371
        %v3405 = vadd.f32 %v3348, %v3381
        %v3406 = vadd.f32 %v3349, %v3371
        %v3407 = vadd.f32 %v3350, %v3381
        %v3408 = vadd.f32 %v3351, %v3371
        %v3409 = vadd.f32 %v3352, %v3381
        %v3410 = vld [vmem:[%s3 + $0x4d] sm:$0x1]
        %v3411 = vlaneseq
        %v3412 = vshrl.u32 %v3411, 7
        %v3413 = vsub.s32 0, %v3412
        %v3414 = vrot.slane %v3410, %v3413
        %v3415 = vmul.f32 %v645, %v3414
        %v3416 = vmul.f32 %v3414, 0.0
        %v3417 = vmul.f32 %v646, %v3414
        %v3418 = vmul.f32 %v647, %v3414
        %v3419 = vmul.f32 %v648, %v3414
        %v3425 = vrot.slane %v3415, 5
        %v3426 = vrot.slane %v3416, 5
        %v3427 = vsel %vm2923, %v3425, %v3426
        %v3428 = vrot.slane %v3417, 5
        %v3429 = vsel %vm2923, %v3428, %v3426
        %v3430 = vrot.slane %v3418, 5
        %v3431 = vsel %vm2923, %v3430, %v3426
        %v3432 = vrot.slane %v3419, 5
        %v3433 = vsel %vm2923, %v3432, %v3426
        %v3434 = vsel %vm2923, %v3426, %v3426
        %v3445 = vadd.f32 %v3394, %v3425
        %v3446 = vadd.f32 %v3395, %v3427
        %v3447 = vadd.f32 %v3396, %v3428
        %v3448 = vadd.f32 %v3397, %v3429
        %v3449 = vadd.f32 %v3398, %v3430
        %v3450 = vadd.f32 %v3399, %v3431
        %v3451 = vadd.f32 %v3400, %v3432
        %v3452 = vadd.f32 %v3401, %v3433
        %v3453 = vadd.f32 %v3402, %v3426
        %v3454 = vadd.f32 %v3403, %v3434
        %v3455 = vadd.f32 %v3404, %v3426
        %v3456 = vadd.f32 %v3405, %v3434
        %v3457 = vadd.f32 %v3406, %v3426
        %v3458 = vadd.f32 %v3407, %v3434
        %v3459 = vadd.f32 %v3408, %v3426
        %v3460 = vadd.f32 %v3409, %v3434
        %v3461 = vld [vmem:[%s3 + $0x6] sm:$0x1]
        %v3462 = vlaneseq
        %v3463 = vshrl.u32 %v3462, 7
        %v3464 = vsub.s32 0, %v3463
        %v3465 = vrot.slane %v3461, %v3464
        %v3466 = vmul.f32 %v3465, 0.0
        %v3467 = vmul.f32 %v641, %v3465
        %v3468 = vmul.f32 %v642, %v3465
        %v3469 = vmul.f32 %v643, %v3465
        %v3470 = vmul.f32 %v644, %v3465
        %vm3476 = vcmask 1041408
        %v3477 = vrot.slane %v3466, 6
        %v3478 = vsel %vm3476, %v3477, %v3477
        %v3479 = vrot.slane %v3467, 6
        %v3480 = vsel %vm3476, %v3479, %v3477
        %v3481 = vrot.slane %v3468, 6
        %v3482 = vsel %vm3476, %v3481, %v3477
        %v3483 = vrot.slane %v3469, 6
        %v3484 = vsel %vm3476, %v3483, %v3477
        %v3485 = vrot.slane %v3470, 6
        %v3486 = vsel %vm3476, %v3485, %v3477
        %v3497 = vadd.f32 %v3445, %v3477
        %v3498 = vadd.f32 %v3446, %v3478
        %v3499 = vadd.f32 %v3447, %v3477
        %v3500 = vadd.f32 %v3448, %v3478
        %v3501 = vadd.f32 %v3449, %v3477
        %v3502 = vadd.f32 %v3450, %v3478
        %v3503 = vadd.f32 %v3451, %v3477
        %v3504 = vadd.f32 %v3452, %v3478
        %v3505 = vadd.f32 %v3453, %v3479
        %v3506 = vadd.f32 %v3454, %v3480
        %v3507 = vadd.f32 %v3455, %v3481
        %v3508 = vadd.f32 %v3456, %v3482
        %v3509 = vadd.f32 %v3457, %v3483
        %v3510 = vadd.f32 %v3458, %v3484
        %v3511 = vadd.f32 %v3459, %v3485
        %v3512 = vadd.f32 %v3460, %v3486
        %v3513 = vld [vmem:[%s3 + $0xf] sm:$0x1]
        %v3514 = vlaneseq
        %v3515 = vshrl.u32 %v3514, 7
        %v3516 = vsub.s32 0, %v3515
        %v3517 = vrot.slane %v3513, %v3516
        %v3518 = vmul.f32 %v3517, 0.0
        %v3519 = vmul.f32 %v641, %v3517
        %v3520 = vmul.f32 %v642, %v3517
        %v3521 = vmul.f32 %v643, %v3517
        %v3522 = vmul.f32 %v644, %v3517
        %v3523 = vmul.f32 %v645, %v3517
        %v3530 = vrot.slane %v3518, 6
        %v3531 = vsel %vm3476, %v3530, %v3530
        %v3532 = vrot.slane %v3519, 6
        %v3533 = vsel %vm3476, %v3532, %v3530
        %v3534 = vrot.slane %v3520, 6
        %v3535 = vsel %vm3476, %v3534, %v3530
        %v3536 = vrot.slane %v3521, 6
        %v3537 = vsel %vm3476, %v3536, %v3530
        %v3538 = vrot.slane %v3522, 6
        %v3539 = vsel %vm3476, %v3538, %v3530
        %v3540 = vrot.slane %v3523, 6
        %v3541 = vsel %vm3476, %v3540, %v3530
        %v3554 = vadd.f32 %v3497, %v3530
        %v3555 = vadd.f32 %v3498, %v3531
        %v3556 = vadd.f32 %v3499, %v3530
        %v3557 = vadd.f32 %v3500, %v3531
        %v3558 = vadd.f32 %v3501, %v3530
        %v3559 = vadd.f32 %v3502, %v3531
        %v3560 = vadd.f32 %v3503, %v3532
        %v3561 = vadd.f32 %v3504, %v3533
        %v3562 = vadd.f32 %v3505, %v3534
        %v3563 = vadd.f32 %v3506, %v3535
        %v3564 = vadd.f32 %v3507, %v3536
        %v3565 = vadd.f32 %v3508, %v3537
        %v3566 = vadd.f32 %v3509, %v3538
        %v3567 = vadd.f32 %v3510, %v3539
        %v3568 = vadd.f32 %v3511, %v3540
        %v3569 = vadd.f32 %v3512, %v3541
        %v3570 = vld [vmem:[%s3 + $0x18] sm:$0x1]
        %v3571 = vlaneseq
        %v3572 = vshrl.u32 %v3571, 7
        %v3573 = vsub.s32 0, %v3572
        %v3574 = vrot.slane %v3570, %v3573
        %v3575 = vmul.f32 %v3574, 0.0
        %v3576 = vmul.f32 %v641, %v3574
        %v3577 = vmul.f32 %v642, %v3574
        %v3578 = vmul.f32 %v643, %v3574
        %v3579 = vmul.f32 %v644, %v3574
        %v3580 = vmul.f32 %v645, %v3574
        %v3581 = vmul.f32 %v646, %v3574
        %v3589 = vrot.slane %v3575, 6
        %v3590 = vsel %vm3476, %v3589, %v3589
        %v3591 = vrot.slane %v3576, 6
        %v3592 = vsel %vm3476, %v3591, %v3589
        %v3593 = vrot.slane %v3577, 6
        %v3594 = vsel %vm3476, %v3593, %v3589
        %v3595 = vrot.slane %v3578, 6
        %v3596 = vsel %vm3476, %v3595, %v3589
        %v3597 = vrot.slane %v3579, 6
        %v3598 = vsel %vm3476, %v3597, %v3589
        %v3599 = vrot.slane %v3580, 6
        %v3600 = vsel %vm3476, %v3599, %v3589
        %v3601 = vrot.slane %v3581, 6
        %v3602 = vsel %vm3476, %v3601, %v3589
        %v3617 = vadd.f32 %v3554, %v3589
        %v3618 = vadd.f32 %v3555, %v3590
        %v3619 = vadd.f32 %v3556, %v3589
        %v3620 = vadd.f32 %v3557, %v3590
        %v3621 = vadd.f32 %v3558, %v3591
        %v3622 = vadd.f32 %v3559, %v3592
        %v3623 = vadd.f32 %v3560, %v3593
        %v3624 = vadd.f32 %v3561, %v3594
        %v3625 = vadd.f32 %v3562, %v3595
        %v3626 = vadd.f32 %v3563, %v3596
        %v3627 = vadd.f32 %v3564, %v3597
        %v3628 = vadd.f32 %v3565, %v3598
        %v3629 = vadd.f32 %v3566, %v3599
        %v3630 = vadd.f32 %v3567, %v3600
        %v3631 = vadd.f32 %v3568, %v3601
        %v3632 = vadd.f32 %v3569, %v3602
        %v3633 = vld [vmem:[%s3 + $0x21] sm:$0x1]
        %v3634 = vlaneseq
        %v3635 = vshrl.u32 %v3634, 7
        %v3636 = vsub.s32 0, %v3635
        %v3637 = vrot.slane %v3633, %v3636
        %v3638 = vmul.f32 %v3637, 0.0
        %v3639 = vmul.f32 %v641, %v3637
        %v3640 = vmul.f32 %v642, %v3637
        %v3641 = vmul.f32 %v643, %v3637
        %v3642 = vmul.f32 %v644, %v3637
        %v3643 = vmul.f32 %v645, %v3637
        %v3644 = vmul.f32 %v646, %v3637
        %v3645 = vmul.f32 %v647, %v3637
        %v3654 = vrot.slane %v3638, 6
        %v3655 = vsel %vm3476, %v3654, %v3654
        %v3656 = vrot.slane %v3639, 6
        %v3657 = vsel %vm3476, %v3656, %v3654
        %v3658 = vrot.slane %v3640, 6
        %v3659 = vsel %vm3476, %v3658, %v3654
        %v3660 = vrot.slane %v3641, 6
        %v3661 = vsel %vm3476, %v3660, %v3654
        %v3662 = vrot.slane %v3642, 6
        %v3663 = vsel %vm3476, %v3662, %v3654
        %v3664 = vrot.slane %v3643, 6
        %v3665 = vsel %vm3476, %v3664, %v3654
        %v3666 = vrot.slane %v3644, 6
        %v3667 = vsel %vm3476, %v3666, %v3654
        %v3668 = vrot.slane %v3645, 6
        %v3669 = vsel %vm3476, %v3668, %v3654
        %v3686 = vadd.f32 %v3617, %v3654
        %v3687 = vadd.f32 %v3618, %v3655
        %v3688 = vadd.f32 %v3619, %v3656
        %v3689 = vadd.f32 %v3620, %v3657
        %v3690 = vadd.f32 %v3621, %v3658
        %v3691 = vadd.f32 %v3622, %v3659
        %v3692 = vadd.f32 %v3623, %v3660
        %v3693 = vadd.f32 %v3624, %v3661
        %v3694 = vadd.f32 %v3625, %v3662
        %v3695 = vadd.f32 %v3626, %v3663
        %v3696 = vadd.f32 %v3627, %v3664
        %v3697 = vadd.f32 %v3628, %v3665
        %v3698 = vadd.f32 %v3629, %v3666
        %v3699 = vadd.f32 %v3630, %v3667
        %v3700 = vadd.f32 %v3631, %v3668
        %v3701 = vadd.f32 %v3632, %v3669
        %v3702 = vld [vmem:[%s3 + $0x2a] sm:$0x1]
        %v3703 = vlaneseq
        %v3704 = vshrl.u32 %v3703, 7
        %v3705 = vsub.s32 0, %v3704
        %v3706 = vrot.slane %v3702, %v3705
        %v3707 = vmul.f32 %v641, %v3706
        %v3708 = vmul.f32 %v3706, 0.0
        %v3709 = vmul.f32 %v642, %v3706
        %v3710 = vmul.f32 %v643, %v3706
        %v3711 = vmul.f32 %v644, %v3706
        %v3712 = vmul.f32 %v645, %v3706
        %v3713 = vmul.f32 %v646, %v3706
        %v3714 = vmul.f32 %v647, %v3706
        %v3715 = vmul.f32 %v648, %v3706
        %v3725 = vrot.slane %v3707, 6
        %v3726 = vrot.slane %v3708, 6
        %v3727 = vsel %vm3476, %v3725, %v3726
        %v3728 = vrot.slane %v3709, 6
        %v3729 = vsel %vm3476, %v3728, %v3726
        %v3730 = vrot.slane %v3710, 6
        %v3731 = vsel %vm3476, %v3730, %v3726
        %v3732 = vrot.slane %v3711, 6
        %v3733 = vsel %vm3476, %v3732, %v3726
        %v3734 = vrot.slane %v3712, 6
        %v3735 = vsel %vm3476, %v3734, %v3726
        %v3736 = vrot.slane %v3713, 6
        %v3737 = vsel %vm3476, %v3736, %v3726
        %v3738 = vrot.slane %v3714, 6
        %v3739 = vsel %vm3476, %v3738, %v3726
        %v3740 = vrot.slane %v3715, 6
        %v3741 = vsel %vm3476, %v3740, %v3726
        %v3758 = vadd.f32 %v3686, %v3725
        %v3759 = vadd.f32 %v3687, %v3727
        %v3760 = vadd.f32 %v3688, %v3728
        %v3761 = vadd.f32 %v3689, %v3729
        %v3762 = vadd.f32 %v3690, %v3730
        %v3763 = vadd.f32 %v3691, %v3731
        %v3764 = vadd.f32 %v3692, %v3732
        %v3765 = vadd.f32 %v3693, %v3733
        %v3766 = vadd.f32 %v3694, %v3734
        %v3767 = vadd.f32 %v3695, %v3735
        %v3768 = vadd.f32 %v3696, %v3736
        %v3769 = vadd.f32 %v3697, %v3737
        %v3770 = vadd.f32 %v3698, %v3738
        %v3771 = vadd.f32 %v3699, %v3739
        %v3772 = vadd.f32 %v3700, %v3740
        %v3773 = vadd.f32 %v3701, %v3741
        %v3774 = vld [vmem:[%s3 + $0x33] sm:$0x1]
        %v3775 = vlaneseq
        %v3776 = vshrl.u32 %v3775, 7
        %v3777 = vsub.s32 0, %v3776
        %v3778 = vrot.slane %v3774, %v3777
        %v3779 = vmul.f32 %v642, %v3778
        %v3780 = vmul.f32 %v3778, 0.0
        %v3781 = vmul.f32 %v643, %v3778
        %v3782 = vmul.f32 %v644, %v3778
        %v3783 = vmul.f32 %v645, %v3778
        %v3784 = vmul.f32 %v646, %v3778
        %v3785 = vmul.f32 %v647, %v3778
        %v3786 = vmul.f32 %v648, %v3778
        %v3795 = vrot.slane %v3779, 6
        %v3796 = vrot.slane %v3780, 6
        %v3797 = vsel %vm3476, %v3795, %v3796
        %v3798 = vrot.slane %v3781, 6
        %v3799 = vsel %vm3476, %v3798, %v3796
        %v3800 = vrot.slane %v3782, 6
        %v3801 = vsel %vm3476, %v3800, %v3796
        %v3802 = vrot.slane %v3783, 6
        %v3803 = vsel %vm3476, %v3802, %v3796
        %v3804 = vrot.slane %v3784, 6
        %v3805 = vsel %vm3476, %v3804, %v3796
        %v3806 = vrot.slane %v3785, 6
        %v3807 = vsel %vm3476, %v3806, %v3796
        %v3808 = vrot.slane %v3786, 6
        %v3809 = vsel %vm3476, %v3808, %v3796
        %v3810 = vsel %vm3476, %v3796, %v3796
        %v3827 = vadd.f32 %v3758, %v3795
        %v3828 = vadd.f32 %v3759, %v3797
        %v3829 = vadd.f32 %v3760, %v3798
        %v3830 = vadd.f32 %v3761, %v3799
        %v3831 = vadd.f32 %v3762, %v3800
        %v3832 = vadd.f32 %v3763, %v3801
        %v3833 = vadd.f32 %v3764, %v3802
        %v3834 = vadd.f32 %v3765, %v3803
        %v3835 = vadd.f32 %v3766, %v3804
        %v3836 = vadd.f32 %v3767, %v3805
        %v3837 = vadd.f32 %v3768, %v3806
        %v3838 = vadd.f32 %v3769, %v3807
        %v3839 = vadd.f32 %v3770, %v3808
        %v3840 = vadd.f32 %v3771, %v3809
        %v3841 = vadd.f32 %v3772, %v3796
        %v3842 = vadd.f32 %v3773, %v3810
        %v3843 = vld [vmem:[%s3 + $0x3c] sm:$0x1]
        %v3844 = vlaneseq
        %v3845 = vshrl.u32 %v3844, 7
        %v3846 = vsub.s32 0, %v3845
        %v3847 = vrot.slane %v3843, %v3846
        %v3848 = vmul.f32 %v643, %v3847
        %v3849 = vmul.f32 %v3847, 0.0
        %v3850 = vmul.f32 %v644, %v3847
        %v3851 = vmul.f32 %v645, %v3847
        %v3852 = vmul.f32 %v646, %v3847
        %v3853 = vmul.f32 %v647, %v3847
        %v3854 = vmul.f32 %v648, %v3847
        %v3862 = vrot.slane %v3848, 6
        %v3863 = vrot.slane %v3849, 6
        %v3864 = vsel %vm3476, %v3862, %v3863
        %v3865 = vrot.slane %v3850, 6
        %v3866 = vsel %vm3476, %v3865, %v3863
        %v3867 = vrot.slane %v3851, 6
        %v3868 = vsel %vm3476, %v3867, %v3863
        %v3869 = vrot.slane %v3852, 6
        %v3870 = vsel %vm3476, %v3869, %v3863
        %v3871 = vrot.slane %v3853, 6
        %v3872 = vsel %vm3476, %v3871, %v3863
        %v3873 = vrot.slane %v3854, 6
        %v3874 = vsel %vm3476, %v3873, %v3863
        %v3875 = vsel %vm3476, %v3863, %v3863
        %v3890 = vadd.f32 %v3827, %v3862
        %v3891 = vadd.f32 %v3828, %v3864
        %v3892 = vadd.f32 %v3829, %v3865
        %v3893 = vadd.f32 %v3830, %v3866
        %v3894 = vadd.f32 %v3831, %v3867
        %v3895 = vadd.f32 %v3832, %v3868
        %v3896 = vadd.f32 %v3833, %v3869
        %v3897 = vadd.f32 %v3834, %v3870
        %v3898 = vadd.f32 %v3835, %v3871
        %v3899 = vadd.f32 %v3836, %v3872
        %v3900 = vadd.f32 %v3837, %v3873
        %v3901 = vadd.f32 %v3838, %v3874
        %v3902 = vadd.f32 %v3839, %v3863
        %v3903 = vadd.f32 %v3840, %v3875
        %v3904 = vadd.f32 %v3841, %v3863
        %v3905 = vadd.f32 %v3842, %v3875
        %v3906 = vld [vmem:[%s3 + $0x45] sm:$0x1]
        %v3907 = vlaneseq
        %v3908 = vshrl.u32 %v3907, 7
        %v3909 = vsub.s32 0, %v3908
        %v3910 = vrot.slane %v3906, %v3909
        %v3911 = vmul.f32 %v644, %v3910
        %v3912 = vmul.f32 %v3910, 0.0
        %v3913 = vmul.f32 %v645, %v3910
        %v3914 = vmul.f32 %v646, %v3910
        %v3915 = vmul.f32 %v647, %v3910
        %v3916 = vmul.f32 %v648, %v3910
        %v3923 = vrot.slane %v3911, 6
        %v3924 = vrot.slane %v3912, 6
        %v3925 = vsel %vm3476, %v3923, %v3924
        %v3926 = vrot.slane %v3913, 6
        %v3927 = vsel %vm3476, %v3926, %v3924
        %v3928 = vrot.slane %v3914, 6
        %v3929 = vsel %vm3476, %v3928, %v3924
        %v3930 = vrot.slane %v3915, 6
        %v3931 = vsel %vm3476, %v3930, %v3924
        %v3932 = vrot.slane %v3916, 6
        %v3933 = vsel %vm3476, %v3932, %v3924
        %v3934 = vsel %vm3476, %v3924, %v3924
        %v3947 = vadd.f32 %v3890, %v3923
        %v3948 = vadd.f32 %v3891, %v3925
        %v3949 = vadd.f32 %v3892, %v3926
        %v3950 = vadd.f32 %v3893, %v3927
        %v3951 = vadd.f32 %v3894, %v3928
        %v3952 = vadd.f32 %v3895, %v3929
        %v3953 = vadd.f32 %v3896, %v3930
        %v3954 = vadd.f32 %v3897, %v3931
        %v3955 = vadd.f32 %v3898, %v3932
        %v3956 = vadd.f32 %v3899, %v3933
        %v3957 = vadd.f32 %v3900, %v3924
        %v3958 = vadd.f32 %v3901, %v3934
        %v3959 = vadd.f32 %v3902, %v3924
        %v3960 = vadd.f32 %v3903, %v3934
        %v3961 = vadd.f32 %v3904, %v3924
        %v3962 = vadd.f32 %v3905, %v3934
        %v3963 = vld [vmem:[%s3 + $0x4e] sm:$0x1]
        %v3964 = vlaneseq
        %v3965 = vshrl.u32 %v3964, 7
        %v3966 = vsub.s32 0, %v3965
        %v3967 = vrot.slane %v3963, %v3966
        %v3968 = vmul.f32 %v645, %v3967
        %v3969 = vmul.f32 %v3967, 0.0
        %v3970 = vmul.f32 %v646, %v3967
        %v3971 = vmul.f32 %v647, %v3967
        %v3972 = vmul.f32 %v648, %v3967
        %v3978 = vrot.slane %v3968, 6
        %v3979 = vrot.slane %v3969, 6
        %v3980 = vsel %vm3476, %v3978, %v3979
        %v3981 = vrot.slane %v3970, 6
        %v3982 = vsel %vm3476, %v3981, %v3979
        %v3983 = vrot.slane %v3971, 6
        %v3984 = vsel %vm3476, %v3983, %v3979
        %v3985 = vrot.slane %v3972, 6
        %v3986 = vsel %vm3476, %v3985, %v3979
        %v3987 = vsel %vm3476, %v3979, %v3979
        %v3998 = vadd.f32 %v3947, %v3978
        %v3999 = vadd.f32 %v3948, %v3980
        %v4000 = vadd.f32 %v3949, %v3981
        %v4001 = vadd.f32 %v3950, %v3982
        %v4002 = vadd.f32 %v3951, %v3983
        %v4003 = vadd.f32 %v3952, %v3984
        %v4004 = vadd.f32 %v3953, %v3985
        %v4005 = vadd.f32 %v3954, %v3986
        %v4006 = vadd.f32 %v3955, %v3979
        %v4007 = vadd.f32 %v3956, %v3987
        %v4008 = vadd.f32 %v3957, %v3979
        %v4009 = vadd.f32 %v3958, %v3987
        %v4010 = vadd.f32 %v3959, %v3979
        %v4011 = vadd.f32 %v3960, %v3987
        %v4012 = vadd.f32 %v3961, %v3979
        %v4013 = vadd.f32 %v3962, %v3987
        %v4014 = vld [vmem:[%s3 + $0x7] sm:$0x1]
        %v4015 = vlaneseq
        %v4016 = vshrl.u32 %v4015, 7
        %v4017 = vsub.s32 0, %v4016
        %v4018 = vrot.slane %v4014, %v4017
        %v4019 = vmul.f32 %v4018, 0.0
        %v4020 = vmul.f32 %v641, %v4018
        %v4021 = vmul.f32 %v642, %v4018
        %v4022 = vmul.f32 %v643, %v4018
        %v4023 = vmul.f32 %v644, %v4018
        %vm4029 = vcmask 1040384
        %v4030 = vrot.slane %v4019, 7
        %v4031 = vsel %vm4029, %v4030, %v4030
        %v4032 = vrot.slane %v4020, 7
        %v4033 = vsel %vm4029, %v4032, %v4030
        %v4034 = vrot.slane %v4021, 7
        %v4035 = vsel %vm4029, %v4034, %v4030
        %v4036 = vrot.slane %v4022, 7
        %v4037 = vsel %vm4029, %v4036, %v4030
        %v4038 = vrot.slane %v4023, 7
        %v4039 = vsel %vm4029, %v4038, %v4030
        %v4050 = vadd.f32 %v3998, %v4030
        %v4051 = vadd.f32 %v3999, %v4031
        %v4052 = vadd.f32 %v4000, %v4030
        %v4053 = vadd.f32 %v4001, %v4031
        %v4054 = vadd.f32 %v4002, %v4030
        %v4055 = vadd.f32 %v4003, %v4031
        %v4056 = vadd.f32 %v4004, %v4030
        %v4057 = vadd.f32 %v4005, %v4031
        %v4058 = vadd.f32 %v4006, %v4032
        %v4059 = vadd.f32 %v4007, %v4033
        %v4060 = vadd.f32 %v4008, %v4034
        %v4061 = vadd.f32 %v4009, %v4035
        %v4062 = vadd.f32 %v4010, %v4036
        %v4063 = vadd.f32 %v4011, %v4037
        %v4064 = vadd.f32 %v4012, %v4038
        %v4065 = vadd.f32 %v4013, %v4039
        %v4066 = vld [vmem:[%s3 + $0x10] sm:$0x1]
        %v4067 = vlaneseq
        %v4068 = vshrl.u32 %v4067, 7
        %v4069 = vsub.s32 0, %v4068
        %v4070 = vrot.slane %v4066, %v4069
        %v4071 = vmul.f32 %v4070, 0.0
        %v4072 = vmul.f32 %v641, %v4070
        %v4073 = vmul.f32 %v642, %v4070
        %v4074 = vmul.f32 %v643, %v4070
        %v4075 = vmul.f32 %v644, %v4070
        %v4076 = vmul.f32 %v645, %v4070
        %v4083 = vrot.slane %v4071, 7
        %v4084 = vsel %vm4029, %v4083, %v4083
        %v4085 = vrot.slane %v4072, 7
        %v4086 = vsel %vm4029, %v4085, %v4083
        %v4087 = vrot.slane %v4073, 7
        %v4088 = vsel %vm4029, %v4087, %v4083
        %v4089 = vrot.slane %v4074, 7
        %v4090 = vsel %vm4029, %v4089, %v4083
        %v4091 = vrot.slane %v4075, 7
        %v4092 = vsel %vm4029, %v4091, %v4083
        %v4093 = vrot.slane %v4076, 7
        %v4094 = vsel %vm4029, %v4093, %v4083
        %v4107 = vadd.f32 %v4050, %v4083
        %v4108 = vadd.f32 %v4051, %v4084
        %v4109 = vadd.f32 %v4052, %v4083
        %v4110 = vadd.f32 %v4053, %v4084
        %v4111 = vadd.f32 %v4054, %v4083
        %v4112 = vadd.f32 %v4055, %v4084
        %v4113 = vadd.f32 %v4056, %v4085
        %v4114 = vadd.f32 %v4057, %v4086
        %v4115 = vadd.f32 %v4058, %v4087
        %v4116 = vadd.f32 %v4059, %v4088
        %v4117 = vadd.f32 %v4060, %v4089
        %v4118 = vadd.f32 %v4061, %v4090
        %v4119 = vadd.f32 %v4062, %v4091
        %v4120 = vadd.f32 %v4063, %v4092
        %v4121 = vadd.f32 %v4064, %v4093
        %v4122 = vadd.f32 %v4065, %v4094
        %v4123 = vld [vmem:[%s3 + $0x19] sm:$0x1]
        %v4124 = vlaneseq
        %v4125 = vshrl.u32 %v4124, 7
        %v4126 = vsub.s32 0, %v4125
        %v4127 = vrot.slane %v4123, %v4126
        %v4128 = vmul.f32 %v4127, 0.0
        %v4129 = vmul.f32 %v641, %v4127
        %v4130 = vmul.f32 %v642, %v4127
        %v4131 = vmul.f32 %v643, %v4127
        %v4132 = vmul.f32 %v644, %v4127
        %v4133 = vmul.f32 %v645, %v4127
        %v4134 = vmul.f32 %v646, %v4127
        %v4142 = vrot.slane %v4128, 7
        %v4143 = vsel %vm4029, %v4142, %v4142
        %v4144 = vrot.slane %v4129, 7
        %v4145 = vsel %vm4029, %v4144, %v4142
        %v4146 = vrot.slane %v4130, 7
        %v4147 = vsel %vm4029, %v4146, %v4142
        %v4148 = vrot.slane %v4131, 7
        %v4149 = vsel %vm4029, %v4148, %v4142
        %v4150 = vrot.slane %v4132, 7
        %v4151 = vsel %vm4029, %v4150, %v4142
        %v4152 = vrot.slane %v4133, 7
        %v4153 = vsel %vm4029, %v4152, %v4142
        %v4154 = vrot.slane %v4134, 7
        %v4155 = vsel %vm4029, %v4154, %v4142
        %v4170 = vadd.f32 %v4107, %v4142
        %v4171 = vadd.f32 %v4108, %v4143
        %v4172 = vadd.f32 %v4109, %v4142
        %v4173 = vadd.f32 %v4110, %v4143
        %v4174 = vadd.f32 %v4111, %v4144
        %v4175 = vadd.f32 %v4112, %v4145
        %v4176 = vadd.f32 %v4113, %v4146
        %v4177 = vadd.f32 %v4114, %v4147
        %v4178 = vadd.f32 %v4115, %v4148
        %v4179 = vadd.f32 %v4116, %v4149
        %v4180 = vadd.f32 %v4117, %v4150
        %v4181 = vadd.f32 %v4118, %v4151
        %v4182 = vadd.f32 %v4119, %v4152
        %v4183 = vadd.f32 %v4120, %v4153
        %v4184 = vadd.f32 %v4121, %v4154
        %v4185 = vadd.f32 %v4122, %v4155
        %v4186 = vld [vmem:[%s3 + $0x22] sm:$0x1]
        %v4187 = vlaneseq
        %v4188 = vshrl.u32 %v4187, 7
        %v4189 = vsub.s32 0, %v4188
        %v4190 = vrot.slane %v4186, %v4189
        %v4191 = vmul.f32 %v4190, 0.0
        %v4192 = vmul.f32 %v641, %v4190
        %v4193 = vmul.f32 %v642, %v4190
        %v4194 = vmul.f32 %v643, %v4190
        %v4195 = vmul.f32 %v644, %v4190
        %v4196 = vmul.f32 %v645, %v4190
        %v4197 = vmul.f32 %v646, %v4190
        %v4198 = vmul.f32 %v647, %v4190
        %v4207 = vrot.slane %v4191, 7
        %v4208 = vsel %vm4029, %v4207, %v4207
        %v4209 = vrot.slane %v4192, 7
        %v4210 = vsel %vm4029, %v4209, %v4207
        %v4211 = vrot.slane %v4193, 7
        %v4212 = vsel %vm4029, %v4211, %v4207
        %v4213 = vrot.slane %v4194, 7
        %v4214 = vsel %vm4029, %v4213, %v4207
        %v4215 = vrot.slane %v4195, 7
        %v4216 = vsel %vm4029, %v4215, %v4207
        %v4217 = vrot.slane %v4196, 7
        %v4218 = vsel %vm4029, %v4217, %v4207
        %v4219 = vrot.slane %v4197, 7
        %v4220 = vsel %vm4029, %v4219, %v4207
        %v4221 = vrot.slane %v4198, 7
        %v4222 = vsel %vm4029, %v4221, %v4207
        %v4239 = vadd.f32 %v4170, %v4207
        %v4240 = vadd.f32 %v4171, %v4208
        %v4241 = vadd.f32 %v4172, %v4209
        %v4242 = vadd.f32 %v4173, %v4210
        %v4243 = vadd.f32 %v4174, %v4211
        %v4244 = vadd.f32 %v4175, %v4212
        %v4245 = vadd.f32 %v4176, %v4213
        %v4246 = vadd.f32 %v4177, %v4214
        %v4247 = vadd.f32 %v4178, %v4215
        %v4248 = vadd.f32 %v4179, %v4216
        %v4249 = vadd.f32 %v4180, %v4217
        %v4250 = vadd.f32 %v4181, %v4218
        %v4251 = vadd.f32 %v4182, %v4219
        %v4252 = vadd.f32 %v4183, %v4220
        %v4253 = vadd.f32 %v4184, %v4221
        %v4254 = vadd.f32 %v4185, %v4222
        %v4255 = vld [vmem:[%s3 + $0x2b] sm:$0x1]
        %v4256 = vlaneseq
        %v4257 = vshrl.u32 %v4256, 7
        %v4258 = vsub.s32 0, %v4257
        %v4259 = vrot.slane %v4255, %v4258
        %v4260 = vmul.f32 %v641, %v4259
        %v4261 = vmul.f32 %v4259, 0.0
        %v4262 = vmul.f32 %v642, %v4259
        %v4263 = vmul.f32 %v643, %v4259
        %v4264 = vmul.f32 %v644, %v4259
        %v4265 = vmul.f32 %v645, %v4259
        %v4266 = vmul.f32 %v646, %v4259
        %v4267 = vmul.f32 %v647, %v4259
        %v4268 = vmul.f32 %v648, %v4259
        %v4278 = vrot.slane %v4260, 7
        %v4279 = vrot.slane %v4261, 7
        %v4280 = vsel %vm4029, %v4278, %v4279
        %v4281 = vrot.slane %v4262, 7
        %v4282 = vsel %vm4029, %v4281, %v4279
        %v4283 = vrot.slane %v4263, 7
        %v4284 = vsel %vm4029, %v4283, %v4279
        %v4285 = vrot.slane %v4264, 7
        %v4286 = vsel %vm4029, %v4285, %v4279
        %v4287 = vrot.slane %v4265, 7
        %v4288 = vsel %vm4029, %v4287, %v4279
        %v4289 = vrot.slane %v4266, 7
        %v4290 = vsel %vm4029, %v4289, %v4279
        %v4291 = vrot.slane %v4267, 7
        %v4292 = vsel %vm4029, %v4291, %v4279
        %v4293 = vrot.slane %v4268, 7
        %v4294 = vsel %vm4029, %v4293, %v4279
        %v4311 = vadd.f32 %v4239, %v4278
        %v4312 = vadd.f32 %v4240, %v4280
        %v4313 = vadd.f32 %v4241, %v4281
        %v4314 = vadd.f32 %v4242, %v4282
        %v4315 = vadd.f32 %v4243, %v4283
        %v4316 = vadd.f32 %v4244, %v4284
        %v4317 = vadd.f32 %v4245, %v4285
        %v4318 = vadd.f32 %v4246, %v4286
        %v4319 = vadd.f32 %v4247, %v4287
        %v4320 = vadd.f32 %v4248, %v4288
        %v4321 = vadd.f32 %v4249, %v4289
        %v4322 = vadd.f32 %v4250, %v4290
        %v4323 = vadd.f32 %v4251, %v4291
        %v4324 = vadd.f32 %v4252, %v4292
        %v4325 = vadd.f32 %v4253, %v4293
        %v4326 = vadd.f32 %v4254, %v4294
        %v4327 = vld [vmem:[%s3 + $0x34] sm:$0x1]
        %v4328 = vlaneseq
        %v4329 = vshrl.u32 %v4328, 7
        %v4330 = vsub.s32 0, %v4329
        %v4331 = vrot.slane %v4327, %v4330
        %v4332 = vmul.f32 %v642, %v4331
        %v4333 = vmul.f32 %v4331, 0.0
        %v4334 = vmul.f32 %v643, %v4331
        %v4335 = vmul.f32 %v644, %v4331
        %v4336 = vmul.f32 %v645, %v4331
        %v4337 = vmul.f32 %v646, %v4331
        %v4338 = vmul.f32 %v647, %v4331
        %v4339 = vmul.f32 %v648, %v4331
        %v4348 = vrot.slane %v4332, 7
        %v4349 = vrot.slane %v4333, 7
        %v4350 = vsel %vm4029, %v4348, %v4349
        %v4351 = vrot.slane %v4334, 7
        %v4352 = vsel %vm4029, %v4351, %v4349
        %v4353 = vrot.slane %v4335, 7
        %v4354 = vsel %vm4029, %v4353, %v4349
        %v4355 = vrot.slane %v4336, 7
        %v4356 = vsel %vm4029, %v4355, %v4349
        %v4357 = vrot.slane %v4337, 7
        %v4358 = vsel %vm4029, %v4357, %v4349
        %v4359 = vrot.slane %v4338, 7
        %v4360 = vsel %vm4029, %v4359, %v4349
        %v4361 = vrot.slane %v4339, 7
        %v4362 = vsel %vm4029, %v4361, %v4349
        %v4363 = vsel %vm4029, %v4349, %v4349
        %v4380 = vadd.f32 %v4311, %v4348
        %v4381 = vadd.f32 %v4312, %v4350
        %v4382 = vadd.f32 %v4313, %v4351
        %v4383 = vadd.f32 %v4314, %v4352
        %v4384 = vadd.f32 %v4315, %v4353
        %v4385 = vadd.f32 %v4316, %v4354
        %v4386 = vadd.f32 %v4317, %v4355
        %v4387 = vadd.f32 %v4318, %v4356
        %v4388 = vadd.f32 %v4319, %v4357
        %v4389 = vadd.f32 %v4320, %v4358
        %v4390 = vadd.f32 %v4321, %v4359
        %v4391 = vadd.f32 %v4322, %v4360
        %v4392 = vadd.f32 %v4323, %v4361
        %v4393 = vadd.f32 %v4324, %v4362
        %v4394 = vadd.f32 %v4325, %v4349
        %v4395 = vadd.f32 %v4326, %v4363
        %v4396 = vld [vmem:[%s3 + $0x3d] sm:$0x1]
        %v4397 = vlaneseq
        %v4398 = vshrl.u32 %v4397, 7
        %v4399 = vsub.s32 0, %v4398
        %v4400 = vrot.slane %v4396, %v4399
        %v4401 = vmul.f32 %v643, %v4400
        %v4402 = vmul.f32 %v4400, 0.0
        %v4403 = vmul.f32 %v644, %v4400
        %v4404 = vmul.f32 %v645, %v4400
        %v4405 = vmul.f32 %v646, %v4400
        %v4406 = vmul.f32 %v647, %v4400
        %v4407 = vmul.f32 %v648, %v4400
        %v4415 = vrot.slane %v4401, 7
        %v4416 = vrot.slane %v4402, 7
        %v4417 = vsel %vm4029, %v4415, %v4416
        %v4418 = vrot.slane %v4403, 7
        %v4419 = vsel %vm4029, %v4418, %v4416
        %v4420 = vrot.slane %v4404, 7
        %v4421 = vsel %vm4029, %v4420, %v4416
        %v4422 = vrot.slane %v4405, 7
        %v4423 = vsel %vm4029, %v4422, %v4416
        %v4424 = vrot.slane %v4406, 7
        %v4425 = vsel %vm4029, %v4424, %v4416
        %v4426 = vrot.slane %v4407, 7
        %v4427 = vsel %vm4029, %v4426, %v4416
        %v4428 = vsel %vm4029, %v4416, %v4416
        %v4443 = vadd.f32 %v4380, %v4415
        %v4444 = vadd.f32 %v4381, %v4417
        %v4445 = vadd.f32 %v4382, %v4418
        %v4446 = vadd.f32 %v4383, %v4419
        %v4447 = vadd.f32 %v4384, %v4420
        %v4448 = vadd.f32 %v4385, %v4421
        %v4449 = vadd.f32 %v4386, %v4422
        %v4450 = vadd.f32 %v4387, %v4423
        %v4451 = vadd.f32 %v4388, %v4424
        %v4452 = vadd.f32 %v4389, %v4425
        %v4453 = vadd.f32 %v4390, %v4426
        %v4454 = vadd.f32 %v4391, %v4427
        %v4455 = vadd.f32 %v4392, %v4416
        %v4456 = vadd.f32 %v4393, %v4428
        %v4457 = vadd.f32 %v4394, %v4416
        %v4458 = vadd.f32 %v4395, %v4428
        %v4459 = vld [vmem:[%s3 + $0x46] sm:$0x1]
        %v4460 = vlaneseq
        %v4461 = vshrl.u32 %v4460, 7
        %v4462 = vsub.s32 0, %v4461
        %v4463 = vrot.slane %v4459, %v4462
        %v4464 = vmul.f32 %v644, %v4463
        %v4465 = vmul.f32 %v4463, 0.0
        %v4466 = vmul.f32 %v645, %v4463
        %v4467 = vmul.f32 %v646, %v4463
        %v4468 = vmul.f32 %v647, %v4463
        %v4469 = vmul.f32 %v648, %v4463
        %v4476 = vrot.slane %v4464, 7
        %v4477 = vrot.slane %v4465, 7
        %v4478 = vsel %vm4029, %v4476, %v4477
        %v4479 = vrot.slane %v4466, 7
        %v4480 = vsel %vm4029, %v4479, %v4477
        %v4481 = vrot.slane %v4467, 7
        %v4482 = vsel %vm4029, %v4481, %v4477
        %v4483 = vrot.slane %v4468, 7
        %v4484 = vsel %vm4029, %v4483, %v4477
        %v4485 = vrot.slane %v4469, 7
        %v4486 = vsel %vm4029, %v4485, %v4477
        %v4487 = vsel %vm4029, %v4477, %v4477
        %v4500 = vadd.f32 %v4443, %v4476
        %v4501 = vadd.f32 %v4444, %v4478
        %v4502 = vadd.f32 %v4445, %v4479
        %v4503 = vadd.f32 %v4446, %v4480
        %v4504 = vadd.f32 %v4447, %v4481
        %v4505 = vadd.f32 %v4448, %v4482
        %v4506 = vadd.f32 %v4449, %v4483
        %v4507 = vadd.f32 %v4450, %v4484
        %v4508 = vadd.f32 %v4451, %v4485
        %v4509 = vadd.f32 %v4452, %v4486
        %v4510 = vadd.f32 %v4453, %v4477
        %v4511 = vadd.f32 %v4454, %v4487
        %v4512 = vadd.f32 %v4455, %v4477
        %v4513 = vadd.f32 %v4456, %v4487
        %v4514 = vadd.f32 %v4457, %v4477
        %v4515 = vadd.f32 %v4458, %v4487
        %v4516 = vld [vmem:[%s3 + $0x4f] sm:$0x1]
        %v4517 = vlaneseq
        %v4518 = vshrl.u32 %v4517, 7
        %v4519 = vsub.s32 0, %v4518
        %v4520 = vrot.slane %v4516, %v4519
        %v4521 = vmul.f32 %v645, %v4520
        %v4522 = vmul.f32 %v4520, 0.0
        %v4523 = vmul.f32 %v646, %v4520
        %v4524 = vmul.f32 %v647, %v4520
        %v4525 = vmul.f32 %v648, %v4520
        %v4531 = vrot.slane %v4521, 7
        %v4532 = vrot.slane %v4522, 7
        %v4533 = vsel %vm4029, %v4531, %v4532
        %v4534 = vrot.slane %v4523, 7
        %v4535 = vsel %vm4029, %v4534, %v4532
        %v4536 = vrot.slane %v4524, 7
        %v4537 = vsel %vm4029, %v4536, %v4532
        %v4538 = vrot.slane %v4525, 7
        %v4539 = vsel %vm4029, %v4538, %v4532
        %v4540 = vsel %vm4029, %v4532, %v4532
        %v4551 = vadd.f32 %v4500, %v4531
        %v4552 = vadd.f32 %v4501, %v4533
        %v4553 = vadd.f32 %v4502, %v4534
        %v4554 = vadd.f32 %v4503, %v4535
        %v4555 = vadd.f32 %v4504, %v4536
        %v4556 = vadd.f32 %v4505, %v4537
        %v4557 = vadd.f32 %v4506, %v4538
        %v4558 = vadd.f32 %v4507, %v4539
        %v4559 = vadd.f32 %v4508, %v4532
        %v4560 = vadd.f32 %v4509, %v4540
        %v4561 = vadd.f32 %v4510, %v4532
        %v4562 = vadd.f32 %v4511, %v4540
        %v4563 = vadd.f32 %v4512, %v4532
        %v4564 = vadd.f32 %v4513, %v4540
        %v4565 = vadd.f32 %v4514, %v4532
        %v4566 = vadd.f32 %v4515, %v4540
        %v4567 = vld [vmem:[%s3 + $0x8] sm:$0x1]
        %v4568 = vlaneseq
        %v4569 = vshrl.u32 %v4568, 7
        %v4570 = vsub.s32 0, %v4569
        %v4571 = vrot.slane %v4567, %v4570
        %v4572 = vmul.f32 %v4571, 0.0
        %v4573 = vmul.f32 %v641, %v4571
        %v4574 = vmul.f32 %v642, %v4571
        %v4575 = vmul.f32 %v643, %v4571
        %v4576 = vmul.f32 %v644, %v4571
        %v4577 = vadd.f32 %v4551, %v4572
        %v4578 = vadd.f32 %v4552, %v4572
        %v4579 = vadd.f32 %v4553, %v4572
        %v4580 = vadd.f32 %v4554, %v4572
        %v4581 = vadd.f32 %v4555, %v4572
        %v4582 = vadd.f32 %v4556, %v4572
        %v4583 = vadd.f32 %v4557, %v4572
        %v4584 = vadd.f32 %v4558, %v4572
        %v4585 = vadd.f32 %v4559, %v4573
        %v4586 = vadd.f32 %v4560, %v4572
        %v4587 = vadd.f32 %v4561, %v4574
        %v4588 = vadd.f32 %v4562, %v4572
        %v4589 = vadd.f32 %v4563, %v4575
        %v4590 = vadd.f32 %v4564, %v4572
        %v4591 = vadd.f32 %v4565, %v4576
        %v4592 = vadd.f32 %v4566, %v4572
        %v4593 = vld [vmem:[%s3 + $0x11] sm:$0x1]
        %v4594 = vlaneseq
        %v4595 = vshrl.u32 %v4594, 7
        %v4596 = vsub.s32 0, %v4595
        %v4597 = vrot.slane %v4593, %v4596
        %v4598 = vmul.f32 %v4597, 0.0
        %v4599 = vmul.f32 %v641, %v4597
        %v4600 = vmul.f32 %v642, %v4597
        %v4601 = vmul.f32 %v643, %v4597
        %v4602 = vmul.f32 %v644, %v4597
        %v4603 = vmul.f32 %v645, %v4597
        %v4604 = vadd.f32 %v4577, %v4598
        %v4605 = vadd.f32 %v4578, %v4598
        %v4606 = vadd.f32 %v4579, %v4598
        %v4607 = vadd.f32 %v4580, %v4598
        %v4608 = vadd.f32 %v4581, %v4598
        %v4609 = vadd.f32 %v4582, %v4598
        %v4610 = vadd.f32 %v4583, %v4599
        %v4611 = vadd.f32 %v4584, %v4598
        %v4612 = vadd.f32 %v4585, %v4600
        %v4613 = vadd.f32 %v4586, %v4598
        %v4614 = vadd.f32 %v4587, %v4601
        %v4615 = vadd.f32 %v4588, %v4598
        %v4616 = vadd.f32 %v4589, %v4602
        %v4617 = vadd.f32 %v4590, %v4598
        %v4618 = vadd.f32 %v4591, %v4603
        %v4619 = vadd.f32 %v4592, %v4598
        %v4620 = vld [vmem:[%s3 + $0x1a] sm:$0x1]
        %v4621 = vlaneseq
        %v4622 = vshrl.u32 %v4621, 7
        %v4623 = vsub.s32 0, %v4622
        %v4624 = vrot.slane %v4620, %v4623
        %v4625 = vmul.f32 %v4624, 0.0
        %v4626 = vmul.f32 %v641, %v4624
        %v4627 = vmul.f32 %v642, %v4624
        %v4628 = vmul.f32 %v643, %v4624
        %v4629 = vmul.f32 %v644, %v4624
        %v4630 = vmul.f32 %v645, %v4624
        %v4631 = vmul.f32 %v646, %v4624
        %v4632 = vadd.f32 %v4604, %v4625
        %v4633 = vadd.f32 %v4605, %v4625
        %v4634 = vadd.f32 %v4606, %v4625
        %v4635 = vadd.f32 %v4607, %v4625
        %v4636 = vadd.f32 %v4608, %v4626
        %v4637 = vadd.f32 %v4609, %v4625
        %v4638 = vadd.f32 %v4610, %v4627
        %v4639 = vadd.f32 %v4611, %v4625
        %v4640 = vadd.f32 %v4612, %v4628
        %v4641 = vadd.f32 %v4613, %v4625
        %v4642 = vadd.f32 %v4614, %v4629
        %v4643 = vadd.f32 %v4615, %v4625
        %v4644 = vadd.f32 %v4616, %v4630
        %v4645 = vadd.f32 %v4617, %v4625
        %v4646 = vadd.f32 %v4618, %v4631
        %v4647 = vadd.f32 %v4619, %v4625
        %v4648 = vld [vmem:[%s3 + $0x23] sm:$0x1]
        %v4649 = vlaneseq
        %v4650 = vshrl.u32 %v4649, 7
        %v4651 = vsub.s32 0, %v4650
        %v4652 = vrot.slane %v4648, %v4651
        %v4653 = vmul.f32 %v4652, 0.0
        %v4654 = vmul.f32 %v641, %v4652
        %v4655 = vmul.f32 %v642, %v4652
        %v4656 = vmul.f32 %v643, %v4652
        %v4657 = vmul.f32 %v644, %v4652
        %v4658 = vmul.f32 %v645, %v4652
        %v4659 = vmul.f32 %v646, %v4652
        %v4660 = vmul.f32 %v647, %v4652
        %v4661 = vadd.f32 %v4632, %v4653
        %v4662 = vadd.f32 %v4633, %v4653
        %v4663 = vadd.f32 %v4634, %v4654
        %v4664 = vadd.f32 %v4635, %v4653
        %v4665 = vadd.f32 %v4636, %v4655
        %v4666 = vadd.f32 %v4637, %v4653
        %v4667 = vadd.f32 %v4638, %v4656
        %v4668 = vadd.f32 %v4639, %v4653
        %v4669 = vadd.f32 %v4640, %v4657
        %v4670 = vadd.f32 %v4641, %v4653
        %v4671 = vadd.f32 %v4642, %v4658
        %v4672 = vadd.f32 %v4643, %v4653
        %v4673 = vadd.f32 %v4644, %v4659
        %v4674 = vadd.f32 %v4645, %v4653
        %v4675 = vadd.f32 %v4646, %v4660
        %v4676 = vadd.f32 %v4647, %v4653
        %v4677 = vld [vmem:[%s3 + $0x2c] sm:$0x1]
        %v4678 = vlaneseq
        %v4679 = vshrl.u32 %v4678, 7
        %v4680 = vsub.s32 0, %v4679
        %v4681 = vrot.slane %v4677, %v4680
        %v4682 = vmul.f32 %v641, %v4681
        %v4683 = vmul.f32 %v4681, 0.0
        %v4684 = vmul.f32 %v642, %v4681
        %v4685 = vmul.f32 %v643, %v4681
        %v4686 = vmul.f32 %v644, %v4681
        %v4687 = vmul.f32 %v645, %v4681
        %v4688 = vmul.f32 %v646, %v4681
        %v4689 = vmul.f32 %v647, %v4681
        %v4690 = vmul.f32 %v648, %v4681
        %v4691 = vadd.f32 %v4661, %v4682
        %v4692 = vadd.f32 %v4662, %v4683
        %v4693 = vadd.f32 %v4663, %v4684
        %v4694 = vadd.f32 %v4664, %v4683
        %v4695 = vadd.f32 %v4665, %v4685
        %v4696 = vadd.f32 %v4666, %v4683
        %v4697 = vadd.f32 %v4667, %v4686
        %v4698 = vadd.f32 %v4668, %v4683
        %v4699 = vadd.f32 %v4669, %v4687
        %v4700 = vadd.f32 %v4670, %v4683
        %v4701 = vadd.f32 %v4671, %v4688
        %v4702 = vadd.f32 %v4672, %v4683
        %v4703 = vadd.f32 %v4673, %v4689
        %v4704 = vadd.f32 %v4674, %v4683
        %v4705 = vadd.f32 %v4675, %v4690
        %v4706 = vadd.f32 %v4676, %v4683
        %v4707 = vld [vmem:[%s3 + $0x35] sm:$0x1]
        %v4708 = vlaneseq
        %v4709 = vshrl.u32 %v4708, 7
        %v4710 = vsub.s32 0, %v4709
        %v4711 = vrot.slane %v4707, %v4710
        %v4712 = vmul.f32 %v642, %v4711
        %v4713 = vmul.f32 %v4711, 0.0
        %v4714 = vmul.f32 %v643, %v4711
        %v4715 = vmul.f32 %v644, %v4711
        %v4716 = vmul.f32 %v645, %v4711
        %v4717 = vmul.f32 %v646, %v4711
        %v4718 = vmul.f32 %v647, %v4711
        %v4719 = vmul.f32 %v648, %v4711
        %v4720 = vadd.f32 %v4691, %v4712
        %v4721 = vadd.f32 %v4692, %v4713
        %v4722 = vadd.f32 %v4693, %v4714
        %v4723 = vadd.f32 %v4694, %v4713
        %v4724 = vadd.f32 %v4695, %v4715
        %v4725 = vadd.f32 %v4696, %v4713
        %v4726 = vadd.f32 %v4697, %v4716
        %v4727 = vadd.f32 %v4698, %v4713
        %v4728 = vadd.f32 %v4699, %v4717
        %v4729 = vadd.f32 %v4700, %v4713
        %v4730 = vadd.f32 %v4701, %v4718
        %v4731 = vadd.f32 %v4702, %v4713
        %v4732 = vadd.f32 %v4703, %v4719
        %v4733 = vadd.f32 %v4704, %v4713
        %v4734 = vadd.f32 %v4705, %v4713
        %v4735 = vadd.f32 %v4706, %v4713
        %v4736 = vld [vmem:[%s3 + $0x3e] sm:$0x1]
        %v4737 = vlaneseq
        %v4738 = vshrl.u32 %v4737, 7
        %v4739 = vsub.s32 0, %v4738
        %v4740 = vrot.slane %v4736, %v4739
        %v4741 = vmul.f32 %v643, %v4740
        %v4742 = vmul.f32 %v4740, 0.0
        %v4743 = vmul.f32 %v644, %v4740
        %v4744 = vmul.f32 %v645, %v4740
        %v4745 = vmul.f32 %v646, %v4740
        %v4746 = vmul.f32 %v647, %v4740
        %v4747 = vmul.f32 %v648, %v4740
        %v4748 = vadd.f32 %v4720, %v4741
        %v4749 = vadd.f32 %v4721, %v4742
        %v4750 = vadd.f32 %v4722, %v4743
        %v4751 = vadd.f32 %v4723, %v4742
        %v4752 = vadd.f32 %v4724, %v4744
        %v4753 = vadd.f32 %v4725, %v4742
        %v4754 = vadd.f32 %v4726, %v4745
        %v4755 = vadd.f32 %v4727, %v4742
        %v4756 = vadd.f32 %v4728, %v4746
        %v4757 = vadd.f32 %v4729, %v4742
        %v4758 = vadd.f32 %v4730, %v4747
        %v4759 = vadd.f32 %v4731, %v4742
        %v4760 = vadd.f32 %v4732, %v4742
        %v4761 = vadd.f32 %v4733, %v4742
        %v4762 = vadd.f32 %v4734, %v4742
        %v4763 = vadd.f32 %v4735, %v4742
        %v4764 = vld [vmem:[%s3 + $0x47] sm:$0x1]
        %v4765 = vlaneseq
        %v4766 = vshrl.u32 %v4765, 7
        %v4767 = vsub.s32 0, %v4766
        %v4768 = vrot.slane %v4764, %v4767
        %v4769 = vmul.f32 %v644, %v4768
        %v4770 = vmul.f32 %v4768, 0.0
        %v4771 = vmul.f32 %v645, %v4768
        %v4772 = vmul.f32 %v646, %v4768
        %v4773 = vmul.f32 %v647, %v4768
        %v4774 = vmul.f32 %v648, %v4768
        %v4775 = vadd.f32 %v4748, %v4769
        %v4776 = vadd.f32 %v4749, %v4770
        %v4777 = vadd.f32 %v4750, %v4771
        %v4778 = vadd.f32 %v4751, %v4770
        %v4779 = vadd.f32 %v4752, %v4772
        %v4780 = vadd.f32 %v4753, %v4770
        %v4781 = vadd.f32 %v4754, %v4773
        %v4782 = vadd.f32 %v4755, %v4770
        %v4783 = vadd.f32 %v4756, %v4774
        %v4784 = vadd.f32 %v4757, %v4770
        %v4785 = vadd.f32 %v4758, %v4770
        %v4786 = vadd.f32 %v4759, %v4770
        %v4787 = vadd.f32 %v4760, %v4770
        %v4788 = vadd.f32 %v4761, %v4770
        %v4789 = vadd.f32 %v4762, %v4770
        %v4790 = vadd.f32 %v4763, %v4770
        %v4791 = vld [vmem:[%s3 + $0x50] sm:$0x1]
        %v4792 = vlaneseq
        %v4793 = vshrl.u32 %v4792, 7
        %v4794 = vsub.s32 0, %v4793
        %v4795 = vrot.slane %v4791, %v4794
        %v4796 = vmul.f32 %v645, %v4795
        %v4797 = vmul.f32 %v4795, 0.0
        %v4798 = vmul.f32 %v646, %v4795
        %v4799 = vmul.f32 %v647, %v4795
        %v4800 = vmul.f32 %v648, %v4795
        %v4801 = vadd.f32 %v4775, %v4796
        %v4802 = vadd.f32 %v4776, %v4797
        %v4803 = vadd.f32 %v4777, %v4798
        %v4804 = vadd.f32 %v4778, %v4797
        %v4805 = vadd.f32 %v4779, %v4799
        %v4806 = vadd.f32 %v4780, %v4797
        %v4807 = vadd.f32 %v4781, %v4800
        %v4808 = vadd.f32 %v4782, %v4797
        %v4809 = vadd.f32 %v4783, %v4797
        %v4810 = vadd.f32 %v4784, %v4797
        %v4811 = vadd.f32 %v4785, %v4797
        %v4812 = vadd.f32 %v4786, %v4797
        %v4813 = vadd.f32 %v4787, %v4797
        %v4814 = vadd.f32 %v4788, %v4797
        %v4815 = vadd.f32 %v4789, %v4797
        %v4816 = vadd.f32 %v4790, %v4797
        %vm4833 = vcmask 1043456
        %v4834 = vrot.slane %v4801, 4
        %v4835 = vrot.slane %v4802, 4
        %v4836 = vsel %vm4833, %v4834, %v4835
        %v4837 = vrot.slane %v4803, 4
        %v4838 = vrot.slane %v4804, 4
        %v4839 = vsel %vm4833, %v4837, %v4838
        %v4840 = vrot.slane %v4805, 4
        %v4841 = vrot.slane %v4806, 4
        %v4842 = vsel %vm4833, %v4840, %v4841
        %v4843 = vrot.slane %v4807, 4
        %v4844 = vrot.slane %v4808, 4
        %v4845 = vsel %vm4833, %v4843, %v4844
        %v4846 = vrot.slane %v4809, 4
        %v4847 = vrot.slane %v4810, 4
        %v4848 = vsel %vm4833, %v4846, %v4847
        %v4849 = vrot.slane %v4811, 4
        %v4850 = vrot.slane %v4812, 4
        %v4851 = vsel %vm4833, %v4849, %v4850
        %v4852 = vrot.slane %v4813, 4
        %v4853 = vrot.slane %v4814, 4
        %v4854 = vsel %vm4833, %v4852, %v4853
        %v4855 = vrot.slane %v4815, 4
        %v4856 = vrot.slane %v4816, 4
        %v4857 = vsel %vm4833, %v4855, %v4856
        %v4866 = vld [vmem:[%s4] sm:$0x1]
        %v4867 = vlaneseq
        %v4868 = vshrl.u32 %v4867, 7
        %v4869 = vsub.s32 0, %v4868
        %v4870 = vrot.slane %v4866, %v4869
        %v4871 = vadd.f32 %v4836, %v4870
        %v4872 = vadd.f32 %v4839, %v4870
        %v4873 = vadd.f32 %v4842, %v4870
        %v4874 = vadd.f32 %v4845, %v4870
        %v4875 = vadd.f32 %v4848, %v4870
        %v4876 = vadd.f32 %v4851, %v4870
        %v4877 = vadd.f32 %v4854, %v4870
        %v4878 = vadd.f32 %v4857, %v4870
        %v4879 = vmul.f32 %v4871, 0.5
        %v4880 = vmul.f32 %v4872, 0.5
        %v4881 = vmul.f32 %v4873, 0.5
        %v4882 = vmul.f32 %v4874, 0.5
        %v4883 = vmul.f32 %v4875, 0.5
        %v4884 = vmul.f32 %v4876, 0.5
        %v4885 = vmul.f32 %v4877, 0.5
        %v4886 = vmul.f32 %v4878, 0.5
        %v4887 = vmul.f32 %v4871, 0.044715
        %v4888 = vmul.f32 %v4872, 0.044715
        %v4889 = vmul.f32 %v4873, 0.044715
        %v4890 = vmul.f32 %v4874, 0.044715
        %v4891 = vmul.f32 %v4875, 0.044715
        %v4892 = vmul.f32 %v4876, 0.044715
        %v4893 = vmul.f32 %v4877, 0.044715
        %v4894 = vmul.f32 %v4878, 0.044715
        %v4895 = vmul.f32 %v4887, %v4871
        %v4896 = vmul.f32 %v4888, %v4872
        %v4897 = vmul.f32 %v4889, %v4873
        %v4898 = vmul.f32 %v4890, %v4874
        %v4899 = vmul.f32 %v4891, %v4875
        %v4900 = vmul.f32 %v4892, %v4876
        %v4901 = vmul.f32 %v4893, %v4877
        %v4902 = vmul.f32 %v4894, %v4878
        %v4903 = vmul.f32 %v4895, %v4871
        %v4904 = vmul.f32 %v4896, %v4872
        %v4905 = vmul.f32 %v4897, %v4873
        %v4906 = vmul.f32 %v4898, %v4874
        %v4907 = vmul.f32 %v4899, %v4875
        %v4908 = vmul.f32 %v4900, %v4876
        %v4909 = vmul.f32 %v4901, %v4877
        %v4910 = vmul.f32 %v4902, %v4878
        %v4911 = vadd.f32 %v4871, %v4903
        %v4912 = vadd.f32 %v4872, %v4904
        %v4913 = vadd.f32 %v4873, %v4905
        %v4914 = vadd.f32 %v4874, %v4906
        %v4915 = vadd.f32 %v4875, %v4907
        %v4916 = vadd.f32 %v4876, %v4908
        %v4917 = vadd.f32 %v4877, %v4909
        %v4918 = vadd.f32 %v4878, %v4910
        %v4919 = vmul.f32 %v4911, 0.7978846
        %v4920 = vmul.f32 %v4912, 0.7978846
        %v4921 = vmul.f32 %v4913, 0.7978846
        %v4922 = vmul.f32 %v4914, 0.7978846
        %v4923 = vmul.f32 %v4915, 0.7978846
        %v4924 = vmul.f32 %v4916, 0.7978846
        %v4925 = vmul.f32 %v4917, 0.7978846
        %v4926 = vmul.f32 %v4918, 0.7978846
        %v4927 = vtanh.pop %v4919
        %v4928 = vtanh.pop %v4920
        %v4929 = vtanh.pop %v4921
        %v4930 = vtanh.pop %v4922
        %v4931 = vtanh.pop %v4923
        %v4932 = vtanh.pop %v4924
        %v4933 = vtanh.pop %v4925
        %v4934 = vtanh.pop %v4926
        %v4935 = vadd.f32 %v4927, 1.0
        %v4936 = vadd.f32 %v4928, 1.0
        %v4937 = vadd.f32 %v4929, 1.0
        %v4938 = vadd.f32 %v4930, 1.0
        %v4939 = vadd.f32 %v4931, 1.0
        %v4940 = vadd.f32 %v4932, 1.0
        %v4941 = vadd.f32 %v4933, 1.0
        %v4942 = vadd.f32 %v4934, 1.0
        %v4943 = vmul.f32 %v4879, %v4935
        %v4944 = vmul.f32 %v4880, %v4936
        %v4945 = vmul.f32 %v4881, %v4937
        %v4946 = vmul.f32 %v4882, %v4938
        %v4947 = vmul.f32 %v4883, %v4939
        %v4948 = vmul.f32 %v4884, %v4940
        %v4949 = vmul.f32 %v4885, %v4941
        %v4950 = vmul.f32 %v4886, %v4942
        %v4951 = vld [vmem:[%s4 + $0x1] sm:$0x1]
        %v4952 = vlaneseq
        %v4953 = vshrl.u32 %v4952, 7
        %v4954 = vsub.s32 0, %v4953
        %v4955 = vrot.slane %v4951, %v4954
        %v4956 = vmul.f32 %v4955, %v4943
        %v4957 = vmul.f32 %v4955, %v4944
        %v4958 = vmul.f32 %v4955, %v4945
        %v4959 = vmul.f32 %v4955, %v4946
        %v4960 = vmul.f32 %v4955, %v4947
        %v4961 = vmul.f32 %v4955, %v4948
        %v4962 = vmul.f32 %v4955, %v4949
        %v4963 = vmul.f32 %v4955, %v4950
        %v4964 = vld [vmem:[%s4 + $0x2] sm:$0x1]
        %v4965 = vlaneseq
        %v4966 = vshrl.u32 %v4965, 7
        %v4967 = vsub.s32 0, %v4966
        %v4968 = vrot.slane %v4964, %v4967
        %v4969 = vadd.f32 %v4956, %v4968
        %v4970 = vadd.f32 %v4957, %v4968
        %v4971 = vadd.f32 %v4958, %v4968
        %v4972 = vadd.f32 %v4959, %v4968
        %v4973 = vadd.f32 %v4960, %v4968
        %v4974 = vadd.f32 %v4961, %v4968
        %v4975 = vadd.f32 %v4962, %v4968
        %v4976 = vadd.f32 %v4963, %v4968
        %v4977 = vadd.f32 %v641, %v4969
        %v4978 = vadd.f32 %v642, %v4970
        %v4979 = vadd.f32 %v643, %v4971
        %v4980 = vadd.f32 %v644, %v4972
        %v4981 = vadd.f32 %v645, %v4973
        %v4982 = vadd.f32 %v646, %v4974
        %v4983 = vadd.f32 %v647, %v4975
        %v4984 = vadd.f32 %v648, %v4976
        %v4985 = vpack.c.bf16 %v4978, %v4977
        %v4986 = vpack.c.bf16 %v4980, %v4979
        %v4987 = vpack.c.bf16 %v4982, %v4981
        %v4988 = vpack.c.bf16 %v4984, %v4983
        %v4989 = vld [vmem:[%s5] sm:$0xf]
        %v4990 = vld [vmem:[%s5 + $0x4] sm:$0xf]
        %v4991 = vld [vmem:[%s5 + $0x8] sm:$0xf]
        %v4992 = vld [vmem:[%s5 + $0xc] sm:$0xf]
        %v4993 = vld [vmem:[%s5 + $0x10] sm:$0xf]
        %v4994 = vld [vmem:[%s5 + $0x14] sm:$0xf]
        %v4995 = vld [vmem:[%s5 + $0x18] sm:$0xf]
        %v4996 = vld [vmem:[%s5 + $0x1c] sm:$0xf]
        %v4997 = vld [vmem:[%s5 + $0x20] sm:$0xf]
        %v4998 = vld [vmem:[%s5 + $0x24] sm:$0xf]
        %v4999 = vld [vmem:[%s5 + $0x28] sm:$0xf]
        %v5000 = vld [vmem:[%s5 + $0x2c] sm:$0xf]
        %v5001 = vld [vmem:[%s5 + $0x30] sm:$0xf]
        %v5002 = vld [vmem:[%s5 + $0x34] sm:$0xf]
        %v5003 = vld [vmem:[%s5 + $0x38] sm:$0xf]
        %v5004 = vld [vmem:[%s5 + $0x3c] sm:$0xf]
        %v5005 = vld [vmem:[%s6] sm:$0x1]
        %v5006 = vlaneseq
        %v5007 = vshrl.u32 %v5006, 7
        %v5008 = vsub.s32 0, %v5007
        %v5009 = vrot.slane %v5005, %v5008
        %v5026 = vunpack.c.l.b16 %v4989
        %v5027 = vunpack.c.l.b16 %v4990
        %v5028 = vunpack.c.l.b16 %v4991
        %v5029 = vunpack.c.l.b16 %v4992
        %v5030 = vunpack.c.l.b16 %v4993
        %v5031 = vunpack.c.l.b16 %v4994
        %v5032 = vunpack.c.l.b16 %v4995
        %v5033 = vunpack.c.l.b16 %v4996
        %v5034 = vunpack.c.l.b16 %v4997
        %v5035 = vunpack.c.l.b16 %v4998
        %v5036 = vunpack.c.l.b16 %v4999
        %v5037 = vunpack.c.l.b16 %v5000
        %v5038 = vunpack.c.l.b16 %v5001
        %v5039 = vunpack.c.l.b16 %v5002
        %v5040 = vunpack.c.l.b16 %v5003
        %v5041 = vunpack.c.l.b16 %v5004
        %v5042 = vpack.c.b16 %v5027, %v5026
        %v5043 = vpack.c.b16 %v5029, %v5028
        %v5044 = vpack.c.b16 %v5031, %v5030
        %v5045 = vpack.c.b16 %v5033, %v5032
        %v5046 = vpack.c.b16 %v5035, %v5034
        %v5047 = vpack.c.b16 %v5037, %v5036
        %v5048 = vpack.c.b16 %v5039, %v5038
        %v5049 = vpack.c.b16 %v5041, %v5040
        %5058 = vmatprep.subr.bf16.mxu0 0
        %5059 = vmatpush1.bf16.msra.mxu0 %v5042
        %5060 = vmatprep.subr.bf16.mxu0 0
        %5061 = vmatpush1.bf16.msra.mxu0 %v5043
        %5062 = vmatprep.subr.bf16.mxu0 0
        %5063 = vmatpush1.bf16.msra.mxu0 %v5044
        %5064 = vmatprep.subr.bf16.mxu0 0
        %5065 = vmatpush1.bf16.msra.mxu0 %v5045
        %5066 = vmatprep.subr.bf16.mxu0 0
        %5067 = vmatpush1.bf16.msra.mxu0 %v5046
        %5068 = vmatprep.subr.bf16.mxu0 0
        %5069 = vmatpush1.bf16.msra.mxu0 %v5047
        %5070 = vmatprep.subr.bf16.mxu0 0
        %5071 = vmatpush1.bf16.msra.mxu0 %v5048
        %5072 = vmatprep.subr.bf16.mxu0 0
        %5073 = vmatpush1.bf16.msra.mxu0 %v5049
        %5074 = vmatprep.subr.bf16.mxu0 0
        %5075 = vmatpush1.bf16.msra.mxu0 0
        %5076 = vmatprep.subr.bf16.mxu0 0
        %5077 = vmatpush1.bf16.msra.mxu0 0
        %5078 = vmatprep.subr.bf16.mxu0 0
        %5079 = vmatpush1.bf16.msra.mxu0 0
        %5080 = vmatprep.subr.bf16.mxu0 0
        %5081 = vmatpush1.bf16.msra.mxu0 0
        %5082 = vmatprep.subr.bf16.mxu0 0
        %5083 = vmatpush1.bf16.msra.mxu0 0
        %5084 = vmatprep.subr.bf16.mxu0 0
        %5085 = vmatpush1.bf16.msra.mxu0 0
        %5086 = vmatprep.subr.bf16.mxu0 0
        %5087 = vmatpush1.bf16.msra.mxu0 0
        %5088 = vmatprep.subr.bf16.mxu0 0
        %5089 = vmatpush1.bf16.msra.mxu0 0
        %5090 = vmatprep.mubr.bf16.mxu0 0
        %5091 = vmatmul.mubr.bf16.gmra.mrb[0].mxu0 %v4985
        %v5092 = vpop.f32.mrb[0].mxu0
        %v5093 = vadd.f32 %v5009, %v5092
        %v5094 = vpop.f32.mrb[0].mxu0
        %v5095 = vpop.f32.mrb[0].mxu0
        %v5096 = vadd.f32 %v5009, %v5095
        %v5097 = vpop.f32.mrb[0].mxu0
        %5098 = vmatprep.mubr.bf16.mxu0 0
        %5099 = vmatmul.mubr.bf16.gmra.mrb[0].mxu0 %v4986
        %v5100 = vpop.f32.mrb[0].mxu0
        %v5101 = vadd.f32 %v5009, %v5100
        %v5102 = vpop.f32.mrb[0].mxu0
        %v5103 = vpop.f32.mrb[0].mxu0
        %v5104 = vadd.f32 %v5009, %v5103
        %v5105 = vpop.f32.mrb[0].mxu0
        %5106 = vmatprep.mubr.bf16.mxu0 0
        %5107 = vmatmul.mubr.bf16.gmra.mrb[0].mxu0 %v4987
        %v5108 = vpop.f32.mrb[0].mxu0
        %v5109 = vadd.f32 %v5009, %v5108
        %v5110 = vpop.f32.mrb[0].mxu0
        %v5111 = vpop.f32.mrb[0].mxu0
        %v5112 = vadd.f32 %v5009, %v5111
        %v5113 = vpop.f32.mrb[0].mxu0
        %5114 = vmatprep.mubr.bf16.mxu0 0
        %5115 = vmatmul.mubr.bf16.gmra.mrb[0].mxu0 %v4988
        %v5116 = vpop.f32.mrb[0].mxu0
        %v5117 = vadd.f32 %v5009, %v5116
        %v5118 = vpop.f32.mrb[0].mxu0
        %v5119 = vpop.f32.mrb[0].mxu0
        %v5120 = vadd.f32 %v5009, %v5119
        %v5121 = vpop.f32.mrb[0].mxu0
        %5122 = vdwg.mxu0
        %v5123 = vmul.f32 %v5093, 0.5
        %v5124 = vmul.f32 %v5096, 0.5
        %v5125 = vmul.f32 %v5101, 0.5
        %v5126 = vmul.f32 %v5104, 0.5
        %v5127 = vmul.f32 %v5109, 0.5
        %v5128 = vmul.f32 %v5112, 0.5
        %v5129 = vmul.f32 %v5117, 0.5
        %v5130 = vmul.f32 %v5120, 0.5
        %v5131 = vmul.f32 %v5093, 0.044715
        %v5132 = vmul.f32 %v5096, 0.044715
        %v5133 = vmul.f32 %v5101, 0.044715
        %v5134 = vmul.f32 %v5104, 0.044715
        %v5135 = vmul.f32 %v5109, 0.044715
        %v5136 = vmul.f32 %v5112, 0.044715
        %v5137 = vmul.f32 %v5117, 0.044715
        %v5138 = vmul.f32 %v5120, 0.044715
        %v5139 = vmul.f32 %v5131, %v5093
        %v5140 = vmul.f32 %v5132, %v5096
        %v5141 = vmul.f32 %v5133, %v5101
        %v5142 = vmul.f32 %v5134, %v5104
        %v5143 = vmul.f32 %v5135, %v5109
        %v5144 = vmul.f32 %v5136, %v5112
        %v5145 = vmul.f32 %v5137, %v5117
        %v5146 = vmul.f32 %v5138, %v5120
        %v5147 = vmul.f32 %v5139, %v5093
        %v5148 = vmul.f32 %v5140, %v5096
        %v5149 = vmul.f32 %v5141, %v5101
        %v5150 = vmul.f32 %v5142, %v5104
        %v5151 = vmul.f32 %v5143, %v5109
        %v5152 = vmul.f32 %v5144, %v5112
        %v5153 = vmul.f32 %v5145, %v5117
        %v5154 = vmul.f32 %v5146, %v5120
        %v5155 = vadd.f32 %v5093, %v5147
        %v5156 = vadd.f32 %v5096, %v5148
        %v5157 = vadd.f32 %v5101, %v5149
        %v5158 = vadd.f32 %v5104, %v5150
        %v5159 = vadd.f32 %v5109, %v5151
        %v5160 = vadd.f32 %v5112, %v5152
        %v5161 = vadd.f32 %v5117, %v5153
        %v5162 = vadd.f32 %v5120, %v5154
        %v5163 = vmul.f32 %v5155, 0.7978846
        %v5164 = vmul.f32 %v5156, 0.7978846
        %v5165 = vmul.f32 %v5157, 0.7978846
        %v5166 = vmul.f32 %v5158, 0.7978846
        %v5167 = vmul.f32 %v5159, 0.7978846
        %v5168 = vmul.f32 %v5160, 0.7978846
        %v5169 = vmul.f32 %v5161, 0.7978846
        %v5170 = vmul.f32 %v5162, 0.7978846
        %v5171 = vtanh.pop %v5163
        %v5172 = vtanh.pop %v5164
        %v5173 = vtanh.pop %v5165
        %v5174 = vtanh.pop %v5166
        %v5175 = vtanh.pop %v5167
        %v5176 = vtanh.pop %v5168
        %v5177 = vtanh.pop %v5169
        %v5178 = vtanh.pop %v5170
        %v5179 = vadd.f32 %v5171, 1.0
        %v5180 = vadd.f32 %v5172, 1.0
        %v5181 = vadd.f32 %v5173, 1.0
        %v5182 = vadd.f32 %v5174, 1.0
        %v5183 = vadd.f32 %v5175, 1.0
        %v5184 = vadd.f32 %v5176, 1.0
        %v5185 = vadd.f32 %v5177, 1.0
        %v5186 = vadd.f32 %v5178, 1.0
        %v5187 = vmul.f32 %v5123, %v5179
        %v5188 = vmul.f32 %v5124, %v5180
        %v5189 = vmul.f32 %v5125, %v5181
        %v5190 = vmul.f32 %v5126, %v5182
        %v5191 = vmul.f32 %v5127, %v5183
        %v5192 = vmul.f32 %v5128, %v5184
        %v5193 = vmul.f32 %v5129, %v5185
        %v5194 = vmul.f32 %v5130, %v5186
        %v5195 = vld [vmem:[%s6 + $0x1] sm:$0x1]
        %v5196 = vlaneseq
        %v5197 = vshrl.u32 %v5196, 7
        %v5198 = vsub.s32 0, %v5197
        %v5199 = vrot.slane %v5195, %v5198
        %v5200 = vmul.f32 %v5199, %v5187
        %v5201 = vmul.f32 %v5199, %v5188
        %v5202 = vmul.f32 %v5199, %v5189
        %v5203 = vmul.f32 %v5199, %v5190
        %v5204 = vmul.f32 %v5199, %v5191
        %v5205 = vmul.f32 %v5199, %v5192
        %v5206 = vmul.f32 %v5199, %v5193
        %v5207 = vmul.f32 %v5199, %v5194
        %v5208 = vld [vmem:[%s6 + $0x2] sm:$0x1]
        %v5209 = vlaneseq
        %v5210 = vshrl.u32 %v5209, 7
        %v5211 = vsub.s32 0, %v5210
        %v5212 = vrot.slane %v5208, %v5211
        %v5213 = vadd.f32 %v5200, %v5212
        %v5214 = vadd.f32 %v5201, %v5212
        %v5215 = vadd.f32 %v5202, %v5212
        %v5216 = vadd.f32 %v5203, %v5212
        %v5217 = vadd.f32 %v5204, %v5212
        %v5218 = vadd.f32 %v5205, %v5212
        %v5219 = vadd.f32 %v5206, %v5212
        %v5220 = vadd.f32 %v5207, %v5212
        %s5221 = scalar_lea.vmem %s3, 88
        %v5222 = vld [vmem:[%s5221] sm:$0x1]
        %v5223 = vlaneseq
        %v5224 = vshrl.u32 %v5223, 7
        %v5225 = vsub.s32 0, %v5224
        %v5226 = vrot.slane %v5222, %v5225
        %v5227 = vmul.f32 %v5226, 0.0
        %v5228 = vmul.f32 %v5213, %v5226
        %v5229 = vmul.f32 %v5214, %v5226
        %v5230 = vmul.f32 %v5215, %v5226
        %v5231 = vmul.f32 %v5216, %v5226
        %v5232 = vadd.f32 %v5227, 0.0
        %v5233 = vadd.f32 %v5228, 0.0
        %v5234 = vadd.f32 %v5229, 0.0
        %v5235 = vadd.f32 %v5230, 0.0
        %v5236 = vadd.f32 %v5231, 0.0
        %v5237 = vld [vmem:[%s5221 + $0x9] sm:$0x1]
        %v5238 = vlaneseq
        %v5239 = vshrl.u32 %v5238, 7
        %v5240 = vsub.s32 0, %v5239
        %v5241 = vrot.slane %v5237, %v5240
        %v5242 = vmul.f32 %v5241, 0.0
        %v5243 = vmul.f32 %v5213, %v5241
        %v5244 = vmul.f32 %v5214, %v5241
        %v5245 = vmul.f32 %v5215, %v5241
        %v5246 = vmul.f32 %v5216, %v5241
        %v5247 = vmul.f32 %v5217, %v5241
        %v5248 = vadd.f32 %v5232, %v5242
        %v5249 = vadd.f32 %v5232, %v5243
        %v5250 = vadd.f32 %v5233, %v5244
        %v5251 = vadd.f32 %v5234, %v5245
        %v5252 = vadd.f32 %v5235, %v5246
        %v5253 = vadd.f32 %v5236, %v5247
        %v5254 = vld [vmem:[%s5221 + $0x12] sm:$0x1]
        %v5255 = vlaneseq
        %v5256 = vshrl.u32 %v5255, 7
        %v5257 = vsub.s32 0, %v5256
        %v5258 = vrot.slane %v5254, %v5257
        %v5259 = vmul.f32 %v5258, 0.0
        %v5260 = vmul.f32 %v5213, %v5258
        %v5261 = vmul.f32 %v5214, %v5258
        %v5262 = vmul.f32 %v5215, %v5258
        %v5263 = vmul.f32 %v5216, %v5258
        %v5264 = vmul.f32 %v5217, %v5258
        %v5265 = vmul.f32 %v5218, %v5258
        %v5266 = vadd.f32 %v5248, %v5259
        %v5267 = vadd.f32 %v5248, %v5260
        %v5268 = vadd.f32 %v5249, %v5261
        %v5269 = vadd.f32 %v5250, %v5262
        %v5270 = vadd.f32 %v5251, %v5263
        %v5271 = vadd.f32 %v5252, %v5264
        %v5272 = vadd.f32 %v5253, %v5265
        %v5273 = vld [vmem:[%s5221 + $0x1b] sm:$0x1]
        %v5274 = vlaneseq
        %v5275 = vshrl.u32 %v5274, 7
        %v5276 = vsub.s32 0, %v5275
        %v5277 = vrot.slane %v5273, %v5276
        %v5278 = vmul.f32 %v5277, 0.0
        %v5279 = vmul.f32 %v5213, %v5277
        %v5280 = vmul.f32 %v5214, %v5277
        %v5281 = vmul.f32 %v5215, %v5277
        %v5282 = vmul.f32 %v5216, %v5277
        %v5283 = vmul.f32 %v5217, %v5277
        %v5284 = vmul.f32 %v5218, %v5277
        %v5285 = vmul.f32 %v5219, %v5277
        %v5286 = vadd.f32 %v5266, %v5278
        %v5287 = vadd.f32 %v5266, %v5279
        %v5288 = vadd.f32 %v5267, %v5280
        %v5289 = vadd.f32 %v5268, %v5281
        %v5290 = vadd.f32 %v5269, %v5282
        %v5291 = vadd.f32 %v5270, %v5283
        %v5292 = vadd.f32 %v5271, %v5284
        %v5293 = vadd.f32 %v5272, %v5285
        %v5294 = vld [vmem:[%s5221 + $0x24] sm:$0x1]
        %v5295 = vlaneseq
        %v5296 = vshrl.u32 %v5295, 7
        %v5297 = vsub.s32 0, %v5296
        %v5298 = vrot.slane %v5294, %v5297
        %v5299 = vmul.f32 %v5298, 0.0
        %v5300 = vmul.f32 %v5213, %v5298
        %v5301 = vmul.f32 %v5214, %v5298
        %v5302 = vmul.f32 %v5215, %v5298
        %v5303 = vmul.f32 %v5216, %v5298
        %v5304 = vmul.f32 %v5217, %v5298
        %v5305 = vmul.f32 %v5218, %v5298
        %v5306 = vmul.f32 %v5219, %v5298
        %v5307 = vmul.f32 %v5220, %v5298
        %v5308 = vadd.f32 %v5286, %v5299
        %v5309 = vadd.f32 %v5286, %v5300
        %v5310 = vadd.f32 %v5287, %v5301
        %v5311 = vadd.f32 %v5288, %v5302
        %v5312 = vadd.f32 %v5289, %v5303
        %v5313 = vadd.f32 %v5290, %v5304
        %v5314 = vadd.f32 %v5291, %v5305
        %v5315 = vadd.f32 %v5292, %v5306
        %v5316 = vadd.f32 %v5293, %v5307
        %v5317 = vld [vmem:[%s5221 + $0x2d] sm:$0x1]
        %v5318 = vlaneseq
        %v5319 = vshrl.u32 %v5318, 7
        %v5320 = vsub.s32 0, %v5319
        %v5321 = vrot.slane %v5317, %v5320
        %v5322 = vmul.f32 %v5321, 0.0
        %v5323 = vmul.f32 %v5214, %v5321
        %v5324 = vmul.f32 %v5215, %v5321
        %v5325 = vmul.f32 %v5216, %v5321
        %v5326 = vmul.f32 %v5217, %v5321
        %v5327 = vmul.f32 %v5218, %v5321
        %v5328 = vmul.f32 %v5219, %v5321
        %v5329 = vmul.f32 %v5220, %v5321
        %v5330 = vadd.f32 %v5308, %v5322
        %v5331 = vadd.f32 %v5309, %v5323
        %v5332 = vadd.f32 %v5310, %v5324
        %v5333 = vadd.f32 %v5311, %v5325
        %v5334 = vadd.f32 %v5312, %v5326
        %v5335 = vadd.f32 %v5313, %v5327
        %v5336 = vadd.f32 %v5314, %v5328
        %v5337 = vadd.f32 %v5315, %v5329
        %v5338 = vadd.f32 %v5316, %v5322
        %v5339 = vld [vmem:[%s5221 + $0x36] sm:$0x1]
        %v5340 = vlaneseq
        %v5341 = vshrl.u32 %v5340, 7
        %v5342 = vsub.s32 0, %v5341
        %v5343 = vrot.slane %v5339, %v5342
        %v5344 = vmul.f32 %v5343, 0.0
        %v5345 = vmul.f32 %v5215, %v5343
        %v5346 = vmul.f32 %v5216, %v5343
        %v5347 = vmul.f32 %v5217, %v5343
        %v5348 = vmul.f32 %v5218, %v5343
        %v5349 = vmul.f32 %v5219, %v5343
        %v5350 = vmul.f32 %v5220, %v5343
        %v5351 = vadd.f32 %v5330, %v5344
        %v5352 = vadd.f32 %v5331, %v5345
        %v5353 = vadd.f32 %v5332, %v5346
        %v5354 = vadd.f32 %v5333, %v5347
        %v5355 = vadd.f32 %v5334, %v5348
        %v5356 = vadd.f32 %v5335, %v5349
        %v5357 = vadd.f32 %v5336, %v5350
        %v5358 = vadd.f32 %v5337, %v5344
        %v5359 = vadd.f32 %v5338, %v5344
        %v5360 = vld [vmem:[%s5221 + $0x3f] sm:$0x1]
        %v5361 = vlaneseq
        %v5362 = vshrl.u32 %v5361, 7
        %v5363 = vsub.s32 0, %v5362
        %v5364 = vrot.slane %v5360, %v5363
        %v5365 = vmul.f32 %v5364, 0.0
        %v5366 = vmul.f32 %v5216, %v5364
        %v5367 = vmul.f32 %v5217, %v5364
        %v5368 = vmul.f32 %v5218, %v5364
        %v5369 = vmul.f32 %v5219, %v5364
        %v5370 = vmul.f32 %v5220, %v5364
        %v5371 = vadd.f32 %v5351, %v5365
        %v5372 = vadd.f32 %v5352, %v5366
        %v5373 = vadd.f32 %v5353, %v5367
        %v5374 = vadd.f32 %v5354, %v5368
        %v5375 = vadd.f32 %v5355, %v5369
        %v5376 = vadd.f32 %v5356, %v5370
        %v5377 = vadd.f32 %v5357, %v5365
        %v5378 = vadd.f32 %v5358, %v5365
        %v5379 = vadd.f32 %v5359, %v5365
        %v5380 = vld [vmem:[%s5221 + $0x48] sm:$0x1]
        %v5381 = vlaneseq
        %v5382 = vshrl.u32 %v5381, 7
        %v5383 = vsub.s32 0, %v5382
        %v5384 = vrot.slane %v5380, %v5383
        %v5385 = vmul.f32 %v5384, 0.0
        %v5386 = vmul.f32 %v5217, %v5384
        %v5387 = vmul.f32 %v5218, %v5384
        %v5388 = vmul.f32 %v5219, %v5384
        %v5389 = vmul.f32 %v5220, %v5384
        %v5390 = vadd.f32 %v5371, %v5385
        %v5391 = vadd.f32 %v5372, %v5386
        %v5392 = vadd.f32 %v5373, %v5387
        %v5393 = vadd.f32 %v5374, %v5388
        %v5394 = vadd.f32 %v5375, %v5389
        %v5395 = vadd.f32 %v5376, %v5385
        %v5396 = vadd.f32 %v5377, %v5385
        %v5397 = vadd.f32 %v5378, %v5385
        %v5398 = vadd.f32 %v5379, %v5385
        %v5399 = vld [vmem:[%s5221 + $0x1] sm:$0x1]
        %v5400 = vlaneseq
        %v5401 = vshrl.u32 %v5400, 7
        %v5402 = vsub.s32 0, %v5401
        %v5403 = vrot.slane %v5399, %v5402
        %v5404 = vmul.f32 %v5403, 0.0
        %v5405 = vmul.f32 %v5213, %v5403
        %v5406 = vmul.f32 %v5214, %v5403
        %v5407 = vmul.f32 %v5215, %v5403
        %v5408 = vmul.f32 %v5216, %v5403
        %v5414 = vrot.slane %v5404, 1
        %v5415 = vsel %vm841, %v5414, %v5414
        %v5416 = vrot.slane %v5405, 1
        %v5417 = vsel %vm841, %v5414, %v5416
        %v5418 = vrot.slane %v5406, 1
        %v5419 = vsel %vm841, %v5414, %v5418
        %v5420 = vrot.slane %v5407, 1
        %v5421 = vsel %vm841, %v5414, %v5420
        %v5422 = vrot.slane %v5408, 1
        %v5423 = vsel %vm841, %v5414, %v5422
        %v5434 = vadd.f32 %v5390, %v5415
        %v5435 = vadd.f32 %v5391, %v5414
        %v5436 = vadd.f32 %v5392, %v5414
        %v5437 = vadd.f32 %v5393, %v5414
        %v5438 = vadd.f32 %v5394, %v5414
        %v5439 = vadd.f32 %v5390, %v5417
        %v5440 = vadd.f32 %v5395, %v5416
        %v5441 = vadd.f32 %v5390, %v5419
        %v5442 = vadd.f32 %v5396, %v5418
        %v5443 = vadd.f32 %v5390, %v5421
        %v5444 = vadd.f32 %v5397, %v5420
        %v5445 = vadd.f32 %v5390, %v5423
        %v5446 = vadd.f32 %v5398, %v5422
        %v5447 = vld [vmem:[%s5221 + $0xa] sm:$0x1]
        %v5448 = vlaneseq
        %v5449 = vshrl.u32 %v5448, 7
        %v5450 = vsub.s32 0, %v5449
        %v5451 = vrot.slane %v5447, %v5450
        %v5452 = vmul.f32 %v5451, 0.0
        %v5453 = vmul.f32 %v5213, %v5451
        %v5454 = vmul.f32 %v5214, %v5451
        %v5455 = vmul.f32 %v5215, %v5451
        %v5456 = vmul.f32 %v5216, %v5451
        %v5457 = vmul.f32 %v5217, %v5451
        %v5464 = vrot.slane %v5452, 1
        %v5465 = vsel %vm841, %v5464, %v5464
        %v5466 = vrot.slane %v5453, 1
        %v5467 = vsel %vm841, %v5464, %v5466
        %v5468 = vrot.slane %v5454, 1
        %v5469 = vsel %vm841, %v5464, %v5468
        %v5470 = vrot.slane %v5455, 1
        %v5471 = vsel %vm841, %v5464, %v5470
        %v5472 = vrot.slane %v5456, 1
        %v5473 = vsel %vm841, %v5464, %v5472
        %v5474 = vrot.slane %v5457, 1
        %v5475 = vsel %vm841, %v5464, %v5474
        %v5488 = vadd.f32 %v5434, %v5465
        %v5489 = vadd.f32 %v5435, %v5464
        %v5490 = vadd.f32 %v5436, %v5464
        %v5491 = vadd.f32 %v5437, %v5464
        %v5492 = vadd.f32 %v5434, %v5467
        %v5493 = vadd.f32 %v5438, %v5466
        %v5494 = vadd.f32 %v5439, %v5469
        %v5495 = vadd.f32 %v5440, %v5468
        %v5496 = vadd.f32 %v5441, %v5471
        %v5497 = vadd.f32 %v5442, %v5470
        %v5498 = vadd.f32 %v5443, %v5473
        %v5499 = vadd.f32 %v5444, %v5472
        %v5500 = vadd.f32 %v5445, %v5475
        %v5501 = vadd.f32 %v5446, %v5474
        %v5502 = vld [vmem:[%s5221 + $0x13] sm:$0x1]
        %v5503 = vlaneseq
        %v5504 = vshrl.u32 %v5503, 7
        %v5505 = vsub.s32 0, %v5504
        %v5506 = vrot.slane %v5502, %v5505
        %v5507 = vmul.f32 %v5506, 0.0
        %v5508 = vmul.f32 %v5213, %v5506
        %v5509 = vmul.f32 %v5214, %v5506
        %v5510 = vmul.f32 %v5215, %v5506
        %v5511 = vmul.f32 %v5216, %v5506
        %v5512 = vmul.f32 %v5217, %v5506
        %v5513 = vmul.f32 %v5218, %v5506
        %v5521 = vrot.slane %v5507, 1
        %v5522 = vsel %vm841, %v5521, %v5521
        %v5523 = vrot.slane %v5508, 1
        %v5524 = vsel %vm841, %v5521, %v5523
        %v5525 = vrot.slane %v5509, 1
        %v5526 = vsel %vm841, %v5521, %v5525
        %v5527 = vrot.slane %v5510, 1
        %v5528 = vsel %vm841, %v5521, %v5527
        %v5529 = vrot.slane %v5511, 1
        %v5530 = vsel %vm841, %v5521, %v5529
        %v5531 = vrot.slane %v5512, 1
        %v5532 = vsel %vm841, %v5521, %v5531
        %v5533 = vrot.slane %v5513, 1
        %v5534 = vsel %vm841, %v5521, %v5533
        %v5549 = vadd.f32 %v5488, %v5522
        %v5550 = vadd.f32 %v5489, %v5521
        %v5551 = vadd.f32 %v5490, %v5521
        %v5552 = vadd.f32 %v5488, %v5524
        %v5553 = vadd.f32 %v5491, %v5523
        %v5554 = vadd.f32 %v5492, %v5526
        %v5555 = vadd.f32 %v5493, %v5525
        %v5556 = vadd.f32 %v5494, %v5528
        %v5557 = vadd.f32 %v5495, %v5527
        %v5558 = vadd.f32 %v5496, %v5530
        %v5559 = vadd.f32 %v5497, %v5529
        %v5560 = vadd.f32 %v5498, %v5532
        %v5561 = vadd.f32 %v5499, %v5531
        %v5562 = vadd.f32 %v5500, %v5534
        %v5563 = vadd.f32 %v5501, %v5533
        %v5564 = vld [vmem:[%s5221 + $0x1c] sm:$0x1]
        %v5565 = vlaneseq
        %v5566 = vshrl.u32 %v5565, 7
        %v5567 = vsub.s32 0, %v5566
        %v5568 = vrot.slane %v5564, %v5567
        %v5569 = vmul.f32 %v5568, 0.0
        %v5570 = vmul.f32 %v5213, %v5568
        %v5571 = vmul.f32 %v5214, %v5568
        %v5572 = vmul.f32 %v5215, %v5568
        %v5573 = vmul.f32 %v5216, %v5568
        %v5574 = vmul.f32 %v5217, %v5568
        %v5575 = vmul.f32 %v5218, %v5568
        %v5576 = vmul.f32 %v5219, %v5568
        %v5585 = vrot.slane %v5569, 1
        %v5586 = vsel %vm841, %v5585, %v5585
        %v5587 = vrot.slane %v5570, 1
        %v5588 = vsel %vm841, %v5585, %v5587
        %v5589 = vrot.slane %v5571, 1
        %v5590 = vsel %vm841, %v5585, %v5589
        %v5591 = vrot.slane %v5572, 1
        %v5592 = vsel %vm841, %v5585, %v5591
        %v5593 = vrot.slane %v5573, 1
        %v5594 = vsel %vm841, %v5585, %v5593
        %v5595 = vrot.slane %v5574, 1
        %v5596 = vsel %vm841, %v5585, %v5595
        %v5597 = vrot.slane %v5575, 1
        %v5598 = vsel %vm841, %v5585, %v5597
        %v5599 = vrot.slane %v5576, 1
        %v5600 = vsel %vm841, %v5585, %v5599
        %v5617 = vadd.f32 %v5549, %v5586
        %v5618 = vadd.f32 %v5550, %v5585
        %v5619 = vadd.f32 %v5549, %v5588
        %v5620 = vadd.f32 %v5551, %v5587
        %v5621 = vadd.f32 %v5552, %v5590
        %v5622 = vadd.f32 %v5553, %v5589
        %v5623 = vadd.f32 %v5554, %v5592
        %v5624 = vadd.f32 %v5555, %v5591
        %v5625 = vadd.f32 %v5556, %v5594
        %v5626 = vadd.f32 %v5557, %v5593
        %v5627 = vadd.f32 %v5558, %v5596
        %v5628 = vadd.f32 %v5559, %v5595
        %v5629 = vadd.f32 %v5560, %v5598
        %v5630 = vadd.f32 %v5561, %v5597
        %v5631 = vadd.f32 %v5562, %v5600
        %v5632 = vadd.f32 %v5563, %v5599
        %v5633 = vld [vmem:[%s5221 + $0x25] sm:$0x1]
        %v5634 = vlaneseq
        %v5635 = vshrl.u32 %v5634, 7
        %v5636 = vsub.s32 0, %v5635
        %v5637 = vrot.slane %v5633, %v5636
        %v5638 = vmul.f32 %v5637, 0.0
        %v5639 = vmul.f32 %v5213, %v5637
        %v5640 = vmul.f32 %v5214, %v5637
        %v5641 = vmul.f32 %v5215, %v5637
        %v5642 = vmul.f32 %v5216, %v5637
        %v5643 = vmul.f32 %v5217, %v5637
        %v5644 = vmul.f32 %v5218, %v5637
        %v5645 = vmul.f32 %v5219, %v5637
        %v5646 = vmul.f32 %v5220, %v5637
        %v5656 = vrot.slane %v5638, 1
        %v5657 = vrot.slane %v5639, 1
        %v5658 = vsel %vm841, %v5656, %v5657
        %v5659 = vrot.slane %v5640, 1
        %v5660 = vsel %vm841, %v5656, %v5659
        %v5661 = vrot.slane %v5641, 1
        %v5662 = vsel %vm841, %v5656, %v5661
        %v5663 = vrot.slane %v5642, 1
        %v5664 = vsel %vm841, %v5656, %v5663
        %v5665 = vrot.slane %v5643, 1
        %v5666 = vsel %vm841, %v5656, %v5665
        %v5667 = vrot.slane %v5644, 1
        %v5668 = vsel %vm841, %v5656, %v5667
        %v5669 = vrot.slane %v5645, 1
        %v5670 = vsel %vm841, %v5656, %v5669
        %v5671 = vrot.slane %v5646, 1
        %v5672 = vsel %vm841, %v5656, %v5671
        %v5689 = vadd.f32 %v5617, %v5658
        %v5690 = vadd.f32 %v5618, %v5657
        %v5691 = vadd.f32 %v5619, %v5660
        %v5692 = vadd.f32 %v5620, %v5659
        %v5693 = vadd.f32 %v5621, %v5662
        %v5694 = vadd.f32 %v5622, %v5661
        %v5695 = vadd.f32 %v5623, %v5664
        %v5696 = vadd.f32 %v5624, %v5663
        %v5697 = vadd.f32 %v5625, %v5666
        %v5698 = vadd.f32 %v5626, %v5665
        %v5699 = vadd.f32 %v5627, %v5668
        %v5700 = vadd.f32 %v5628, %v5667
        %v5701 = vadd.f32 %v5629, %v5670
        %v5702 = vadd.f32 %v5630, %v5669
        %v5703 = vadd.f32 %v5631, %v5672
        %v5704 = vadd.f32 %v5632, %v5671
        %v5705 = vld [vmem:[%s5221 + $0x2e] sm:$0x1]
        %v5706 = vlaneseq
        %v5707 = vshrl.u32 %v5706, 7
        %v5708 = vsub.s32 0, %v5707
        %v5709 = vrot.slane %v5705, %v5708
        %v5710 = vmul.f32 %v5709, 0.0
        %v5711 = vmul.f32 %v5214, %v5709
        %v5712 = vmul.f32 %v5215, %v5709
        %v5713 = vmul.f32 %v5216, %v5709
        %v5714 = vmul.f32 %v5217, %v5709
        %v5715 = vmul.f32 %v5218, %v5709
        %v5716 = vmul.f32 %v5219, %v5709
        %v5717 = vmul.f32 %v5220, %v5709
        %v5726 = vrot.slane %v5710, 1
        %v5727 = vrot.slane %v5711, 1
        %v5728 = vsel %vm841, %v5726, %v5727
        %v5729 = vrot.slane %v5712, 1
        %v5730 = vsel %vm841, %v5726, %v5729
        %v5731 = vrot.slane %v5713, 1
        %v5732 = vsel %vm841, %v5726, %v5731
        %v5733 = vrot.slane %v5714, 1
        %v5734 = vsel %vm841, %v5726, %v5733
        %v5735 = vrot.slane %v5715, 1
        %v5736 = vsel %vm841, %v5726, %v5735
        %v5737 = vrot.slane %v5716, 1
        %v5738 = vsel %vm841, %v5726, %v5737
        %v5739 = vrot.slane %v5717, 1
        %v5740 = vsel %vm841, %v5726, %v5739
        %v5741 = vsel %vm841, %v5726, %v5726
        %v5758 = vadd.f32 %v5689, %v5728
        %v5759 = vadd.f32 %v5690, %v5727
        %v5760 = vadd.f32 %v5691, %v5730
        %v5761 = vadd.f32 %v5692, %v5729
        %v5762 = vadd.f32 %v5693, %v5732
        %v5763 = vadd.f32 %v5694, %v5731
        %v5764 = vadd.f32 %v5695, %v5734
        %v5765 = vadd.f32 %v5696, %v5733
        %v5766 = vadd.f32 %v5697, %v5736
        %v5767 = vadd.f32 %v5698, %v5735
        %v5768 = vadd.f32 %v5699, %v5738
        %v5769 = vadd.f32 %v5700, %v5737
        %v5770 = vadd.f32 %v5701, %v5740
        %v5771 = vadd.f32 %v5702, %v5739
        %v5772 = vadd.f32 %v5703, %v5741
        %v5773 = vadd.f32 %v5704, %v5726
        %v5774 = vld [vmem:[%s5221 + $0x37] sm:$0x1]
        %v5775 = vlaneseq
        %v5776 = vshrl.u32 %v5775, 7
        %v5777 = vsub.s32 0, %v5776
        %v5778 = vrot.slane %v5774, %v5777
        %v5779 = vmul.f32 %v5778, 0.0
        %v5780 = vmul.f32 %v5215, %v5778
        %v5781 = vmul.f32 %v5216, %v5778
        %v5782 = vmul.f32 %v5217, %v5778
        %v5783 = vmul.f32 %v5218, %v5778
        %v5784 = vmul.f32 %v5219, %v5778
        %v5785 = vmul.f32 %v5220, %v5778
        %v5793 = vrot.slane %v5779, 1
        %v5794 = vrot.slane %v5780, 1
        %v5795 = vsel %vm841, %v5793, %v5794
        %v5796 = vrot.slane %v5781, 1
        %v5797 = vsel %vm841, %v5793, %v5796
        %v5798 = vrot.slane %v5782, 1
        %v5799 = vsel %vm841, %v5793, %v5798
        %v5800 = vrot.slane %v5783, 1
        %v5801 = vsel %vm841, %v5793, %v5800
        %v5802 = vrot.slane %v5784, 1
        %v5803 = vsel %vm841, %v5793, %v5802
        %v5804 = vrot.slane %v5785, 1
        %v5805 = vsel %vm841, %v5793, %v5804
        %v5806 = vsel %vm841, %v5793, %v5793
        %v5821 = vadd.f32 %v5758, %v5795
        %v5822 = vadd.f32 %v5759, %v5794
        %v5823 = vadd.f32 %v5760, %v5797
        %v5824 = vadd.f32 %v5761, %v5796
        %v5825 = vadd.f32 %v5762, %v5799
        %v5826 = vadd.f32 %v5763, %v5798
        %v5827 = vadd.f32 %v5764, %v5801
        %v5828 = vadd.f32 %v5765, %v5800
        %v5829 = vadd.f32 %v5766, %v5803
        %v5830 = vadd.f32 %v5767, %v5802
        %v5831 = vadd.f32 %v5768, %v5805
        %v5832 = vadd.f32 %v5769, %v5804
        %v5833 = vadd.f32 %v5770, %v5806
        %v5834 = vadd.f32 %v5771, %v5793
        %v5835 = vadd.f32 %v5772, %v5806
        %v5836 = vadd.f32 %v5773, %v5793
        %v5837 = vld [vmem:[%s5221 + $0x40] sm:$0x1]
        %v5838 = vlaneseq
        %v5839 = vshrl.u32 %v5838, 7
        %v5840 = vsub.s32 0, %v5839
        %v5841 = vrot.slane %v5837, %v5840
        %v5842 = vmul.f32 %v5841, 0.0
        %v5843 = vmul.f32 %v5216, %v5841
        %v5844 = vmul.f32 %v5217, %v5841
        %v5845 = vmul.f32 %v5218, %v5841
        %v5846 = vmul.f32 %v5219, %v5841
        %v5847 = vmul.f32 %v5220, %v5841
        %v5854 = vrot.slane %v5842, 1
        %v5855 = vrot.slane %v5843, 1
        %v5856 = vsel %vm841, %v5854, %v5855
        %v5857 = vrot.slane %v5844, 1
        %v5858 = vsel %vm841, %v5854, %v5857
        %v5859 = vrot.slane %v5845, 1
        %v5860 = vsel %vm841, %v5854, %v5859
        %v5861 = vrot.slane %v5846, 1
        %v5862 = vsel %vm841, %v5854, %v5861
        %v5863 = vrot.slane %v5847, 1
        %v5864 = vsel %vm841, %v5854, %v5863
        %v5865 = vsel %vm841, %v5854, %v5854
        %v5878 = vadd.f32 %v5821, %v5856
        %v5879 = vadd.f32 %v5822, %v5855
        %v5880 = vadd.f32 %v5823, %v5858
        %v5881 = vadd.f32 %v5824, %v5857
        %v5882 = vadd.f32 %v5825, %v5860
        %v5883 = vadd.f32 %v5826, %v5859
        %v5884 = vadd.f32 %v5827, %v5862
        %v5885 = vadd.f32 %v5828, %v5861
        %v5886 = vadd.f32 %v5829, %v5864
        %v5887 = vadd.f32 %v5830, %v5863
        %v5888 = vadd.f32 %v5831, %v5865
        %v5889 = vadd.f32 %v5832, %v5854
        %v5890 = vadd.f32 %v5833, %v5865
        %v5891 = vadd.f32 %v5834, %v5854
        %v5892 = vadd.f32 %v5835, %v5865
        %v5893 = vadd.f32 %v5836, %v5854
        %v5894 = vld [vmem:[%s5221 + $0x49] sm:$0x1]
        %v5895 = vlaneseq
        %v5896 = vshrl.u32 %v5895, 7
        %v5897 = vsub.s32 0, %v5896
        %v5898 = vrot.slane %v5894, %v5897
        %v5899 = vmul.f32 %v5898, 0.0
        %v5900 = vmul.f32 %v5217, %v5898
        %v5901 = vmul.f32 %v5218, %v5898
        %v5902 = vmul.f32 %v5219, %v5898
        %v5903 = vmul.f32 %v5220, %v5898
        %v5909 = vrot.slane %v5899, 1
        %v5910 = vrot.slane %v5900, 1
        %v5911 = vsel %vm841, %v5909, %v5910
        %v5912 = vrot.slane %v5901, 1
        %v5913 = vsel %vm841, %v5909, %v5912
        %v5914 = vrot.slane %v5902, 1
        %v5915 = vsel %vm841, %v5909, %v5914
        %v5916 = vrot.slane %v5903, 1
        %v5917 = vsel %vm841, %v5909, %v5916
        %v5918 = vsel %vm841, %v5909, %v5909
        %v5929 = vadd.f32 %v5878, %v5911
        %v5930 = vadd.f32 %v5879, %v5910
        %v5931 = vadd.f32 %v5880, %v5913
        %v5932 = vadd.f32 %v5881, %v5912
        %v5933 = vadd.f32 %v5882, %v5915
        %v5934 = vadd.f32 %v5883, %v5914
        %v5935 = vadd.f32 %v5884, %v5917
        %v5936 = vadd.f32 %v5885, %v5916
        %v5937 = vadd.f32 %v5886, %v5918
        %v5938 = vadd.f32 %v5887, %v5909
        %v5939 = vadd.f32 %v5888, %v5918
        %v5940 = vadd.f32 %v5889, %v5909
        %v5941 = vadd.f32 %v5890, %v5918
        %v5942 = vadd.f32 %v5891, %v5909
        %v5943 = vadd.f32 %v5892, %v5918
        %v5944 = vadd.f32 %v5893, %v5909
        %v5945 = vld [vmem:[%s5221 + $0x2] sm:$0x1]
        %v5946 = vlaneseq
        %v5947 = vshrl.u32 %v5946, 7
        %v5948 = vsub.s32 0, %v5947
        %v5949 = vrot.slane %v5945, %v5948
        %v5950 = vmul.f32 %v5949, 0.0
        %v5951 = vmul.f32 %v5213, %v5949
        %v5952 = vmul.f32 %v5214, %v5949
        %v5953 = vmul.f32 %v5215, %v5949
        %v5954 = vmul.f32 %v5216, %v5949
        %v5960 = vrot.slane %v5950, 2
        %v5961 = vsel %vm1388, %v5960, %v5960
        %v5962 = vrot.slane %v5951, 2
        %v5963 = vsel %vm1388, %v5960, %v5962
        %v5964 = vrot.slane %v5952, 2
        %v5965 = vsel %vm1388, %v5960, %v5964
        %v5966 = vrot.slane %v5953, 2
        %v5967 = vsel %vm1388, %v5960, %v5966
        %v5968 = vrot.slane %v5954, 2
        %v5969 = vsel %vm1388, %v5960, %v5968
        %v5980 = vadd.f32 %v5929, %v5961
        %v5981 = vadd.f32 %v5930, %v5960
        %v5982 = vadd.f32 %v5931, %v5961
        %v5983 = vadd.f32 %v5932, %v5960
        %v5984 = vadd.f32 %v5933, %v5961
        %v5985 = vadd.f32 %v5934, %v5960
        %v5986 = vadd.f32 %v5935, %v5961
        %v5987 = vadd.f32 %v5936, %v5960
        %v5988 = vadd.f32 %v5937, %v5963
        %v5989 = vadd.f32 %v5938, %v5962
        %v5990 = vadd.f32 %v5939, %v5965
        %v5991 = vadd.f32 %v5940, %v5964
        %v5992 = vadd.f32 %v5941, %v5967
        %v5993 = vadd.f32 %v5942, %v5966
        %v5994 = vadd.f32 %v5943, %v5969
        %v5995 = vadd.f32 %v5944, %v5968
        %v5996 = vld [vmem:[%s5221 + $0xb] sm:$0x1]
        %v5997 = vlaneseq
        %v5998 = vshrl.u32 %v5997, 7
        %v5999 = vsub.s32 0, %v5998
        %v6000 = vrot.slane %v5996, %v5999
        %v6001 = vmul.f32 %v6000, 0.0
        %v6002 = vmul.f32 %v5213, %v6000
        %v6003 = vmul.f32 %v5214, %v6000
        %v6004 = vmul.f32 %v5215, %v6000
        %v6005 = vmul.f32 %v5216, %v6000
        %v6006 = vmul.f32 %v5217, %v6000
        %v6013 = vrot.slane %v6001, 2
        %v6014 = vsel %vm1388, %v6013, %v6013
        %v6015 = vrot.slane %v6002, 2
        %v6016 = vsel %vm1388, %v6013, %v6015
        %v6017 = vrot.slane %v6003, 2
        %v6018 = vsel %vm1388, %v6013, %v6017
        %v6019 = vrot.slane %v6004, 2
        %v6020 = vsel %vm1388, %v6013, %v6019
        %v6021 = vrot.slane %v6005, 2
        %v6022 = vsel %vm1388, %v6013, %v6021
        %v6023 = vrot.slane %v6006, 2
        %v6024 = vsel %vm1388, %v6013, %v6023
        %v6037 = vadd.f32 %v5980, %v6014
        %v6038 = vadd.f32 %v5981, %v6013
        %v6039 = vadd.f32 %v5982, %v6014
        %v6040 = vadd.f32 %v5983, %v6013
        %v6041 = vadd.f32 %v5984, %v6014
        %v6042 = vadd.f32 %v5985, %v6013
        %v6043 = vadd.f32 %v5986, %v6016
        %v6044 = vadd.f32 %v5987, %v6015
        %v6045 = vadd.f32 %v5988, %v6018
        %v6046 = vadd.f32 %v5989, %v6017
        %v6047 = vadd.f32 %v5990, %v6020
        %v6048 = vadd.f32 %v5991, %v6019
        %v6049 = vadd.f32 %v5992, %v6022
        %v6050 = vadd.f32 %v5993, %v6021
        %v6051 = vadd.f32 %v5994, %v6024
        %v6052 = vadd.f32 %v5995, %v6023
        %v6053 = vld [vmem:[%s5221 + $0x14] sm:$0x1]
        %v6054 = vlaneseq
        %v6055 = vshrl.u32 %v6054, 7
        %v6056 = vsub.s32 0, %v6055
        %v6057 = vrot.slane %v6053, %v6056
        %v6058 = vmul.f32 %v6057, 0.0
        %v6059 = vmul.f32 %v5213, %v6057
        %v6060 = vmul.f32 %v5214, %v6057
        %v6061 = vmul.f32 %v5215, %v6057
        %v6062 = vmul.f32 %v5216, %v6057
        %v6063 = vmul.f32 %v5217, %v6057
        %v6064 = vmul.f32 %v5218, %v6057
        %v6072 = vrot.slane %v6058, 2
        %v6073 = vsel %vm1388, %v6072, %v6072
        %v6074 = vrot.slane %v6059, 2
        %v6075 = vsel %vm1388, %v6072, %v6074
        %v6076 = vrot.slane %v6060, 2
        %v6077 = vsel %vm1388, %v6072, %v6076
        %v6078 = vrot.slane %v6061, 2
        %v6079 = vsel %vm1388, %v6072, %v6078
        %v6080 = vrot.slane %v6062, 2
        %v6081 = vsel %vm1388, %v6072, %v6080
        %v6082 = vrot.slane %v6063, 2
        %v6083 = vsel %vm1388, %v6072, %v6082
        %v6084 = vrot.slane %v6064, 2
        %v6085 = vsel %vm1388, %v6072, %v6084
        %v6100 = vadd.f32 %v6037, %v6073
        %v6101 = vadd.f32 %v6038, %v6072
        %v6102 = vadd.f32 %v6039, %v6073
        %v6103 = vadd.f32 %v6040, %v6072
        %v6104 = vadd.f32 %v6041, %v6075
        %v6105 = vadd.f32 %v6042, %v6074
        %v6106 = vadd.f32 %v6043, %v6077
        %v6107 = vadd.f32 %v6044, %v6076
        %v6108 = vadd.f32 %v6045, %v6079
        %v6109 = vadd.f32 %v6046, %v6078
        %v6110 = vadd.f32 %v6047, %v6081
        %v6111 = vadd.f32 %v6048, %v6080
        %v6112 = vadd.f32 %v6049, %v6083
        %v6113 = vadd.f32 %v6050, %v6082
        %v6114 = vadd.f32 %v6051, %v6085
        %v6115 = vadd.f32 %v6052, %v6084
        %v6116 = vld [vmem:[%s5221 + $0x1d] sm:$0x1]
        %v6117 = vlaneseq
        %v6118 = vshrl.u32 %v6117, 7
        %v6119 = vsub.s32 0, %v6118
        %v6120 = vrot.slane %v6116, %v6119
        %v6121 = vmul.f32 %v6120, 0.0
        %v6122 = vmul.f32 %v5213, %v6120
        %v6123 = vmul.f32 %v5214, %v6120
        %v6124 = vmul.f32 %v5215, %v6120
        %v6125 = vmul.f32 %v5216, %v6120
        %v6126 = vmul.f32 %v5217, %v6120
        %v6127 = vmul.f32 %v5218, %v6120
        %v6128 = vmul.f32 %v5219, %v6120
        %v6137 = vrot.slane %v6121, 2
        %v6138 = vsel %vm1388, %v6137, %v6137
        %v6139 = vrot.slane %v6122, 2
        %v6140 = vsel %vm1388, %v6137, %v6139
        %v6141 = vrot.slane %v6123, 2
        %v6142 = vsel %vm1388, %v6137, %v6141
        %v6143 = vrot.slane %v6124, 2
        %v6144 = vsel %vm1388, %v6137, %v6143
        %v6145 = vrot.slane %v6125, 2
        %v6146 = vsel %vm1388, %v6137, %v6145
        %v6147 = vrot.slane %v6126, 2
        %v6148 = vsel %vm1388, %v6137, %v6147
        %v6149 = vrot.slane %v6127, 2
        %v6150 = vsel %vm1388, %v6137, %v6149
        %v6151 = vrot.slane %v6128, 2
        %v6152 = vsel %vm1388, %v6137, %v6151
        %v6169 = vadd.f32 %v6100, %v6138
        %v6170 = vadd.f32 %v6101, %v6137
        %v6171 = vadd.f32 %v6102, %v6140
        %v6172 = vadd.f32 %v6103, %v6139
        %v6173 = vadd.f32 %v6104, %v6142
        %v6174 = vadd.f32 %v6105, %v6141
        %v6175 = vadd.f32 %v6106, %v6144
        %v6176 = vadd.f32 %v6107, %v6143
        %v6177 = vadd.f32 %v6108, %v6146
        %v6178 = vadd.f32 %v6109, %v6145
        %v6179 = vadd.f32 %v6110, %v6148
        %v6180 = vadd.f32 %v6111, %v6147
        %v6181 = vadd.f32 %v6112, %v6150
        %v6182 = vadd.f32 %v6113, %v6149
        %v6183 = vadd.f32 %v6114, %v6152
        %v6184 = vadd.f32 %v6115, %v6151
        %v6185 = vld [vmem:[%s5221 + $0x26] sm:$0x1]
        %v6186 = vlaneseq
        %v6187 = vshrl.u32 %v6186, 7
        %v6188 = vsub.s32 0, %v6187
        %v6189 = vrot.slane %v6185, %v6188
        %v6190 = vmul.f32 %v6189, 0.0
        %v6191 = vmul.f32 %v5213, %v6189
        %v6192 = vmul.f32 %v5214, %v6189
        %v6193 = vmul.f32 %v5215, %v6189
        %v6194 = vmul.f32 %v5216, %v6189
        %v6195 = vmul.f32 %v5217, %v6189
        %v6196 = vmul.f32 %v5218, %v6189
        %v6197 = vmul.f32 %v5219, %v6189
        %v6198 = vmul.f32 %v5220, %v6189
        %v6208 = vrot.slane %v6190, 2
        %v6209 = vrot.slane %v6191, 2
        %v6210 = vsel %vm1388, %v6208, %v6209
        %v6211 = vrot.slane %v6192, 2
        %v6212 = vsel %vm1388, %v6208, %v6211
        %v6213 = vrot.slane %v6193, 2
        %v6214 = vsel %vm1388, %v6208, %v6213
        %v6215 = vrot.slane %v6194, 2
        %v6216 = vsel %vm1388, %v6208, %v6215
        %v6217 = vrot.slane %v6195, 2
        %v6218 = vsel %vm1388, %v6208, %v6217
        %v6219 = vrot.slane %v6196, 2
        %v6220 = vsel %vm1388, %v6208, %v6219
        %v6221 = vrot.slane %v6197, 2
        %v6222 = vsel %vm1388, %v6208, %v6221
        %v6223 = vrot.slane %v6198, 2
        %v6224 = vsel %vm1388, %v6208, %v6223
        %v6241 = vadd.f32 %v6169, %v6210
        %v6242 = vadd.f32 %v6170, %v6209
        %v6243 = vadd.f32 %v6171, %v6212
        %v6244 = vadd.f32 %v6172, %v6211
        %v6245 = vadd.f32 %v6173, %v6214
        %v6246 = vadd.f32 %v6174, %v6213
        %v6247 = vadd.f32 %v6175, %v6216
        %v6248 = vadd.f32 %v6176, %v6215
        %v6249 = vadd.f32 %v6177, %v6218
        %v6250 = vadd.f32 %v6178, %v6217
        %v6251 = vadd.f32 %v6179, %v6220
        %v6252 = vadd.f32 %v6180, %v6219
        %v6253 = vadd.f32 %v6181, %v6222
        %v6254 = vadd.f32 %v6182, %v6221
        %v6255 = vadd.f32 %v6183, %v6224
        %v6256 = vadd.f32 %v6184, %v6223
        %v6257 = vld [vmem:[%s5221 + $0x2f] sm:$0x1]
        %v6258 = vlaneseq
        %v6259 = vshrl.u32 %v6258, 7
        %v6260 = vsub.s32 0, %v6259
        %v6261 = vrot.slane %v6257, %v6260
        %v6262 = vmul.f32 %v6261, 0.0
        %v6263 = vmul.f32 %v5214, %v6261
        %v6264 = vmul.f32 %v5215, %v6261
        %v6265 = vmul.f32 %v5216, %v6261
        %v6266 = vmul.f32 %v5217, %v6261
        %v6267 = vmul.f32 %v5218, %v6261
        %v6268 = vmul.f32 %v5219, %v6261
        %v6269 = vmul.f32 %v5220, %v6261
        %v6278 = vrot.slane %v6262, 2
        %v6279 = vrot.slane %v6263, 2
        %v6280 = vsel %vm1388, %v6278, %v6279
        %v6281 = vrot.slane %v6264, 2
        %v6282 = vsel %vm1388, %v6278, %v6281
        %v6283 = vrot.slane %v6265, 2
        %v6284 = vsel %vm1388, %v6278, %v6283
        %v6285 = vrot.slane %v6266, 2
        %v6286 = vsel %vm1388, %v6278, %v6285
        %v6287 = vrot.slane %v6267, 2
        %v6288 = vsel %vm1388, %v6278, %v6287
        %v6289 = vrot.slane %v6268, 2
        %v6290 = vsel %vm1388, %v6278, %v6289
        %v6291 = vrot.slane %v6269, 2
        %v6292 = vsel %vm1388, %v6278, %v6291
        %v6293 = vsel %vm1388, %v6278, %v6278
        %v6310 = vadd.f32 %v6241, %v6280
        %v6311 = vadd.f32 %v6242, %v6279
        %v6312 = vadd.f32 %v6243, %v6282
        %v6313 = vadd.f32 %v6244, %v6281
        %v6314 = vadd.f32 %v6245, %v6284
        %v6315 = vadd.f32 %v6246, %v6283
        %v6316 = vadd.f32 %v6247, %v6286
        %v6317 = vadd.f32 %v6248, %v6285
        %v6318 = vadd.f32 %v6249, %v6288
        %v6319 = vadd.f32 %v6250, %v6287
        %v6320 = vadd.f32 %v6251, %v6290
        %v6321 = vadd.f32 %v6252, %v6289
        %v6322 = vadd.f32 %v6253, %v6292
        %v6323 = vadd.f32 %v6254, %v6291
        %v6324 = vadd.f32 %v6255, %v6293
        %v6325 = vadd.f32 %v6256, %v6278
        %v6326 = vld [vmem:[%s5221 + $0x38] sm:$0x1]
        %v6327 = vlaneseq
        %v6328 = vshrl.u32 %v6327, 7
        %v6329 = vsub.s32 0, %v6328
        %v6330 = vrot.slane %v6326, %v6329
        %v6331 = vmul.f32 %v6330, 0.0
        %v6332 = vmul.f32 %v5215, %v6330
        %v6333 = vmul.f32 %v5216, %v6330
        %v6334 = vmul.f32 %v5217, %v6330
        %v6335 = vmul.f32 %v5218, %v6330
        %v6336 = vmul.f32 %v5219, %v6330
        %v6337 = vmul.f32 %v5220, %v6330
        %v6345 = vrot.slane %v6331, 2
        %v6346 = vrot.slane %v6332, 2
        %v6347 = vsel %vm1388, %v6345, %v6346
        %v6348 = vrot.slane %v6333, 2
        %v6349 = vsel %vm1388, %v6345, %v6348
        %v6350 = vrot.slane %v6334, 2
        %v6351 = vsel %vm1388, %v6345, %v6350
        %v6352 = vrot.slane %v6335, 2
        %v6353 = vsel %vm1388, %v6345, %v6352
        %v6354 = vrot.slane %v6336, 2
        %v6355 = vsel %vm1388, %v6345, %v6354
        %v6356 = vrot.slane %v6337, 2
        %v6357 = vsel %vm1388, %v6345, %v6356
        %v6358 = vsel %vm1388, %v6345, %v6345
        %v6373 = vadd.f32 %v6310, %v6347
        %v6374 = vadd.f32 %v6311, %v6346
        %v6375 = vadd.f32 %v6312, %v6349
        %v6376 = vadd.f32 %v6313, %v6348
        %v6377 = vadd.f32 %v6314, %v6351
        %v6378 = vadd.f32 %v6315, %v6350
        %v6379 = vadd.f32 %v6316, %v6353
        %v6380 = vadd.f32 %v6317, %v6352
        %v6381 = vadd.f32 %v6318, %v6355
        %v6382 = vadd.f32 %v6319, %v6354
        %v6383 = vadd.f32 %v6320, %v6357
        %v6384 = vadd.f32 %v6321, %v6356
        %v6385 = vadd.f32 %v6322, %v6358
        %v6386 = vadd.f32 %v6323, %v6345
        %v6387 = vadd.f32 %v6324, %v6358
        %v6388 = vadd.f32 %v6325, %v6345
        %v6389 = vld [vmem:[%s5221 + $0x41] sm:$0x1]
        %v6390 = vlaneseq
        %v6391 = vshrl.u32 %v6390, 7
        %v6392 = vsub.s32 0, %v6391
        %v6393 = vrot.slane %v6389, %v6392
        %v6394 = vmul.f32 %v6393, 0.0
        %v6395 = vmul.f32 %v5216, %v6393
        %v6396 = vmul.f32 %v5217, %v6393
        %v6397 = vmul.f32 %v5218, %v6393
        %v6398 = vmul.f32 %v5219, %v6393
        %v6399 = vmul.f32 %v5220, %v6393
        %v6406 = vrot.slane %v6394, 2
        %v6407 = vrot.slane %v6395, 2
        %v6408 = vsel %vm1388, %v6406, %v6407
        %v6409 = vrot.slane %v6396, 2
        %v6410 = vsel %vm1388, %v6406, %v6409
        %v6411 = vrot.slane %v6397, 2
        %v6412 = vsel %vm1388, %v6406, %v6411
        %v6413 = vrot.slane %v6398, 2
        %v6414 = vsel %vm1388, %v6406, %v6413
        %v6415 = vrot.slane %v6399, 2
        %v6416 = vsel %vm1388, %v6406, %v6415
        %v6417 = vsel %vm1388, %v6406, %v6406
        %v6430 = vadd.f32 %v6373, %v6408
        %v6431 = vadd.f32 %v6374, %v6407
        %v6432 = vadd.f32 %v6375, %v6410
        %v6433 = vadd.f32 %v6376, %v6409
        %v6434 = vadd.f32 %v6377, %v6412
        %v6435 = vadd.f32 %v6378, %v6411
        %v6436 = vadd.f32 %v6379, %v6414
        %v6437 = vadd.f32 %v6380, %v6413
        %v6438 = vadd.f32 %v6381, %v6416
        %v6439 = vadd.f32 %v6382, %v6415
        %v6440 = vadd.f32 %v6383, %v6417
        %v6441 = vadd.f32 %v6384, %v6406
        %v6442 = vadd.f32 %v6385, %v6417
        %v6443 = vadd.f32 %v6386, %v6406
        %v6444 = vadd.f32 %v6387, %v6417
        %v6445 = vadd.f32 %v6388, %v6406
        %v6446 = vld [vmem:[%s5221 + $0x4a] sm:$0x1]
        %v6447 = vlaneseq
        %v6448 = vshrl.u32 %v6447, 7
        %v6449 = vsub.s32 0, %v6448
        %v6450 = vrot.slane %v6446, %v6449
        %v6451 = vmul.f32 %v6450, 0.0
        %v6452 = vmul.f32 %v5217, %v6450
        %v6453 = vmul.f32 %v5218, %v6450
        %v6454 = vmul.f32 %v5219, %v6450
        %v6455 = vmul.f32 %v5220, %v6450
        %v6461 = vrot.slane %v6451, 2
        %v6462 = vrot.slane %v6452, 2
        %v6463 = vsel %vm1388, %v6461, %v6462
        %v6464 = vrot.slane %v6453, 2
        %v6465 = vsel %vm1388, %v6461, %v6464
        %v6466 = vrot.slane %v6454, 2
        %v6467 = vsel %vm1388, %v6461, %v6466
        %v6468 = vrot.slane %v6455, 2
        %v6469 = vsel %vm1388, %v6461, %v6468
        %v6470 = vsel %vm1388, %v6461, %v6461
        %v6481 = vadd.f32 %v6430, %v6463
        %v6482 = vadd.f32 %v6431, %v6462
        %v6483 = vadd.f32 %v6432, %v6465
        %v6484 = vadd.f32 %v6433, %v6464
        %v6485 = vadd.f32 %v6434, %v6467
        %v6486 = vadd.f32 %v6435, %v6466
        %v6487 = vadd.f32 %v6436, %v6469
        %v6488 = vadd.f32 %v6437, %v6468
        %v6489 = vadd.f32 %v6438, %v6470
        %v6490 = vadd.f32 %v6439, %v6461
        %v6491 = vadd.f32 %v6440, %v6470
        %v6492 = vadd.f32 %v6441, %v6461
        %v6493 = vadd.f32 %v6442, %v6470
        %v6494 = vadd.f32 %v6443, %v6461
        %v6495 = vadd.f32 %v6444, %v6470
        %v6496 = vadd.f32 %v6445, %v6461
        %v6497 = vld [vmem:[%s5221 + $0x3] sm:$0x1]
        %v6498 = vlaneseq
        %v6499 = vshrl.u32 %v6498, 7
        %v6500 = vsub.s32 0, %v6499
        %v6501 = vrot.slane %v6497, %v6500
        %v6502 = vmul.f32 %v6501, 0.0
        %v6503 = vmul.f32 %v5213, %v6501
        %v6504 = vmul.f32 %v5214, %v6501
        %v6505 = vmul.f32 %v5215, %v6501
        %v6506 = vmul.f32 %v5216, %v6501
        %v6512 = vrot.slane %v6502, 3
        %v6513 = vsel %vm1941, %v6512, %v6512
        %v6514 = vrot.slane %v6503, 3
        %v6515 = vsel %vm1941, %v6512, %v6514
        %v6516 = vrot.slane %v6504, 3
        %v6517 = vsel %vm1941, %v6512, %v6516
        %v6518 = vrot.slane %v6505, 3
        %v6519 = vsel %vm1941, %v6512, %v6518
        %v6520 = vrot.slane %v6506, 3
        %v6521 = vsel %vm1941, %v6512, %v6520
        %v6532 = vadd.f32 %v6481, %v6513
        %v6533 = vadd.f32 %v6482, %v6512
        %v6534 = vadd.f32 %v6483, %v6513
        %v6535 = vadd.f32 %v6484, %v6512
        %v6536 = vadd.f32 %v6485, %v6513
        %v6537 = vadd.f32 %v6486, %v6512
        %v6538 = vadd.f32 %v6487, %v6513
        %v6539 = vadd.f32 %v6488, %v6512
        %v6540 = vadd.f32 %v6489, %v6515
        %v6541 = vadd.f32 %v6490, %v6514
        %v6542 = vadd.f32 %v6491, %v6517
        %v6543 = vadd.f32 %v6492, %v6516
        %v6544 = vadd.f32 %v6493, %v6519
        %v6545 = vadd.f32 %v6494, %v6518
        %v6546 = vadd.f32 %v6495, %v6521
        %v6547 = vadd.f32 %v6496, %v6520
        %v6548 = vld [vmem:[%s5221 + $0xc] sm:$0x1]
        %v6549 = vlaneseq
        %v6550 = vshrl.u32 %v6549, 7
        %v6551 = vsub.s32 0, %v6550
        %v6552 = vrot.slane %v6548, %v6551
        %v6553 = vmul.f32 %v6552, 0.0
        %v6554 = vmul.f32 %v5213, %v6552
        %v6555 = vmul.f32 %v5214, %v6552
        %v6556 = vmul.f32 %v5215, %v6552
        %v6557 = vmul.f32 %v5216, %v6552
        %v6558 = vmul.f32 %v5217, %v6552
        %v6565 = vrot.slane %v6553, 3
        %v6566 = vsel %vm1941, %v6565, %v6565
        %v6567 = vrot.slane %v6554, 3
        %v6568 = vsel %vm1941, %v6565, %v6567
        %v6569 = vrot.slane %v6555, 3
        %v6570 = vsel %vm1941, %v6565, %v6569
        %v6571 = vrot.slane %v6556, 3
        %v6572 = vsel %vm1941, %v6565, %v6571
        %v6573 = vrot.slane %v6557, 3
        %v6574 = vsel %vm1941, %v6565, %v6573
        %v6575 = vrot.slane %v6558, 3
        %v6576 = vsel %vm1941, %v6565, %v6575
        %v6589 = vadd.f32 %v6532, %v6566
        %v6590 = vadd.f32 %v6533, %v6565
        %v6591 = vadd.f32 %v6534, %v6566
        %v6592 = vadd.f32 %v6535, %v6565
        %v6593 = vadd.f32 %v6536, %v6566
        %v6594 = vadd.f32 %v6537, %v6565
        %v6595 = vadd.f32 %v6538, %v6568
        %v6596 = vadd.f32 %v6539, %v6567
        %v6597 = vadd.f32 %v6540, %v6570
        %v6598 = vadd.f32 %v6541, %v6569
        %v6599 = vadd.f32 %v6542, %v6572
        %v6600 = vadd.f32 %v6543, %v6571
        %v6601 = vadd.f32 %v6544, %v6574
        %v6602 = vadd.f32 %v6545, %v6573
        %v6603 = vadd.f32 %v6546, %v6576
        %v6604 = vadd.f32 %v6547, %v6575
        %v6605 = vld [vmem:[%s5221 + $0x15] sm:$0x1]
        %v6606 = vlaneseq
        %v6607 = vshrl.u32 %v6606, 7
        %v6608 = vsub.s32 0, %v6607
        %v6609 = vrot.slane %v6605, %v6608
        %v6610 = vmul.f32 %v6609, 0.0
        %v6611 = vmul.f32 %v5213, %v6609
        %v6612 = vmul.f32 %v5214, %v6609
        %v6613 = vmul.f32 %v5215, %v6609
        %v6614 = vmul.f32 %v5216, %v6609
        %v6615 = vmul.f32 %v5217, %v6609
        %v6616 = vmul.f32 %v5218, %v6609
        %v6624 = vrot.slane %v6610, 3
        %v6625 = vsel %vm1941, %v6624, %v6624
        %v6626 = vrot.slane %v6611, 3
        %v6627 = vsel %vm1941, %v6624, %v6626
        %v6628 = vrot.slane %v6612, 3
        %v6629 = vsel %vm1941, %v6624, %v6628
        %v6630 = vrot.slane %v6613, 3
        %v6631 = vsel %vm1941, %v6624, %v6630
        %v6632 = vrot.slane %v6614, 3
        %v6633 = vsel %vm1941, %v6624, %v6632
        %v6634 = vrot.slane %v6615, 3
        %v6635 = vsel %vm1941, %v6624, %v6634
        %v6636 = vrot.slane %v6616, 3
        %v6637 = vsel %vm1941, %v6624, %v6636
        %v6652 = vadd.f32 %v6589, %v6625
        %v6653 = vadd.f32 %v6590, %v6624
        %v6654 = vadd.f32 %v6591, %v6625
        %v6655 = vadd.f32 %v6592, %v6624
        %v6656 = vadd.f32 %v6593, %v6627
        %v6657 = vadd.f32 %v6594, %v6626
        %v6658 = vadd.f32 %v6595, %v6629
        %v6659 = vadd.f32 %v6596, %v6628
        %v6660 = vadd.f32 %v6597, %v6631
        %v6661 = vadd.f32 %v6598, %v6630
        %v6662 = vadd.f32 %v6599, %v6633
        %v6663 = vadd.f32 %v6600, %v6632
        %v6664 = vadd.f32 %v6601, %v6635
        %v6665 = vadd.f32 %v6602, %v6634
        %v6666 = vadd.f32 %v6603, %v6637
        %v6667 = vadd.f32 %v6604, %v6636
        %v6668 = vld [vmem:[%s5221 + $0x1e] sm:$0x1]
        %v6669 = vlaneseq
        %v6670 = vshrl.u32 %v6669, 7
        %v6671 = vsub.s32 0, %v6670
        %v6672 = vrot.slane %v6668, %v6671
        %v6673 = vmul.f32 %v6672, 0.0
        %v6674 = vmul.f32 %v5213, %v6672
        %v6675 = vmul.f32 %v5214, %v6672
        %v6676 = vmul.f32 %v5215, %v6672
        %v6677 = vmul.f32 %v5216, %v6672
        %v6678 = vmul.f32 %v5217, %v6672
        %v6679 = vmul.f32 %v5218, %v6672
        %v6680 = vmul.f32 %v5219, %v6672
        %v6689 = vrot.slane %v6673, 3
        %v6690 = vsel %vm1941, %v6689, %v6689
        %v6691 = vrot.slane %v6674, 3
        %v6692 = vsel %vm1941, %v6689, %v6691
        %v6693 = vrot.slane %v6675, 3
        %v6694 = vsel %vm1941, %v6689, %v6693
        %v6695 = vrot.slane %v6676, 3
        %v6696 = vsel %vm1941, %v6689, %v6695
        %v6697 = vrot.slane %v6677, 3
        %v6698 = vsel %vm1941, %v6689, %v6697
        %v6699 = vrot.slane %v6678, 3
        %v6700 = vsel %vm1941, %v6689, %v6699
        %v6701 = vrot.slane %v6679, 3
        %v6702 = vsel %vm1941, %v6689, %v6701
        %v6703 = vrot.slane %v6680, 3
        %v6704 = vsel %vm1941, %v6689, %v6703
        %v6721 = vadd.f32 %v6652, %v6690
        %v6722 = vadd.f32 %v6653, %v6689
        %v6723 = vadd.f32 %v6654, %v6692
        %v6724 = vadd.f32 %v6655, %v6691
        %v6725 = vadd.f32 %v6656, %v6694
        %v6726 = vadd.f32 %v6657, %v6693
        %v6727 = vadd.f32 %v6658, %v6696
        %v6728 = vadd.f32 %v6659, %v6695
        %v6729 = vadd.f32 %v6660, %v6698
        %v6730 = vadd.f32 %v6661, %v6697
        %v6731 = vadd.f32 %v6662, %v6700
        %v6732 = vadd.f32 %v6663, %v6699
        %v6733 = vadd.f32 %v6664, %v6702
        %v6734 = vadd.f32 %v6665, %v6701
        %v6735 = vadd.f32 %v6666, %v6704
        %v6736 = vadd.f32 %v6667, %v6703
        %v6737 = vld [vmem:[%s5221 + $0x27] sm:$0x1]
        %v6738 = vlaneseq
        %v6739 = vshrl.u32 %v6738, 7
        %v6740 = vsub.s32 0, %v6739
        %v6741 = vrot.slane %v6737, %v6740
        %v6742 = vmul.f32 %v6741, 0.0
        %v6743 = vmul.f32 %v5213, %v6741
        %v6744 = vmul.f32 %v5214, %v6741
        %v6745 = vmul.f32 %v5215, %v6741
        %v6746 = vmul.f32 %v5216, %v6741
        %v6747 = vmul.f32 %v5217, %v6741
        %v6748 = vmul.f32 %v5218, %v6741
        %v6749 = vmul.f32 %v5219, %v6741
        %v6750 = vmul.f32 %v5220, %v6741
        %v6760 = vrot.slane %v6742, 3
        %v6761 = vrot.slane %v6743, 3
        %v6762 = vsel %vm1941, %v6760, %v6761
        %v6763 = vrot.slane %v6744, 3
        %v6764 = vsel %vm1941, %v6760, %v6763
        %v6765 = vrot.slane %v6745, 3
        %v6766 = vsel %vm1941, %v6760, %v6765
        %v6767 = vrot.slane %v6746, 3
        %v6768 = vsel %vm1941, %v6760, %v6767
        %v6769 = vrot.slane %v6747, 3
        %v6770 = vsel %vm1941, %v6760, %v6769
        %v6771 = vrot.slane %v6748, 3
        %v6772 = vsel %vm1941, %v6760, %v6771
        %v6773 = vrot.slane %v6749, 3
        %v6774 = vsel %vm1941, %v6760, %v6773
        %v6775 = vrot.slane %v6750, 3
        %v6776 = vsel %vm1941, %v6760, %v6775
        %v6793 = vadd.f32 %v6721, %v6762
        %v6794 = vadd.f32 %v6722, %v6761
        %v6795 = vadd.f32 %v6723, %v6764
        %v6796 = vadd.f32 %v6724, %v6763
        %v6797 = vadd.f32 %v6725, %v6766
        %v6798 = vadd.f32 %v6726, %v6765
        %v6799 = vadd.f32 %v6727, %v6768
        %v6800 = vadd.f32 %v6728, %v6767
        %v6801 = vadd.f32 %v6729, %v6770
        %v6802 = vadd.f32 %v6730, %v6769
        %v6803 = vadd.f32 %v6731, %v6772
        %v6804 = vadd.f32 %v6732, %v6771
        %v6805 = vadd.f32 %v6733, %v6774
        %v6806 = vadd.f32 %v6734, %v6773
        %v6807 = vadd.f32 %v6735, %v6776
        %v6808 = vadd.f32 %v6736, %v6775
        %v6809 = vld [vmem:[%s5221 + $0x30] sm:$0x1]
        %v6810 = vlaneseq
        %v6811 = vshrl.u32 %v6810, 7
        %v6812 = vsub.s32 0, %v6811
        %v6813 = vrot.slane %v6809, %v6812
        %v6814 = vmul.f32 %v6813, 0.0
        %v6815 = vmul.f32 %v5214, %v6813
        %v6816 = vmul.f32 %v5215, %v6813
        %v6817 = vmul.f32 %v5216, %v6813
        %v6818 = vmul.f32 %v5217, %v6813
        %v6819 = vmul.f32 %v5218, %v6813
        %v6820 = vmul.f32 %v5219, %v6813
        %v6821 = vmul.f32 %v5220, %v6813
        %v6830 = vrot.slane %v6814, 3
        %v6831 = vrot.slane %v6815, 3
        %v6832 = vsel %vm1941, %v6830, %v6831
        %v6833 = vrot.slane %v6816, 3
        %v6834 = vsel %vm1941, %v6830, %v6833
        %v6835 = vrot.slane %v6817, 3
        %v6836 = vsel %vm1941, %v6830, %v6835
        %v6837 = vrot.slane %v6818, 3
        %v6838 = vsel %vm1941, %v6830, %v6837
        %v6839 = vrot.slane %v6819, 3
        %v6840 = vsel %vm1941, %v6830, %v6839
        %v6841 = vrot.slane %v6820, 3
        %v6842 = vsel %vm1941, %v6830, %v6841
        %v6843 = vrot.slane %v6821, 3
        %v6844 = vsel %vm1941, %v6830, %v6843
        %v6845 = vsel %vm1941, %v6830, %v6830
        %v6862 = vadd.f32 %v6793, %v6832
        %v6863 = vadd.f32 %v6794, %v6831
        %v6864 = vadd.f32 %v6795, %v6834
        %v6865 = vadd.f32 %v6796, %v6833
        %v6866 = vadd.f32 %v6797, %v6836
        %v6867 = vadd.f32 %v6798, %v6835
        %v6868 = vadd.f32 %v6799, %v6838
        %v6869 = vadd.f32 %v6800, %v6837
        %v6870 = vadd.f32 %v6801, %v6840
        %v6871 = vadd.f32 %v6802, %v6839
        %v6872 = vadd.f32 %v6803, %v6842
        %v6873 = vadd.f32 %v6804, %v6841
        %v6874 = vadd.f32 %v6805, %v6844
        %v6875 = vadd.f32 %v6806, %v6843
        %v6876 = vadd.f32 %v6807, %v6845
        %v6877 = vadd.f32 %v6808, %v6830
        %v6878 = vld [vmem:[%s5221 + $0x39] sm:$0x1]
        %v6879 = vlaneseq
        %v6880 = vshrl.u32 %v6879, 7
        %v6881 = vsub.s32 0, %v6880
        %v6882 = vrot.slane %v6878, %v6881
        %v6883 = vmul.f32 %v6882, 0.0
        %v6884 = vmul.f32 %v5215, %v6882
        %v6885 = vmul.f32 %v5216, %v6882
        %v6886 = vmul.f32 %v5217, %v6882
        %v6887 = vmul.f32 %v5218, %v6882
        %v6888 = vmul.f32 %v5219, %v6882
        %v6889 = vmul.f32 %v5220, %v6882
        %v6897 = vrot.slane %v6883, 3
        %v6898 = vrot.slane %v6884, 3
        %v6899 = vsel %vm1941, %v6897, %v6898
        %v6900 = vrot.slane %v6885, 3
        %v6901 = vsel %vm1941, %v6897, %v6900
        %v6902 = vrot.slane %v6886, 3
        %v6903 = vsel %vm1941, %v6897, %v6902
        %v6904 = vrot.slane %v6887, 3
        %v6905 = vsel %vm1941, %v6897, %v6904
        %v6906 = vrot.slane %v6888, 3
        %v6907 = vsel %vm1941, %v6897, %v6906
        %v6908 = vrot.slane %v6889, 3
        %v6909 = vsel %vm1941, %v6897, %v6908
        %v6910 = vsel %vm1941, %v6897, %v6897
        %v6925 = vadd.f32 %v6862, %v6899
        %v6926 = vadd.f32 %v6863, %v6898
        %v6927 = vadd.f32 %v6864, %v6901
        %v6928 = vadd.f32 %v6865, %v6900
        %v6929 = vadd.f32 %v6866, %v6903
        %v6930 = vadd.f32 %v6867, %v6902
        %v6931 = vadd.f32 %v6868, %v6905
        %v6932 = vadd.f32 %v6869, %v6904
        %v6933 = vadd.f32 %v6870, %v6907
        %v6934 = vadd.f32 %v6871, %v6906
        %v6935 = vadd.f32 %v6872, %v6909
        %v6936 = vadd.f32 %v6873, %v6908
        %v6937 = vadd.f32 %v6874, %v6910
        %v6938 = vadd.f32 %v6875, %v6897
        %v6939 = vadd.f32 %v6876, %v6910
        %v6940 = vadd.f32 %v6877, %v6897
        %v6941 = vld [vmem:[%s5221 + $0x42] sm:$0x1]
        %v6942 = vlaneseq
        %v6943 = vshrl.u32 %v6942, 7
        %v6944 = vsub.s32 0, %v6943
        %v6945 = vrot.slane %v6941, %v6944
        %v6946 = vmul.f32 %v6945, 0.0
        %v6947 = vmul.f32 %v5216, %v6945
        %v6948 = vmul.f32 %v5217, %v6945
        %v6949 = vmul.f32 %v5218, %v6945
        %v6950 = vmul.f32 %v5219, %v6945
        %v6951 = vmul.f32 %v5220, %v6945
        %v6958 = vrot.slane %v6946, 3
        %v6959 = vrot.slane %v6947, 3
        %v6960 = vsel %vm1941, %v6958, %v6959
        %v6961 = vrot.slane %v6948, 3
        %v6962 = vsel %vm1941, %v6958, %v6961
        %v6963 = vrot.slane %v6949, 3
        %v6964 = vsel %vm1941, %v6958, %v6963
        %v6965 = vrot.slane %v6950, 3
        %v6966 = vsel %vm1941, %v6958, %v6965
        %v6967 = vrot.slane %v6951, 3
        %v6968 = vsel %vm1941, %v6958, %v6967
        %v6969 = vsel %vm1941, %v6958, %v6958
        %v6982 = vadd.f32 %v6925, %v6960
        %v6983 = vadd.f32 %v6926, %v6959
        %v6984 = vadd.f32 %v6927, %v6962
        %v6985 = vadd.f32 %v6928, %v6961
        %v6986 = vadd.f32 %v6929, %v6964
        %v6987 = vadd.f32 %v6930, %v6963
        %v6988 = vadd.f32 %v6931, %v6966
        %v6989 = vadd.f32 %v6932, %v6965
        %v6990 = vadd.f32 %v6933, %v6968
        %v6991 = vadd.f32 %v6934, %v6967
        %v6992 = vadd.f32 %v6935, %v6969
        %v6993 = vadd.f32 %v6936, %v6958
        %v6994 = vadd.f32 %v6937, %v6969
        %v6995 = vadd.f32 %v6938, %v6958
        %v6996 = vadd.f32 %v6939, %v6969
        %v6997 = vadd.f32 %v6940, %v6958
        %v6998 = vld [vmem:[%s5221 + $0x4b] sm:$0x1]
        %v6999 = vlaneseq
        %v7000 = vshrl.u32 %v6999, 7
        %v7001 = vsub.s32 0, %v7000
        %v7002 = vrot.slane %v6998, %v7001
        %v7003 = vmul.f32 %v7002, 0.0
        %v7004 = vmul.f32 %v5217, %v7002
        %v7005 = vmul.f32 %v5218, %v7002
        %v7006 = vmul.f32 %v5219, %v7002
        %v7007 = vmul.f32 %v5220, %v7002
        %v7013 = vrot.slane %v7003, 3
        %v7014 = vrot.slane %v7004, 3
        %v7015 = vsel %vm1941, %v7013, %v7014
        %v7016 = vrot.slane %v7005, 3
        %v7017 = vsel %vm1941, %v7013, %v7016
        %v7018 = vrot.slane %v7006, 3
        %v7019 = vsel %vm1941, %v7013, %v7018
        %v7020 = vrot.slane %v7007, 3
        %v7021 = vsel %vm1941, %v7013, %v7020
        %v7022 = vsel %vm1941, %v7013, %v7013
        %v7033 = vadd.f32 %v6982, %v7015
        %v7034 = vadd.f32 %v6983, %v7014
        %v7035 = vadd.f32 %v6984, %v7017
        %v7036 = vadd.f32 %v6985, %v7016
        %v7037 = vadd.f32 %v6986, %v7019
        %v7038 = vadd.f32 %v6987, %v7018
        %v7039 = vadd.f32 %v6988, %v7021
        %v7040 = vadd.f32 %v6989, %v7020
        %v7041 = vadd.f32 %v6990, %v7022
        %v7042 = vadd.f32 %v6991, %v7013
        %v7043 = vadd.f32 %v6992, %v7022
        %v7044 = vadd.f32 %v6993, %v7013
        %v7045 = vadd.f32 %v6994, %v7022
        %v7046 = vadd.f32 %v6995, %v7013
        %v7047 = vadd.f32 %v6996, %v7022
        %v7048 = vadd.f32 %v6997, %v7013
        %v7049 = vld [vmem:[%s5221 + $0x4] sm:$0x1]
        %v7050 = vlaneseq
        %v7051 = vshrl.u32 %v7050, 7
        %v7052 = vsub.s32 0, %v7051
        %v7053 = vrot.slane %v7049, %v7052
        %v7054 = vmul.f32 %v7053, 0.0
        %v7055 = vmul.f32 %v5213, %v7053
        %v7056 = vmul.f32 %v5214, %v7053
        %v7057 = vmul.f32 %v5215, %v7053
        %v7058 = vmul.f32 %v5216, %v7053
        %v7064 = vrot.slane %v7054, 4
        %v7065 = vrot.slane %v7055, 4
        %v7066 = vrot.slane %v7056, 4
        %v7067 = vrot.slane %v7057, 4
        %v7068 = vrot.slane %v7058, 4
        %v7074 = vadd.f32 %v7033, %v7064
        %v7075 = vadd.f32 %v7034, %v7064
        %v7076 = vadd.f32 %v7035, %v7064
        %v7077 = vadd.f32 %v7036, %v7064
        %v7078 = vadd.f32 %v7037, %v7064
        %v7079 = vadd.f32 %v7038, %v7064
        %v7080 = vadd.f32 %v7039, %v7064
        %v7081 = vadd.f32 %v7040, %v7064
        %v7082 = vadd.f32 %v7041, %v7065
        %v7083 = vadd.f32 %v7042, %v7065
        %v7084 = vadd.f32 %v7043, %v7066
        %v7085 = vadd.f32 %v7044, %v7066
        %v7086 = vadd.f32 %v7045, %v7067
        %v7087 = vadd.f32 %v7046, %v7067
        %v7088 = vadd.f32 %v7047, %v7068
        %v7089 = vadd.f32 %v7048, %v7068
        %v7090 = vld [vmem:[%s5221 + $0xd] sm:$0x1]
        %v7091 = vlaneseq
        %v7092 = vshrl.u32 %v7091, 7
        %v7093 = vsub.s32 0, %v7092
        %v7094 = vrot.slane %v7090, %v7093
        %v7095 = vmul.f32 %v7094, 0.0
        %v7096 = vmul.f32 %v5213, %v7094
        %v7097 = vmul.f32 %v5214, %v7094
        %v7098 = vmul.f32 %v5215, %v7094
        %v7099 = vmul.f32 %v5216, %v7094
        %v7100 = vmul.f32 %v5217, %v7094
        %v7107 = vrot.slane %v7095, 4
        %v7108 = vrot.slane %v7096, 4
        %v7109 = vrot.slane %v7097, 4
        %v7110 = vrot.slane %v7098, 4
        %v7111 = vrot.slane %v7099, 4
        %v7112 = vrot.slane %v7100, 4
        %v7119 = vadd.f32 %v7074, %v7107
        %v7120 = vadd.f32 %v7075, %v7107
        %v7121 = vadd.f32 %v7076, %v7107
        %v7122 = vadd.f32 %v7077, %v7107
        %v7123 = vadd.f32 %v7078, %v7107
        %v7124 = vadd.f32 %v7079, %v7107
        %v7125 = vadd.f32 %v7080, %v7108
        %v7126 = vadd.f32 %v7081, %v7108
        %v7127 = vadd.f32 %v7082, %v7109
        %v7128 = vadd.f32 %v7083, %v7109
        %v7129 = vadd.f32 %v7084, %v7110
        %v7130 = vadd.f32 %v7085, %v7110
        %v7131 = vadd.f32 %v7086, %v7111
        %v7132 = vadd.f32 %v7087, %v7111
        %v7133 = vadd.f32 %v7088, %v7112
        %v7134 = vadd.f32 %v7089, %v7112
        %v7135 = vld [vmem:[%s5221 + $0x16] sm:$0x1]
        %v7136 = vlaneseq
        %v7137 = vshrl.u32 %v7136, 7
        %v7138 = vsub.s32 0, %v7137
        %v7139 = vrot.slane %v7135, %v7138
        %v7140 = vmul.f32 %v7139, 0.0
        %v7141 = vmul.f32 %v5213, %v7139
        %v7142 = vmul.f32 %v5214, %v7139
        %v7143 = vmul.f32 %v5215, %v7139
        %v7144 = vmul.f32 %v5216, %v7139
        %v7145 = vmul.f32 %v5217, %v7139
        %v7146 = vmul.f32 %v5218, %v7139
        %v7154 = vrot.slane %v7140, 4
        %v7155 = vrot.slane %v7141, 4
        %v7156 = vrot.slane %v7142, 4
        %v7157 = vrot.slane %v7143, 4
        %v7158 = vrot.slane %v7144, 4
        %v7159 = vrot.slane %v7145, 4
        %v7160 = vrot.slane %v7146, 4
        %v7168 = vadd.f32 %v7119, %v7154
        %v7169 = vadd.f32 %v7120, %v7154
        %v7170 = vadd.f32 %v7121, %v7154
        %v7171 = vadd.f32 %v7122, %v7154
        %v7172 = vadd.f32 %v7123, %v7155
        %v7173 = vadd.f32 %v7124, %v7155
        %v7174 = vadd.f32 %v7125, %v7156
        %v7175 = vadd.f32 %v7126, %v7156
        %v7176 = vadd.f32 %v7127, %v7157
        %v7177 = vadd.f32 %v7128, %v7157
        %v7178 = vadd.f32 %v7129, %v7158
        %v7179 = vadd.f32 %v7130, %v7158
        %v7180 = vadd.f32 %v7131, %v7159
        %v7181 = vadd.f32 %v7132, %v7159
        %v7182 = vadd.f32 %v7133, %v7160
        %v7183 = vadd.f32 %v7134, %v7160
        %v7184 = vld [vmem:[%s5221 + $0x1f] sm:$0x1]
        %v7185 = vlaneseq
        %v7186 = vshrl.u32 %v7185, 7
        %v7187 = vsub.s32 0, %v7186
        %v7188 = vrot.slane %v7184, %v7187
        %v7189 = vmul.f32 %v7188, 0.0
        %v7190 = vmul.f32 %v5213, %v7188
        %v7191 = vmul.f32 %v5214, %v7188
        %v7192 = vmul.f32 %v5215, %v7188
        %v7193 = vmul.f32 %v5216, %v7188
        %v7194 = vmul.f32 %v5217, %v7188
        %v7195 = vmul.f32 %v5218, %v7188
        %v7196 = vmul.f32 %v5219, %v7188
        %v7205 = vrot.slane %v7189, 4
        %v7206 = vrot.slane %v7190, 4
        %v7207 = vrot.slane %v7191, 4
        %v7208 = vrot.slane %v7192, 4
        %v7209 = vrot.slane %v7193, 4
        %v7210 = vrot.slane %v7194, 4
        %v7211 = vrot.slane %v7195, 4
        %v7212 = vrot.slane %v7196, 4
        %v7221 = vadd.f32 %v7168, %v7205
        %v7222 = vadd.f32 %v7169, %v7205
        %v7223 = vadd.f32 %v7170, %v7206
        %v7224 = vadd.f32 %v7171, %v7206
        %v7225 = vadd.f32 %v7172, %v7207
        %v7226 = vadd.f32 %v7173, %v7207
        %v7227 = vadd.f32 %v7174, %v7208
        %v7228 = vadd.f32 %v7175, %v7208
        %v7229 = vadd.f32 %v7176, %v7209
        %v7230 = vadd.f32 %v7177, %v7209
        %v7231 = vadd.f32 %v7178, %v7210
        %v7232 = vadd.f32 %v7179, %v7210
        %v7233 = vadd.f32 %v7180, %v7211
        %v7234 = vadd.f32 %v7181, %v7211
        %v7235 = vadd.f32 %v7182, %v7212
        %v7236 = vadd.f32 %v7183, %v7212
        %v7237 = vld [vmem:[%s5221 + $0x28] sm:$0x1]
        %v7238 = vlaneseq
        %v7239 = vshrl.u32 %v7238, 7
        %v7240 = vsub.s32 0, %v7239
        %v7241 = vrot.slane %v7237, %v7240
        %v7242 = vmul.f32 %v5213, %v7241
        %v7243 = vmul.f32 %v5214, %v7241
        %v7244 = vmul.f32 %v5215, %v7241
        %v7245 = vmul.f32 %v5216, %v7241
        %v7246 = vmul.f32 %v5217, %v7241
        %v7247 = vmul.f32 %v5218, %v7241
        %v7248 = vmul.f32 %v5219, %v7241
        %v7249 = vmul.f32 %v5220, %v7241
        %v7258 = vrot.slane %v7242, 4
        %v7259 = vrot.slane %v7243, 4
        %v7260 = vrot.slane %v7244, 4
        %v7261 = vrot.slane %v7245, 4
        %v7262 = vrot.slane %v7246, 4
        %v7263 = vrot.slane %v7247, 4
        %v7264 = vrot.slane %v7248, 4
        %v7265 = vrot.slane %v7249, 4
        %v7274 = vadd.f32 %v7221, %v7258
        %v7275 = vadd.f32 %v7222, %v7258
        %v7276 = vadd.f32 %v7223, %v7259
        %v7277 = vadd.f32 %v7224, %v7259
        %v7278 = vadd.f32 %v7225, %v7260
        %v7279 = vadd.f32 %v7226, %v7260
        %v7280 = vadd.f32 %v7227, %v7261
        %v7281 = vadd.f32 %v7228, %v7261
        %v7282 = vadd.f32 %v7229, %v7262
        %v7283 = vadd.f32 %v7230, %v7262
        %v7284 = vadd.f32 %v7231, %v7263
        %v7285 = vadd.f32 %v7232, %v7263
        %v7286 = vadd.f32 %v7233, %v7264
        %v7287 = vadd.f32 %v7234, %v7264
        %v7288 = vadd.f32 %v7235, %v7265
        %v7289 = vadd.f32 %v7236, %v7265
        %v7290 = vld [vmem:[%s5221 + $0x31] sm:$0x1]
        %v7291 = vlaneseq
        %v7292 = vshrl.u32 %v7291, 7
        %v7293 = vsub.s32 0, %v7292
        %v7294 = vrot.slane %v7290, %v7293
        %v7295 = vmul.f32 %v5214, %v7294
        %v7296 = vmul.f32 %v5215, %v7294
        %v7297 = vmul.f32 %v5216, %v7294
        %v7298 = vmul.f32 %v5217, %v7294
        %v7299 = vmul.f32 %v5218, %v7294
        %v7300 = vmul.f32 %v5219, %v7294
        %v7301 = vmul.f32 %v5220, %v7294
        %v7302 = vmul.f32 %v7294, 0.0
        %v7311 = vrot.slane %v7295, 4
        %v7312 = vrot.slane %v7296, 4
        %v7313 = vrot.slane %v7297, 4
        %v7314 = vrot.slane %v7298, 4
        %v7315 = vrot.slane %v7299, 4
        %v7316 = vrot.slane %v7300, 4
        %v7317 = vrot.slane %v7301, 4
        %v7318 = vrot.slane %v7302, 4
        %v7327 = vadd.f32 %v7274, %v7311
        %v7328 = vadd.f32 %v7275, %v7311
        %v7329 = vadd.f32 %v7276, %v7312
        %v7330 = vadd.f32 %v7277, %v7312
        %v7331 = vadd.f32 %v7278, %v7313
        %v7332 = vadd.f32 %v7279, %v7313
        %v7333 = vadd.f32 %v7280, %v7314
        %v7334 = vadd.f32 %v7281, %v7314
        %v7335 = vadd.f32 %v7282, %v7315
        %v7336 = vadd.f32 %v7283, %v7315
        %v7337 = vadd.f32 %v7284, %v7316
        %v7338 = vadd.f32 %v7285, %v7316
        %v7339 = vadd.f32 %v7286, %v7317
        %v7340 = vadd.f32 %v7287, %v7317
        %v7341 = vadd.f32 %v7288, %v7318
        %v7342 = vadd.f32 %v7289, %v7318
        %v7343 = vld [vmem:[%s5221 + $0x3a] sm:$0x1]
        %v7344 = vlaneseq
        %v7345 = vshrl.u32 %v7344, 7
        %v7346 = vsub.s32 0, %v7345
        %v7347 = vrot.slane %v7343, %v7346
        %v7348 = vmul.f32 %v5215, %v7347
        %v7349 = vmul.f32 %v5216, %v7347
        %v7350 = vmul.f32 %v5217, %v7347
        %v7351 = vmul.f32 %v5218, %v7347
        %v7352 = vmul.f32 %v5219, %v7347
        %v7353 = vmul.f32 %v5220, %v7347
        %v7354 = vmul.f32 %v7347, 0.0
        %v7362 = vrot.slane %v7348, 4
        %v7363 = vrot.slane %v7349, 4
        %v7364 = vrot.slane %v7350, 4
        %v7365 = vrot.slane %v7351, 4
        %v7366 = vrot.slane %v7352, 4
        %v7367 = vrot.slane %v7353, 4
        %v7368 = vrot.slane %v7354, 4
        %v7376 = vadd.f32 %v7327, %v7362
        %v7377 = vadd.f32 %v7328, %v7362
        %v7378 = vadd.f32 %v7329, %v7363
        %v7379 = vadd.f32 %v7330, %v7363
        %v7380 = vadd.f32 %v7331, %v7364
        %v7381 = vadd.f32 %v7332, %v7364
        %v7382 = vadd.f32 %v7333, %v7365
        %v7383 = vadd.f32 %v7334, %v7365
        %v7384 = vadd.f32 %v7335, %v7366
        %v7385 = vadd.f32 %v7336, %v7366
        %v7386 = vadd.f32 %v7337, %v7367
        %v7387 = vadd.f32 %v7338, %v7367
        %v7388 = vadd.f32 %v7339, %v7368
        %v7389 = vadd.f32 %v7340, %v7368
        %v7390 = vadd.f32 %v7341, %v7368
        %v7391 = vadd.f32 %v7342, %v7368
        %v7392 = vld [vmem:[%s5221 + $0x43] sm:$0x1]
        %v7393 = vlaneseq
        %v7394 = vshrl.u32 %v7393, 7
        %v7395 = vsub.s32 0, %v7394
        %v7396 = vrot.slane %v7392, %v7395
        %v7397 = vmul.f32 %v5216, %v7396
        %v7398 = vmul.f32 %v5217, %v7396
        %v7399 = vmul.f32 %v5218, %v7396
        %v7400 = vmul.f32 %v5219, %v7396
        %v7401 = vmul.f32 %v5220, %v7396
        %v7402 = vmul.f32 %v7396, 0.0
        %v7409 = vrot.slane %v7397, 4
        %v7410 = vrot.slane %v7398, 4
        %v7411 = vrot.slane %v7399, 4
        %v7412 = vrot.slane %v7400, 4
        %v7413 = vrot.slane %v7401, 4
        %v7414 = vrot.slane %v7402, 4
        %v7421 = vadd.f32 %v7376, %v7409
        %v7422 = vadd.f32 %v7377, %v7409
        %v7423 = vadd.f32 %v7378, %v7410
        %v7424 = vadd.f32 %v7379, %v7410
        %v7425 = vadd.f32 %v7380, %v7411
        %v7426 = vadd.f32 %v7381, %v7411
        %v7427 = vadd.f32 %v7382, %v7412
        %v7428 = vadd.f32 %v7383, %v7412
        %v7429 = vadd.f32 %v7384, %v7413
        %v7430 = vadd.f32 %v7385, %v7413
        %v7431 = vadd.f32 %v7386, %v7414
        %v7432 = vadd.f32 %v7387, %v7414
        %v7433 = vadd.f32 %v7388, %v7414
        %v7434 = vadd.f32 %v7389, %v7414
        %v7435 = vadd.f32 %v7390, %v7414
        %v7436 = vadd.f32 %v7391, %v7414
        %v7437 = vld [vmem:[%s5221 + $0x4c] sm:$0x1]
        %v7438 = vlaneseq
        %v7439 = vshrl.u32 %v7438, 7
        %v7440 = vsub.s32 0, %v7439
        %v7441 = vrot.slane %v7437, %v7440
        %v7442 = vmul.f32 %v5217, %v7441
        %v7443 = vmul.f32 %v5218, %v7441
        %v7444 = vmul.f32 %v5219, %v7441
        %v7445 = vmul.f32 %v5220, %v7441
        %v7446 = vmul.f32 %v7441, 0.0
        %v7452 = vrot.slane %v7442, 4
        %v7453 = vrot.slane %v7443, 4
        %v7454 = vrot.slane %v7444, 4
        %v7455 = vrot.slane %v7445, 4
        %v7456 = vrot.slane %v7446, 4
        %v7462 = vadd.f32 %v7421, %v7452
        %v7463 = vadd.f32 %v7422, %v7452
        %v7464 = vadd.f32 %v7423, %v7453
        %v7465 = vadd.f32 %v7424, %v7453
        %v7466 = vadd.f32 %v7425, %v7454
        %v7467 = vadd.f32 %v7426, %v7454
        %v7468 = vadd.f32 %v7427, %v7455
        %v7469 = vadd.f32 %v7428, %v7455
        %v7470 = vadd.f32 %v7429, %v7456
        %v7471 = vadd.f32 %v7430, %v7456
        %v7472 = vadd.f32 %v7431, %v7456
        %v7473 = vadd.f32 %v7432, %v7456
        %v7474 = vadd.f32 %v7433, %v7456
        %v7475 = vadd.f32 %v7434, %v7456
        %v7476 = vadd.f32 %v7435, %v7456
        %v7477 = vadd.f32 %v7436, %v7456
        %v7478 = vld [vmem:[%s5221 + $0x5] sm:$0x1]
        %v7479 = vlaneseq
        %v7480 = vshrl.u32 %v7479, 7
        %v7481 = vsub.s32 0, %v7480
        %v7482 = vrot.slane %v7478, %v7481
        %v7483 = vmul.f32 %v7482, 0.0
        %v7484 = vmul.f32 %v5213, %v7482
        %v7485 = vmul.f32 %v5214, %v7482
        %v7486 = vmul.f32 %v5215, %v7482
        %v7487 = vmul.f32 %v5216, %v7482
        %v7493 = vrot.slane %v7483, 5
        %v7494 = vsel %vm2923, %v7493, %v7493
        %v7495 = vrot.slane %v7484, 5
        %v7496 = vsel %vm2923, %v7495, %v7493
        %v7497 = vrot.slane %v7485, 5
        %v7498 = vsel %vm2923, %v7497, %v7493
        %v7499 = vrot.slane %v7486, 5
        %v7500 = vsel %vm2923, %v7499, %v7493
        %v7501 = vrot.slane %v7487, 5
        %v7502 = vsel %vm2923, %v7501, %v7493
        %v7513 = vadd.f32 %v7462, %v7493
        %v7514 = vadd.f32 %v7463, %v7494
        %v7515 = vadd.f32 %v7464, %v7493
        %v7516 = vadd.f32 %v7465, %v7494
        %v7517 = vadd.f32 %v7466, %v7493
        %v7518 = vadd.f32 %v7467, %v7494
        %v7519 = vadd.f32 %v7468, %v7493
        %v7520 = vadd.f32 %v7469, %v7494
        %v7521 = vadd.f32 %v7470, %v7495
        %v7522 = vadd.f32 %v7471, %v7496
        %v7523 = vadd.f32 %v7472, %v7497
        %v7524 = vadd.f32 %v7473, %v7498
        %v7525 = vadd.f32 %v7474, %v7499
        %v7526 = vadd.f32 %v7475, %v7500
        %v7527 = vadd.f32 %v7476, %v7501
        %v7528 = vadd.f32 %v7477, %v7502
        %v7529 = vld [vmem:[%s5221 + $0xe] sm:$0x1]
        %v7530 = vlaneseq
        %v7531 = vshrl.u32 %v7530, 7
        %v7532 = vsub.s32 0, %v7531
        %v7533 = vrot.slane %v7529, %v7532
        %v7534 = vmul.f32 %v7533, 0.0
        %v7535 = vmul.f32 %v5213, %v7533
        %v7536 = vmul.f32 %v5214, %v7533
        %v7537 = vmul.f32 %v5215, %v7533
        %v7538 = vmul.f32 %v5216, %v7533
        %v7539 = vmul.f32 %v5217, %v7533
        %v7546 = vrot.slane %v7534, 5
        %v7547 = vsel %vm2923, %v7546, %v7546
        %v7548 = vrot.slane %v7535, 5
        %v7549 = vsel %vm2923, %v7548, %v7546
        %v7550 = vrot.slane %v7536, 5
        %v7551 = vsel %vm2923, %v7550, %v7546
        %v7552 = vrot.slane %v7537, 5
        %v7553 = vsel %vm2923, %v7552, %v7546
        %v7554 = vrot.slane %v7538, 5
        %v7555 = vsel %vm2923, %v7554, %v7546
        %v7556 = vrot.slane %v7539, 5
        %v7557 = vsel %vm2923, %v7556, %v7546
        %v7570 = vadd.f32 %v7513, %v7546
        %v7571 = vadd.f32 %v7514, %v7547
        %v7572 = vadd.f32 %v7515, %v7546
        %v7573 = vadd.f32 %v7516, %v7547
        %v7574 = vadd.f32 %v7517, %v7546
        %v7575 = vadd.f32 %v7518, %v7547
        %v7576 = vadd.f32 %v7519, %v7548
        %v7577 = vadd.f32 %v7520, %v7549
        %v7578 = vadd.f32 %v7521, %v7550
        %v7579 = vadd.f32 %v7522, %v7551
        %v7580 = vadd.f32 %v7523, %v7552
        %v7581 = vadd.f32 %v7524, %v7553
        %v7582 = vadd.f32 %v7525, %v7554
        %v7583 = vadd.f32 %v7526, %v7555
        %v7584 = vadd.f32 %v7527, %v7556
        %v7585 = vadd.f32 %v7528, %v7557
        %v7586 = vld [vmem:[%s5221 + $0x17] sm:$0x1]
        %v7587 = vlaneseq
        %v7588 = vshrl.u32 %v7587, 7
        %v7589 = vsub.s32 0, %v7588
        %v7590 = vrot.slane %v7586, %v7589
        %v7591 = vmul.f32 %v7590, 0.0
        %v7592 = vmul.f32 %v5213, %v7590
        %v7593 = vmul.f32 %v5214, %v7590
        %v7594 = vmul.f32 %v5215, %v7590
        %v7595 = vmul.f32 %v5216, %v7590
        %v7596 = vmul.f32 %v5217, %v7590
        %v7597 = vmul.f32 %v5218, %v7590
        %v7605 = vrot.slane %v7591, 5
        %v7606 = vsel %vm2923, %v7605, %v7605
        %v7607 = vrot.slane %v7592, 5
        %v7608 = vsel %vm2923, %v7607, %v7605
        %v7609 = vrot.slane %v7593, 5
        %v7610 = vsel %vm2923, %v7609, %v7605
        %v7611 = vrot.slane %v7594, 5
        %v7612 = vsel %vm2923, %v7611, %v7605
        %v7613 = vrot.slane %v7595, 5
        %v7614 = vsel %vm2923, %v7613, %v7605
        %v7615 = vrot.slane %v7596, 5
        %v7616 = vsel %vm2923, %v7615, %v7605
        %v7617 = vrot.slane %v7597, 5
        %v7618 = vsel %vm2923, %v7617, %v7605
        %v7633 = vadd.f32 %v7570, %v7605
        %v7634 = vadd.f32 %v7571, %v7606
        %v7635 = vadd.f32 %v7572, %v7605
        %v7636 = vadd.f32 %v7573, %v7606
        %v7637 = vadd.f32 %v7574, %v7607
        %v7638 = vadd.f32 %v7575, %v7608
        %v7639 = vadd.f32 %v7576, %v7609
        %v7640 = vadd.f32 %v7577, %v7610
        %v7641 = vadd.f32 %v7578, %v7611
        %v7642 = vadd.f32 %v7579, %v7612
        %v7643 = vadd.f32 %v7580, %v7613
        %v7644 = vadd.f32 %v7581, %v7614
        %v7645 = vadd.f32 %v7582, %v7615
        %v7646 = vadd.f32 %v7583, %v7616
        %v7647 = vadd.f32 %v7584, %v7617
        %v7648 = vadd.f32 %v7585, %v7618
        %v7649 = vld [vmem:[%s5221 + $0x20] sm:$0x1]
        %v7650 = vlaneseq
        %v7651 = vshrl.u32 %v7650, 7
        %v7652 = vsub.s32 0, %v7651
        %v7653 = vrot.slane %v7649, %v7652
        %v7654 = vmul.f32 %v7653, 0.0
        %v7655 = vmul.f32 %v5213, %v7653
        %v7656 = vmul.f32 %v5214, %v7653
        %v7657 = vmul.f32 %v5215, %v7653
        %v7658 = vmul.f32 %v5216, %v7653
        %v7659 = vmul.f32 %v5217, %v7653
        %v7660 = vmul.f32 %v5218, %v7653
        %v7661 = vmul.f32 %v5219, %v7653
        %v7670 = vrot.slane %v7654, 5
        %v7671 = vsel %vm2923, %v7670, %v7670
        %v7672 = vrot.slane %v7655, 5
        %v7673 = vsel %vm2923, %v7672, %v7670
        %v7674 = vrot.slane %v7656, 5
        %v7675 = vsel %vm2923, %v7674, %v7670
        %v7676 = vrot.slane %v7657, 5
        %v7677 = vsel %vm2923, %v7676, %v7670
        %v7678 = vrot.slane %v7658, 5
        %v7679 = vsel %vm2923, %v7678, %v7670
        %v7680 = vrot.slane %v7659, 5
        %v7681 = vsel %vm2923, %v7680, %v7670
        %v7682 = vrot.slane %v7660, 5
        %v7683 = vsel %vm2923, %v7682, %v7670
        %v7684 = vrot.slane %v7661, 5
        %v7685 = vsel %vm2923, %v7684, %v7670
        %v7702 = vadd.f32 %v7633, %v7670
        %v7703 = vadd.f32 %v7634, %v7671
        %v7704 = vadd.f32 %v7635, %v7672
        %v7705 = vadd.f32 %v7636, %v7673
        %v7706 = vadd.f32 %v7637, %v7674
        %v7707 = vadd.f32 %v7638, %v7675
        %v7708 = vadd.f32 %v7639, %v7676
        %v7709 = vadd.f32 %v7640, %v7677
        %v7710 = vadd.f32 %v7641, %v7678
        %v7711 = vadd.f32 %v7642, %v7679
        %v7712 = vadd.f32 %v7643, %v7680
        %v7713 = vadd.f32 %v7644, %v7681
        %v7714 = vadd.f32 %v7645, %v7682
        %v7715 = vadd.f32 %v7646, %v7683
        %v7716 = vadd.f32 %v7647, %v7684
        %v7717 = vadd.f32 %v7648, %v7685
        %v7718 = vld [vmem:[%s5221 + $0x29] sm:$0x1]
        %v7719 = vlaneseq
        %v7720 = vshrl.u32 %v7719, 7
        %v7721 = vsub.s32 0, %v7720
        %v7722 = vrot.slane %v7718, %v7721
        %v7723 = vmul.f32 %v5213, %v7722
        %v7724 = vmul.f32 %v7722, 0.0
        %v7725 = vmul.f32 %v5214, %v7722
        %v7726 = vmul.f32 %v5215, %v7722
        %v7727 = vmul.f32 %v5216, %v7722
        %v7728 = vmul.f32 %v5217, %v7722
        %v7729 = vmul.f32 %v5218, %v7722
        %v7730 = vmul.f32 %v5219, %v7722
        %v7731 = vmul.f32 %v5220, %v7722
        %v7741 = vrot.slane %v7723, 5
        %v7742 = vrot.slane %v7724, 5
        %v7743 = vsel %vm2923, %v7741, %v7742
        %v7744 = vrot.slane %v7725, 5
        %v7745 = vsel %vm2923, %v7744, %v7742
        %v7746 = vrot.slane %v7726, 5
        %v7747 = vsel %vm2923, %v7746, %v7742
        %v7748 = vrot.slane %v7727, 5
        %v7749 = vsel %vm2923, %v7748, %v7742
        %v7750 = vrot.slane %v7728, 5
        %v7751 = vsel %vm2923, %v7750, %v7742
        %v7752 = vrot.slane %v7729, 5
        %v7753 = vsel %vm2923, %v7752, %v7742
        %v7754 = vrot.slane %v7730, 5
        %v7755 = vsel %vm2923, %v7754, %v7742
        %v7756 = vrot.slane %v7731, 5
        %v7757 = vsel %vm2923, %v7756, %v7742
        %v7774 = vadd.f32 %v7702, %v7741
        %v7775 = vadd.f32 %v7703, %v7743
        %v7776 = vadd.f32 %v7704, %v7744
        %v7777 = vadd.f32 %v7705, %v7745
        %v7778 = vadd.f32 %v7706, %v7746
        %v7779 = vadd.f32 %v7707, %v7747
        %v7780 = vadd.f32 %v7708, %v7748
        %v7781 = vadd.f32 %v7709, %v7749
        %v7782 = vadd.f32 %v7710, %v7750
        %v7783 = vadd.f32 %v7711, %v7751
        %v7784 = vadd.f32 %v7712, %v7752
        %v7785 = vadd.f32 %v7713, %v7753
        %v7786 = vadd.f32 %v7714, %v7754
        %v7787 = vadd.f32 %v7715, %v7755
        %v7788 = vadd.f32 %v7716, %v7756
        %v7789 = vadd.f32 %v7717, %v7757
        %v7790 = vld [vmem:[%s5221 + $0x32] sm:$0x1]
        %v7791 = vlaneseq
        %v7792 = vshrl.u32 %v7791, 7
        %v7793 = vsub.s32 0, %v7792
        %v7794 = vrot.slane %v7790, %v7793
        %v7795 = vmul.f32 %v5214, %v7794
        %v7796 = vmul.f32 %v7794, 0.0
        %v7797 = vmul.f32 %v5215, %v7794
        %v7798 = vmul.f32 %v5216, %v7794
        %v7799 = vmul.f32 %v5217, %v7794
        %v7800 = vmul.f32 %v5218, %v7794
        %v7801 = vmul.f32 %v5219, %v7794
        %v7802 = vmul.f32 %v5220, %v7794
        %v7811 = vrot.slane %v7795, 5
        %v7812 = vrot.slane %v7796, 5
        %v7813 = vsel %vm2923, %v7811, %v7812
        %v7814 = vrot.slane %v7797, 5
        %v7815 = vsel %vm2923, %v7814, %v7812
        %v7816 = vrot.slane %v7798, 5
        %v7817 = vsel %vm2923, %v7816, %v7812
        %v7818 = vrot.slane %v7799, 5
        %v7819 = vsel %vm2923, %v7818, %v7812
        %v7820 = vrot.slane %v7800, 5
        %v7821 = vsel %vm2923, %v7820, %v7812
        %v7822 = vrot.slane %v7801, 5
        %v7823 = vsel %vm2923, %v7822, %v7812
        %v7824 = vrot.slane %v7802, 5
        %v7825 = vsel %vm2923, %v7824, %v7812
        %v7826 = vsel %vm2923, %v7812, %v7812
        %v7843 = vadd.f32 %v7774, %v7811
        %v7844 = vadd.f32 %v7775, %v7813
        %v7845 = vadd.f32 %v7776, %v7814
        %v7846 = vadd.f32 %v7777, %v7815
        %v7847 = vadd.f32 %v7778, %v7816
        %v7848 = vadd.f32 %v7779, %v7817
        %v7849 = vadd.f32 %v7780, %v7818
        %v7850 = vadd.f32 %v7781, %v7819
        %v7851 = vadd.f32 %v7782, %v7820
        %v7852 = vadd.f32 %v7783, %v7821
        %v7853 = vadd.f32 %v7784, %v7822
        %v7854 = vadd.f32 %v7785, %v7823
        %v7855 = vadd.f32 %v7786, %v7824
        %v7856 = vadd.f32 %v7787, %v7825
        %v7857 = vadd.f32 %v7788, %v7812
        %v7858 = vadd.f32 %v7789, %v7826
        %v7859 = vld [vmem:[%s5221 + $0x3b] sm:$0x1]
        %v7860 = vlaneseq
        %v7861 = vshrl.u32 %v7860, 7
        %v7862 = vsub.s32 0, %v7861
        %v7863 = vrot.slane %v7859, %v7862
        %v7864 = vmul.f32 %v5215, %v7863
        %v7865 = vmul.f32 %v7863, 0.0
        %v7866 = vmul.f32 %v5216, %v7863
        %v7867 = vmul.f32 %v5217, %v7863
        %v7868 = vmul.f32 %v5218, %v7863
        %v7869 = vmul.f32 %v5219, %v7863
        %v7870 = vmul.f32 %v5220, %v7863
        %v7878 = vrot.slane %v7864, 5
        %v7879 = vrot.slane %v7865, 5
        %v7880 = vsel %vm2923, %v7878, %v7879
        %v7881 = vrot.slane %v7866, 5
        %v7882 = vsel %vm2923, %v7881, %v7879
        %v7883 = vrot.slane %v7867, 5
        %v7884 = vsel %vm2923, %v7883, %v7879
        %v7885 = vrot.slane %v7868, 5
        %v7886 = vsel %vm2923, %v7885, %v7879
        %v7887 = vrot.slane %v7869, 5
        %v7888 = vsel %vm2923, %v7887, %v7879
        %v7889 = vrot.slane %v7870, 5
        %v7890 = vsel %vm2923, %v7889, %v7879
        %v7891 = vsel %vm2923, %v7879, %v7879
        %v7906 = vadd.f32 %v7843, %v7878
        %v7907 = vadd.f32 %v7844, %v7880
        %v7908 = vadd.f32 %v7845, %v7881
        %v7909 = vadd.f32 %v7846, %v7882
        %v7910 = vadd.f32 %v7847, %v7883
        %v7911 = vadd.f32 %v7848, %v7884
        %v7912 = vadd.f32 %v7849, %v7885
        %v7913 = vadd.f32 %v7850, %v7886
        %v7914 = vadd.f32 %v7851, %v7887
        %v7915 = vadd.f32 %v7852, %v7888
        %v7916 = vadd.f32 %v7853, %v7889
        %v7917 = vadd.f32 %v7854, %v7890
        %v7918 = vadd.f32 %v7855, %v7879
        %v7919 = vadd.f32 %v7856, %v7891
        %v7920 = vadd.f32 %v7857, %v7879
        %v7921 = vadd.f32 %v7858, %v7891
        %v7922 = vld [vmem:[%s5221 + $0x44] sm:$0x1]
        %v7923 = vlaneseq
        %v7924 = vshrl.u32 %v7923, 7
        %v7925 = vsub.s32 0, %v7924
        %v7926 = vrot.slane %v7922, %v7925
        %v7927 = vmul.f32 %v5216, %v7926
        %v7928 = vmul.f32 %v7926, 0.0
        %v7929 = vmul.f32 %v5217, %v7926
        %v7930 = vmul.f32 %v5218, %v7926
        %v7931 = vmul.f32 %v5219, %v7926
        %v7932 = vmul.f32 %v5220, %v7926
        %v7939 = vrot.slane %v7927, 5
        %v7940 = vrot.slane %v7928, 5
        %v7941 = vsel %vm2923, %v7939, %v7940
        %v7942 = vrot.slane %v7929, 5
        %v7943 = vsel %vm2923, %v7942, %v7940
        %v7944 = vrot.slane %v7930, 5
        %v7945 = vsel %vm2923, %v7944, %v7940
        %v7946 = vrot.slane %v7931, 5
        %v7947 = vsel %vm2923, %v7946, %v7940
        %v7948 = vrot.slane %v7932, 5
        %v7949 = vsel %vm2923, %v7948, %v7940
        %v7950 = vsel %vm2923, %v7940, %v7940
        %v7963 = vadd.f32 %v7906, %v7939
        %v7964 = vadd.f32 %v7907, %v7941
        %v7965 = vadd.f32 %v7908, %v7942
        %v7966 = vadd.f32 %v7909, %v7943
        %v7967 = vadd.f32 %v7910, %v7944
        %v7968 = vadd.f32 %v7911, %v7945
        %v7969 = vadd.f32 %v7912, %v7946
        %v7970 = vadd.f32 %v7913, %v7947
        %v7971 = vadd.f32 %v7914, %v7948
        %v7972 = vadd.f32 %v7915, %v7949
        %v7973 = vadd.f32 %v7916, %v7940
        %v7974 = vadd.f32 %v7917, %v7950
        %v7975 = vadd.f32 %v7918, %v7940
        %v7976 = vadd.f32 %v7919, %v7950
        %v7977 = vadd.f32 %v7920, %v7940
        %v7978 = vadd.f32 %v7921, %v7950
        %v7979 = vld [vmem:[%s5221 + $0x4d] sm:$0x1]
        %v7980 = vlaneseq
        %v7981 = vshrl.u32 %v7980, 7
        %v7982 = vsub.s32 0, %v7981
        %v7983 = vrot.slane %v7979, %v7982
        %v7984 = vmul.f32 %v5217, %v7983
        %v7985 = vmul.f32 %v7983, 0.0
        %v7986 = vmul.f32 %v5218, %v7983
        %v7987 = vmul.f32 %v5219, %v7983
        %v7988 = vmul.f32 %v5220, %v7983
        %v7994 = vrot.slane %v7984, 5
        %v7995 = vrot.slane %v7985, 5
        %v7996 = vsel %vm2923, %v7994, %v7995
        %v7997 = vrot.slane %v7986, 5
        %v7998 = vsel %vm2923, %v7997, %v7995
        %v7999 = vrot.slane %v7987, 5
        %v8000 = vsel %vm2923, %v7999, %v7995
        %v8001 = vrot.slane %v7988, 5
        %v8002 = vsel %vm2923, %v8001, %v7995
        %v8003 = vsel %vm2923, %v7995, %v7995
        %v8014 = vadd.f32 %v7963, %v7994
        %v8015 = vadd.f32 %v7964, %v7996
        %v8016 = vadd.f32 %v7965, %v7997
        %v8017 = vadd.f32 %v7966, %v7998
        %v8018 = vadd.f32 %v7967, %v7999
        %v8019 = vadd.f32 %v7968, %v8000
        %v8020 = vadd.f32 %v7969, %v8001
        %v8021 = vadd.f32 %v7970, %v8002
        %v8022 = vadd.f32 %v7971, %v7995
        %v8023 = vadd.f32 %v7972, %v8003
        %v8024 = vadd.f32 %v7973, %v7995
        %v8025 = vadd.f32 %v7974, %v8003
        %v8026 = vadd.f32 %v7975, %v7995
        %v8027 = vadd.f32 %v7976, %v8003
        %v8028 = vadd.f32 %v7977, %v7995
        %v8029 = vadd.f32 %v7978, %v8003
        %v8030 = vld [vmem:[%s5221 + $0x6] sm:$0x1]
        %v8031 = vlaneseq
        %v8032 = vshrl.u32 %v8031, 7
        %v8033 = vsub.s32 0, %v8032
        %v8034 = vrot.slane %v8030, %v8033
        %v8035 = vmul.f32 %v8034, 0.0
        %v8036 = vmul.f32 %v5213, %v8034
        %v8037 = vmul.f32 %v5214, %v8034
        %v8038 = vmul.f32 %v5215, %v8034
        %v8039 = vmul.f32 %v5216, %v8034
        %v8045 = vrot.slane %v8035, 6
        %v8046 = vsel %vm3476, %v8045, %v8045
        %v8047 = vrot.slane %v8036, 6
        %v8048 = vsel %vm3476, %v8047, %v8045
        %v8049 = vrot.slane %v8037, 6
        %v8050 = vsel %vm3476, %v8049, %v8045
        %v8051 = vrot.slane %v8038, 6
        %v8052 = vsel %vm3476, %v8051, %v8045
        %v8053 = vrot.slane %v8039, 6
        %v8054 = vsel %vm3476, %v8053, %v8045
        %v8065 = vadd.f32 %v8014, %v8045
        %v8066 = vadd.f32 %v8015, %v8046
        %v8067 = vadd.f32 %v8016, %v8045
        %v8068 = vadd.f32 %v8017, %v8046
        %v8069 = vadd.f32 %v8018, %v8045
        %v8070 = vadd.f32 %v8019, %v8046
        %v8071 = vadd.f32 %v8020, %v8045
        %v8072 = vadd.f32 %v8021, %v8046
        %v8073 = vadd.f32 %v8022, %v8047
        %v8074 = vadd.f32 %v8023, %v8048
        %v8075 = vadd.f32 %v8024, %v8049
        %v8076 = vadd.f32 %v8025, %v8050
        %v8077 = vadd.f32 %v8026, %v8051
        %v8078 = vadd.f32 %v8027, %v8052
        %v8079 = vadd.f32 %v8028, %v8053
        %v8080 = vadd.f32 %v8029, %v8054
        %v8081 = vld [vmem:[%s5221 + $0xf] sm:$0x1]
        %v8082 = vlaneseq
        %v8083 = vshrl.u32 %v8082, 7
        %v8084 = vsub.s32 0, %v8083
        %v8085 = vrot.slane %v8081, %v8084
        %v8086 = vmul.f32 %v8085, 0.0
        %v8087 = vmul.f32 %v5213, %v8085
        %v8088 = vmul.f32 %v5214, %v8085
        %v8089 = vmul.f32 %v5215, %v8085
        %v8090 = vmul.f32 %v5216, %v8085
        %v8091 = vmul.f32 %v5217, %v8085
        %v8098 = vrot.slane %v8086, 6
        %v8099 = vsel %vm3476, %v8098, %v8098
        %v8100 = vrot.slane %v8087, 6
        %v8101 = vsel %vm3476, %v8100, %v8098
        %v8102 = vrot.slane %v8088, 6
        %v8103 = vsel %vm3476, %v8102, %v8098
        %v8104 = vrot.slane %v8089, 6
        %v8105 = vsel %vm3476, %v8104, %v8098
        %v8106 = vrot.slane %v8090, 6
        %v8107 = vsel %vm3476, %v8106, %v8098
        %v8108 = vrot.slane %v8091, 6
        %v8109 = vsel %vm3476, %v8108, %v8098
        %v8122 = vadd.f32 %v8065, %v8098
        %v8123 = vadd.f32 %v8066, %v8099
        %v8124 = vadd.f32 %v8067, %v8098
        %v8125 = vadd.f32 %v8068, %v8099
        %v8126 = vadd.f32 %v8069, %v8098
        %v8127 = vadd.f32 %v8070, %v8099
        %v8128 = vadd.f32 %v8071, %v8100
        %v8129 = vadd.f32 %v8072, %v8101
        %v8130 = vadd.f32 %v8073, %v8102
        %v8131 = vadd.f32 %v8074, %v8103
        %v8132 = vadd.f32 %v8075, %v8104
        %v8133 = vadd.f32 %v8076, %v8105
        %v8134 = vadd.f32 %v8077, %v8106
        %v8135 = vadd.f32 %v8078, %v8107
        %v8136 = vadd.f32 %v8079, %v8108
        %v8137 = vadd.f32 %v8080, %v8109
        %v8138 = vld [vmem:[%s5221 + $0x18] sm:$0x1]
        %v8139 = vlaneseq
        %v8140 = vshrl.u32 %v8139, 7
        %v8141 = vsub.s32 0, %v8140
        %v8142 = vrot.slane %v8138, %v8141
        %v8143 = vmul.f32 %v8142, 0.0
        %v8144 = vmul.f32 %v5213, %v8142
        %v8145 = vmul.f32 %v5214, %v8142
        %v8146 = vmul.f32 %v5215, %v8142
        %v8147 = vmul.f32 %v5216, %v8142
        %v8148 = vmul.f32 %v5217, %v8142
        %v8149 = vmul.f32 %v5218, %v8142
        %v8157 = vrot.slane %v8143, 6
        %v8158 = vsel %vm3476, %v8157, %v8157
        %v8159 = vrot.slane %v8144, 6
        %v8160 = vsel %vm3476, %v8159, %v8157
        %v8161 = vrot.slane %v8145, 6
        %v8162 = vsel %vm3476, %v8161, %v8157
        %v8163 = vrot.slane %v8146, 6
        %v8164 = vsel %vm3476, %v8163, %v8157
        %v8165 = vrot.slane %v8147, 6
        %v8166 = vsel %vm3476, %v8165, %v8157
        %v8167 = vrot.slane %v8148, 6
        %v8168 = vsel %vm3476, %v8167, %v8157
        %v8169 = vrot.slane %v8149, 6
        %v8170 = vsel %vm3476, %v8169, %v8157
        %v8185 = vadd.f32 %v8122, %v8157
        %v8186 = vadd.f32 %v8123, %v8158
        %v8187 = vadd.f32 %v8124, %v8157
        %v8188 = vadd.f32 %v8125, %v8158
        %v8189 = vadd.f32 %v8126, %v8159
        %v8190 = vadd.f32 %v8127, %v8160
        %v8191 = vadd.f32 %v8128, %v8161
        %v8192 = vadd.f32 %v8129, %v8162
        %v8193 = vadd.f32 %v8130, %v8163
        %v8194 = vadd.f32 %v8131, %v8164
        %v8195 = vadd.f32 %v8132, %v8165
        %v8196 = vadd.f32 %v8133, %v8166
        %v8197 = vadd.f32 %v8134, %v8167
        %v8198 = vadd.f32 %v8135, %v8168
        %v8199 = vadd.f32 %v8136, %v8169
        %v8200 = vadd.f32 %v8137, %v8170
        %v8201 = vld [vmem:[%s5221 + $0x21] sm:$0x1]
        %v8202 = vlaneseq
        %v8203 = vshrl.u32 %v8202, 7
        %v8204 = vsub.s32 0, %v8203
        %v8205 = vrot.slane %v8201, %v8204
        %v8206 = vmul.f32 %v8205, 0.0
        %v8207 = vmul.f32 %v5213, %v8205
        %v8208 = vmul.f32 %v5214, %v8205
        %v8209 = vmul.f32 %v5215, %v8205
        %v8210 = vmul.f32 %v5216, %v8205
        %v8211 = vmul.f32 %v5217, %v8205
        %v8212 = vmul.f32 %v5218, %v8205
        %v8213 = vmul.f32 %v5219, %v8205
        %v8222 = vrot.slane %v8206, 6
        %v8223 = vsel %vm3476, %v8222, %v8222
        %v8224 = vrot.slane %v8207, 6
        %v8225 = vsel %vm3476, %v8224, %v8222
        %v8226 = vrot.slane %v8208, 6
        %v8227 = vsel %vm3476, %v8226, %v8222
        %v8228 = vrot.slane %v8209, 6
        %v8229 = vsel %vm3476, %v8228, %v8222
        %v8230 = vrot.slane %v8210, 6
        %v8231 = vsel %vm3476, %v8230, %v8222
        %v8232 = vrot.slane %v8211, 6
        %v8233 = vsel %vm3476, %v8232, %v8222
        %v8234 = vrot.slane %v8212, 6
        %v8235 = vsel %vm3476, %v8234, %v8222
        %v8236 = vrot.slane %v8213, 6
        %v8237 = vsel %vm3476, %v8236, %v8222
        %v8254 = vadd.f32 %v8185, %v8222
        %v8255 = vadd.f32 %v8186, %v8223
        %v8256 = vadd.f32 %v8187, %v8224
        %v8257 = vadd.f32 %v8188, %v8225
        %v8258 = vadd.f32 %v8189, %v8226
        %v8259 = vadd.f32 %v8190, %v8227
        %v8260 = vadd.f32 %v8191, %v8228
        %v8261 = vadd.f32 %v8192, %v8229
        %v8262 = vadd.f32 %v8193, %v8230
        %v8263 = vadd.f32 %v8194, %v8231
        %v8264 = vadd.f32 %v8195, %v8232
        %v8265 = vadd.f32 %v8196, %v8233
        %v8266 = vadd.f32 %v8197, %v8234
        %v8267 = vadd.f32 %v8198, %v8235
        %v8268 = vadd.f32 %v8199, %v8236
        %v8269 = vadd.f32 %v8200, %v8237
        %v8270 = vld [vmem:[%s5221 + $0x2a] sm:$0x1]
        %v8271 = vlaneseq
        %v8272 = vshrl.u32 %v8271, 7
        %v8273 = vsub.s32 0, %v8272
        %v8274 = vrot.slane %v8270, %v8273
        %v8275 = vmul.f32 %v5213, %v8274
        %v8276 = vmul.f32 %v8274, 0.0
        %v8277 = vmul.f32 %v5214, %v8274
        %v8278 = vmul.f32 %v5215, %v8274
        %v8279 = vmul.f32 %v5216, %v8274
        %v8280 = vmul.f32 %v5217, %v8274
        %v8281 = vmul.f32 %v5218, %v8274
        %v8282 = vmul.f32 %v5219, %v8274
        %v8283 = vmul.f32 %v5220, %v8274
        %v8293 = vrot.slane %v8275, 6
        %v8294 = vrot.slane %v8276, 6
        %v8295 = vsel %vm3476, %v8293, %v8294
        %v8296 = vrot.slane %v8277, 6
        %v8297 = vsel %vm3476, %v8296, %v8294
        %v8298 = vrot.slane %v8278, 6
        %v8299 = vsel %vm3476, %v8298, %v8294
        %v8300 = vrot.slane %v8279, 6
        %v8301 = vsel %vm3476, %v8300, %v8294
        %v8302 = vrot.slane %v8280, 6
        %v8303 = vsel %vm3476, %v8302, %v8294
        %v8304 = vrot.slane %v8281, 6
        %v8305 = vsel %vm3476, %v8304, %v8294
        %v8306 = vrot.slane %v8282, 6
        %v8307 = vsel %vm3476, %v8306, %v8294
        %v8308 = vrot.slane %v8283, 6
        %v8309 = vsel %vm3476, %v8308, %v8294
        %v8326 = vadd.f32 %v8254, %v8293
        %v8327 = vadd.f32 %v8255, %v8295
        %v8328 = vadd.f32 %v8256, %v8296
        %v8329 = vadd.f32 %v8257, %v8297
        %v8330 = vadd.f32 %v8258, %v8298
        %v8331 = vadd.f32 %v8259, %v8299
        %v8332 = vadd.f32 %v8260, %v8300
        %v8333 = vadd.f32 %v8261, %v8301
        %v8334 = vadd.f32 %v8262, %v8302
        %v8335 = vadd.f32 %v8263, %v8303
        %v8336 = vadd.f32 %v8264, %v8304
        %v8337 = vadd.f32 %v8265, %v8305
        %v8338 = vadd.f32 %v8266, %v8306
        %v8339 = vadd.f32 %v8267, %v8307
        %v8340 = vadd.f32 %v8268, %v8308
        %v8341 = vadd.f32 %v8269, %v8309
        %v8342 = vld [vmem:[%s5221 + $0x33] sm:$0x1]
        %v8343 = vlaneseq
        %v8344 = vshrl.u32 %v8343, 7
        %v8345 = vsub.s32 0, %v8344
        %v8346 = vrot.slane %v8342, %v8345
        %v8347 = vmul.f32 %v5214, %v8346
        %v8348 = vmul.f32 %v8346, 0.0
        %v8349 = vmul.f32 %v5215, %v8346
        %v8350 = vmul.f32 %v5216, %v8346
        %v8351 = vmul.f32 %v5217, %v8346
        %v8352 = vmul.f32 %v5218, %v8346
        %v8353 = vmul.f32 %v5219, %v8346
        %v8354 = vmul.f32 %v5220, %v8346
        %v8363 = vrot.slane %v8347, 6
        %v8364 = vrot.slane %v8348, 6
        %v8365 = vsel %vm3476, %v8363, %v8364
        %v8366 = vrot.slane %v8349, 6
        %v8367 = vsel %vm3476, %v8366, %v8364
        %v8368 = vrot.slane %v8350, 6
        %v8369 = vsel %vm3476, %v8368, %v8364
        %v8370 = vrot.slane %v8351, 6
        %v8371 = vsel %vm3476, %v8370, %v8364
        %v8372 = vrot.slane %v8352, 6
        %v8373 = vsel %vm3476, %v8372, %v8364
        %v8374 = vrot.slane %v8353, 6
        %v8375 = vsel %vm3476, %v8374, %v8364
        %v8376 = vrot.slane %v8354, 6
        %v8377 = vsel %vm3476, %v8376, %v8364
        %v8378 = vsel %vm3476, %v8364, %v8364
        %v8395 = vadd.f32 %v8326, %v8363
        %v8396 = vadd.f32 %v8327, %v8365
        %v8397 = vadd.f32 %v8328, %v8366
        %v8398 = vadd.f32 %v8329, %v8367
        %v8399 = vadd.f32 %v8330, %v8368
        %v8400 = vadd.f32 %v8331, %v8369
        %v8401 = vadd.f32 %v8332, %v8370
        %v8402 = vadd.f32 %v8333, %v8371
        %v8403 = vadd.f32 %v8334, %v8372
        %v8404 = vadd.f32 %v8335, %v8373
        %v8405 = vadd.f32 %v8336, %v8374
        %v8406 = vadd.f32 %v8337, %v8375
        %v8407 = vadd.f32 %v8338, %v8376
        %v8408 = vadd.f32 %v8339, %v8377
        %v8409 = vadd.f32 %v8340, %v8364
        %v8410 = vadd.f32 %v8341, %v8378
        %v8411 = vld [vmem:[%s5221 + $0x3c] sm:$0x1]
        %v8412 = vlaneseq
        %v8413 = vshrl.u32 %v8412, 7
        %v8414 = vsub.s32 0, %v8413
        %v8415 = vrot.slane %v8411, %v8414
        %v8416 = vmul.f32 %v5215, %v8415
        %v8417 = vmul.f32 %v8415, 0.0
        %v8418 = vmul.f32 %v5216, %v8415
        %v8419 = vmul.f32 %v5217, %v8415
        %v8420 = vmul.f32 %v5218, %v8415
        %v8421 = vmul.f32 %v5219, %v8415
        %v8422 = vmul.f32 %v5220, %v8415
        %v8430 = vrot.slane %v8416, 6
        %v8431 = vrot.slane %v8417, 6
        %v8432 = vsel %vm3476, %v8430, %v8431
        %v8433 = vrot.slane %v8418, 6
        %v8434 = vsel %vm3476, %v8433, %v8431
        %v8435 = vrot.slane %v8419, 6
        %v8436 = vsel %vm3476, %v8435, %v8431
        %v8437 = vrot.slane %v8420, 6
        %v8438 = vsel %vm3476, %v8437, %v8431
        %v8439 = vrot.slane %v8421, 6
        %v8440 = vsel %vm3476, %v8439, %v8431
        %v8441 = vrot.slane %v8422, 6
        %v8442 = vsel %vm3476, %v8441, %v8431
        %v8443 = vsel %vm3476, %v8431, %v8431
        %v8458 = vadd.f32 %v8395, %v8430
        %v8459 = vadd.f32 %v8396, %v8432
        %v8460 = vadd.f32 %v8397, %v8433
        %v8461 = vadd.f32 %v8398, %v8434
        %v8462 = vadd.f32 %v8399, %v8435
        %v8463 = vadd.f32 %v8400, %v8436
        %v8464 = vadd.f32 %v8401, %v8437
        %v8465 = vadd.f32 %v8402, %v8438
        %v8466 = vadd.f32 %v8403, %v8439
        %v8467 = vadd.f32 %v8404, %v8440
        %v8468 = vadd.f32 %v8405, %v8441
        %v8469 = vadd.f32 %v8406, %v8442
        %v8470 = vadd.f32 %v8407, %v8431
        %v8471 = vadd.f32 %v8408, %v8443
        %v8472 = vadd.f32 %v8409, %v8431
        %v8473 = vadd.f32 %v8410, %v8443
        %v8474 = vld [vmem:[%s5221 + $0x45] sm:$0x1]
        %v8475 = vlaneseq
        %v8476 = vshrl.u32 %v8475, 7
        %v8477 = vsub.s32 0, %v8476
        %v8478 = vrot.slane %v8474, %v8477
        %v8479 = vmul.f32 %v5216, %v8478
        %v8480 = vmul.f32 %v8478, 0.0
        %v8481 = vmul.f32 %v5217, %v8478
        %v8482 = vmul.f32 %v5218, %v8478
        %v8483 = vmul.f32 %v5219, %v8478
        %v8484 = vmul.f32 %v5220, %v8478
        %v8491 = vrot.slane %v8479, 6
        %v8492 = vrot.slane %v8480, 6
        %v8493 = vsel %vm3476, %v8491, %v8492
        %v8494 = vrot.slane %v8481, 6
        %v8495 = vsel %vm3476, %v8494, %v8492
        %v8496 = vrot.slane %v8482, 6
        %v8497 = vsel %vm3476, %v8496, %v8492
        %v8498 = vrot.slane %v8483, 6
        %v8499 = vsel %vm3476, %v8498, %v8492
        %v8500 = vrot.slane %v8484, 6
        %v8501 = vsel %vm3476, %v8500, %v8492
        %v8502 = vsel %vm3476, %v8492, %v8492
        %v8515 = vadd.f32 %v8458, %v8491
        %v8516 = vadd.f32 %v8459, %v8493
        %v8517 = vadd.f32 %v8460, %v8494
        %v8518 = vadd.f32 %v8461, %v8495
        %v8519 = vadd.f32 %v8462, %v8496
        %v8520 = vadd.f32 %v8463, %v8497
        %v8521 = vadd.f32 %v8464, %v8498
        %v8522 = vadd.f32 %v8465, %v8499
        %v8523 = vadd.f32 %v8466, %v8500
        %v8524 = vadd.f32 %v8467, %v8501
        %v8525 = vadd.f32 %v8468, %v8492
        %v8526 = vadd.f32 %v8469, %v8502
        %v8527 = vadd.f32 %v8470, %v8492
        %v8528 = vadd.f32 %v8471, %v8502
        %v8529 = vadd.f32 %v8472, %v8492
        %v8530 = vadd.f32 %v8473, %v8502
        %v8531 = vld [vmem:[%s5221 + $0x4e] sm:$0x1]
        %v8532 = vlaneseq
        %v8533 = vshrl.u32 %v8532, 7
        %v8534 = vsub.s32 0, %v8533
        %v8535 = vrot.slane %v8531, %v8534
        %v8536 = vmul.f32 %v5217, %v8535
        %v8537 = vmul.f32 %v8535, 0.0
        %v8538 = vmul.f32 %v5218, %v8535
        %v8539 = vmul.f32 %v5219, %v8535
        %v8540 = vmul.f32 %v5220, %v8535
        %v8546 = vrot.slane %v8536, 6
        %v8547 = vrot.slane %v8537, 6
        %v8548 = vsel %vm3476, %v8546, %v8547
        %v8549 = vrot.slane %v8538, 6
        %v8550 = vsel %vm3476, %v8549, %v8547
        %v8551 = vrot.slane %v8539, 6
        %v8552 = vsel %vm3476, %v8551, %v8547
        %v8553 = vrot.slane %v8540, 6
        %v8554 = vsel %vm3476, %v8553, %v8547
        %v8555 = vsel %vm3476, %v8547, %v8547
        %v8566 = vadd.f32 %v8515, %v8546
        %v8567 = vadd.f32 %v8516, %v8548
        %v8568 = vadd.f32 %v8517, %v8549
        %v8569 = vadd.f32 %v8518, %v8550
        %v8570 = vadd.f32 %v8519, %v8551
        %v8571 = vadd.f32 %v8520, %v8552
        %v8572 = vadd.f32 %v8521, %v8553
        %v8573 = vadd.f32 %v8522, %v8554
        %v8574 = vadd.f32 %v8523, %v8547
        %v8575 = vadd.f32 %v8524, %v8555
        %v8576 = vadd.f32 %v8525, %v8547
        %v8577 = vadd.f32 %v8526, %v8555
        %v8578 = vadd.f32 %v8527, %v8547
        %v8579 = vadd.f32 %v8528, %v8555
        %v8580 = vadd.f32 %v8529, %v8547
        %v8581 = vadd.f32 %v8530, %v8555
        %v8582 = vld [vmem:[%s5221 + $0x7] sm:$0x1]
        %v8583 = vlaneseq
        %v8584 = vshrl.u32 %v8583, 7
        %v8585 = vsub.s32 0, %v8584
        %v8586 = vrot.slane %v8582, %v8585
        %v8587 = vmul.f32 %v8586, 0.0
        %v8588 = vmul.f32 %v5213, %v8586
        %v8589 = vmul.f32 %v5214, %v8586
        %v8590 = vmul.f32 %v5215, %v8586
        %v8591 = vmul.f32 %v5216, %v8586
        %v8597 = vrot.slane %v8587, 7
        %v8598 = vsel %vm4029, %v8597, %v8597
        %v8599 = vrot.slane %v8588, 7
        %v8600 = vsel %vm4029, %v8599, %v8597
        %v8601 = vrot.slane %v8589, 7
        %v8602 = vsel %vm4029, %v8601, %v8597
        %v8603 = vrot.slane %v8590, 7
        %v8604 = vsel %vm4029, %v8603, %v8597
        %v8605 = vrot.slane %v8591, 7
        %v8606 = vsel %vm4029, %v8605, %v8597
        %v8617 = vadd.f32 %v8566, %v8597
        %v8618 = vadd.f32 %v8567, %v8598
        %v8619 = vadd.f32 %v8568, %v8597
        %v8620 = vadd.f32 %v8569, %v8598
        %v8621 = vadd.f32 %v8570, %v8597
        %v8622 = vadd.f32 %v8571, %v8598
        %v8623 = vadd.f32 %v8572, %v8597
        %v8624 = vadd.f32 %v8573, %v8598
        %v8625 = vadd.f32 %v8574, %v8599
        %v8626 = vadd.f32 %v8575, %v8600
        %v8627 = vadd.f32 %v8576, %v8601
        %v8628 = vadd.f32 %v8577, %v8602
        %v8629 = vadd.f32 %v8578, %v8603
        %v8630 = vadd.f32 %v8579, %v8604
        %v8631 = vadd.f32 %v8580, %v8605
        %v8632 = vadd.f32 %v8581, %v8606
        %v8633 = vld [vmem:[%s5221 + $0x10] sm:$0x1]
        %v8634 = vlaneseq
        %v8635 = vshrl.u32 %v8634, 7
        %v8636 = vsub.s32 0, %v8635
        %v8637 = vrot.slane %v8633, %v8636
        %v8638 = vmul.f32 %v8637, 0.0
        %v8639 = vmul.f32 %v5213, %v8637
        %v8640 = vmul.f32 %v5214, %v8637
        %v8641 = vmul.f32 %v5215, %v8637
        %v8642 = vmul.f32 %v5216, %v8637
        %v8643 = vmul.f32 %v5217, %v8637
        %v8650 = vrot.slane %v8638, 7
        %v8651 = vsel %vm4029, %v8650, %v8650
        %v8652 = vrot.slane %v8639, 7
        %v8653 = vsel %vm4029, %v8652, %v8650
        %v8654 = vrot.slane %v8640, 7
        %v8655 = vsel %vm4029, %v8654, %v8650
        %v8656 = vrot.slane %v8641, 7
        %v8657 = vsel %vm4029, %v8656, %v8650
        %v8658 = vrot.slane %v8642, 7
        %v8659 = vsel %vm4029, %v8658, %v8650
        %v8660 = vrot.slane %v8643, 7
        %v8661 = vsel %vm4029, %v8660, %v8650
        %v8674 = vadd.f32 %v8617, %v8650
        %v8675 = vadd.f32 %v8618, %v8651
        %v8676 = vadd.f32 %v8619, %v8650
        %v8677 = vadd.f32 %v8620, %v8651
        %v8678 = vadd.f32 %v8621, %v8650
        %v8679 = vadd.f32 %v8622, %v8651
        %v8680 = vadd.f32 %v8623, %v8652
        %v8681 = vadd.f32 %v8624, %v8653
        %v8682 = vadd.f32 %v8625, %v8654
        %v8683 = vadd.f32 %v8626, %v8655
        %v8684 = vadd.f32 %v8627, %v8656
        %v8685 = vadd.f32 %v8628, %v8657
        %v8686 = vadd.f32 %v8629, %v8658
        %v8687 = vadd.f32 %v8630, %v8659
        %v8688 = vadd.f32 %v8631, %v8660
        %v8689 = vadd.f32 %v8632, %v8661
        %v8690 = vld [vmem:[%s5221 + $0x19] sm:$0x1]
        %v8691 = vlaneseq
        %v8692 = vshrl.u32 %v8691, 7
        %v8693 = vsub.s32 0, %v8692
        %v8694 = vrot.slane %v8690, %v8693
        %v8695 = vmul.f32 %v8694, 0.0
        %v8696 = vmul.f32 %v5213, %v8694
        %v8697 = vmul.f32 %v5214, %v8694
        %v8698 = vmul.f32 %v5215, %v8694
        %v8699 = vmul.f32 %v5216, %v8694
        %v8700 = vmul.f32 %v5217, %v8694
        %v8701 = vmul.f32 %v5218, %v8694
        %v8709 = vrot.slane %v8695, 7
        %v8710 = vsel %vm4029, %v8709, %v8709
        %v8711 = vrot.slane %v8696, 7
        %v8712 = vsel %vm4029, %v8711, %v8709
        %v8713 = vrot.slane %v8697, 7
        %v8714 = vsel %vm4029, %v8713, %v8709
        %v8715 = vrot.slane %v8698, 7
        %v8716 = vsel %vm4029, %v8715, %v8709
        %v8717 = vrot.slane %v8699, 7
        %v8718 = vsel %vm4029, %v8717, %v8709
        %v8719 = vrot.slane %v8700, 7
        %v8720 = vsel %vm4029, %v8719, %v8709
        %v8721 = vrot.slane %v8701, 7
        %v8722 = vsel %vm4029, %v8721, %v8709
        %v8737 = vadd.f32 %v8674, %v8709
        %v8738 = vadd.f32 %v8675, %v8710
        %v8739 = vadd.f32 %v8676, %v8709
        %v8740 = vadd.f32 %v8677, %v8710
        %v8741 = vadd.f32 %v8678, %v8711
        %v8742 = vadd.f32 %v8679, %v8712
        %v8743 = vadd.f32 %v8680, %v8713
        %v8744 = vadd.f32 %v8681, %v8714
        %v8745 = vadd.f32 %v8682, %v8715
        %v8746 = vadd.f32 %v8683, %v8716
        %v8747 = vadd.f32 %v8684, %v8717
        %v8748 = vadd.f32 %v8685, %v8718
        %v8749 = vadd.f32 %v8686, %v8719
        %v8750 = vadd.f32 %v8687, %v8720
        %v8751 = vadd.f32 %v8688, %v8721
        %v8752 = vadd.f32 %v8689, %v8722
        %v8753 = vld [vmem:[%s5221 + $0x22] sm:$0x1]
        %v8754 = vlaneseq
        %v8755 = vshrl.u32 %v8754, 7
        %v8756 = vsub.s32 0, %v8755
        %v8757 = vrot.slane %v8753, %v8756
        %v8758 = vmul.f32 %v8757, 0.0
        %v8759 = vmul.f32 %v5213, %v8757
        %v8760 = vmul.f32 %v5214, %v8757
        %v8761 = vmul.f32 %v5215, %v8757
        %v8762 = vmul.f32 %v5216, %v8757
        %v8763 = vmul.f32 %v5217, %v8757
        %v8764 = vmul.f32 %v5218, %v8757
        %v8765 = vmul.f32 %v5219, %v8757
        %v8774 = vrot.slane %v8758, 7
        %v8775 = vsel %vm4029, %v8774, %v8774
        %v8776 = vrot.slane %v8759, 7
        %v8777 = vsel %vm4029, %v8776, %v8774
        %v8778 = vrot.slane %v8760, 7
        %v8779 = vsel %vm4029, %v8778, %v8774
        %v8780 = vrot.slane %v8761, 7
        %v8781 = vsel %vm4029, %v8780, %v8774
        %v8782 = vrot.slane %v8762, 7
        %v8783 = vsel %vm4029, %v8782, %v8774
        %v8784 = vrot.slane %v8763, 7
        %v8785 = vsel %vm4029, %v8784, %v8774
        %v8786 = vrot.slane %v8764, 7
        %v8787 = vsel %vm4029, %v8786, %v8774
        %v8788 = vrot.slane %v8765, 7
        %v8789 = vsel %vm4029, %v8788, %v8774
        %v8806 = vadd.f32 %v8737, %v8774
        %v8807 = vadd.f32 %v8738, %v8775
        %v8808 = vadd.f32 %v8739, %v8776
        %v8809 = vadd.f32 %v8740, %v8777
        %v8810 = vadd.f32 %v8741, %v8778
        %v8811 = vadd.f32 %v8742, %v8779
        %v8812 = vadd.f32 %v8743, %v8780
        %v8813 = vadd.f32 %v8744, %v8781
        %v8814 = vadd.f32 %v8745, %v8782
        %v8815 = vadd.f32 %v8746, %v8783
        %v8816 = vadd.f32 %v8747, %v8784
        %v8817 = vadd.f32 %v8748, %v8785
        %v8818 = vadd.f32 %v8749, %v8786
        %v8819 = vadd.f32 %v8750, %v8787
        %v8820 = vadd.f32 %v8751, %v8788
        %v8821 = vadd.f32 %v8752, %v8789
        %v8822 = vld [vmem:[%s5221 + $0x2b] sm:$0x1]
        %v8823 = vlaneseq
        %v8824 = vshrl.u32 %v8823, 7
        %v8825 = vsub.s32 0, %v8824
        %v8826 = vrot.slane %v8822, %v8825
        %v8827 = vmul.f32 %v5213, %v8826
        %v8828 = vmul.f32 %v8826, 0.0
        %v8829 = vmul.f32 %v5214, %v8826
        %v8830 = vmul.f32 %v5215, %v8826
        %v8831 = vmul.f32 %v5216, %v8826
        %v8832 = vmul.f32 %v5217, %v8826
        %v8833 = vmul.f32 %v5218, %v8826
        %v8834 = vmul.f32 %v5219, %v8826
        %v8835 = vmul.f32 %v5220, %v8826
        %v8845 = vrot.slane %v8827, 7
        %v8846 = vrot.slane %v8828, 7
        %v8847 = vsel %vm4029, %v8845, %v8846
        %v8848 = vrot.slane %v8829, 7
        %v8849 = vsel %vm4029, %v8848, %v8846
        %v8850 = vrot.slane %v8830, 7
        %v8851 = vsel %vm4029, %v8850, %v8846
        %v8852 = vrot.slane %v8831, 7
        %v8853 = vsel %vm4029, %v8852, %v8846
        %v8854 = vrot.slane %v8832, 7
        %v8855 = vsel %vm4029, %v8854, %v8846
        %v8856 = vrot.slane %v8833, 7
        %v8857 = vsel %vm4029, %v8856, %v8846
        %v8858 = vrot.slane %v8834, 7
        %v8859 = vsel %vm4029, %v8858, %v8846
        %v8860 = vrot.slane %v8835, 7
        %v8861 = vsel %vm4029, %v8860, %v8846
        %v8878 = vadd.f32 %v8806, %v8845
        %v8879 = vadd.f32 %v8807, %v8847
        %v8880 = vadd.f32 %v8808, %v8848
        %v8881 = vadd.f32 %v8809, %v8849
        %v8882 = vadd.f32 %v8810, %v8850
        %v8883 = vadd.f32 %v8811, %v8851
        %v8884 = vadd.f32 %v8812, %v8852
        %v8885 = vadd.f32 %v8813, %v8853
        %v8886 = vadd.f32 %v8814, %v8854
        %v8887 = vadd.f32 %v8815, %v8855
        %v8888 = vadd.f32 %v8816, %v8856
        %v8889 = vadd.f32 %v8817, %v8857
        %v8890 = vadd.f32 %v8818, %v8858
        %v8891 = vadd.f32 %v8819, %v8859
        %v8892 = vadd.f32 %v8820, %v8860
        %v8893 = vadd.f32 %v8821, %v8861
        %v8894 = vld [vmem:[%s5221 + $0x34] sm:$0x1]
        %v8895 = vlaneseq
        %v8896 = vshrl.u32 %v8895, 7
        %v8897 = vsub.s32 0, %v8896
        %v8898 = vrot.slane %v8894, %v8897
        %v8899 = vmul.f32 %v5214, %v8898
        %v8900 = vmul.f32 %v8898, 0.0
        %v8901 = vmul.f32 %v5215, %v8898
        %v8902 = vmul.f32 %v5216, %v8898
        %v8903 = vmul.f32 %v5217, %v8898
        %v8904 = vmul.f32 %v5218, %v8898
        %v8905 = vmul.f32 %v5219, %v8898
        %v8906 = vmul.f32 %v5220, %v8898
        %v8915 = vrot.slane %v8899, 7
        %v8916 = vrot.slane %v8900, 7
        %v8917 = vsel %vm4029, %v8915, %v8916
        %v8918 = vrot.slane %v8901, 7
        %v8919 = vsel %vm4029, %v8918, %v8916
        %v8920 = vrot.slane %v8902, 7
        %v8921 = vsel %vm4029, %v8920, %v8916
        %v8922 = vrot.slane %v8903, 7
        %v8923 = vsel %vm4029, %v8922, %v8916
        %v8924 = vrot.slane %v8904, 7
        %v8925 = vsel %vm4029, %v8924, %v8916
        %v8926 = vrot.slane %v8905, 7
        %v8927 = vsel %vm4029, %v8926, %v8916
        %v8928 = vrot.slane %v8906, 7
        %v8929 = vsel %vm4029, %v8928, %v8916
        %v8930 = vsel %vm4029, %v8916, %v8916
        %v8947 = vadd.f32 %v8878, %v8915
        %v8948 = vadd.f32 %v8879, %v8917
        %v8949 = vadd.f32 %v8880, %v8918
        %v8950 = vadd.f32 %v8881, %v8919
        %v8951 = vadd.f32 %v8882, %v8920
        %v8952 = vadd.f32 %v8883, %v8921
        %v8953 = vadd.f32 %v8884, %v8922
        %v8954 = vadd.f32 %v8885, %v8923
        %v8955 = vadd.f32 %v8886, %v8924
        %v8956 = vadd.f32 %v8887, %v8925
        %v8957 = vadd.f32 %v8888, %v8926
        %v8958 = vadd.f32 %v8889, %v8927
        %v8959 = vadd.f32 %v8890, %v8928
        %v8960 = vadd.f32 %v8891, %v8929
        %v8961 = vadd.f32 %v8892, %v8916
        %v8962 = vadd.f32 %v8893, %v8930
        %v8963 = vld [vmem:[%s5221 + $0x3d] sm:$0x1]
        %v8964 = vlaneseq
        %v8965 = vshrl.u32 %v8964, 7
        %v8966 = vsub.s32 0, %v8965
        %v8967 = vrot.slane %v8963, %v8966
        %v8968 = vmul.f32 %v5215, %v8967
        %v8969 = vmul.f32 %v8967, 0.0
        %v8970 = vmul.f32 %v5216, %v8967
        %v8971 = vmul.f32 %v5217, %v8967
        %v8972 = vmul.f32 %v5218, %v8967
        %v8973 = vmul.f32 %v5219, %v8967
        %v8974 = vmul.f32 %v5220, %v8967
        %v8982 = vrot.slane %v8968, 7
        %v8983 = vrot.slane %v8969, 7
        %v8984 = vsel %vm4029, %v8982, %v8983
        %v8985 = vrot.slane %v8970, 7
        %v8986 = vsel %vm4029, %v8985, %v8983
        %v8987 = vrot.slane %v8971, 7
        %v8988 = vsel %vm4029, %v8987, %v8983
        %v8989 = vrot.slane %v8972, 7
        %v8990 = vsel %vm4029, %v8989, %v8983
        %v8991 = vrot.slane %v8973, 7
        %v8992 = vsel %vm4029, %v8991, %v8983
        %v8993 = vrot.slane %v8974, 7
        %v8994 = vsel %vm4029, %v8993, %v8983
        %v8995 = vsel %vm4029, %v8983, %v8983
        %v9010 = vadd.f32 %v8947, %v8982
        %v9011 = vadd.f32 %v8948, %v8984
        %v9012 = vadd.f32 %v8949, %v8985
        %v9013 = vadd.f32 %v8950, %v8986
        %v9014 = vadd.f32 %v8951, %v8987
        %v9015 = vadd.f32 %v8952, %v8988
        %v9016 = vadd.f32 %v8953, %v8989
        %v9017 = vadd.f32 %v8954, %v8990
        %v9018 = vadd.f32 %v8955, %v8991
        %v9019 = vadd.f32 %v8956, %v8992
        %v9020 = vadd.f32 %v8957, %v8993
        %v9021 = vadd.f32 %v8958, %v8994
        %v9022 = vadd.f32 %v8959, %v8983
        %v9023 = vadd.f32 %v8960, %v8995
        %v9024 = vadd.f32 %v8961, %v8983
        %v9025 = vadd.f32 %v8962, %v8995
        %v9026 = vld [vmem:[%s5221 + $0x46] sm:$0x1]
        %v9027 = vlaneseq
        %v9028 = vshrl.u32 %v9027, 7
        %v9029 = vsub.s32 0, %v9028
        %v9030 = vrot.slane %v9026, %v9029
        %v9031 = vmul.f32 %v5216, %v9030
        %v9032 = vmul.f32 %v9030, 0.0
        %v9033 = vmul.f32 %v5217, %v9030
        %v9034 = vmul.f32 %v5218, %v9030
        %v9035 = vmul.f32 %v5219, %v9030
        %v9036 = vmul.f32 %v5220, %v9030
        %v9043 = vrot.slane %v9031, 7
        %v9044 = vrot.slane %v9032, 7
        %v9045 = vsel %vm4029, %v9043, %v9044
        %v9046 = vrot.slane %v9033, 7
        %v9047 = vsel %vm4029, %v9046, %v9044
        %v9048 = vrot.slane %v9034, 7
        %v9049 = vsel %vm4029, %v9048, %v9044
        %v9050 = vrot.slane %v9035, 7
        %v9051 = vsel %vm4029, %v9050, %v9044
        %v9052 = vrot.slane %v9036, 7
        %v9053 = vsel %vm4029, %v9052, %v9044
        %v9054 = vsel %vm4029, %v9044, %v9044
        %v9067 = vadd.f32 %v9010, %v9043
        %v9068 = vadd.f32 %v9011, %v9045
        %v9069 = vadd.f32 %v9012, %v9046
        %v9070 = vadd.f32 %v9013, %v9047
        %v9071 = vadd.f32 %v9014, %v9048
        %v9072 = vadd.f32 %v9015, %v9049
        %v9073 = vadd.f32 %v9016, %v9050
        %v9074 = vadd.f32 %v9017, %v9051
        %v9075 = vadd.f32 %v9018, %v9052
        %v9076 = vadd.f32 %v9019, %v9053
        %v9077 = vadd.f32 %v9020, %v9044
        %v9078 = vadd.f32 %v9021, %v9054
        %v9079 = vadd.f32 %v9022, %v9044
        %v9080 = vadd.f32 %v9023, %v9054
        %v9081 = vadd.f32 %v9024, %v9044
        %v9082 = vadd.f32 %v9025, %v9054
        %v9083 = vld [vmem:[%s5221 + $0x4f] sm:$0x1]
        %v9084 = vlaneseq
        %v9085 = vshrl.u32 %v9084, 7
        %v9086 = vsub.s32 0, %v9085
        %v9087 = vrot.slane %v9083, %v9086
        %v9088 = vmul.f32 %v5217, %v9087
        %v9089 = vmul.f32 %v9087, 0.0
        %v9090 = vmul.f32 %v5218, %v9087
        %v9091 = vmul.f32 %v5219, %v9087
        %v9092 = vmul.f32 %v5220, %v9087
        %v9098 = vrot.slane %v9088, 7
        %v9099 = vrot.slane %v9089, 7
        %v9100 = vsel %vm4029, %v9098, %v9099
        %v9101 = vrot.slane %v9090, 7
        %v9102 = vsel %vm4029, %v9101, %v9099
        %v9103 = vrot.slane %v9091, 7
        %v9104 = vsel %vm4029, %v9103, %v9099
        %v9105 = vrot.slane %v9092, 7
        %v9106 = vsel %vm4029, %v9105, %v9099
        %v9107 = vsel %vm4029, %v9099, %v9099
        %v9118 = vadd.f32 %v9067, %v9098
        %v9119 = vadd.f32 %v9068, %v9100
        %v9120 = vadd.f32 %v9069, %v9101
        %v9121 = vadd.f32 %v9070, %v9102
        %v9122 = vadd.f32 %v9071, %v9103
        %v9123 = vadd.f32 %v9072, %v9104
        %v9124 = vadd.f32 %v9073, %v9105
        %v9125 = vadd.f32 %v9074, %v9106
        %v9126 = vadd.f32 %v9075, %v9099
        %v9127 = vadd.f32 %v9076, %v9107
        %v9128 = vadd.f32 %v9077, %v9099
        %v9129 = vadd.f32 %v9078, %v9107
        %v9130 = vadd.f32 %v9079, %v9099
        %v9131 = vadd.f32 %v9080, %v9107
        %v9132 = vadd.f32 %v9081, %v9099
        %v9133 = vadd.f32 %v9082, %v9107
        %v9134 = vld [vmem:[%s5221 + $0x8] sm:$0x1]
        %v9135 = vlaneseq
        %v9136 = vshrl.u32 %v9135, 7
        %v9137 = vsub.s32 0, %v9136
        %v9138 = vrot.slane %v9134, %v9137
        %v9139 = vmul.f32 %v9138, 0.0
        %v9140 = vmul.f32 %v5213, %v9138
        %v9141 = vmul.f32 %v5214, %v9138
        %v9142 = vmul.f32 %v5215, %v9138
        %v9143 = vmul.f32 %v5216, %v9138
        %v9144 = vadd.f32 %v9118, %v9139
        %v9145 = vadd.f32 %v9119, %v9139
        %v9146 = vadd.f32 %v9120, %v9139
        %v9147 = vadd.f32 %v9121, %v9139
        %v9148 = vadd.f32 %v9122, %v9139
        %v9149 = vadd.f32 %v9123, %v9139
        %v9150 = vadd.f32 %v9124, %v9139
        %v9151 = vadd.f32 %v9125, %v9139
        %v9152 = vadd.f32 %v9126, %v9140
        %v9153 = vadd.f32 %v9127, %v9139
        %v9154 = vadd.f32 %v9128, %v9141
        %v9155 = vadd.f32 %v9129, %v9139
        %v9156 = vadd.f32 %v9130, %v9142
        %v9157 = vadd.f32 %v9131, %v9139
        %v9158 = vadd.f32 %v9132, %v9143
        %v9159 = vadd.f32 %v9133, %v9139
        %v9160 = vld [vmem:[%s5221 + $0x11] sm:$0x1]
        %v9161 = vlaneseq
        %v9162 = vshrl.u32 %v9161, 7
        %v9163 = vsub.s32 0, %v9162
        %v9164 = vrot.slane %v9160, %v9163
        %v9165 = vmul.f32 %v9164, 0.0
        %v9166 = vmul.f32 %v5213, %v9164
        %v9167 = vmul.f32 %v5214, %v9164
        %v9168 = vmul.f32 %v5215, %v9164
        %v9169 = vmul.f32 %v5216, %v9164
        %v9170 = vmul.f32 %v5217, %v9164
        %v9171 = vadd.f32 %v9144, %v9165
        %v9172 = vadd.f32 %v9145, %v9165
        %v9173 = vadd.f32 %v9146, %v9165
        %v9174 = vadd.f32 %v9147, %v9165
        %v9175 = vadd.f32 %v9148, %v9165
        %v9176 = vadd.f32 %v9149, %v9165
        %v9177 = vadd.f32 %v9150, %v9166
        %v9178 = vadd.f32 %v9151, %v9165
        %v9179 = vadd.f32 %v9152, %v9167
        %v9180 = vadd.f32 %v9153, %v9165
        %v9181 = vadd.f32 %v9154, %v9168
        %v9182 = vadd.f32 %v9155, %v9165
        %v9183 = vadd.f32 %v9156, %v9169
        %v9184 = vadd.f32 %v9157, %v9165
        %v9185 = vadd.f32 %v9158, %v9170
        %v9186 = vadd.f32 %v9159, %v9165
        %v9187 = vld [vmem:[%s5221 + $0x1a] sm:$0x1]
        %v9188 = vlaneseq
        %v9189 = vshrl.u32 %v9188, 7
        %v9190 = vsub.s32 0, %v9189
        %v9191 = vrot.slane %v9187, %v9190
        %v9192 = vmul.f32 %v9191, 0.0
        %v9193 = vmul.f32 %v5213, %v9191
        %v9194 = vmul.f32 %v5214, %v9191
        %v9195 = vmul.f32 %v5215, %v9191
        %v9196 = vmul.f32 %v5216, %v9191
        %v9197 = vmul.f32 %v5217, %v9191
        %v9198 = vmul.f32 %v5218, %v9191
        %v9199 = vadd.f32 %v9171, %v9192
        %v9200 = vadd.f32 %v9172, %v9192
        %v9201 = vadd.f32 %v9173, %v9192
        %v9202 = vadd.f32 %v9174, %v9192
        %v9203 = vadd.f32 %v9175, %v9193
        %v9204 = vadd.f32 %v9176, %v9192
        %v9205 = vadd.f32 %v9177, %v9194
        %v9206 = vadd.f32 %v9178, %v9192
        %v9207 = vadd.f32 %v9179, %v9195
        %v9208 = vadd.f32 %v9180, %v9192
        %v9209 = vadd.f32 %v9181, %v9196
        %v9210 = vadd.f32 %v9182, %v9192
        %v9211 = vadd.f32 %v9183, %v9197
        %v9212 = vadd.f32 %v9184, %v9192
        %v9213 = vadd.f32 %v9185, %v9198
        %v9214 = vadd.f32 %v9186, %v9192
        %v9215 = vld [vmem:[%s5221 + $0x23] sm:$0x1]
        %v9216 = vlaneseq
        %v9217 = vshrl.u32 %v9216, 7
        %v9218 = vsub.s32 0, %v9217
        %v9219 = vrot.slane %v9215, %v9218
        %v9220 = vmul.f32 %v9219, 0.0
        %v9221 = vmul.f32 %v5213, %v9219
        %v9222 = vmul.f32 %v5214, %v9219
        %v9223 = vmul.f32 %v5215, %v9219
        %v9224 = vmul.f32 %v5216, %v9219
        %v9225 = vmul.f32 %v5217, %v9219
        %v9226 = vmul.f32 %v5218, %v9219
        %v9227 = vmul.f32 %v5219, %v9219
        %v9228 = vadd.f32 %v9199, %v9220
        %v9229 = vadd.f32 %v9200, %v9220
        %v9230 = vadd.f32 %v9201, %v9221
        %v9231 = vadd.f32 %v9202, %v9220
        %v9232 = vadd.f32 %v9203, %v9222
        %v9233 = vadd.f32 %v9204, %v9220
        %v9234 = vadd.f32 %v9205, %v9223
        %v9235 = vadd.f32 %v9206, %v9220
        %v9236 = vadd.f32 %v9207, %v9224
        %v9237 = vadd.f32 %v9208, %v9220
        %v9238 = vadd.f32 %v9209, %v9225
        %v9239 = vadd.f32 %v9210, %v9220
        %v9240 = vadd.f32 %v9211, %v9226
        %v9241 = vadd.f32 %v9212, %v9220
        %v9242 = vadd.f32 %v9213, %v9227
        %v9243 = vadd.f32 %v9214, %v9220
        %v9244 = vld [vmem:[%s5221 + $0x2c] sm:$0x1]
        %v9245 = vlaneseq
        %v9246 = vshrl.u32 %v9245, 7
        %v9247 = vsub.s32 0, %v9246
        %v9248 = vrot.slane %v9244, %v9247
        %v9249 = vmul.f32 %v5213, %v9248
        %v9250 = vmul.f32 %v9248, 0.0
        %v9251 = vmul.f32 %v5214, %v9248
        %v9252 = vmul.f32 %v5215, %v9248
        %v9253 = vmul.f32 %v5216, %v9248
        %v9254 = vmul.f32 %v5217, %v9248
        %v9255 = vmul.f32 %v5218, %v9248
        %v9256 = vmul.f32 %v5219, %v9248
        %v9257 = vmul.f32 %v5220, %v9248
        %v9258 = vadd.f32 %v9228, %v9249
        %v9259 = vadd.f32 %v9229, %v9250
        %v9260 = vadd.f32 %v9230, %v9251
        %v9261 = vadd.f32 %v9231, %v9250
        %v9262 = vadd.f32 %v9232, %v9252
        %v9263 = vadd.f32 %v9233, %v9250
        %v9264 = vadd.f32 %v9234, %v9253
        %v9265 = vadd.f32 %v9235, %v9250
        %v9266 = vadd.f32 %v9236, %v9254
        %v9267 = vadd.f32 %v9237, %v9250
        %v9268 = vadd.f32 %v9238, %v9255
        %v9269 = vadd.f32 %v9239, %v9250
        %v9270 = vadd.f32 %v9240, %v9256
        %v9271 = vadd.f32 %v9241, %v9250
        %v9272 = vadd.f32 %v9242, %v9257
        %v9273 = vadd.f32 %v9243, %v9250
        %v9274 = vld [vmem:[%s5221 + $0x35] sm:$0x1]
        %v9275 = vlaneseq
        %v9276 = vshrl.u32 %v9275, 7
        %v9277 = vsub.s32 0, %v9276
        %v9278 = vrot.slane %v9274, %v9277
        %v9279 = vmul.f32 %v5214, %v9278
        %v9280 = vmul.f32 %v9278, 0.0
        %v9281 = vmul.f32 %v5215, %v9278
        %v9282 = vmul.f32 %v5216, %v9278
        %v9283 = vmul.f32 %v5217, %v9278
        %v9284 = vmul.f32 %v5218, %v9278
        %v9285 = vmul.f32 %v5219, %v9278
        %v9286 = vmul.f32 %v5220, %v9278
        %v9287 = vadd.f32 %v9258, %v9279
        %v9288 = vadd.f32 %v9259, %v9280
        %v9289 = vadd.f32 %v9260, %v9281
        %v9290 = vadd.f32 %v9261, %v9280
        %v9291 = vadd.f32 %v9262, %v9282
        %v9292 = vadd.f32 %v9263, %v9280
        %v9293 = vadd.f32 %v9264, %v9283
        %v9294 = vadd.f32 %v9265, %v9280
        %v9295 = vadd.f32 %v9266, %v9284
        %v9296 = vadd.f32 %v9267, %v9280
        %v9297 = vadd.f32 %v9268, %v9285
        %v9298 = vadd.f32 %v9269, %v9280
        %v9299 = vadd.f32 %v9270, %v9286
        %v9300 = vadd.f32 %v9271, %v9280
        %v9301 = vadd.f32 %v9272, %v9280
        %v9302 = vadd.f32 %v9273, %v9280
        %v9303 = vld [vmem:[%s5221 + $0x3e] sm:$0x1]
        %v9304 = vlaneseq
        %v9305 = vshrl.u32 %v9304, 7
        %v9306 = vsub.s32 0, %v9305
        %v9307 = vrot.slane %v9303, %v9306
        %v9308 = vmul.f32 %v5215, %v9307
        %v9309 = vmul.f32 %v9307, 0.0
        %v9310 = vmul.f32 %v5216, %v9307
        %v9311 = vmul.f32 %v5217, %v9307
        %v9312 = vmul.f32 %v5218, %v9307
        %v9313 = vmul.f32 %v5219, %v9307
        %v9314 = vmul.f32 %v5220, %v9307
        %v9315 = vadd.f32 %v9287, %v9308
        %v9316 = vadd.f32 %v9288, %v9309
        %v9317 = vadd.f32 %v9289, %v9310
        %v9318 = vadd.f32 %v9290, %v9309
        %v9319 = vadd.f32 %v9291, %v9311
        %v9320 = vadd.f32 %v9292, %v9309
        %v9321 = vadd.f32 %v9293, %v9312
        %v9322 = vadd.f32 %v9294, %v9309
        %v9323 = vadd.f32 %v9295, %v9313
        %v9324 = vadd.f32 %v9296, %v9309
        %v9325 = vadd.f32 %v9297, %v9314
        %v9326 = vadd.f32 %v9298, %v9309
        %v9327 = vadd.f32 %v9299, %v9309
        %v9328 = vadd.f32 %v9300, %v9309
        %v9329 = vadd.f32 %v9301, %v9309
        %v9330 = vadd.f32 %v9302, %v9309
        %v9331 = vld [vmem:[%s5221 + $0x47] sm:$0x1]
        %v9332 = vlaneseq
        %v9333 = vshrl.u32 %v9332, 7
        %v9334 = vsub.s32 0, %v9333
        %v9335 = vrot.slane %v9331, %v9334
        %v9336 = vmul.f32 %v5216, %v9335
        %v9337 = vmul.f32 %v9335, 0.0
        %v9338 = vmul.f32 %v5217, %v9335
        %v9339 = vmul.f32 %v5218, %v9335
        %v9340 = vmul.f32 %v5219, %v9335
        %v9341 = vmul.f32 %v5220, %v9335
        %v9342 = vadd.f32 %v9315, %v9336
        %v9343 = vadd.f32 %v9316, %v9337
        %v9344 = vadd.f32 %v9317, %v9338
        %v9345 = vadd.f32 %v9318, %v9337
        %v9346 = vadd.f32 %v9319, %v9339
        %v9347 = vadd.f32 %v9320, %v9337
        %v9348 = vadd.f32 %v9321, %v9340
        %v9349 = vadd.f32 %v9322, %v9337
        %v9350 = vadd.f32 %v9323, %v9341
        %v9351 = vadd.f32 %v9324, %v9337
        %v9352 = vadd.f32 %v9325, %v9337
        %v9353 = vadd.f32 %v9326, %v9337
        %v9354 = vadd.f32 %v9327, %v9337
        %v9355 = vadd.f32 %v9328, %v9337
        %v9356 = vadd.f32 %v9329, %v9337
        %v9357 = vadd.f32 %v9330, %v9337
        %v9358 = vld [vmem:[%s5221 + $0x50] sm:$0x1]
        %v9359 = vlaneseq
        %v9360 = vshrl.u32 %v9359, 7
        %v9361 = vsub.s32 0, %v9360
        %v9362 = vrot.slane %v9358, %v9361
        %v9363 = vmul.f32 %v5217, %v9362
        %v9364 = vmul.f32 %v9362, 0.0
        %v9365 = vmul.f32 %v5218, %v9362
        %v9366 = vmul.f32 %v5219, %v9362
        %v9367 = vmul.f32 %v5220, %v9362
        %v9368 = vadd.f32 %v9342, %v9363
        %v9369 = vadd.f32 %v9343, %v9364
        %v9370 = vadd.f32 %v9344, %v9365
        %v9371 = vadd.f32 %v9345, %v9364
        %v9372 = vadd.f32 %v9346, %v9366
        %v9373 = vadd.f32 %v9347, %v9364
        %v9374 = vadd.f32 %v9348, %v9367
        %v9375 = vadd.f32 %v9349, %v9364
        %v9376 = vadd.f32 %v9350, %v9364
        %v9377 = vadd.f32 %v9351, %v9364
        %v9378 = vadd.f32 %v9352, %v9364
        %v9379 = vadd.f32 %v9353, %v9364
        %v9380 = vadd.f32 %v9354, %v9364
        %v9381 = vadd.f32 %v9355, %v9364
        %v9382 = vadd.f32 %v9356, %v9364
        %v9383 = vadd.f32 %v9357, %v9364
        %v9400 = vrot.slane %v9368, 4
        %v9401 = vrot.slane %v9369, 4
        %v9402 = vsel %vm4833, %v9400, %v9401
        %v9403 = vrot.slane %v9370, 4
        %v9404 = vrot.slane %v9371, 4
        %v9405 = vsel %vm4833, %v9403, %v9404
        %v9406 = vrot.slane %v9372, 4
        %v9407 = vrot.slane %v9373, 4
        %v9408 = vsel %vm4833, %v9406, %v9407
        %v9409 = vrot.slane %v9374, 4
        %v9410 = vrot.slane %v9375, 4
        %v9411 = vsel %vm4833, %v9409, %v9410
        %v9412 = vrot.slane %v9376, 4
        %v9413 = vrot.slane %v9377, 4
        %v9414 = vsel %vm4833, %v9412, %v9413
        %v9415 = vrot.slane %v9378, 4
        %v9416 = vrot.slane %v9379, 4
        %v9417 = vsel %vm4833, %v9415, %v9416
        %v9418 = vrot.slane %v9380, 4
        %v9419 = vrot.slane %v9381, 4
        %v9420 = vsel %vm4833, %v9418, %v9419
        %v9421 = vrot.slane %v9382, 4
        %v9422 = vrot.slane %v9383, 4
        %v9423 = vsel %vm4833, %v9421, %v9422
        %s9432 = scalar_lea.vmem %s4, 4
        %v9433 = vld [vmem:[%s9432] sm:$0x1]
        %v9434 = vlaneseq
        %v9435 = vshrl.u32 %v9434, 7
        %v9436 = vsub.s32 0, %v9435
        %v9437 = vrot.slane %v9433, %v9436
        %v9438 = vadd.f32 %v9402, %v9437
        %v9439 = vadd.f32 %v9405, %v9437
        %v9440 = vadd.f32 %v9408, %v9437
        %v9441 = vadd.f32 %v9411, %v9437
        %v9442 = vadd.f32 %v9414, %v9437
        %v9443 = vadd.f32 %v9417, %v9437
        %v9444 = vadd.f32 %v9420, %v9437
        %v9445 = vadd.f32 %v9423, %v9437
        %v9446 = vmul.f32 %v9438, 0.5
        %v9447 = vmul.f32 %v9439, 0.5
        %v9448 = vmul.f32 %v9440, 0.5
        %v9449 = vmul.f32 %v9441, 0.5
        %v9450 = vmul.f32 %v9442, 0.5
        %v9451 = vmul.f32 %v9443, 0.5
        %v9452 = vmul.f32 %v9444, 0.5
        %v9453 = vmul.f32 %v9445, 0.5
        %v9454 = vmul.f32 %v9438, 0.044715
        %v9455 = vmul.f32 %v9439, 0.044715
        %v9456 = vmul.f32 %v9440, 0.044715
        %v9457 = vmul.f32 %v9441, 0.044715
        %v9458 = vmul.f32 %v9442, 0.044715
        %v9459 = vmul.f32 %v9443, 0.044715
        %v9460 = vmul.f32 %v9444, 0.044715
        %v9461 = vmul.f32 %v9445, 0.044715
        %v9462 = vmul.f32 %v9454, %v9438
        %v9463 = vmul.f32 %v9455, %v9439
        %v9464 = vmul.f32 %v9456, %v9440
        %v9465 = vmul.f32 %v9457, %v9441
        %v9466 = vmul.f32 %v9458, %v9442
        %v9467 = vmul.f32 %v9459, %v9443
        %v9468 = vmul.f32 %v9460, %v9444
        %v9469 = vmul.f32 %v9461, %v9445
        %v9470 = vmul.f32 %v9462, %v9438
        %v9471 = vmul.f32 %v9463, %v9439
        %v9472 = vmul.f32 %v9464, %v9440
        %v9473 = vmul.f32 %v9465, %v9441
        %v9474 = vmul.f32 %v9466, %v9442
        %v9475 = vmul.f32 %v9467, %v9443
        %v9476 = vmul.f32 %v9468, %v9444
        %v9477 = vmul.f32 %v9469, %v9445
        %v9478 = vadd.f32 %v9438, %v9470
        %v9479 = vadd.f32 %v9439, %v9471
        %v9480 = vadd.f32 %v9440, %v9472
        %v9481 = vadd.f32 %v9441, %v9473
        %v9482 = vadd.f32 %v9442, %v9474
        %v9483 = vadd.f32 %v9443, %v9475
        %v9484 = vadd.f32 %v9444, %v9476
        %v9485 = vadd.f32 %v9445, %v9477
        %v9486 = vmul.f32 %v9478, 0.7978846
        %v9487 = vmul.f32 %v9479, 0.7978846
        %v9488 = vmul.f32 %v9480, 0.7978846
        %v9489 = vmul.f32 %v9481, 0.7978846
        %v9490 = vmul.f32 %v9482, 0.7978846
        %v9491 = vmul.f32 %v9483, 0.7978846
        %v9492 = vmul.f32 %v9484, 0.7978846
        %v9493 = vmul.f32 %v9485, 0.7978846
        %v9494 = vtanh.pop %v9486
        %v9495 = vtanh.pop %v9487
        %v9496 = vtanh.pop %v9488
        %v9497 = vtanh.pop %v9489
        %v9498 = vtanh.pop %v9490
        %v9499 = vtanh.pop %v9491
        %v9500 = vtanh.pop %v9492
        %v9501 = vtanh.pop %v9493
        %v9502 = vadd.f32 %v9494, 1.0
        %v9503 = vadd.f32 %v9495, 1.0
        %v9504 = vadd.f32 %v9496, 1.0
        %v9505 = vadd.f32 %v9497, 1.0
        %v9506 = vadd.f32 %v9498, 1.0
        %v9507 = vadd.f32 %v9499, 1.0
        %v9508 = vadd.f32 %v9500, 1.0
        %v9509 = vadd.f32 %v9501, 1.0
        %v9510 = vmul.f32 %v9446, %v9502
        %v9511 = vmul.f32 %v9447, %v9503
        %v9512 = vmul.f32 %v9448, %v9504
        %v9513 = vmul.f32 %v9449, %v9505
        %v9514 = vmul.f32 %v9450, %v9506
        %v9515 = vmul.f32 %v9451, %v9507
        %v9516 = vmul.f32 %v9452, %v9508
        %v9517 = vmul.f32 %v9453, %v9509
        %v9518 = vld [vmem:[%s9432 + $0x1] sm:$0x1]
        %v9519 = vlaneseq
        %v9520 = vshrl.u32 %v9519, 7
        %v9521 = vsub.s32 0, %v9520
        %v9522 = vrot.slane %v9518, %v9521
        %v9523 = vmul.f32 %v9522, %v9510
        %v9524 = vmul.f32 %v9522, %v9511
        %v9525 = vmul.f32 %v9522, %v9512
        %v9526 = vmul.f32 %v9522, %v9513
        %v9527 = vmul.f32 %v9522, %v9514
        %v9528 = vmul.f32 %v9522, %v9515
        %v9529 = vmul.f32 %v9522, %v9516
        %v9530 = vmul.f32 %v9522, %v9517
        %v9531 = vld [vmem:[%s9432 + $0x2] sm:$0x1]
        %v9532 = vlaneseq
        %v9533 = vshrl.u32 %v9532, 7
        %v9534 = vsub.s32 0, %v9533
        %v9535 = vrot.slane %v9531, %v9534
        %v9536 = vadd.f32 %v9523, %v9535
        %v9537 = vadd.f32 %v9524, %v9535
        %v9538 = vadd.f32 %v9525, %v9535
        %v9539 = vadd.f32 %v9526, %v9535
        %v9540 = vadd.f32 %v9527, %v9535
        %v9541 = vadd.f32 %v9528, %v9535
        %v9542 = vadd.f32 %v9529, %v9535
        %v9543 = vadd.f32 %v9530, %v9535
        %v9544 = vadd.f32 %v5213, %v9536
        %v9545 = vadd.f32 %v5214, %v9537
        %v9546 = vadd.f32 %v5215, %v9538
        %v9547 = vadd.f32 %v5216, %v9539
        %v9548 = vadd.f32 %v5217, %v9540
        %v9549 = vadd.f32 %v5218, %v9541
        %v9550 = vadd.f32 %v5219, %v9542
        %v9551 = vadd.f32 %v5220, %v9543
        %v9552 = vpack.c.bf16 %v9545, %v9544
        %v9553 = vpack.c.bf16 %v9547, %v9546
        %v9554 = vpack.c.bf16 %v9549, %v9548
        %v9555 = vpack.c.bf16 %v9551, %v9550
        %s9556 = scalar_lea.vmem %s5, 64
        %v9557 = vld [vmem:[%s9556] sm:$0xf]
        %v9558 = vld [vmem:[%s9556 + $0x4] sm:$0xf]
        %v9559 = vld [vmem:[%s9556 + $0x8] sm:$0xf]
        %v9560 = vld [vmem:[%s9556 + $0xc] sm:$0xf]
        %v9561 = vld [vmem:[%s9556 + $0x10] sm:$0xf]
        %v9562 = vld [vmem:[%s9556 + $0x14] sm:$0xf]
        %v9563 = vld [vmem:[%s9556 + $0x18] sm:$0xf]
        %v9564 = vld [vmem:[%s9556 + $0x1c] sm:$0xf]
        %v9565 = vld [vmem:[%s9556 + $0x20] sm:$0xf]
        %v9566 = vld [vmem:[%s9556 + $0x24] sm:$0xf]
        %v9567 = vld [vmem:[%s9556 + $0x28] sm:$0xf]
        %v9568 = vld [vmem:[%s9556 + $0x2c] sm:$0xf]
        %v9569 = vld [vmem:[%s9556 + $0x30] sm:$0xf]
        %v9570 = vld [vmem:[%s9556 + $0x34] sm:$0xf]
        %v9571 = vld [vmem:[%s9556 + $0x38] sm:$0xf]
        %v9572 = vld [vmem:[%s9556 + $0x3c] sm:$0xf]
        %s9573 = scalar_lea.vmem %s6, 4
        %v9574 = vld [vmem:[%s9573] sm:$0x1]
        %v9575 = vlaneseq
        %v9576 = vshrl.u32 %v9575, 7
        %v9577 = vsub.s32 0, %v9576
        %v9578 = vrot.slane %v9574, %v9577
        %v9595 = vunpack.c.l.b16 %v9557
        %v9596 = vunpack.c.l.b16 %v9558
        %v9597 = vunpack.c.l.b16 %v9559
        %v9598 = vunpack.c.l.b16 %v9560
        %v9599 = vunpack.c.l.b16 %v9561
        %v9600 = vunpack.c.l.b16 %v9562
        %v9601 = vunpack.c.l.b16 %v9563
        %v9602 = vunpack.c.l.b16 %v9564
        %v9603 = vunpack.c.l.b16 %v9565
        %v9604 = vunpack.c.l.b16 %v9566
        %v9605 = vunpack.c.l.b16 %v9567
        %v9606 = vunpack.c.l.b16 %v9568
        %v9607 = vunpack.c.l.b16 %v9569
        %v9608 = vunpack.c.l.b16 %v9570
        %v9609 = vunpack.c.l.b16 %v9571
        %v9610 = vunpack.c.l.b16 %v9572
        %v9611 = vpack.c.b16 %v9596, %v9595
        %v9612 = vpack.c.b16 %v9598, %v9597
        %v9613 = vpack.c.b16 %v9600, %v9599
        %v9614 = vpack.c.b16 %v9602, %v9601
        %v9615 = vpack.c.b16 %v9604, %v9603
        %v9616 = vpack.c.b16 %v9606, %v9605
        %v9617 = vpack.c.b16 %v9608, %v9607
        %v9618 = vpack.c.b16 %v9610, %v9609
        %9627 = vmatprep.subr.bf16.mxu0 0
        %9628 = vmatpush1.bf16.msra.mxu0 %v9611
        %9629 = vmatprep.subr.bf16.mxu0 0
        %9630 = vmatpush1.bf16.msra.mxu0 %v9612
        %9631 = vmatprep.subr.bf16.mxu0 0
        %9632 = vmatpush1.bf16.msra.mxu0 %v9613
        %9633 = vmatprep.subr.bf16.mxu0 0
        %9634 = vmatpush1.bf16.msra.mxu0 %v9614
        %9635 = vmatprep.subr.bf16.mxu0 0
        %9636 = vmatpush1.bf16.msra.mxu0 %v9615
        %9637 = vmatprep.subr.bf16.mxu0 0
        %9638 = vmatpush1.bf16.msra.mxu0 %v9616
        %9639 = vmatprep.subr.bf16.mxu0 0
        %9640 = vmatpush1.bf16.msra.mxu0 %v9617
        %9641 = vmatprep.subr.bf16.mxu0 0
        %9642 = vmatpush1.bf16.msra.mxu0 %v9618
        %9643 = vmatprep.subr.bf16.mxu0 0
        %9644 = vmatpush1.bf16.msra.mxu0 0
        %9645 = vmatprep.subr.bf16.mxu0 0
        %9646 = vmatpush1.bf16.msra.mxu0 0
        %9647 = vmatprep.subr.bf16.mxu0 0
        %9648 = vmatpush1.bf16.msra.mxu0 0
        %9649 = vmatprep.subr.bf16.mxu0 0
        %9650 = vmatpush1.bf16.msra.mxu0 0
        %9651 = vmatprep.subr.bf16.mxu0 0
        %9652 = vmatpush1.bf16.msra.mxu0 0
        %9653 = vmatprep.subr.bf16.mxu0 0
        %9654 = vmatpush1.bf16.msra.mxu0 0
        %9655 = vmatprep.subr.bf16.mxu0 0
        %9656 = vmatpush1.bf16.msra.mxu0 0
        %9657 = vmatprep.subr.bf16.mxu0 0
        %9658 = vmatpush1.bf16.msra.mxu0 0
        %9659 = vmatprep.mubr.bf16.mxu0 0
        %9660 = vmatmul.mubr.bf16.gmra.mrb[0].mxu0 %v9552
        %v9661 = vpop.f32.mrb[0].mxu0
        %v9662 = vadd.f32 %v9578, %v9661
        %v9663 = vpop.f32.mrb[0].mxu0
        %v9664 = vpop.f32.mrb[0].mxu0
        %v9665 = vadd.f32 %v9578, %v9664
        %v9666 = vpop.f32.mrb[0].mxu0
        %9667 = vmatprep.mubr.bf16.mxu0 0
        %9668 = vmatmul.mubr.bf16.gmra.mrb[0].mxu0 %v9553
        %v9669 = vpop.f32.mrb[0].mxu0
        %v9670 = vadd.f32 %v9578, %v9669
        %v9671 = vpop.f32.mrb[0].mxu0
        %v9672 = vpop.f32.mrb[0].mxu0
        %v9673 = vadd.f32 %v9578, %v9672
        %v9674 = vpop.f32.mrb[0].mxu0
        %9675 = vmatprep.mubr.bf16.mxu0 0
        %9676 = vmatmul.mubr.bf16.gmra.mrb[0].mxu0 %v9554
        %v9677 = vpop.f32.mrb[0].mxu0
        %v9678 = vadd.f32 %v9578, %v9677
        %v9679 = vpop.f32.mrb[0].mxu0
        %v9680 = vpop.f32.mrb[0].mxu0
        %v9681 = vadd.f32 %v9578, %v9680
        %v9682 = vpop.f32.mrb[0].mxu0
        %9683 = vmatprep.mubr.bf16.mxu0 0
        %9684 = vmatmul.mubr.bf16.gmra.mrb[0].mxu0 %v9555
        %v9685 = vpop.f32.mrb[0].mxu0
        %v9686 = vadd.f32 %v9578, %v9685
        %v9687 = vpop.f32.mrb[0].mxu0
        %v9688 = vpop.f32.mrb[0].mxu0
        %v9689 = vadd.f32 %v9578, %v9688
        %v9690 = vpop.f32.mrb[0].mxu0
        %9691 = vdwg.mxu0
        %v9692 = vmul.f32 %v9662, 0.5
        %v9693 = vmul.f32 %v9665, 0.5
        %v9694 = vmul.f32 %v9670, 0.5
        %v9695 = vmul.f32 %v9673, 0.5
        %v9696 = vmul.f32 %v9678, 0.5
        %v9697 = vmul.f32 %v9681, 0.5
        %v9698 = vmul.f32 %v9686, 0.5
        %v9699 = vmul.f32 %v9689, 0.5
        %v9700 = vmul.f32 %v9662, 0.044715
        %v9701 = vmul.f32 %v9665, 0.044715
        %v9702 = vmul.f32 %v9670, 0.044715
        %v9703 = vmul.f32 %v9673, 0.044715
        %v9704 = vmul.f32 %v9678, 0.044715
        %v9705 = vmul.f32 %v9681, 0.044715
        %v9706 = vmul.f32 %v9686, 0.044715
        %v9707 = vmul.f32 %v9689, 0.044715
        %v9708 = vmul.f32 %v9700, %v9662
        %v9709 = vmul.f32 %v9701, %v9665
        %v9710 = vmul.f32 %v9702, %v9670
        %v9711 = vmul.f32 %v9703, %v9673
        %v9712 = vmul.f32 %v9704, %v9678
        %v9713 = vmul.f32 %v9705, %v9681
        %v9714 = vmul.f32 %v9706, %v9686
        %v9715 = vmul.f32 %v9707, %v9689
        %v9716 = vmul.f32 %v9708, %v9662
        %v9717 = vmul.f32 %v9709, %v9665
        %v9718 = vmul.f32 %v9710, %v9670
        %v9719 = vmul.f32 %v9711, %v9673
        %v9720 = vmul.f32 %v9712, %v9678
        %v9721 = vmul.f32 %v9713, %v9681
        %v9722 = vmul.f32 %v9714, %v9686
        %v9723 = vmul.f32 %v9715, %v9689
        %v9724 = vadd.f32 %v9662, %v9716
        %v9725 = vadd.f32 %v9665, %v9717
        %v9726 = vadd.f32 %v9670, %v9718
        %v9727 = vadd.f32 %v9673, %v9719
        %v9728 = vadd.f32 %v9678, %v9720
        %v9729 = vadd.f32 %v9681, %v9721
        %v9730 = vadd.f32 %v9686, %v9722
        %v9731 = vadd.f32 %v9689, %v9723
        %v9732 = vmul.f32 %v9724, 0.7978846
        %v9733 = vmul.f32 %v9725, 0.7978846
        %v9734 = vmul.f32 %v9726, 0.7978846
        %v9735 = vmul.f32 %v9727, 0.7978846
        %v9736 = vmul.f32 %v9728, 0.7978846
        %v9737 = vmul.f32 %v9729, 0.7978846
        %v9738 = vmul.f32 %v9730, 0.7978846
        %v9739 = vmul.f32 %v9731, 0.7978846
        %v9740 = vtanh.pop %v9732
        %v9741 = vtanh.pop %v9733
        %v9742 = vtanh.pop %v9734
        %v9743 = vtanh.pop %v9735
        %v9744 = vtanh.pop %v9736
        %v9745 = vtanh.pop %v9737
        %v9746 = vtanh.pop %v9738
        %v9747 = vtanh.pop %v9739
        %v9748 = vadd.f32 %v9740, 1.0
        %v9749 = vadd.f32 %v9741, 1.0
        %v9750 = vadd.f32 %v9742, 1.0
        %v9751 = vadd.f32 %v9743, 1.0
        %v9752 = vadd.f32 %v9744, 1.0
        %v9753 = vadd.f32 %v9745, 1.0
        %v9754 = vadd.f32 %v9746, 1.0
        %v9755 = vadd.f32 %v9747, 1.0
        %v9756 = vmul.f32 %v9692, %v9748
        %v9757 = vmul.f32 %v9693, %v9749
        %v9758 = vmul.f32 %v9694, %v9750
        %v9759 = vmul.f32 %v9695, %v9751
        %v9760 = vmul.f32 %v9696, %v9752
        %v9761 = vmul.f32 %v9697, %v9753
        %v9762 = vmul.f32 %v9698, %v9754
        %v9763 = vmul.f32 %v9699, %v9755
        %v9764 = vld [vmem:[%s9573 + $0x1] sm:$0x1]
        %v9765 = vlaneseq
        %v9766 = vshrl.u32 %v9765, 7
        %v9767 = vsub.s32 0, %v9766
        %v9768 = vrot.slane %v9764, %v9767
        %v9769 = vmul.f32 %v9768, %v9756
        %v9770 = vmul.f32 %v9768, %v9757
        %v9771 = vmul.f32 %v9768, %v9758
        %v9772 = vmul.f32 %v9768, %v9759
        %v9773 = vmul.f32 %v9768, %v9760
        %v9774 = vmul.f32 %v9768, %v9761
        %v9775 = vmul.f32 %v9768, %v9762
        %v9776 = vmul.f32 %v9768, %v9763
        %v9777 = vld [vmem:[%s9573 + $0x2] sm:$0x1]
        %v9778 = vlaneseq
        %v9779 = vshrl.u32 %v9778, 7
        %v9780 = vsub.s32 0, %v9779
        %v9781 = vrot.slane %v9777, %v9780
        %v9782 = vadd.f32 %v9769, %v9781
        %v9783 = vadd.f32 %v9770, %v9781
        %v9784 = vadd.f32 %v9771, %v9781
        %v9785 = vadd.f32 %v9772, %v9781
        %v9786 = vadd.f32 %v9773, %v9781
        %v9787 = vadd.f32 %v9774, %v9781
        %v9788 = vadd.f32 %v9775, %v9781
        %v9789 = vadd.f32 %v9776, %v9781
        %v9790 = vadd.f32 %v9782, %v9783
        %v9791 = vadd.f32 %v9790, %v9784
        %v9792 = vadd.f32 %v9791, %v9785
        %v9793 = vadd.f32 %v9792, %v9786
        %v9794 = vadd.f32 %v9793, %v9787
        %v9795 = vadd.f32 %v9794, %v9788
        %v9796 = vadd.f32 %v9795, %v9789
        %v9797 = vrot.slane %v9796, 4
        %v9798 = vadd.f32 %v9796, %v9797
        %v9799 = vrot.slane %v9798, 2
        %v9800 = vadd.f32 %v9798, %v9799
        %v9801 = vrot.slane %v9800, 1
        %v9802 = vadd.f32 %v9800, %v9801
        %v9803 = vrcp.pop 64.0
        %v9804 = vmul.f32 %v9802, %v9803
        %v9805 = vpack.c.bf16 %v9804, %v9804
        %v9806 = vld [vmem:[%s7] sm:$0xf]
        %v9807 = vld [vmem:[%s7 + $0x4] sm:$0xf]
        %v9808 = vld [vmem:[%s7 + $0x8] sm:$0xf]
        %v9809 = vld [vmem:[%s7 + $0xc] sm:$0xf]
        %v9810 = vld [vmem:[%s7 + $0x10] sm:$0xf]
        %v9811 = vld [vmem:[%s7 + $0x14] sm:$0xf]
        %v9812 = vld [vmem:[%s7 + $0x18] sm:$0xf]
        %v9813 = vld [vmem:[%s7 + $0x1c] sm:$0xf]
        %v9814 = vld [vmem:[%s7 + $0x20] sm:$0xf]
        %v9815 = vld [vmem:[%s7 + $0x24] sm:$0xf]
        %v9816 = vld [vmem:[%s7 + $0x28] sm:$0xf]
        %v9817 = vld [vmem:[%s7 + $0x2c] sm:$0xf]
        %v9818 = vld [vmem:[%s7 + $0x30] sm:$0xf]
        %v9819 = vld [vmem:[%s7 + $0x34] sm:$0xf]
        %v9820 = vld [vmem:[%s7 + $0x38] sm:$0xf]
        %v9821 = vld [vmem:[%s7 + $0x3c] sm:$0xf]
        %v9822 = vld [vmem:[%s8] sm:$0x1]
        %v9839 = vunpack.c.l.b16 %v9806
        %v9840 = vunpack.c.l.b16 %v9807
        %v9841 = vunpack.c.l.b16 %v9808
        %v9842 = vunpack.c.l.b16 %v9809
        %v9843 = vunpack.c.l.b16 %v9810
        %v9844 = vunpack.c.l.b16 %v9811
        %v9845 = vunpack.c.l.b16 %v9812
        %v9846 = vunpack.c.l.b16 %v9813
        %v9847 = vunpack.c.l.b16 %v9814
        %v9848 = vunpack.c.l.b16 %v9815
        %v9849 = vunpack.c.l.b16 %v9816
        %v9850 = vunpack.c.l.b16 %v9817
        %v9851 = vunpack.c.l.b16 %v9818
        %v9852 = vunpack.c.l.b16 %v9819
        %v9853 = vunpack.c.l.b16 %v9820
        %v9854 = vunpack.c.l.b16 %v9821
        %v9855 = vpack.c.b16 %v9840, %v9839
        %v9856 = vpack.c.b16 %v9842, %v9841
        %v9857 = vpack.c.b16 %v9844, %v9843
        %v9858 = vpack.c.b16 %v9846, %v9845
        %v9859 = vpack.c.b16 %v9848, %v9847
        %v9860 = vpack.c.b16 %v9850, %v9849
        %v9861 = vpack.c.b16 %v9852, %v9851
        %v9862 = vpack.c.b16 %v9854, %v9853
        %9871 = vmatprep.subr.bf16.mxu0 0
        %9872 = vmatpush1.bf16.msra.mxu0 %v9855
        %9873 = vmatprep.subr.bf16.mxu0 0
        %9874 = vmatpush1.bf16.msra.mxu0 %v9856
        %9875 = vmatprep.subr.bf16.mxu0 0
        %9876 = vmatpush1.bf16.msra.mxu0 %v9857
        %9877 = vmatprep.subr.bf16.mxu0 0
        %9878 = vmatpush1.bf16.msra.mxu0 %v9858
        %9879 = vmatprep.subr.bf16.mxu0 0
        %9880 = vmatpush1.bf16.msra.mxu0 %v9859
        %9881 = vmatprep.subr.bf16.mxu0 0
        %9882 = vmatpush1.bf16.msra.mxu0 %v9860
        %9883 = vmatprep.subr.bf16.mxu0 0
        %9884 = vmatpush1.bf16.msra.mxu0 %v9861
        %9885 = vmatprep.subr.bf16.mxu0 0
        %9886 = vmatpush1.bf16.msra.mxu0 %v9862
        %9887 = vmatprep.subr.bf16.mxu0 0
        %9888 = vmatpush1.bf16.msra.mxu0 0
        %9889 = vmatprep.subr.bf16.mxu0 0
        %9890 = vmatpush1.bf16.msra.mxu0 0
        %9891 = vmatprep.subr.bf16.mxu0 0
        %9892 = vmatpush1.bf16.msra.mxu0 0
        %9893 = vmatprep.subr.bf16.mxu0 0
        %9894 = vmatpush1.bf16.msra.mxu0 0
        %9895 = vmatprep.subr.bf16.mxu0 0
        %9896 = vmatpush1.bf16.msra.mxu0 0
        %9897 = vmatprep.subr.bf16.mxu0 0
        %9898 = vmatpush1.bf16.msra.mxu0 0
        %9899 = vmatprep.subr.bf16.mxu0 0
        %9900 = vmatpush1.bf16.msra.mxu0 0
        %9901 = vmatprep.subr.bf16.mxu0 0
        %9902 = vmatpush1.bf16.msra.mxu0 0
        %9903 = vmatprep.mubr.bf16.mxu0 0
        %9904 = vmatmul.mubr.bf16.gmra.mrb[0].mxu0 %v9805
        %v9905 = vpop.f32.mrb[0].mxu0
        %v9906 = vadd.f32 %v9822, %v9905
        %v9907 = vpop.f32.mrb[0].mxu0
        %v9908 = vpop.f32.mrb[0].mxu0
        %v9909 = vpop.f32.mrb[0].mxu0
        %9910 = vdwg.mxu0
        %v9911 = vmul.f32 %v9906, 0.5
        %v9912 = vmul.f32 %v9906, 0.044715
        %v9913 = vmul.f32 %v9912, %v9906
        %v9914 = vmul.f32 %v9913, %v9906
        %v9915 = vadd.f32 %v9906, %v9914
        %v9916 = vmul.f32 %v9915, 0.7978846
        %v9917 = vtanh.pop %v9916
        %v9918 = vadd.f32 %v9917, 1.0
        %v9919 = vmul.f32 %v9911, %v9918
        %v9920 = vpack.c.bf16 %v9919, %v9919
        %v9921 = vld [vmem:[%s9] sm:$0xf]
        %v9922 = vld [vmem:[%s9 + $0x4] sm:$0xf]
        %v9923 = vld [vmem:[%s9 + $0x8] sm:$0xf]
        %v9924 = vld [vmem:[%s9 + $0xc] sm:$0xf]
        %v9925 = vld [vmem:[%s9 + $0x10] sm:$0xf]
        %v9926 = vld [vmem:[%s9 + $0x14] sm:$0xf]
        %v9927 = vld [vmem:[%s9 + $0x18] sm:$0xf]
        %v9928 = vld [vmem:[%s9 + $0x1c] sm:$0xf]
        %v9929 = vld [vmem:[%s9 + $0x20] sm:$0xf]
        %v9930 = vld [vmem:[%s9 + $0x24] sm:$0xf]
        %v9931 = vld [vmem:[%s9 + $0x28] sm:$0xf]
        %v9932 = vld [vmem:[%s9 + $0x2c] sm:$0xf]
        %v9933 = vld [vmem:[%s9 + $0x30] sm:$0xf]
        %v9934 = vld [vmem:[%s9 + $0x34] sm:$0xf]
        %v9935 = vld [vmem:[%s9 + $0x38] sm:$0xf]
        %v9936 = vld [vmem:[%s9 + $0x3c] sm:$0xf]
        %v9937 = vld [vmem:[%s10] sm:$0x1]
        %v9954 = vunpack.c.l.b16 %v9921
        %v9955 = vunpack.c.l.b16 %v9922
        %v9956 = vunpack.c.l.b16 %v9923
        %v9957 = vunpack.c.l.b16 %v9924
        %v9958 = vunpack.c.l.b16 %v9925
        %v9959 = vunpack.c.l.b16 %v9926
        %v9960 = vunpack.c.l.b16 %v9927
        %v9961 = vunpack.c.l.b16 %v9928
        %v9962 = vunpack.c.l.b16 %v9929
        %v9963 = vunpack.c.l.b16 %v9930
        %v9964 = vunpack.c.l.b16 %v9931
        %v9965 = vunpack.c.l.b16 %v9932
        %v9966 = vunpack.c.l.b16 %v9933
        %v9967 = vunpack.c.l.b16 %v9934
        %v9968 = vunpack.c.l.b16 %v9935
        %v9969 = vunpack.c.l.b16 %v9936
        %v9970 = vpack.c.b16 %v9955, %v9954
        %v9971 = vpack.c.b16 %v9957, %v9956
        %v9972 = vpack.c.b16 %v9959, %v9958
        %v9973 = vpack.c.b16 %v9961, %v9960
        %v9974 = vpack.c.b16 %v9963, %v9962
        %v9975 = vpack.c.b16 %v9965, %v9964
        %v9976 = vpack.c.b16 %v9967, %v9966
        %v9977 = vpack.c.b16 %v9969, %v9968
        %9986 = vmatprep.subr.bf16.mxu0 0
        %9987 = vmatpush1.bf16.msra.mxu0 %v9970
        %9988 = vmatprep.subr.bf16.mxu0 0
        %9989 = vmatpush1.bf16.msra.mxu0 %v9971
        %9990 = vmatprep.subr.bf16.mxu0 0
        %9991 = vmatpush1.bf16.msra.mxu0 %v9972
        %9992 = vmatprep.subr.bf16.mxu0 0
        %9993 = vmatpush1.bf16.msra.mxu0 %v9973
        %9994 = vmatprep.subr.bf16.mxu0 0
        %9995 = vmatpush1.bf16.msra.mxu0 %v9974
        %9996 = vmatprep.subr.bf16.mxu0 0
        %9997 = vmatpush1.bf16.msra.mxu0 %v9975
        %9998 = vmatprep.subr.bf16.mxu0 0
        %9999 = vmatpush1.bf16.msra.mxu0 %v9976
        %10000 = vmatprep.subr.bf16.mxu0 0
        %10001 = vmatpush1.bf16.msra.mxu0 %v9977
        %10002 = vmatprep.subr.bf16.mxu0 0
        %10003 = vmatpush1.bf16.msra.mxu0 0
        %10004 = vmatprep.subr.bf16.mxu0 0
        %10005 = vmatpush1.bf16.msra.mxu0 0
        %10006 = vmatprep.subr.bf16.mxu0 0
        %10007 = vmatpush1.bf16.msra.mxu0 0
        %10008 = vmatprep.subr.bf16.mxu0 0
        %10009 = vmatpush1.bf16.msra.mxu0 0
        %10010 = vmatprep.subr.bf16.mxu0 0
        %10011 = vmatpush1.bf16.msra.mxu0 0
        %10012 = vmatprep.subr.bf16.mxu0 0
        %10013 = vmatpush1.bf16.msra.mxu0 0
        %10014 = vmatprep.subr.bf16.mxu0 0
        %10015 = vmatpush1.bf16.msra.mxu0 0
        %10016 = vmatprep.subr.bf16.mxu0 0
        %10017 = vmatpush1.bf16.msra.mxu0 0
        %10018 = vmatprep.mubr.bf16.mxu0 0
        %10019 = vmatmul.mubr.bf16.gmra.mrb[0].mxu0 %v9920
        %v10020 = vpop.f32.mrb[0].mxu0
        %v10021 = vadd.f32 %v9937, %v10020
        %v10022 = vpop.f32.mrb[0].mxu0
        %v10023 = vpop.f32.mrb[0].mxu0
        %v10024 = vpop.f32.mrb[0].mxu0
        %10025 = vdwg.mxu0
        %10026 = vst [vmem:[%s378] sm:$0x1] %v10021
        %s10027 = sand.u32 %s269, 1
        %s10028 = scalar_lea.sflag [#allocation3], %s10027
        %s10029 = sand.u32 %s269, 1
        %s10030 = scalar_lea.vmem [#allocation2], %s10029
        // Predicated region
        $region65: #{_lambda_.1} parent=63 // pred_check
          %p10031 = pneg %p279
        $region66: #{_lambda_.1} parent=63 // pred_check_branch
          %10033 = sbr.rel (%p10031) target = $region68
        $region67: #{_lambda_.1} parent=63 // pred_region
          %s10035 = ssub.s32 16, 16
          %10036 = vsyncadd %s10028, %s10035
          %s10037 = smul.addr %s25, 16
          %s10038 = scalar_lea.hbm %s11, %s10037
          %s10040 = sshll.u32 %s10030, 4
          %s10041 = int_to_ptr.vmem [resolvable:$true] %s10040
          %10043 = dma.vmem_to_hbm [thread:$0]  %s10041, 16, %s10038, %s10028
        $region68: #{_lambda_.1} parent=63 // pred_fallthru
          _
      $region64: #{_lambda_.1} parent=5 // pred_fallthru
        _
      %p10044 = scmp.le.s32.totalorder 2, %s20
      // Predicated region
      $region69: #{_lambda_.1} parent=5 // pred_check
        %p10045 = pneg %p10044
      $region70: #{_lambda_.1} parent=5 // pred_check_branch
        %10047 = sbr.rel (%p10045) target = $region72
      $region71: #{_lambda_.1} parent=5 // pred_region
        %s10048 = ssub.s32 %s20, 2
        // Predicated region
        $region73: #{_lambda_.1} parent=71 // pred_check
          %p10049 = pneg %p285
        $region74: #{_lambda_.1} parent=71 // pred_check_branch
          %10051 = sbr.rel (%p10049) target = $region76
        $region75: #{_lambda_.1} parent=71 // pred_region
          %s10052 = sand.u32 %s270, 1
          %s10053 = scalar_lea.sflag [#allocation3], %s10052
          %s10054 = sand.u32 %s270, 1
          %s10055 = scalar_lea.vmem [#allocation2], %s10054
          %10056 = dma.done %s10053, 16
        $region76: #{_lambda_.1} parent=71 // pred_fallthru
          _
      $region72: #{_lambda_.1} parent=5 // pred_fallthru
        _
    $region6: #{_lambda_.1} parent=1 // loop_footer
      %s24 = sadd.s32 1, %s20
    $region7: #{_lambda_.1} parent=1 // loop_footer_branch
      %19 = sbr.rel target = $region3
    $region8: #{_lambda_.1} parent=1 // loop_exit
      _
    %10057 = vsyncpa [#allocation3], 1
    %s10058 = scalar_lea.sflag [#allocation3], 1
    %10059 = vsyncpa %s10058, 1

</llo_original>
